<compile_context>
chip_gen: v6e
topology: v6e:2x2x1
jax: 0.10.0
libtpu: 0.0.40
codegen_flags: <defaults>
</compile_context>

<pallas_src>
import functools
import math

import jax
import jax.numpy as jnp
from jax import lax
from jax.experimental import pallas as pl
from jax.experimental.pallas import tpu as pltpu

EPS = 1e-5          # BatchNorm2d eps
MAX_GROUP = 16      # max (batch, vertex) pairs handled per grid step


# ----------------------------------------------------------------------------
# Fused kernel: QKV projection + multi-head causal attention + output FC.
# All affines fold conv-bias + eval-mode BN; Q's affine also folds 1/sqrt(d)
# (valid because ReLU(x)/c == ReLU(x/c) for c > 0).
# ----------------------------------------------------------------------------
def _fused_kernel(x_ref, t_ref, wx_ref, wt_ref, sc_ref, sh_ref,
                  wo_ref, so_ref, ho_ref, o_ref, *, group, head_width, mask):
    gt, D = x_ref.shape                     # gt = group * T rows
    T = gt // group
    nheads = D // head_width

    x = x_ref[...]                          # [G*T, D]
    t = t_ref[...]                          # [G*T, D]

    def project(i):
        # 1x1 conv on [X ; TPE] (two halves, concat never materialized)
        y = jnp.dot(x, wx_ref[i], preferred_element_type=jnp.float32)
        y = y + jnp.dot(t, wt_ref[i], preferred_element_type=jnp.float32)
        y = jnp.maximum(y * sc_ref[i] + sh_ref[i], 0.0)
        return y.reshape(group, T, D)       # leading/sublane split (T = 8k)

    q = project(0)                          # 1/sqrt(d) already folded into Q
    k = project(1)
    v = project(2)

    if mask:
        row = lax.broadcasted_iota(jnp.int32, (T, T), 0)
        col = lax.broadcasted_iota(jnp.int32, (T, T), 1)
        keep = (col <= row)[None]           # [1, T, T], shared by groups/heads
        neg = jnp.float32(-2 ** 15 + 1)     # torch sentinel, kept for parity

    heads = []
    for h in range(nheads):
        lo = h * head_width
        qh = q[..., lo:lo + head_width]     # [G, T, Kh]
        kh = k[..., lo:lo + head_width]
        vh = v[..., lo:lo + head_width]
        s = jnp.einsum('gqc,gkc->gqk', qh, kh,
                       preferred_element_type=jnp.float32)      # [G, T, T]
        if mask:
            s = jnp.where(keep, s, neg)
        s = s - jnp.max(s, axis=-1, keepdims=True)
        e = jnp.exp(s)
        p = e / jnp.sum(e, axis=-1, keepdims=True)
        heads.append(jnp.einsum('gqk,gkc->gqc', p, vh,
                                preferred_element_type=jnp.float32))
    att = jnp.concatenate(heads, axis=-1).reshape(gt, D)        # [G*T, D]

    # output FC: matmul + folded bias/BN affine + ReLU, dense 2D store
    y = jnp.dot(att, wo_ref[...], preferred_element_type=jnp.float32)
    o_ref[...] = jnp.maximum(y * so_ref[...] + ho_ref[...], 0.0)


# ----------------------------------------------------------------------------
# Module forward (glue in plain JAX)
# ----------------------------------------------------------------------------
def _fold_affine(fc_params, extra_scale=1.0):
    """Fold conv bias + eval-mode BatchNorm (+ optional extra scale) into a
    (scale, shift) pair applied after the matmul and before the ReLU."""
    w, b, gamma, beta, mean, var = fc_params
    s = gamma / jnp.sqrt(var + EPS)
    return w, s * extra_scale, ((b - mean) * s + beta) * extra_scale


def _pick_group(bn, cap=MAX_GROUP):
    for g in range(min(bn, cap), 0, -1):
        if bn % g == 0:
            return g
    return 1


def temporal_attention(X, TPE, params, K, d, mask=True):
    B, T, N, D = X.shape
    assert D % K == 0
    BN = B * N
    M = BN * T
    G = _pick_group(BN)

    # Fold BN/bias into affines; fold the 1/sqrt(d) score scale into Q.
    wq, sq, hq = _fold_affine(params["q"], 1.0 / math.sqrt(d))
    wk, sk, hk = _fold_affine(params["k"])
    wv, sv, hv = _fold_affine(params["v"])
    wo, so, ho = _fold_affine(params["out"])

    # Split each [2D, D] weight into its X half and TPE half so the channel
    # concat torch.cat((X, TPE), -1) never materializes in HBM.
    wx3 = jnp.stack([wq[:D], wk[:D], wv[:D]])            # [3, D, D]
    wt3 = jnp.stack([wq[D:], wk[D:], wv[D:]])            # [3, D, D]
    sc3 = jnp.stack([sq, sk, sv]).reshape(3, 1, D)
    sh3 = jnp.stack([hq, hk, hv]).reshape(3, 1, D)
    so2 = so.reshape(1, D)
    ho2 = ho.reshape(1, D)

    # Pipeline runs in (B, N, T) row order: two input transposes, one output
    # transpose, no other XLA glue.
    x2 = jnp.transpose(X, (0, 2, 1, 3)).reshape(M, D)
    t2 = jnp.transpose(TPE, (0, 2, 1, 3)).reshape(M, D)

    row = pl.BlockSpec((G * T, D), lambda i: (i, 0))
    rep = lambda a: pl.BlockSpec(a.shape, lambda i: (0,) * a.ndim)

    out = pl.pallas_call(
        functools.partial(_fused_kernel, group=G, head_width=K, mask=mask),
        out_shape=jax.ShapeDtypeStruct((M, D), jnp.float32),
        grid=(BN // G,),
        in_specs=[row, row, rep(wx3), rep(wt3), rep(sc3), rep(sh3),
                  rep(wo), rep(so2), rep(ho2)],
        out_specs=row,
        compiler_params=pltpu.CompilerParams(
            dimension_semantics=("parallel",)),
    )(x2, t2, wx3, wt3, sc3, sh3, wo, so2, ho2)

    return jnp.transpose(out.reshape(B, N, T, D), (0, 2, 1, 3))   # [B,T,N,D]


# ----------------------------------------------------------------------------
# Deterministic parameter init (matches the module's __init__ shapes)
# ----------------------------------------------------------------------------
def make_fc_params(key, cin, cout):
    bound = math.sqrt(6.0 / (cin + cout))            # xavier_uniform, 1x1 conv
    w = jax.random.uniform(key, (cin, cout), jnp.float32, -bound, bound)
    b = jnp.zeros((cout,), jnp.float32)              # torch.nn.init.zeros_
    gamma = jnp.ones((cout,), jnp.float32)           # BN weight
    beta = jnp.zeros((cout,), jnp.float32)           # BN bias
    mean = jnp.zeros((cout,), jnp.float32)           # BN running_mean
    var = jnp.ones((cout,), jnp.float32)             # BN running_var
    # TODO(synk): train-mode BatchNorm (batch statistics + running-stat update)
    # is not reproduced; eval-mode BN is folded into the matmul instead.
    return (w, b, gamma, beta, mean, var)


# ----------------------------------------------------------------------------
# Pure-JAX reference (mirrors the PyTorch forward for the correctness check)
# ----------------------------------------------------------------------------
def reference(X, TPE, params, K, d, mask=True):
    def fc_ref(x, p):
        w, b, gamma, beta, mean, var = p
        y = x @ w + b
        y = (y - mean) / jnp.sqrt(var + EPS) * gamma + beta
        return jnp.maximum(y, 0.0)

    Xc = jnp.concatenate([X, TPE], axis=-1)
    q = fc_ref(Xc, params["q"])
    k = fc_ref(Xc, params["k"])
    v = fc_ref(Xc, params["v"])
    nheads = q.shape[-1] // K
    qh = jnp.concatenate(jnp.split(q, nheads, axis=-1), axis=0)
    kh = jnp.concatenate(jnp.split(k, nheads, axis=-1), axis=0)
    vh = jnp.concatenate(jnp.split(v, nheads, axis=-1), axis=0)
    qh = jnp.transpose(qh, (0, 2, 1, 3))
    kh = jnp.transpose(kh, (0, 2, 3, 1))
    vh = jnp.transpose(vh, (0, 2, 1, 3))
    att = jnp.matmul(qh, kh) / (d ** 0.5)
    if mask:
        T = X.shape[1]
        tril = jnp.tril(jnp.ones((T, T), bool))[None, None]
        att = jnp.where(tril, att, jnp.float32(-2 ** 15 + 1))
    att = jax.nn.softmax(att, axis=-1)
    out = jnp.matmul(att, vh)
    out = jnp.transpose(out, (0, 2, 1, 3))
    out = jnp.concatenate(jnp.split(out, nheads, axis=0), axis=-1)
    return fc_ref(out, params["out"])


if __name__ == "__main__":
    key = jax.random.PRNGKey(0)
    K, d = 4, 4                 # K == d (the module's only valid configuration)
    D = K * d                   # 16
    B, T, N = 2, 8, 4           # batch, num_step, num_vertex

    k1, k2, k3, k4, k5, k6 = jax.random.split(key, 6)
    X = jax.random.normal(k1, (B, T, N, D), jnp.float32)
    TPE = jax.random.normal(k2, (B, T, N, D), jnp.float32)
    params = {
        "q": make_fc_params(k3, 2 * D, D),
        "k": make_fc_params(k4, 2 * D, D),
        "v": make_fc_params(k5, 2 * D, D),
        "out": make_fc_params(k6, D, D),
    }

    fwd = jax.jit(functools.partial(temporal_attention, K=K, d=d, mask=True))
    out = jax.block_until_ready(fwd(X, TPE, params))

    ref = reference(X, TPE, params, K, d, mask=True)
    assert out.shape == (B, T, N, D), out.shape
    err = float(jnp.max(jnp.abs(out - ref)))
    assert jnp.allclose(out, ref, atol=1e-4, rtol=1e-4), err
    print("KERNEL_OK")
</pallas_src>

<mosaic_0001>
module attributes {stable_mosaic.version = 11 : i64} {
  func.func @_fused_kernel(%arg0: i32, %arg1: memref<64x16xf32, #tpu.memory_space<vmem>>, %arg2: memref<64x16xf32, #tpu.memory_space<vmem>>, %arg3: memref<3x16x16xf32, #tpu.memory_space<vmem>>, %arg4: memref<3x16x16xf32, #tpu.memory_space<vmem>>, %arg5: memref<3x1x16xf32, #tpu.memory_space<vmem>>, %arg6: memref<3x1x16xf32, #tpu.memory_space<vmem>>, %arg7: memref<16x16xf32, #tpu.memory_space<vmem>>, %arg8: memref<1x16xf32, #tpu.memory_space<vmem>>, %arg9: memref<1x16xf32, #tpu.memory_space<vmem>>, %arg10: memref<64x16xf32, #tpu.memory_space<vmem>>) attributes {dimension_semantics = [#tpu.dimension_semantics<parallel>], iteration_bounds = array<i64: 1>, scalar_prefetch = 0 : i64, scratch_operands = 0 : i64, tpu.core_type = #tpu.core_type<tc>, window_params = [{transform_indices = @transform_0, window_bounds = array<i64: 64, 16>}, {transform_indices = @transform_1, window_bounds = array<i64: 64, 16>}, {pipeline_mode = #tpu.pipeline_mode<synchronous>, transform_indices = @transform_2, window_bounds = array<i64: 3, 16, 16>}, {pipeline_mode = #tpu.pipeline_mode<synchronous>, transform_indices = @transform_3, window_bounds = array<i64: 3, 16, 16>}, {pipeline_mode = #tpu.pipeline_mode<synchronous>, transform_indices = @transform_4, window_bounds = array<i64: 3, 1, 16>}, {pipeline_mode = #tpu.pipeline_mode<synchronous>, transform_indices = @transform_5, window_bounds = array<i64: 3, 1, 16>}, {pipeline_mode = #tpu.pipeline_mode<synchronous>, transform_indices = @transform_6, window_bounds = array<i64: 16, 16>}, {pipeline_mode = #tpu.pipeline_mode<synchronous>, transform_indices = @transform_7, window_bounds = array<i64: 1, 16>}, {pipeline_mode = #tpu.pipeline_mode<synchronous>, transform_indices = @transform_8, window_bounds = array<i64: 1, 16>}, {transform_indices = @transform_9, window_bounds = array<i64: 64, 16>}]} {
    %c0 = arith.constant 0 : index
    %c0_0 = arith.constant 0 : index
    %0 = vector.load %arg1[%c0, %c0_0] : memref<64x16xf32, #tpu.memory_space<vmem>>, vector<64x16xf32>
    %c0_1 = arith.constant 0 : index
    %c0_2 = arith.constant 0 : index
    %1 = vector.load %arg2[%c0_1, %c0_2] : memref<64x16xf32, #tpu.memory_space<vmem>>, vector<64x16xf32>
    %c0_3 = arith.constant 0 : index
    %c0_4 = arith.constant 0 : index
    %c0_5 = arith.constant 0 : index
    %2 = vector.load %arg3[%c0_3, %c0_4, %c0_5] : memref<3x16x16xf32, #tpu.memory_space<vmem>>, vector<1x16x16xf32>
    %3 = vector.shape_cast %2 : vector<1x16x16xf32> to vector<16x16xf32>
    %cst = arith.constant dense<0.000000e+00> : vector<64x16xf32>
    %4 = tpu.matmul %0, %3, %cst {dimension_numbers = #tpu.dot_dimension_numbers<[1], [0], [0], [1], [0, 0, 1, 1], [], []>} : vector<64x16xf32>, vector<16x16xf32>, vector<64x16xf32> -> vector<64x16xf32>
    %c0_6 = arith.constant 0 : index
    %c0_7 = arith.constant 0 : index
    %c0_8 = arith.constant 0 : index
    %5 = vector.load %arg4[%c0_6, %c0_7, %c0_8] : memref<3x16x16xf32, #tpu.memory_space<vmem>>, vector<1x16x16xf32>
    %6 = vector.shape_cast %5 : vector<1x16x16xf32> to vector<16x16xf32>
    %cst_9 = arith.constant dense<0.000000e+00> : vector<64x16xf32>
    %7 = tpu.matmul %1, %6, %cst_9 {dimension_numbers = #tpu.dot_dimension_numbers<[1], [0], [0], [1], [0, 0, 1, 1], [], []>} : vector<64x16xf32>, vector<16x16xf32>, vector<64x16xf32> -> vector<64x16xf32>
    %8 = arith.addf %4, %7 : vector<64x16xf32>
    %c0_10 = arith.constant 0 : index
    %c0_11 = arith.constant 0 : index
    %c0_12 = arith.constant 0 : index
    %9 = vector.load %arg5[%c0_10, %c0_11, %c0_12] : memref<3x1x16xf32, #tpu.memory_space<vmem>>, vector<1x1x16xf32>
    %10 = vector.shape_cast %9 : vector<1x1x16xf32> to vector<1x16xf32>
    %11 = vector.broadcast %10 : vector<1x16xf32> to vector<64x16xf32>
    %12 = arith.mulf %8, %11 : vector<64x16xf32>
    %c0_13 = arith.constant 0 : index
    %c0_14 = arith.constant 0 : index
    %c0_15 = arith.constant 0 : index
    %13 = vector.load %arg6[%c0_13, %c0_14, %c0_15] : memref<3x1x16xf32, #tpu.memory_space<vmem>>, vector<1x1x16xf32>
    %14 = vector.shape_cast %13 : vector<1x1x16xf32> to vector<1x16xf32>
    %15 = vector.broadcast %14 : vector<1x16xf32> to vector<64x16xf32>
    %16 = arith.addf %12, %15 : vector<64x16xf32>
    %cst_16 = arith.constant 0.000000e+00 : f32
    %17 = vector.broadcast %cst_16 : f32 to vector<64x16xf32>
    %18 = arith.maximumf %16, %17 : vector<64x16xf32>
    %19 = vector.shape_cast %18 : vector<64x16xf32> to vector<8x8x16xf32>
    %c1 = arith.constant 1 : index
    %c0_17 = arith.constant 0 : index
    %c0_18 = arith.constant 0 : index
    %20 = vector.load %arg3[%c1, %c0_17, %c0_18] : memref<3x16x16xf32, #tpu.memory_space<vmem>>, vector<1x16x16xf32>
    %21 = vector.shape_cast %20 : vector<1x16x16xf32> to vector<16x16xf32>
    %cst_19 = arith.constant dense<0.000000e+00> : vector<64x16xf32>
    %22 = tpu.matmul %0, %21, %cst_19 {dimension_numbers = #tpu.dot_dimension_numbers<[1], [0], [0], [1], [0, 0, 1, 1], [], []>} : vector<64x16xf32>, vector<16x16xf32>, vector<64x16xf32> -> vector<64x16xf32>
    %c1_20 = arith.constant 1 : index
    %c0_21 = arith.constant 0 : index
    %c0_22 = arith.constant 0 : index
    %23 = vector.load %arg4[%c1_20, %c0_21, %c0_22] : memref<3x16x16xf32, #tpu.memory_space<vmem>>, vector<1x16x16xf32>
    %24 = vector.shape_cast %23 : vector<1x16x16xf32> to vector<16x16xf32>
    %cst_23 = arith.constant dense<0.000000e+00> : vector<64x16xf32>
    %25 = tpu.matmul %1, %24, %cst_23 {dimension_numbers = #tpu.dot_dimension_numbers<[1], [0], [0], [1], [0, 0, 1, 1], [], []>} : vector<64x16xf32>, vector<16x16xf32>, vector<64x16xf32> -> vector<64x16xf32>
    %26 = arith.addf %22, %25 : vector<64x16xf32>
    %c1_24 = arith.constant 1 : index
    %c0_25 = arith.constant 0 : index
    %c0_26 = arith.constant 0 : index
    %27 = vector.load %arg5[%c1_24, %c0_25, %c0_26] : memref<3x1x16xf32, #tpu.memory_space<vmem>>, vector<1x1x16xf32>
    %28 = vector.shape_cast %27 : vector<1x1x16xf32> to vector<1x16xf32>
    %29 = vector.broadcast %28 : vector<1x16xf32> to vector<64x16xf32>
    %30 = arith.mulf %26, %29 : vector<64x16xf32>
    %c1_27 = arith.constant 1 : index
    %c0_28 = arith.constant 0 : index
    %c0_29 = arith.constant 0 : index
    %31 = vector.load %arg6[%c1_27, %c0_28, %c0_29] : memref<3x1x16xf32, #tpu.memory_space<vmem>>, vector<1x1x16xf32>
    %32 = vector.shape_cast %31 : vector<1x1x16xf32> to vector<1x16xf32>
    %33 = vector.broadcast %32 : vector<1x16xf32> to vector<64x16xf32>
    %34 = arith.addf %30, %33 : vector<64x16xf32>
    %cst_30 = arith.constant 0.000000e+00 : f32
    %35 = vector.broadcast %cst_30 : f32 to vector<64x16xf32>
    %36 = arith.maximumf %34, %35 : vector<64x16xf32>
    %37 = vector.shape_cast %36 : vector<64x16xf32> to vector<8x8x16xf32>
    %c2 = arith.constant 2 : index
    %c0_31 = arith.constant 0 : index
    %c0_32 = arith.constant 0 : index
    %38 = vector.load %arg3[%c2, %c0_31, %c0_32] : memref<3x16x16xf32, #tpu.memory_space<vmem>>, vector<1x16x16xf32>
    %39 = vector.shape_cast %38 : vector<1x16x16xf32> to vector<16x16xf32>
    %cst_33 = arith.constant dense<0.000000e+00> : vector<64x16xf32>
    %40 = tpu.matmul %0, %39, %cst_33 {dimension_numbers = #tpu.dot_dimension_numbers<[1], [0], [0], [1], [0, 0, 1, 1], [], []>} : vector<64x16xf32>, vector<16x16xf32>, vector<64x16xf32> -> vector<64x16xf32>
    %c2_34 = arith.constant 2 : index
    %c0_35 = arith.constant 0 : index
    %c0_36 = arith.constant 0 : index
    %41 = vector.load %arg4[%c2_34, %c0_35, %c0_36] : memref<3x16x16xf32, #tpu.memory_space<vmem>>, vector<1x16x16xf32>
    %42 = vector.shape_cast %41 : vector<1x16x16xf32> to vector<16x16xf32>
    %cst_37 = arith.constant dense<0.000000e+00> : vector<64x16xf32>
    %43 = tpu.matmul %1, %42, %cst_37 {dimension_numbers = #tpu.dot_dimension_numbers<[1], [0], [0], [1], [0, 0, 1, 1], [], []>} : vector<64x16xf32>, vector<16x16xf32>, vector<64x16xf32> -> vector<64x16xf32>
    %44 = arith.addf %40, %43 : vector<64x16xf32>
    %c2_38 = arith.constant 2 : index
    %c0_39 = arith.constant 0 : index
    %c0_40 = arith.constant 0 : index
    %45 = vector.load %arg5[%c2_38, %c0_39, %c0_40] : memref<3x1x16xf32, #tpu.memory_space<vmem>>, vector<1x1x16xf32>
    %46 = vector.shape_cast %45 : vector<1x1x16xf32> to vector<1x16xf32>
    %47 = vector.broadcast %46 : vector<1x16xf32> to vector<64x16xf32>
    %48 = arith.mulf %44, %47 : vector<64x16xf32>
    %c2_41 = arith.constant 2 : index
    %c0_42 = arith.constant 0 : index
    %c0_43 = arith.constant 0 : index
    %49 = vector.load %arg6[%c2_41, %c0_42, %c0_43] : memref<3x1x16xf32, #tpu.memory_space<vmem>>, vector<1x1x16xf32>
    %50 = vector.shape_cast %49 : vector<1x1x16xf32> to vector<1x16xf32>
    %51 = vector.broadcast %50 : vector<1x16xf32> to vector<64x16xf32>
    %52 = arith.addf %48, %51 : vector<64x16xf32>
    %cst_44 = arith.constant 0.000000e+00 : f32
    %53 = vector.broadcast %cst_44 : f32 to vector<64x16xf32>
    %54 = arith.maximumf %52, %53 : vector<64x16xf32>
    %55 = vector.shape_cast %54 : vector<64x16xf32> to vector<8x8x16xf32>
    %56 = tpu.iota {dimensions = array<i32: 0>} : vector<8x8xi32>
    %57 = tpu.iota {dimensions = array<i32: 1>} : vector<8x8xi32>
    %58 = arith.cmpi sle, %57, %56 : vector<8x8xi32>
    %59 = vector.shape_cast %58 : vector<8x8xi1> to vector<1x8x8xi1>
    %60 = vector.extract_strided_slice %19 {offsets = [0, 0, 0], sizes = [8, 8, 4], strides = [1, 1, 1]} : vector<8x8x16xf32> to vector<8x8x4xf32>
    %61 = vector.extract_strided_slice %37 {offsets = [0, 0, 0], sizes = [8, 8, 4], strides = [1, 1, 1]} : vector<8x8x16xf32> to vector<8x8x4xf32>
    %62 = vector.extract_strided_slice %55 {offsets = [0, 0, 0], sizes = [8, 8, 4], strides = [1, 1, 1]} : vector<8x8x16xf32> to vector<8x8x4xf32>
    "tpu.trace_start"() <{level = 10 : i32, message = "gqc,gkc->gqk"}> : () -> ()
    %cst_45 = arith.constant dense<0.000000e+00> : vector<8x8x8xf32>
    %63 = tpu.matmul %60, %61, %cst_45 {dimension_numbers = #tpu.dot_dimension_numbers<[2], [2], [1], [1], [0, 0, 0, 1, 1, 1], [0], [0]>} : vector<8x8x4xf32>, vector<8x8x4xf32>, vector<8x8x8xf32> -> vector<8x8x8xf32>
    %cst_46 = arith.constant -3.276700e+04 : f32
    "tpu.trace_stop"() : () -> ()
    %64 = vector.shape_cast %59 : vector<1x8x8xi1> to vector<1x8x8xi1>
    %65 = vector.broadcast %64 : vector<1x8x8xi1> to vector<8x8x8xi1>
    %66 = vector.broadcast %cst_46 : f32 to vector<8x8x8xf32>
    %67 = arith.select %65, %63, %66 : vector<8x8x8xi1>, vector<8x8x8xf32>
    %cst_47 = arith.constant dense<0xFF800000> : vector<8x8xf32>
    %68 = vector.multi_reduction <maximumf>, %67, %cst_47 [2] : vector<8x8x8xf32> to vector<8x8xf32>
    %69 = vector.shape_cast %68 : vector<8x8xf32> to vector<8x8x1xf32>
    %70 = vector.broadcast %69 : vector<8x8x1xf32> to vector<8x8x8xf32>
    %71 = arith.subf %67, %70 : vector<8x8x8xf32>
    %72 = math.exp %71 : vector<8x8x8xf32>
    %cst_48 = arith.constant dense<0.000000e+00> : vector<8x8xf32>
    %73 = vector.multi_reduction <add>, %72, %cst_48 [2] : vector<8x8x8xf32> to vector<8x8xf32>
    %74 = vector.shape_cast %73 : vector<8x8xf32> to vector<8x8x1xf32>
    %75 = vector.broadcast %74 : vector<8x8x1xf32> to vector<8x8x8xf32>
    %76 = arith.divf %72, %75 : vector<8x8x8xf32>
    "tpu.trace_start"() <{level = 10 : i32, message = "gqk,gkc->gqc"}> : () -> ()
    %cst_49 = arith.constant dense<0.000000e+00> : vector<8x8x4xf32>
    %77 = tpu.matmul %76, %62, %cst_49 {dimension_numbers = #tpu.dot_dimension_numbers<[2], [1], [1], [2], [0, 0, 0, 1, 1, 2], [0], [0]>} : vector<8x8x8xf32>, vector<8x8x4xf32>, vector<8x8x4xf32> -> vector<8x8x4xf32>
    "tpu.trace_stop"() : () -> ()
    %78 = vector.extract_strided_slice %19 {offsets = [0, 0, 4], sizes = [8, 8, 4], strides = [1, 1, 1]} : vector<8x8x16xf32> to vector<8x8x4xf32>
    %79 = vector.extract_strided_slice %37 {offsets = [0, 0, 4], sizes = [8, 8, 4], strides = [1, 1, 1]} : vector<8x8x16xf32> to vector<8x8x4xf32>
    %80 = vector.extract_strided_slice %55 {offsets = [0, 0, 4], sizes = [8, 8, 4], strides = [1, 1, 1]} : vector<8x8x16xf32> to vector<8x8x4xf32>
    "tpu.trace_start"() <{level = 10 : i32, message = "gqc,gkc->gqk"}> : () -> ()
    %cst_50 = arith.constant dense<0.000000e+00> : vector<8x8x8xf32>
    %81 = tpu.matmul %78, %79, %cst_50 {dimension_numbers = #tpu.dot_dimension_numbers<[2], [2], [1], [1], [0, 0, 0, 1, 1, 1], [0], [0]>} : vector<8x8x4xf32>, vector<8x8x4xf32>, vector<8x8x8xf32> -> vector<8x8x8xf32>
    %cst_51 = arith.constant -3.276700e+04 : f32
    "tpu.trace_stop"() : () -> ()
    %82 = vector.shape_cast %59 : vector<1x8x8xi1> to vector<1x8x8xi1>
    %83 = vector.broadcast %82 : vector<1x8x8xi1> to vector<8x8x8xi1>
    %84 = vector.broadcast %cst_51 : f32 to vector<8x8x8xf32>
    %85 = arith.select %83, %81, %84 : vector<8x8x8xi1>, vector<8x8x8xf32>
    %cst_52 = arith.constant dense<0xFF800000> : vector<8x8xf32>
    %86 = vector.multi_reduction <maximumf>, %85, %cst_52 [2] : vector<8x8x8xf32> to vector<8x8xf32>
    %87 = vector.shape_cast %86 : vector<8x8xf32> to vector<8x8x1xf32>
    %88 = vector.broadcast %87 : vector<8x8x1xf32> to vector<8x8x8xf32>
    %89 = arith.subf %85, %88 : vector<8x8x8xf32>
    %90 = math.exp %89 : vector<8x8x8xf32>
    %cst_53 = arith.constant dense<0.000000e+00> : vector<8x8xf32>
    %91 = vector.multi_reduction <add>, %90, %cst_53 [2] : vector<8x8x8xf32> to vector<8x8xf32>
    %92 = vector.shape_cast %91 : vector<8x8xf32> to vector<8x8x1xf32>
    %93 = vector.broadcast %92 : vector<8x8x1xf32> to vector<8x8x8xf32>
    %94 = arith.divf %90, %93 : vector<8x8x8xf32>
    "tpu.trace_start"() <{level = 10 : i32, message = "gqk,gkc->gqc"}> : () -> ()
    %cst_54 = arith.constant dense<0.000000e+00> : vector<8x8x4xf32>
    %95 = tpu.matmul %94, %80, %cst_54 {dimension_numbers = #tpu.dot_dimension_numbers<[2], [1], [1], [2], [0, 0, 0, 1, 1, 2], [0], [0]>} : vector<8x8x8xf32>, vector<8x8x4xf32>, vector<8x8x4xf32> -> vector<8x8x4xf32>
    "tpu.trace_stop"() : () -> ()
    %96 = vector.extract_strided_slice %19 {offsets = [0, 0, 8], sizes = [8, 8, 4], strides = [1, 1, 1]} : vector<8x8x16xf32> to vector<8x8x4xf32>
    %97 = vector.extract_strided_slice %37 {offsets = [0, 0, 8], sizes = [8, 8, 4], strides = [1, 1, 1]} : vector<8x8x16xf32> to vector<8x8x4xf32>
    %98 = vector.extract_strided_slice %55 {offsets = [0, 0, 8], sizes = [8, 8, 4], strides = [1, 1, 1]} : vector<8x8x16xf32> to vector<8x8x4xf32>
    "tpu.trace_start"() <{level = 10 : i32, message = "gqc,gkc->gqk"}> : () -> ()
    %cst_55 = arith.constant dense<0.000000e+00> : vector<8x8x8xf32>
    %99 = tpu.matmul %96, %97, %cst_55 {dimension_numbers = #tpu.dot_dimension_numbers<[2], [2], [1], [1], [0, 0, 0, 1, 1, 1], [0], [0]>} : vector<8x8x4xf32>, vector<8x8x4xf32>, vector<8x8x8xf32> -> vector<8x8x8xf32>
    %cst_56 = arith.constant -3.276700e+04 : f32
    "tpu.trace_stop"() : () -> ()
    %100 = vector.shape_cast %59 : vector<1x8x8xi1> to vector<1x8x8xi1>
    %101 = vector.broadcast %100 : vector<1x8x8xi1> to vector<8x8x8xi1>
    %102 = vector.broadcast %cst_56 : f32 to vector<8x8x8xf32>
    %103 = arith.select %101, %99, %102 : vector<8x8x8xi1>, vector<8x8x8xf32>
    %cst_57 = arith.constant dense<0xFF800000> : vector<8x8xf32>
    %104 = vector.multi_reduction <maximumf>, %103, %cst_57 [2] : vector<8x8x8xf32> to vector<8x8xf32>
    %105 = vector.shape_cast %104 : vector<8x8xf32> to vector<8x8x1xf32>
    %106 = vector.broadcast %105 : vector<8x8x1xf32> to vector<8x8x8xf32>
    %107 = arith.subf %103, %106 : vector<8x8x8xf32>
    %108 = math.exp %107 : vector<8x8x8xf32>
    %cst_58 = arith.constant dense<0.000000e+00> : vector<8x8xf32>
    %109 = vector.multi_reduction <add>, %108, %cst_58 [2] : vector<8x8x8xf32> to vector<8x8xf32>
    %110 = vector.shape_cast %109 : vector<8x8xf32> to vector<8x8x1xf32>
    %111 = vector.broadcast %110 : vector<8x8x1xf32> to vector<8x8x8xf32>
    %112 = arith.divf %108, %111 : vector<8x8x8xf32>
    "tpu.trace_start"() <{level = 10 : i32, message = "gqk,gkc->gqc"}> : () -> ()
    %cst_59 = arith.constant dense<0.000000e+00> : vector<8x8x4xf32>
    %113 = tpu.matmul %112, %98, %cst_59 {dimension_numbers = #tpu.dot_dimension_numbers<[2], [1], [1], [2], [0, 0, 0, 1, 1, 2], [0], [0]>} : vector<8x8x8xf32>, vector<8x8x4xf32>, vector<8x8x4xf32> -> vector<8x8x4xf32>
    "tpu.trace_stop"() : () -> ()
    %114 = vector.extract_strided_slice %19 {offsets = [0, 0, 12], sizes = [8, 8, 4], strides = [1, 1, 1]} : vector<8x8x16xf32> to vector<8x8x4xf32>
    %115 = vector.extract_strided_slice %37 {offsets = [0, 0, 12], sizes = [8, 8, 4], strides = [1, 1, 1]} : vector<8x8x16xf32> to vector<8x8x4xf32>
    %116 = vector.extract_strided_slice %55 {offsets = [0, 0, 12], sizes = [8, 8, 4], strides = [1, 1, 1]} : vector<8x8x16xf32> to vector<8x8x4xf32>
    "tpu.trace_start"() <{level = 10 : i32, message = "gqc,gkc->gqk"}> : () -> ()
    %cst_60 = arith.constant dense<0.000000e+00> : vector<8x8x8xf32>
    %117 = tpu.matmul %114, %115, %cst_60 {dimension_numbers = #tpu.dot_dimension_numbers<[2], [2], [1], [1], [0, 0, 0, 1, 1, 1], [0], [0]>} : vector<8x8x4xf32>, vector<8x8x4xf32>, vector<8x8x8xf32> -> vector<8x8x8xf32>
    %cst_61 = arith.constant -3.276700e+04 : f32
    "tpu.trace_stop"() : () -> ()
    %118 = vector.shape_cast %59 : vector<1x8x8xi1> to vector<1x8x8xi1>
    %119 = vector.broadcast %118 : vector<1x8x8xi1> to vector<8x8x8xi1>
    %120 = vector.broadcast %cst_61 : f32 to vector<8x8x8xf32>
    %121 = arith.select %119, %117, %120 : vector<8x8x8xi1>, vector<8x8x8xf32>
    %cst_62 = arith.constant dense<0xFF800000> : vector<8x8xf32>
    %122 = vector.multi_reduction <maximumf>, %121, %cst_62 [2] : vector<8x8x8xf32> to vector<8x8xf32>
    %123 = vector.shape_cast %122 : vector<8x8xf32> to vector<8x8x1xf32>
    %124 = vector.broadcast %123 : vector<8x8x1xf32> to vector<8x8x8xf32>
    %125 = arith.subf %121, %124 : vector<8x8x8xf32>
    %126 = math.exp %125 : vector<8x8x8xf32>
    %cst_63 = arith.constant dense<0.000000e+00> : vector<8x8xf32>
    %127 = vector.multi_reduction <add>, %126, %cst_63 [2] : vector<8x8x8xf32> to vector<8x8xf32>
    %128 = vector.shape_cast %127 : vector<8x8xf32> to vector<8x8x1xf32>
    %129 = vector.broadcast %128 : vector<8x8x1xf32> to vector<8x8x8xf32>
    %130 = arith.divf %126, %129 : vector<8x8x8xf32>
    "tpu.trace_start"() <{level = 10 : i32, message = "gqk,gkc->gqc"}> : () -> ()
    %cst_64 = arith.constant dense<0.000000e+00> : vector<8x8x4xf32>
    %131 = tpu.matmul %130, %116, %cst_64 {dimension_numbers = #tpu.dot_dimension_numbers<[2], [1], [1], [2], [0, 0, 0, 1, 1, 2], [0], [0]>} : vector<8x8x8xf32>, vector<8x8x4xf32>, vector<8x8x4xf32> -> vector<8x8x4xf32>
    "tpu.trace_stop"() : () -> ()
    %132 = tpu.concatenate %77, %95, %113, %131 in 2 : vector<8x8x4xf32>, vector<8x8x4xf32>, vector<8x8x4xf32>, vector<8x8x4xf32> -> vector<8x8x16xf32>
    %133 = vector.shape_cast %132 : vector<8x8x16xf32> to vector<64x16xf32>
    %c0_65 = arith.constant 0 : index
    %c0_66 = arith.constant 0 : index
    %134 = vector.load %arg7[%c0_65, %c0_66] : memref<16x16xf32, #tpu.memory_space<vmem>>, vector<16x16xf32>
    %cst_67 = arith.constant dense<0.000000e+00> : vector<64x16xf32>
    %135 = tpu.matmul %133, %134, %cst_67 {dimension_numbers = #tpu.dot_dimension_numbers<[1], [0], [0], [1], [0, 0, 1, 1], [], []>} : vector<64x16xf32>, vector<16x16xf32>, vector<64x16xf32> -> vector<64x16xf32>
    %c0_68 = arith.constant 0 : index
    %c0_69 = arith.constant 0 : index
    %136 = vector.load %arg8[%c0_68, %c0_69] : memref<1x16xf32, #tpu.memory_space<vmem>>, vector<1x16xf32>
    %137 = vector.broadcast %136 : vector<1x16xf32> to vector<64x16xf32>
    %138 = arith.mulf %135, %137 : vector<64x16xf32>
    %c0_70 = arith.constant 0 : index
    %c0_71 = arith.constant 0 : index
    %139 = vector.load %arg9[%c0_70, %c0_71] : memref<1x16xf32, #tpu.memory_space<vmem>>, vector<1x16xf32>
    %140 = vector.broadcast %139 : vector<1x16xf32> to vector<64x16xf32>
    %141 = arith.addf %138, %140 : vector<64x16xf32>
    %cst_72 = arith.constant 0.000000e+00 : f32
    %142 = vector.broadcast %cst_72 : f32 to vector<64x16xf32>
    %143 = arith.maximumf %141, %142 : vector<64x16xf32>
    %c0_73 = arith.constant 0 : index
    %c0_74 = arith.constant 0 : index
    %144 = vector.load %arg10[%c0_73, %c0_74] : memref<64x16xf32, #tpu.memory_space<vmem>>, vector<64x16xf32>
    tpu.vector_store %arg10[%c0_73, %c0_74], %143 {strides = array<i32>} : memref<64x16xf32, #tpu.memory_space<vmem>>, vector<64x16xf32>,
    return
  }
  func.func @transform_0(%arg0: i32) -> (i32, i32) {
    %c0_i32 = arith.constant 0 : i32
    %c0_i32_0 = arith.constant 0 : i32
    return %arg0, %c0_i32 : i32, i32
  }
  func.func @transform_1(%arg0: i32) -> (i32, i32) {
    %c0_i32 = arith.constant 0 : i32
    %c0_i32_0 = arith.constant 0 : i32
    return %arg0, %c0_i32 : i32, i32
  }
  func.func @transform_2(%arg0: i32) -> (i32, i32, i32) {
    %c0_i32 = arith.constant 0 : i32
    %c0_i32_0 = arith.constant 0 : i32
    %c0_i32_1 = arith.constant 0 : i32
    %c0_i32_2 = arith.constant 0 : i32
    return %c0_i32, %c0_i32_0, %c0_i32_1 : i32, i32, i32
  }
  func.func @transform_3(%arg0: i32) -> (i32, i32, i32) {
    %c0_i32 = arith.constant 0 : i32
    %c0_i32_0 = arith.constant 0 : i32
    %c0_i32_1 = arith.constant 0 : i32
    %c0_i32_2 = arith.constant 0 : i32
    return %c0_i32, %c0_i32_0, %c0_i32_1 : i32, i32, i32
  }
  func.func @transform_4(%arg0: i32) -> (i32, i32, i32) {
    %c0_i32 = arith.constant 0 : i32
    %c0_i32_0 = arith.constant 0 : i32
    %c0_i32_1 = arith.constant 0 : i32
    %c0_i32_2 = arith.constant 0 : i32
    return %c0_i32, %c0_i32_0, %c0_i32_1 : i32, i32, i32
  }
  func.func @transform_5(%arg0: i32) -> (i32, i32, i32) {
    %c0_i32 = arith.constant 0 : i32
    %c0_i32_0 = arith.constant 0 : i32
    %c0_i32_1 = arith.constant 0 : i32
    %c0_i32_2 = arith.constant 0 : i32
    return %c0_i32, %c0_i32_0, %c0_i32_1 : i32, i32, i32
  }
  func.func @transform_6(%arg0: i32) -> (i32, i32) {
    %c0_i32 = arith.constant 0 : i32
    %c0_i32_0 = arith.constant 0 : i32
    %c0_i32_1 = arith.constant 0 : i32
    return %c0_i32, %c0_i32_0 : i32, i32
  }
  func.func @transform_7(%arg0: i32) -> (i32, i32) {
    %c0_i32 = arith.constant 0 : i32
    %c0_i32_0 = arith.constant 0 : i32
    %c0_i32_1 = arith.constant 0 : i32
    return %c0_i32, %c0_i32_0 : i32, i32
  }
  func.func @transform_8(%arg0: i32) -> (i32, i32) {
    %c0_i32 = arith.constant 0 : i32
    %c0_i32_0 = arith.constant 0 : i32
    %c0_i32_1 = arith.constant 0 : i32
    return %c0_i32, %c0_i32_0 : i32, i32
  }
  func.func @transform_9(%arg0: i32) -> (i32, i32) {
    %c0_i32 = arith.constant 0 : i32
    %c0_i32_0 = arith.constant 0 : i32
    return %arg0, %c0_i32 : i32, i32
  }
}

</mosaic_0001>

<llo_original>
// kernel: temporal_attention.1
$region0: #{temporal_attention.1}
  #allocation0 [shape = 'u32[]', space=smem, size = 0x4, offset = 0x4, fixed_abs, tag = 'smem constant byte address 0x4 - core index']
  #allocation1 [shape = 'u32[144,128]{1,0:T(1,128)}', space=vmem, size = 0x12000, scoped, tag = 'internal scratch']
  %s0 = inlined_call_operand.vmem [shape: f32[64,16], index: 0, kind: input, shape index: {}]
  %s1 = inlined_call_operand.vmem [shape: f32[64,16], index: 1, kind: input, shape index: {}]
  %s2 = inlined_call_operand.vmem [shape: f32[3,16,16], index: 2, kind: input, shape index: {}]
  %s3 = inlined_call_operand.vmem [shape: f32[3,16,16], index: 3, kind: input, shape index: {}]
  %s4 = inlined_call_operand.vmem [shape: f32[3,1,16], index: 4, kind: input, shape index: {}]
  %s5 = inlined_call_operand.vmem [shape: f32[3,1,16], index: 5, kind: input, shape index: {}]
  %s6 = inlined_call_operand.vmem [shape: f32[16,16], index: 6, kind: input, shape index: {}]
  %s7 = inlined_call_operand.vmem [shape: f32[1,16], index: 7, kind: input, shape index: {}]
  %s8 = inlined_call_operand.vmem [shape: f32[1,16], index: 8, kind: input, shape index: {}]
  %s9 = inlined_call_operand.vmem [shape: f32[64,16], index: 9, kind: output, shape index: {}]
  %s10 = sld [smem:[#allocation0]]
  $region46: #{temporal_attention.1} parent=0
    _
  %s12 = ssub.s32 1, %s10
  %s13 = scalar_select 0, %s12, %s10
  // Predicated region
  $region2: #{temporal_attention.1} parent=0 // pred_check
    _
  $region3: #{temporal_attention.1} parent=0 // pred_check_branch
    %15 = sbr.rel (0) target = $region5
  $region4: #{temporal_attention.1} parent=0 // pred_region
    _
  $region5: #{temporal_attention.1} parent=0 // pred_fallthru
    _
  // Predicated region
  $region6: #{temporal_attention.1} parent=0 // pred_check
    _
  $region7: #{temporal_attention.1} parent=0 // pred_check_branch
    %17 = sbr.rel (0) target = $region9
  $region8: #{temporal_attention.1} parent=0 // pred_region
    _
  $region9: #{temporal_attention.1} parent=0 // pred_fallthru
    _
  // Predicated region
  $region10: #{temporal_attention.1} parent=0 // pred_check
    _
  $region11: #{temporal_attention.1} parent=0 // pred_check_branch
    %19 = sbr.rel (0) target = $region13
  $region12: #{temporal_attention.1} parent=0 // pred_region
    _
  $region13: #{temporal_attention.1} parent=0 // pred_fallthru
    _
  // Predicated region
  $region14: #{temporal_attention.1} parent=0 // pred_check
    _
  $region15: #{temporal_attention.1} parent=0 // pred_check_branch
    %21 = sbr.rel (0) target = $region17
  $region16: #{temporal_attention.1} parent=0 // pred_region
    _
  $region17: #{temporal_attention.1} parent=0 // pred_fallthru
    _
  // Predicated region
  $region18: #{temporal_attention.1} parent=0 // pred_check
    _
  $region19: #{temporal_attention.1} parent=0 // pred_check_branch
    %23 = sbr.rel (0) target = $region21
  $region20: #{temporal_attention.1} parent=0 // pred_region
    _
  $region21: #{temporal_attention.1} parent=0 // pred_fallthru
    _
  // Predicated region
  $region22: #{temporal_attention.1} parent=0 // pred_check
    _
  $region23: #{temporal_attention.1} parent=0 // pred_check_branch
    %25 = sbr.rel (0) target = $region25
  $region24: #{temporal_attention.1} parent=0 // pred_region
    _
  $region25: #{temporal_attention.1} parent=0 // pred_fallthru
    _
  // Predicated region
  $region26: #{temporal_attention.1} parent=0 // pred_check
    _
  $region27: #{temporal_attention.1} parent=0 // pred_check_branch
    %27 = sbr.rel (0) target = $region29
  $region28: #{temporal_attention.1} parent=0 // pred_region
    _
  $region29: #{temporal_attention.1} parent=0 // pred_fallthru
    _
  // Predicated region
  $region30: #{temporal_attention.1} parent=0 // pred_check
    _
  $region31: #{temporal_attention.1} parent=0 // pred_check_branch
    %29 = sbr.rel (0) target = $region33
  $region32: #{temporal_attention.1} parent=0 // pred_region
    _
  $region33: #{temporal_attention.1} parent=0 // pred_fallthru
    _
  // Predicated region
  $region34: #{temporal_attention.1} parent=0 // pred_check
    _
  $region35: #{temporal_attention.1} parent=0 // pred_check_branch
    %31 = sbr.rel (0) target = $region37
  $region36: #{temporal_attention.1} parent=0 // pred_region
    _
  $region37: #{temporal_attention.1} parent=0 // pred_fallthru
    _
  %v32 = vld [vmem:[%s0] sm:$0xff]
  %v33 = vld [vmem:[%s0 + $0x8] sm:$0xff]
  %v34 = vld [vmem:[%s0 + $0x10] sm:$0xff]
  %v35 = vld [vmem:[%s0 + $0x18] sm:$0xff]
  %v36 = vld [vmem:[%s0 + $0x20] sm:$0xff]
  %v37 = vld [vmem:[%s0 + $0x28] sm:$0xff]
  %v38 = vld [vmem:[%s0 + $0x30] sm:$0xff]
  %v39 = vld [vmem:[%s0 + $0x38] sm:$0xff]
  %v40 = vld [vmem:[%s1] sm:$0xff]
  %v41 = vld [vmem:[%s1 + $0x8] sm:$0xff]
  %v42 = vld [vmem:[%s1 + $0x10] sm:$0xff]
  %v43 = vld [vmem:[%s1 + $0x18] sm:$0xff]
  %v44 = vld [vmem:[%s1 + $0x20] sm:$0xff]
  %v45 = vld [vmem:[%s1 + $0x28] sm:$0xff]
  %v46 = vld [vmem:[%s1 + $0x30] sm:$0xff]
  %v47 = vld [vmem:[%s1 + $0x38] sm:$0xff]
  %v48 = vld [vmem:[%s2] sm:$0xff]
  %v49 = vld [vmem:[%s2 + $0x8] sm:$0xff]
  %v50 = vld [vmem:[%s3] sm:$0xff]
  %v51 = vld [vmem:[%s3 + $0x8] sm:$0xff]
  %vm52 = vcmask 130048
  %v54 = vsel %vm52, %v40, 0
  %v57 = vsel %vm52, %v41, 0
  %v60 = vsel %vm52, %v42, 0
  %v63 = vsel %vm52, %v43, 0
  %v66 = vsel %vm52, %v44, 0
  %v69 = vsel %vm52, %v45, 0
  %v72 = vsel %vm52, %v46, 0
  %v75 = vsel %vm52, %v47, 0
  %77 = vmatprep.subr.mxu0 0.0
  %78 = vmatpush1.msra.mxu0 0.0
  %79 = vmatprep.subr.mxu0 0.0
  %80 = vmatpush1.msra.mxu0 0.0
  %81 = vmatprep.subr.mxu0 0.0
  %82 = vmatpush1.msra.mxu0 0.0
  %83 = vmatprep.subr.mxu0 0.0
  %84 = vmatpush1.msra.mxu0 0.0
  %85 = vmatprep.subr.mxu0 0.0
  %86 = vmatpush1.msra.mxu0 0.0
  %87 = vmatprep.subr.mxu0 0.0
  %88 = vmatpush1.msra.mxu0 0.0
  %89 = vmatprep.subr.mxu0 0.0
  %90 = vmatpush1.msra.mxu0 0.0
  %91 = vmatprep.subr.mxu0 0.0
  %92 = vmatpush1.msra.mxu0 0.0
  %93 = vmatprep.subr.mxu0 0.0
  %94 = vmatpush1.msra.mxu0 0.0
  %95 = vmatprep.subr.mxu0 0.0
  %96 = vmatpush1.msra.mxu0 0.0
  %97 = vmatprep.subr.mxu0 0.0
  %98 = vmatpush1.msra.mxu0 0.0
  %99 = vmatprep.subr.mxu0 0.0
  %100 = vmatpush1.msra.mxu0 0.0
  %101 = vmatprep.subr.mxu0 0.0
  %102 = vmatpush1.msra.mxu0 0.0
  %103 = vmatprep.subr.mxu0 0.0
  %104 = vmatpush1.msra.mxu0 0.0
  %105 = vmatprep.subr.mxu0 0.0
  %106 = vmatpush1.msra.mxu0 %v51
  %107 = vmatprep.subr.mxu0 0.0
  %108 = vmatpush1.msra.mxu0 %v50
  %109 = vmatprep.subr.mxu0 0.0
  %110 = vmatpush2.msra.mxu0 0.0
  %111 = vmatprep.subr.mxu0 0.0
  %112 = vmatpush2.msra.mxu0 0.0
  %113 = vmatprep.subr.mxu0 0.0
  %114 = vmatpush2.msra.mxu0 0.0
  %115 = vmatprep.subr.mxu0 0.0
  %116 = vmatpush2.msra.mxu0 0.0
  %117 = vmatprep.subr.mxu0 0.0
  %118 = vmatpush2.msra.mxu0 0.0
  %119 = vmatprep.subr.mxu0 0.0
  %120 = vmatpush2.msra.mxu0 0.0
  %121 = vmatprep.subr.mxu0 0.0
  %122 = vmatpush2.msra.mxu0 0.0
  %123 = vmatprep.subr.mxu0 0.0
  %124 = vmatpush2.msra.mxu0 0.0
  %125 = vmatprep.subr.mxu0 0.0
  %126 = vmatpush2.msra.mxu0 0.0
  %127 = vmatprep.subr.mxu0 0.0
  %128 = vmatpush2.msra.mxu0 0.0
  %129 = vmatprep.subr.mxu0 0.0
  %130 = vmatpush2.msra.mxu0 0.0
  %131 = vmatprep.subr.mxu0 0.0
  %132 = vmatpush2.msra.mxu0 0.0
  %133 = vmatprep.subr.mxu0 0.0
  %134 = vmatpush2.msra.mxu0 0.0
  %135 = vmatprep.subr.mxu0 0.0
  %136 = vmatpush2.msra.mxu0 0.0
  %137 = vmatprep.subr.mxu0 0.0
  %138 = vmatpush2.msra.mxu0 0.0
  %139 = vmatprep.subr.mxu0 0.0
  %140 = vmatpush2.msra.mxu0 0.0
  %141 = vmatprep.mubr.f32.mxu0 0.0
  %142 = vmatmul.mubr.f32.gmra.mxu0 %v54
  %v143 = vpop.f32.mrf.mxu0
  %v144 = vadd.f32 0.0, %v143
  %v145 = vpop.f32.mrf.mxu0
  %146 = vmatprep.mubr.f32.mxu0 0.0
  %147 = vmatmul.mubr.f32.gmra.mxu0 %v57
  %v148 = vpop.f32.mrf.mxu0
  %v149 = vadd.f32 0.0, %v148
  %v150 = vpop.f32.mrf.mxu0
  %151 = vmatprep.mubr.f32.mxu0 0.0
  %152 = vmatmul.mubr.f32.gmra.mxu0 %v60
  %v153 = vpop.f32.mrf.mxu0
  %v154 = vadd.f32 0.0, %v153
  %v155 = vpop.f32.mrf.mxu0
  %156 = vmatprep.mubr.f32.mxu0 0.0
  %157 = vmatmul.mubr.f32.gmra.mxu0 %v63
  %v158 = vpop.f32.mrf.mxu0
  %v159 = vadd.f32 0.0, %v158
  %v160 = vpop.f32.mrf.mxu0
  %161 = vmatprep.mubr.f32.mxu0 0.0
  %162 = vmatmul.mubr.f32.gmra.mxu0 %v66
  %v163 = vpop.f32.mrf.mxu0
  %v164 = vadd.f32 0.0, %v163
  %v165 = vpop.f32.mrf.mxu0
  %166 = vmatprep.mubr.f32.mxu0 0.0
  %167 = vmatmul.mubr.f32.gmra.mxu0 %v69
  %v168 = vpop.f32.mrf.mxu0
  %v169 = vadd.f32 0.0, %v168
  %v170 = vpop.f32.mrf.mxu0
  %171 = vmatprep.mubr.f32.mxu0 0.0
  %172 = vmatmul.mubr.f32.gmra.mxu0 %v72
  %v173 = vpop.f32.mrf.mxu0
  %v174 = vadd.f32 0.0, %v173
  %v175 = vpop.f32.mrf.mxu0
  %176 = vmatprep.mubr.f32.mxu0 0.0
  %177 = vmatmul.mubr.f32.gmra.mxu0 %v75
  %v178 = vpop.f32.mrf.mxu0
  %v179 = vadd.f32 0.0, %v178
  %v180 = vpop.f32.mrf.mxu0
  %181 = vdwg.mxu0
  %v183 = vsel %vm52, %v32, 0
  %v186 = vsel %vm52, %v33, 0
  %v189 = vsel %vm52, %v34, 0
  %v192 = vsel %vm52, %v35, 0
  %v195 = vsel %vm52, %v36, 0
  %v198 = vsel %vm52, %v37, 0
  %v201 = vsel %vm52, %v38, 0
  %v204 = vsel %vm52, %v39, 0
  %206 = vmatprep.subr.mxu0 0.0
  %207 = vmatpush1.msra.mxu0 0.0
  %208 = vmatprep.subr.mxu0 0.0
  %209 = vmatpush1.msra.mxu0 0.0
  %210 = vmatprep.subr.mxu0 0.0
  %211 = vmatpush1.msra.mxu0 0.0
  %212 = vmatprep.subr.mxu0 0.0
  %213 = vmatpush1.msra.mxu0 0.0
  %214 = vmatprep.subr.mxu0 0.0
  %215 = vmatpush1.msra.mxu0 0.0
  %216 = vmatprep.subr.mxu0 0.0
  %217 = vmatpush1.msra.mxu0 0.0
  %218 = vmatprep.subr.mxu0 0.0
  %219 = vmatpush1.msra.mxu0 0.0
  %220 = vmatprep.subr.mxu0 0.0
  %221 = vmatpush1.msra.mxu0 0.0
  %222 = vmatprep.subr.mxu0 0.0
  %223 = vmatpush1.msra.mxu0 0.0
  %224 = vmatprep.subr.mxu0 0.0
  %225 = vmatpush1.msra.mxu0 0.0
  %226 = vmatprep.subr.mxu0 0.0
  %227 = vmatpush1.msra.mxu0 0.0
  %228 = vmatprep.subr.mxu0 0.0
  %229 = vmatpush1.msra.mxu0 0.0
  %230 = vmatprep.subr.mxu0 0.0
  %231 = vmatpush1.msra.mxu0 0.0
  %232 = vmatprep.subr.mxu0 0.0
  %233 = vmatpush1.msra.mxu0 0.0
  %234 = vmatprep.subr.mxu0 0.0
  %235 = vmatpush1.msra.mxu0 %v49
  %236 = vmatprep.subr.mxu0 0.0
  %237 = vmatpush1.msra.mxu0 %v48
  %238 = vmatprep.subr.mxu0 0.0
  %239 = vmatpush2.msra.mxu0 0.0
  %240 = vmatprep.subr.mxu0 0.0
  %241 = vmatpush2.msra.mxu0 0.0
  %242 = vmatprep.subr.mxu0 0.0
  %243 = vmatpush2.msra.mxu0 0.0
  %244 = vmatprep.subr.mxu0 0.0
  %245 = vmatpush2.msra.mxu0 0.0
  %246 = vmatprep.subr.mxu0 0.0
  %247 = vmatpush2.msra.mxu0 0.0
  %248 = vmatprep.subr.mxu0 0.0
  %249 = vmatpush2.msra.mxu0 0.0
  %250 = vmatprep.subr.mxu0 0.0
  %251 = vmatpush2.msra.mxu0 0.0
  %252 = vmatprep.subr.mxu0 0.0
  %253 = vmatpush2.msra.mxu0 0.0
  %254 = vmatprep.subr.mxu0 0.0
  %255 = vmatpush2.msra.mxu0 0.0
  %256 = vmatprep.subr.mxu0 0.0
  %257 = vmatpush2.msra.mxu0 0.0
  %258 = vmatprep.subr.mxu0 0.0
  %259 = vmatpush2.msra.mxu0 0.0
  %260 = vmatprep.subr.mxu0 0.0
  %261 = vmatpush2.msra.mxu0 0.0
  %262 = vmatprep.subr.mxu0 0.0
  %263 = vmatpush2.msra.mxu0 0.0
  %264 = vmatprep.subr.mxu0 0.0
  %265 = vmatpush2.msra.mxu0 0.0
  %266 = vmatprep.subr.mxu0 0.0
  %267 = vmatpush2.msra.mxu0 0.0
  %268 = vmatprep.subr.mxu0 0.0
  %269 = vmatpush2.msra.mxu0 0.0
  %270 = vmatprep.mubr.f32.mxu0 0.0
  %271 = vmatmul.mubr.f32.gmra.mxu0 %v183
  %v272 = vpop.f32.mrf.mxu0
  %v273 = vadd.f32 %v144, %v272
  %v274 = vpop.f32.mrf.mxu0
  %275 = vmatprep.mubr.f32.mxu0 0.0
  %276 = vmatmul.mubr.f32.gmra.mxu0 %v186
  %v277 = vpop.f32.mrf.mxu0
  %v278 = vadd.f32 %v149, %v277
  %v279 = vpop.f32.mrf.mxu0
  %280 = vmatprep.mubr.f32.mxu0 0.0
  %281 = vmatmul.mubr.f32.gmra.mxu0 %v189
  %v282 = vpop.f32.mrf.mxu0
  %v283 = vadd.f32 %v154, %v282
  %v284 = vpop.f32.mrf.mxu0
  %285 = vmatprep.mubr.f32.mxu0 0.0
  %286 = vmatmul.mubr.f32.gmra.mxu0 %v192
  %v287 = vpop.f32.mrf.mxu0
  %v288 = vadd.f32 %v159, %v287
  %v289 = vpop.f32.mrf.mxu0
  %290 = vmatprep.mubr.f32.mxu0 0.0
  %291 = vmatmul.mubr.f32.gmra.mxu0 %v195
  %v292 = vpop.f32.mrf.mxu0
  %v293 = vadd.f32 %v164, %v292
  %v294 = vpop.f32.mrf.mxu0
  %295 = vmatprep.mubr.f32.mxu0 0.0
  %296 = vmatmul.mubr.f32.gmra.mxu0 %v198
  %v297 = vpop.f32.mrf.mxu0
  %v298 = vadd.f32 %v169, %v297
  %v299 = vpop.f32.mrf.mxu0
  %300 = vmatprep.mubr.f32.mxu0 0.0
  %301 = vmatmul.mubr.f32.gmra.mxu0 %v201
  %v302 = vpop.f32.mrf.mxu0
  %v303 = vadd.f32 %v174, %v302
  %v304 = vpop.f32.mrf.mxu0
  %305 = vmatprep.mubr.f32.mxu0 0.0
  %306 = vmatmul.mubr.f32.gmra.mxu0 %v204
  %v307 = vpop.f32.mrf.mxu0
  %v308 = vadd.f32 %v179, %v307
  %v309 = vpop.f32.mrf.mxu0
  %310 = vdwg.mxu0
  %v311 = vld [vmem:[%s4] sm:$0x1]
  %v313 = vlaneseq
  %v314 = vshrl.u32 %v313, 7
  %v315 = vsub.s32 0, %v314
  %v316 = vrot.slane %v311, %v315
  %v318 = vmul.f32 %v273, %v316
  %v319 = vmul.f32 %v278, %v316
  %v320 = vmul.f32 %v283, %v316
  %v321 = vmul.f32 %v288, %v316
  %v322 = vmul.f32 %v293, %v316
  %v323 = vmul.f32 %v298, %v316
  %v324 = vmul.f32 %v303, %v316
  %v325 = vmul.f32 %v308, %v316
  %v326 = vld [vmem:[%s5] sm:$0x1]
  %v328 = vlaneseq
  %v329 = vshrl.u32 %v328, 7
  %v330 = vsub.s32 0, %v329
  %v331 = vrot.slane %v326, %v330
  %v333 = vadd.f32 %v318, %v331
  %v334 = vadd.f32 %v319, %v331
  %v335 = vadd.f32 %v320, %v331
  %v336 = vadd.f32 %v321, %v331
  %v337 = vadd.f32 %v322, %v331
  %v338 = vadd.f32 %v323, %v331
  %v339 = vadd.f32 %v324, %v331
  %v340 = vadd.f32 %v325, %v331
  %v341 = vmax.f32 %v333, 0.0
  %v342 = vmax.f32 %v334, 0.0
  %v343 = vmax.f32 %v335, 0.0
  %v344 = vmax.f32 %v336, 0.0
  %v345 = vmax.f32 %v337, 0.0
  %v346 = vmax.f32 %v338, 0.0
  %v347 = vmax.f32 %v339, 0.0
  %v348 = vmax.f32 %v340, 0.0
  %s349 = scalar_lea.vmem %s2, 16
  %v350 = vld [vmem:[%s349] sm:$0xff]
  %v351 = vld [vmem:[%s349 + $0x8] sm:$0xff]
  %s352 = scalar_lea.vmem %s3, 16
  %v353 = vld [vmem:[%s352] sm:$0xff]
  %v354 = vld [vmem:[%s352 + $0x8] sm:$0xff]
  %355 = vmatprep.subr.mxu0 0.0
  %356 = vmatpush1.msra.mxu0 0.0
  %357 = vmatprep.subr.mxu0 0.0
  %358 = vmatpush1.msra.mxu0 0.0
  %359 = vmatprep.subr.mxu0 0.0
  %360 = vmatpush1.msra.mxu0 0.0
  %361 = vmatprep.subr.mxu0 0.0
  %362 = vmatpush1.msra.mxu0 0.0
  %363 = vmatprep.subr.mxu0 0.0
  %364 = vmatpush1.msra.mxu0 0.0
  %365 = vmatprep.subr.mxu0 0.0
  %366 = vmatpush1.msra.mxu0 0.0
  %367 = vmatprep.subr.mxu0 0.0
  %368 = vmatpush1.msra.mxu0 0.0
  %369 = vmatprep.subr.mxu0 0.0
  %370 = vmatpush1.msra.mxu0 0.0
  %371 = vmatprep.subr.mxu0 0.0
  %372 = vmatpush1.msra.mxu0 0.0
  %373 = vmatprep.subr.mxu0 0.0
  %374 = vmatpush1.msra.mxu0 0.0
  %375 = vmatprep.subr.mxu0 0.0
  %376 = vmatpush1.msra.mxu0 0.0
  %377 = vmatprep.subr.mxu0 0.0
  %378 = vmatpush1.msra.mxu0 0.0
  %379 = vmatprep.subr.mxu0 0.0
  %380 = vmatpush1.msra.mxu0 0.0
  %381 = vmatprep.subr.mxu0 0.0
  %382 = vmatpush1.msra.mxu0 0.0
  %383 = vmatprep.subr.mxu0 0.0
  %384 = vmatpush1.msra.mxu0 %v354
  %385 = vmatprep.subr.mxu0 0.0
  %386 = vmatpush1.msra.mxu0 %v353
  %387 = vmatprep.subr.mxu0 0.0
  %388 = vmatpush2.msra.mxu0 0.0
  %389 = vmatprep.subr.mxu0 0.0
  %390 = vmatpush2.msra.mxu0 0.0
  %391 = vmatprep.subr.mxu0 0.0
  %392 = vmatpush2.msra.mxu0 0.0
  %393 = vmatprep.subr.mxu0 0.0
  %394 = vmatpush2.msra.mxu0 0.0
  %395 = vmatprep.subr.mxu0 0.0
  %396 = vmatpush2.msra.mxu0 0.0
  %397 = vmatprep.subr.mxu0 0.0
  %398 = vmatpush2.msra.mxu0 0.0
  %399 = vmatprep.subr.mxu0 0.0
  %400 = vmatpush2.msra.mxu0 0.0
  %401 = vmatprep.subr.mxu0 0.0
  %402 = vmatpush2.msra.mxu0 0.0
  %403 = vmatprep.subr.mxu0 0.0
  %404 = vmatpush2.msra.mxu0 0.0
  %405 = vmatprep.subr.mxu0 0.0
  %406 = vmatpush2.msra.mxu0 0.0
  %407 = vmatprep.subr.mxu0 0.0
  %408 = vmatpush2.msra.mxu0 0.0
  %409 = vmatprep.subr.mxu0 0.0
  %410 = vmatpush2.msra.mxu0 0.0
  %411 = vmatprep.subr.mxu0 0.0
  %412 = vmatpush2.msra.mxu0 0.0
  %413 = vmatprep.subr.mxu0 0.0
  %414 = vmatpush2.msra.mxu0 0.0
  %415 = vmatprep.subr.mxu0 0.0
  %416 = vmatpush2.msra.mxu0 0.0
  %417 = vmatprep.subr.mxu0 0.0
  %418 = vmatpush2.msra.mxu0 0.0
  %419 = vmatprep.mubr.f32.mxu0 0.0
  %420 = vmatmul.mubr.f32.gmra.mxu0 %v54
  %v421 = vpop.f32.mrf.mxu0
  %v422 = vadd.f32 0.0, %v421
  %v423 = vpop.f32.mrf.mxu0
  %424 = vmatprep.mubr.f32.mxu0 0.0
  %425 = vmatmul.mubr.f32.gmra.mxu0 %v57
  %v426 = vpop.f32.mrf.mxu0
  %v427 = vadd.f32 0.0, %v426
  %v428 = vpop.f32.mrf.mxu0
  %429 = vmatprep.mubr.f32.mxu0 0.0
  %430 = vmatmul.mubr.f32.gmra.mxu0 %v60
  %v431 = vpop.f32.mrf.mxu0
  %v432 = vadd.f32 0.0, %v431
  %v433 = vpop.f32.mrf.mxu0
  %434 = vmatprep.mubr.f32.mxu0 0.0
  %435 = vmatmul.mubr.f32.gmra.mxu0 %v63
  %v436 = vpop.f32.mrf.mxu0
  %v437 = vadd.f32 0.0, %v436
  %v438 = vpop.f32.mrf.mxu0
  %439 = vmatprep.mubr.f32.mxu0 0.0
  %440 = vmatmul.mubr.f32.gmra.mxu0 %v66
  %v441 = vpop.f32.mrf.mxu0
  %v442 = vadd.f32 0.0, %v441
  %v443 = vpop.f32.mrf.mxu0
  %444 = vmatprep.mubr.f32.mxu0 0.0
  %445 = vmatmul.mubr.f32.gmra.mxu0 %v69
  %v446 = vpop.f32.mrf.mxu0
  %v447 = vadd.f32 0.0, %v446
  %v448 = vpop.f32.mrf.mxu0
  %449 = vmatprep.mubr.f32.mxu0 0.0
  %450 = vmatmul.mubr.f32.gmra.mxu0 %v72
  %v451 = vpop.f32.mrf.mxu0
  %v452 = vadd.f32 0.0, %v451
  %v453 = vpop.f32.mrf.mxu0
  %454 = vmatprep.mubr.f32.mxu0 0.0
  %455 = vmatmul.mubr.f32.gmra.mxu0 %v75
  %v456 = vpop.f32.mrf.mxu0
  %v457 = vadd.f32 0.0, %v456
  %v458 = vpop.f32.mrf.mxu0
  %459 = vdwg.mxu0
  %460 = vmatprep.subr.mxu0 0.0
  %461 = vmatpush1.msra.mxu0 0.0
  %462 = vmatprep.subr.mxu0 0.0
  %463 = vmatpush1.msra.mxu0 0.0
  %464 = vmatprep.subr.mxu0 0.0
  %465 = vmatpush1.msra.mxu0 0.0
  %466 = vmatprep.subr.mxu0 0.0
  %467 = vmatpush1.msra.mxu0 0.0
  %468 = vmatprep.subr.mxu0 0.0
  %469 = vmatpush1.msra.mxu0 0.0
  %470 = vmatprep.subr.mxu0 0.0
  %471 = vmatpush1.msra.mxu0 0.0
  %472 = vmatprep.subr.mxu0 0.0
  %473 = vmatpush1.msra.mxu0 0.0
  %474 = vmatprep.subr.mxu0 0.0
  %475 = vmatpush1.msra.mxu0 0.0
  %476 = vmatprep.subr.mxu0 0.0
  %477 = vmatpush1.msra.mxu0 0.0
  %478 = vmatprep.subr.mxu0 0.0
  %479 = vmatpush1.msra.mxu0 0.0
  %480 = vmatprep.subr.mxu0 0.0
  %481 = vmatpush1.msra.mxu0 0.0
  %482 = vmatprep.subr.mxu0 0.0
  %483 = vmatpush1.msra.mxu0 0.0
  %484 = vmatprep.subr.mxu0 0.0
  %485 = vmatpush1.msra.mxu0 0.0
  %486 = vmatprep.subr.mxu0 0.0
  %487 = vmatpush1.msra.mxu0 0.0
  %488 = vmatprep.subr.mxu0 0.0
  %489 = vmatpush1.msra.mxu0 %v351
  %490 = vmatprep.subr.mxu0 0.0
  %491 = vmatpush1.msra.mxu0 %v350
  %492 = vmatprep.subr.mxu0 0.0
  %493 = vmatpush2.msra.mxu0 0.0
  %494 = vmatprep.subr.mxu0 0.0
  %495 = vmatpush2.msra.mxu0 0.0
  %496 = vmatprep.subr.mxu0 0.0
  %497 = vmatpush2.msra.mxu0 0.0
  %498 = vmatprep.subr.mxu0 0.0
  %499 = vmatpush2.msra.mxu0 0.0
  %500 = vmatprep.subr.mxu0 0.0
  %501 = vmatpush2.msra.mxu0 0.0
  %502 = vmatprep.subr.mxu0 0.0
  %503 = vmatpush2.msra.mxu0 0.0
  %504 = vmatprep.subr.mxu0 0.0
  %505 = vmatpush2.msra.mxu0 0.0
  %506 = vmatprep.subr.mxu0 0.0
  %507 = vmatpush2.msra.mxu0 0.0
  %508 = vmatprep.subr.mxu0 0.0
  %509 = vmatpush2.msra.mxu0 0.0
  %510 = vmatprep.subr.mxu0 0.0
  %511 = vmatpush2.msra.mxu0 0.0
  %512 = vmatprep.subr.mxu0 0.0
  %513 = vmatpush2.msra.mxu0 0.0
  %514 = vmatprep.subr.mxu0 0.0
  %515 = vmatpush2.msra.mxu0 0.0
  %516 = vmatprep.subr.mxu0 0.0
  %517 = vmatpush2.msra.mxu0 0.0
  %518 = vmatprep.subr.mxu0 0.0
  %519 = vmatpush2.msra.mxu0 0.0
  %520 = vmatprep.subr.mxu0 0.0
  %521 = vmatpush2.msra.mxu0 0.0
  %522 = vmatprep.subr.mxu0 0.0
  %523 = vmatpush2.msra.mxu0 0.0
  %524 = vmatprep.mubr.f32.mxu0 0.0
  %525 = vmatmul.mubr.f32.gmra.mxu0 %v183
  %v526 = vpop.f32.mrf.mxu0
  %v527 = vadd.f32 %v422, %v526
  %v528 = vpop.f32.mrf.mxu0
  %529 = vmatprep.mubr.f32.mxu0 0.0
  %530 = vmatmul.mubr.f32.gmra.mxu0 %v186
  %v531 = vpop.f32.mrf.mxu0
  %v532 = vadd.f32 %v427, %v531
  %v533 = vpop.f32.mrf.mxu0
  %534 = vmatprep.mubr.f32.mxu0 0.0
  %535 = vmatmul.mubr.f32.gmra.mxu0 %v189
  %v536 = vpop.f32.mrf.mxu0
  %v537 = vadd.f32 %v432, %v536
  %v538 = vpop.f32.mrf.mxu0
  %539 = vmatprep.mubr.f32.mxu0 0.0
  %540 = vmatmul.mubr.f32.gmra.mxu0 %v192
  %v541 = vpop.f32.mrf.mxu0
  %v542 = vadd.f32 %v437, %v541
  %v543 = vpop.f32.mrf.mxu0
  %544 = vmatprep.mubr.f32.mxu0 0.0
  %545 = vmatmul.mubr.f32.gmra.mxu0 %v195
  %v546 = vpop.f32.mrf.mxu0
  %v547 = vadd.f32 %v442, %v546
  %v548 = vpop.f32.mrf.mxu0
  %549 = vmatprep.mubr.f32.mxu0 0.0
  %550 = vmatmul.mubr.f32.gmra.mxu0 %v198
  %v551 = vpop.f32.mrf.mxu0
  %v552 = vadd.f32 %v447, %v551
  %v553 = vpop.f32.mrf.mxu0
  %554 = vmatprep.mubr.f32.mxu0 0.0
  %555 = vmatmul.mubr.f32.gmra.mxu0 %v201
  %v556 = vpop.f32.mrf.mxu0
  %v557 = vadd.f32 %v452, %v556
  %v558 = vpop.f32.mrf.mxu0
  %559 = vmatprep.mubr.f32.mxu0 0.0
  %560 = vmatmul.mubr.f32.gmra.mxu0 %v204
  %v561 = vpop.f32.mrf.mxu0
  %v562 = vadd.f32 %v457, %v561
  %v563 = vpop.f32.mrf.mxu0
  %564 = vdwg.mxu0
  %s565 = scalar_lea.vmem %s4, 1
  %v566 = vld [vmem:[%s565] sm:$0x1]
  %v568 = vlaneseq
  %v569 = vshrl.u32 %v568, 7
  %v570 = vsub.s32 0, %v569
  %v571 = vrot.slane %v566, %v570
  %v573 = vmul.f32 %v527, %v571
  %v574 = vmul.f32 %v532, %v571
  %v575 = vmul.f32 %v537, %v571
  %v576 = vmul.f32 %v542, %v571
  %v577 = vmul.f32 %v547, %v571
  %v578 = vmul.f32 %v552, %v571
  %v579 = vmul.f32 %v557, %v571
  %v580 = vmul.f32 %v562, %v571
  %s581 = scalar_lea.vmem %s5, 1
  %v582 = vld [vmem:[%s581] sm:$0x1]
  %v584 = vlaneseq
  %v585 = vshrl.u32 %v584, 7
  %v586 = vsub.s32 0, %v585
  %v587 = vrot.slane %v582, %v586
  %v589 = vadd.f32 %v573, %v587
  %v590 = vadd.f32 %v574, %v587
  %v591 = vadd.f32 %v575, %v587
  %v592 = vadd.f32 %v576, %v587
  %v593 = vadd.f32 %v577, %v587
  %v594 = vadd.f32 %v578, %v587
  %v595 = vadd.f32 %v579, %v587
  %v596 = vadd.f32 %v580, %v587
  %v597 = vmax.f32 %v589, 0.0
  %v598 = vmax.f32 %v590, 0.0
  %v599 = vmax.f32 %v591, 0.0
  %v600 = vmax.f32 %v592, 0.0
  %v601 = vmax.f32 %v593, 0.0
  %v602 = vmax.f32 %v594, 0.0
  %v603 = vmax.f32 %v595, 0.0
  %v604 = vmax.f32 %v596, 0.0
  %s605 = scalar_lea.vmem %s2, 32
  %v606 = vld [vmem:[%s605] sm:$0xff]
  %v607 = vld [vmem:[%s605 + $0x8] sm:$0xff]
  %s608 = scalar_lea.vmem %s3, 32
  %v609 = vld [vmem:[%s608] sm:$0xff]
  %v610 = vld [vmem:[%s608 + $0x8] sm:$0xff]
  %611 = vmatprep.subr.mxu0 0.0
  %612 = vmatpush1.msra.mxu0 0.0
  %613 = vmatprep.subr.mxu0 0.0
  %614 = vmatpush1.msra.mxu0 0.0
  %615 = vmatprep.subr.mxu0 0.0
  %616 = vmatpush1.msra.mxu0 0.0
  %617 = vmatprep.subr.mxu0 0.0
  %618 = vmatpush1.msra.mxu0 0.0
  %619 = vmatprep.subr.mxu0 0.0
  %620 = vmatpush1.msra.mxu0 0.0
  %621 = vmatprep.subr.mxu0 0.0
  %622 = vmatpush1.msra.mxu0 0.0
  %623 = vmatprep.subr.mxu0 0.0
  %624 = vmatpush1.msra.mxu0 0.0
  %625 = vmatprep.subr.mxu0 0.0
  %626 = vmatpush1.msra.mxu0 0.0
  %627 = vmatprep.subr.mxu0 0.0
  %628 = vmatpush1.msra.mxu0 0.0
  %629 = vmatprep.subr.mxu0 0.0
  %630 = vmatpush1.msra.mxu0 0.0
  %631 = vmatprep.subr.mxu0 0.0
  %632 = vmatpush1.msra.mxu0 0.0
  %633 = vmatprep.subr.mxu0 0.0
  %634 = vmatpush1.msra.mxu0 0.0
  %635 = vmatprep.subr.mxu0 0.0
  %636 = vmatpush1.msra.mxu0 0.0
  %637 = vmatprep.subr.mxu0 0.0
  %638 = vmatpush1.msra.mxu0 0.0
  %639 = vmatprep.subr.mxu0 0.0
  %640 = vmatpush1.msra.mxu0 %v610
  %641 = vmatprep.subr.mxu0 0.0
  %642 = vmatpush1.msra.mxu0 %v609
  %643 = vmatprep.subr.mxu0 0.0
  %644 = vmatpush2.msra.mxu0 0.0
  %645 = vmatprep.subr.mxu0 0.0
  %646 = vmatpush2.msra.mxu0 0.0
  %647 = vmatprep.subr.mxu0 0.0
  %648 = vmatpush2.msra.mxu0 0.0
  %649 = vmatprep.subr.mxu0 0.0
  %650 = vmatpush2.msra.mxu0 0.0
  %651 = vmatprep.subr.mxu0 0.0
  %652 = vmatpush2.msra.mxu0 0.0
  %653 = vmatprep.subr.mxu0 0.0
  %654 = vmatpush2.msra.mxu0 0.0
  %655 = vmatprep.subr.mxu0 0.0
  %656 = vmatpush2.msra.mxu0 0.0
  %657 = vmatprep.subr.mxu0 0.0
  %658 = vmatpush2.msra.mxu0 0.0
  %659 = vmatprep.subr.mxu0 0.0
  %660 = vmatpush2.msra.mxu0 0.0
  %661 = vmatprep.subr.mxu0 0.0
  %662 = vmatpush2.msra.mxu0 0.0
  %663 = vmatprep.subr.mxu0 0.0
  %664 = vmatpush2.msra.mxu0 0.0
  %665 = vmatprep.subr.mxu0 0.0
  %666 = vmatpush2.msra.mxu0 0.0
  %667 = vmatprep.subr.mxu0 0.0
  %668 = vmatpush2.msra.mxu0 0.0
  %669 = vmatprep.subr.mxu0 0.0
  %670 = vmatpush2.msra.mxu0 0.0
  %671 = vmatprep.subr.mxu0 0.0
  %672 = vmatpush2.msra.mxu0 0.0
  %673 = vmatprep.subr.mxu0 0.0
  %674 = vmatpush2.msra.mxu0 0.0
  %675 = vmatprep.mubr.f32.mxu0 0.0
  %676 = vmatmul.mubr.f32.gmra.mxu0 %v54
  %v677 = vpop.f32.mrf.mxu0
  %v678 = vadd.f32 0.0, %v677
  %v679 = vpop.f32.mrf.mxu0
  %680 = vmatprep.mubr.f32.mxu0 0.0
  %681 = vmatmul.mubr.f32.gmra.mxu0 %v57
  %v682 = vpop.f32.mrf.mxu0
  %v683 = vadd.f32 0.0, %v682
  %v684 = vpop.f32.mrf.mxu0
  %685 = vmatprep.mubr.f32.mxu0 0.0
  %686 = vmatmul.mubr.f32.gmra.mxu0 %v60
  %v687 = vpop.f32.mrf.mxu0
  %v688 = vadd.f32 0.0, %v687
  %v689 = vpop.f32.mrf.mxu0
  %690 = vmatprep.mubr.f32.mxu0 0.0
  %691 = vmatmul.mubr.f32.gmra.mxu0 %v63
  %v692 = vpop.f32.mrf.mxu0
  %v693 = vadd.f32 0.0, %v692
  %v694 = vpop.f32.mrf.mxu0
  %695 = vmatprep.mubr.f32.mxu0 0.0
  %696 = vmatmul.mubr.f32.gmra.mxu0 %v66
  %v697 = vpop.f32.mrf.mxu0
  %v698 = vadd.f32 0.0, %v697
  %v699 = vpop.f32.mrf.mxu0
  %700 = vmatprep.mubr.f32.mxu0 0.0
  %701 = vmatmul.mubr.f32.gmra.mxu0 %v69
  %v702 = vpop.f32.mrf.mxu0
  %v703 = vadd.f32 0.0, %v702
  %v704 = vpop.f32.mrf.mxu0
  %705 = vmatprep.mubr.f32.mxu0 0.0
  %706 = vmatmul.mubr.f32.gmra.mxu0 %v72
  %v707 = vpop.f32.mrf.mxu0
  %v708 = vadd.f32 0.0, %v707
  %v709 = vpop.f32.mrf.mxu0
  %710 = vmatprep.mubr.f32.mxu0 0.0
  %711 = vmatmul.mubr.f32.gmra.mxu0 %v75
  %v712 = vpop.f32.mrf.mxu0
  %v713 = vadd.f32 0.0, %v712
  %v714 = vpop.f32.mrf.mxu0
  %715 = vdwg.mxu0
  %716 = vmatprep.subr.mxu0 0.0
  %717 = vmatpush1.msra.mxu0 0.0
  %718 = vmatprep.subr.mxu0 0.0
  %719 = vmatpush1.msra.mxu0 0.0
  %720 = vmatprep.subr.mxu0 0.0
  %721 = vmatpush1.msra.mxu0 0.0
  %722 = vmatprep.subr.mxu0 0.0
  %723 = vmatpush1.msra.mxu0 0.0
  %724 = vmatprep.subr.mxu0 0.0
  %725 = vmatpush1.msra.mxu0 0.0
  %726 = vmatprep.subr.mxu0 0.0
  %727 = vmatpush1.msra.mxu0 0.0
  %728 = vmatprep.subr.mxu0 0.0
  %729 = vmatpush1.msra.mxu0 0.0
  %730 = vmatprep.subr.mxu0 0.0
  %731 = vmatpush1.msra.mxu0 0.0
  %732 = vmatprep.subr.mxu0 0.0
  %733 = vmatpush1.msra.mxu0 0.0
  %734 = vmatprep.subr.mxu0 0.0
  %735 = vmatpush1.msra.mxu0 0.0
  %736 = vmatprep.subr.mxu0 0.0
  %737 = vmatpush1.msra.mxu0 0.0
  %738 = vmatprep.subr.mxu0 0.0
  %739 = vmatpush1.msra.mxu0 0.0
  %740 = vmatprep.subr.mxu0 0.0
  %741 = vmatpush1.msra.mxu0 0.0
  %742 = vmatprep.subr.mxu0 0.0
  %743 = vmatpush1.msra.mxu0 0.0
  %744 = vmatprep.subr.mxu0 0.0
  %745 = vmatpush1.msra.mxu0 %v607
  %746 = vmatprep.subr.mxu0 0.0
  %747 = vmatpush1.msra.mxu0 %v606
  %748 = vmatprep.subr.mxu0 0.0
  %749 = vmatpush2.msra.mxu0 0.0
  %750 = vmatprep.subr.mxu0 0.0
  %751 = vmatpush2.msra.mxu0 0.0
  %752 = vmatprep.subr.mxu0 0.0
  %753 = vmatpush2.msra.mxu0 0.0
  %754 = vmatprep.subr.mxu0 0.0
  %755 = vmatpush2.msra.mxu0 0.0
  %756 = vmatprep.subr.mxu0 0.0
  %757 = vmatpush2.msra.mxu0 0.0
  %758 = vmatprep.subr.mxu0 0.0
  %759 = vmatpush2.msra.mxu0 0.0
  %760 = vmatprep.subr.mxu0 0.0
  %761 = vmatpush2.msra.mxu0 0.0
  %762 = vmatprep.subr.mxu0 0.0
  %763 = vmatpush2.msra.mxu0 0.0
  %764 = vmatprep.subr.mxu0 0.0
  %765 = vmatpush2.msra.mxu0 0.0
  %766 = vmatprep.subr.mxu0 0.0
  %767 = vmatpush2.msra.mxu0 0.0
  %768 = vmatprep.subr.mxu0 0.0
  %769 = vmatpush2.msra.mxu0 0.0
  %770 = vmatprep.subr.mxu0 0.0
  %771 = vmatpush2.msra.mxu0 0.0
  %772 = vmatprep.subr.mxu0 0.0
  %773 = vmatpush2.msra.mxu0 0.0
  %774 = vmatprep.subr.mxu0 0.0
  %775 = vmatpush2.msra.mxu0 0.0
  %776 = vmatprep.subr.mxu0 0.0
  %777 = vmatpush2.msra.mxu0 0.0
  %778 = vmatprep.subr.mxu0 0.0
  %779 = vmatpush2.msra.mxu0 0.0
  %780 = vmatprep.mubr.f32.mxu0 0.0
  %781 = vmatmul.mubr.f32.gmra.mxu0 %v183
  %v782 = vpop.f32.mrf.mxu0
  %v783 = vadd.f32 %v678, %v782
  %v784 = vpop.f32.mrf.mxu0
  %785 = vmatprep.mubr.f32.mxu0 0.0
  %786 = vmatmul.mubr.f32.gmra.mxu0 %v186
  %v787 = vpop.f32.mrf.mxu0
  %v788 = vadd.f32 %v683, %v787
  %v789 = vpop.f32.mrf.mxu0
  %790 = vmatprep.mubr.f32.mxu0 0.0
  %791 = vmatmul.mubr.f32.gmra.mxu0 %v189
  %v792 = vpop.f32.mrf.mxu0
  %v793 = vadd.f32 %v688, %v792
  %v794 = vpop.f32.mrf.mxu0
  %795 = vmatprep.mubr.f32.mxu0 0.0
  %796 = vmatmul.mubr.f32.gmra.mxu0 %v192
  %v797 = vpop.f32.mrf.mxu0
  %v798 = vadd.f32 %v693, %v797
  %v799 = vpop.f32.mrf.mxu0
  %800 = vmatprep.mubr.f32.mxu0 0.0
  %801 = vmatmul.mubr.f32.gmra.mxu0 %v195
  %v802 = vpop.f32.mrf.mxu0
  %v803 = vadd.f32 %v698, %v802
  %v804 = vpop.f32.mrf.mxu0
  %805 = vmatprep.mubr.f32.mxu0 0.0
  %806 = vmatmul.mubr.f32.gmra.mxu0 %v198
  %v807 = vpop.f32.mrf.mxu0
  %v808 = vadd.f32 %v703, %v807
  %v809 = vpop.f32.mrf.mxu0
  %810 = vmatprep.mubr.f32.mxu0 0.0
  %811 = vmatmul.mubr.f32.gmra.mxu0 %v201
  %v812 = vpop.f32.mrf.mxu0
  %v813 = vadd.f32 %v708, %v812
  %v814 = vpop.f32.mrf.mxu0
  %815 = vmatprep.mubr.f32.mxu0 0.0
  %816 = vmatmul.mubr.f32.gmra.mxu0 %v204
  %v817 = vpop.f32.mrf.mxu0
  %v818 = vadd.f32 %v713, %v817
  %v819 = vpop.f32.mrf.mxu0
  %820 = vdwg.mxu0
  %s821 = scalar_lea.vmem %s4, 2
  %v822 = vld [vmem:[%s821] sm:$0x1]
  %v824 = vlaneseq
  %v825 = vshrl.u32 %v824, 7
  %v826 = vsub.s32 0, %v825
  %v827 = vrot.slane %v822, %v826
  %v829 = vmul.f32 %v783, %v827
  %v830 = vmul.f32 %v788, %v827
  %v831 = vmul.f32 %v793, %v827
  %v832 = vmul.f32 %v798, %v827
  %v833 = vmul.f32 %v803, %v827
  %v834 = vmul.f32 %v808, %v827
  %v835 = vmul.f32 %v813, %v827
  %v836 = vmul.f32 %v818, %v827
  %s837 = scalar_lea.vmem %s5, 2
  %v838 = vld [vmem:[%s837] sm:$0x1]
  %v840 = vlaneseq
  %v841 = vshrl.u32 %v840, 7
  %v842 = vsub.s32 0, %v841
  %v843 = vrot.slane %v838, %v842
  %v845 = vadd.f32 %v829, %v843
  %v846 = vadd.f32 %v830, %v843
  %v847 = vadd.f32 %v831, %v843
  %v848 = vadd.f32 %v832, %v843
  %v849 = vadd.f32 %v833, %v843
  %v850 = vadd.f32 %v834, %v843
  %v851 = vadd.f32 %v835, %v843
  %v852 = vadd.f32 %v836, %v843
  %v853 = vmax.f32 %v845, 0.0
  %v854 = vmax.f32 %v846, 0.0
  %v855 = vmax.f32 %v847, 0.0
  %v856 = vmax.f32 %v848, 0.0
  %v857 = vmax.f32 %v849, 0.0
  %v858 = vmax.f32 %v850, 0.0
  %v859 = vmax.f32 %v851, 0.0
  %v860 = vmax.f32 %v852, 0.0
  %v861 = vlaneseq
  %v862 = vshrl.u32 %v861, 7
  %v863 = vlaneseq
  %v864 = vand.u32 %v863, 127
  %vm865 = vcmp.le.s32.totalorder %v864, %v862
  %vm866 = vcmask 31744
  %v868 = vsel %vm866, %v341, 0
  %v871 = vsel %vm866, %v597, 0
  %873 = vmatprep.subr.mxu0 0.0
  %874 = vmatpush1.xpose.msra.mxu0 0.0
  %875 = vmatprep.subr.mxu0 0.0
  %876 = vmatpush1.xpose.msra.mxu0 0.0
  %877 = vmatprep.subr.mxu0 0.0
  %878 = vmatpush1.xpose.msra.mxu0 0.0
  %879 = vmatprep.subr.mxu0 0.0
  %880 = vmatpush1.xpose.msra.mxu0 0.0
  %881 = vmatprep.subr.mxu0 0.0
  %882 = vmatpush1.xpose.msra.mxu0 0.0
  %883 = vmatprep.subr.mxu0 0.0
  %884 = vmatpush1.xpose.msra.mxu0 0.0
  %885 = vmatprep.subr.mxu0 0.0
  %886 = vmatpush1.xpose.msra.mxu0 0.0
  %887 = vmatprep.subr.mxu0 0.0
  %888 = vmatpush1.xpose.msra.mxu0 0.0
  %889 = vmatprep.subr.mxu0 0.0
  %890 = vmatpush1.xpose.msra.mxu0 0.0
  %891 = vmatprep.subr.mxu0 0.0
  %892 = vmatpush1.xpose.msra.mxu0 0.0
  %893 = vmatprep.subr.mxu0 0.0
  %894 = vmatpush1.xpose.msra.mxu0 0.0
  %895 = vmatprep.subr.mxu0 0.0
  %896 = vmatpush1.xpose.msra.mxu0 0.0
  %897 = vmatprep.subr.mxu0 0.0
  %898 = vmatpush1.xpose.msra.mxu0 0.0
  %899 = vmatprep.subr.mxu0 0.0
  %900 = vmatpush1.xpose.msra.mxu0 0.0
  %901 = vmatprep.subr.mxu0 0.0
  %902 = vmatpush1.xpose.msra.mxu0 0.0
  %903 = vmatprep.subr.mxu0 0.0
  %904 = vmatpush1.xpose.msra.mxu0 %v871
  %905 = vmatprep.subr.mxu0 0.0
  %906 = vmatpush2.xpose.msra.mxu0 0.0
  %907 = vmatprep.subr.mxu0 0.0
  %908 = vmatpush2.xpose.msra.mxu0 0.0
  %909 = vmatprep.subr.mxu0 0.0
  %910 = vmatpush2.xpose.msra.mxu0 0.0
  %911 = vmatprep.subr.mxu0 0.0
  %912 = vmatpush2.xpose.msra.mxu0 0.0
  %913 = vmatprep.subr.mxu0 0.0
  %914 = vmatpush2.xpose.msra.mxu0 0.0
  %915 = vmatprep.subr.mxu0 0.0
  %916 = vmatpush2.xpose.msra.mxu0 0.0
  %917 = vmatprep.subr.mxu0 0.0
  %918 = vmatpush2.xpose.msra.mxu0 0.0
  %919 = vmatprep.subr.mxu0 0.0
  %920 = vmatpush2.xpose.msra.mxu0 0.0
  %921 = vmatprep.subr.mxu0 0.0
  %922 = vmatpush2.xpose.msra.mxu0 0.0
  %923 = vmatprep.subr.mxu0 0.0
  %924 = vmatpush2.xpose.msra.mxu0 0.0
  %925 = vmatprep.subr.mxu0 0.0
  %926 = vmatpush2.xpose.msra.mxu0 0.0
  %927 = vmatprep.subr.mxu0 0.0
  %928 = vmatpush2.xpose.msra.mxu0 0.0
  %929 = vmatprep.subr.mxu0 0.0
  %930 = vmatpush2.xpose.msra.mxu0 0.0
  %931 = vmatprep.subr.mxu0 0.0
  %932 = vmatpush2.xpose.msra.mxu0 0.0
  %933 = vmatprep.subr.mxu0 0.0
  %934 = vmatpush2.xpose.msra.mxu0 0.0
  %935 = vmatprep.subr.mxu0 0.0
  %936 = vmatpush2.xpose.msra.mxu0 0.0
  %937 = vmatprep.mubr.f32.mxu0 0.0
  %938 = vmatmul.mubr.f32.gmra.mxu0 %v868
  %v939 = vpop.f32.mrf.mxu0
  %v940 = vadd.f32 0.0, %v939
  %v941 = vpop.f32.mrf.mxu0
  %942 = vdwg.mxu0
  %v944 = vsel %vm866, %v342, 0
  %v947 = vsel %vm866, %v598, 0
  %949 = vmatprep.subr.mxu0 0.0
  %950 = vmatpush1.xpose.msra.mxu0 0.0
  %951 = vmatprep.subr.mxu0 0.0
  %952 = vmatpush1.xpose.msra.mxu0 0.0
  %953 = vmatprep.subr.mxu0 0.0
  %954 = vmatpush1.xpose.msra.mxu0 0.0
  %955 = vmatprep.subr.mxu0 0.0
  %956 = vmatpush1.xpose.msra.mxu0 0.0
  %957 = vmatprep.subr.mxu0 0.0
  %958 = vmatpush1.xpose.msra.mxu0 0.0
  %959 = vmatprep.subr.mxu0 0.0
  %960 = vmatpush1.xpose.msra.mxu0 0.0
  %961 = vmatprep.subr.mxu0 0.0
  %962 = vmatpush1.xpose.msra.mxu0 0.0
  %963 = vmatprep.subr.mxu0 0.0
  %964 = vmatpush1.xpose.msra.mxu0 0.0
  %965 = vmatprep.subr.mxu0 0.0
  %966 = vmatpush1.xpose.msra.mxu0 0.0
  %967 = vmatprep.subr.mxu0 0.0
  %968 = vmatpush1.xpose.msra.mxu0 0.0
  %969 = vmatprep.subr.mxu0 0.0
  %970 = vmatpush1.xpose.msra.mxu0 0.0
  %971 = vmatprep.subr.mxu0 0.0
  %972 = vmatpush1.xpose.msra.mxu0 0.0
  %973 = vmatprep.subr.mxu0 0.0
  %974 = vmatpush1.xpose.msra.mxu0 0.0
  %975 = vmatprep.subr.mxu0 0.0
  %976 = vmatpush1.xpose.msra.mxu0 0.0
  %977 = vmatprep.subr.mxu0 0.0
  %978 = vmatpush1.xpose.msra.mxu0 0.0
  %979 = vmatprep.subr.mxu0 0.0
  %980 = vmatpush1.xpose.msra.mxu0 %v947
  %981 = vmatprep.subr.mxu0 0.0
  %982 = vmatpush2.xpose.msra.mxu0 0.0
  %983 = vmatprep.subr.mxu0 0.0
  %984 = vmatpush2.xpose.msra.mxu0 0.0
  %985 = vmatprep.subr.mxu0 0.0
  %986 = vmatpush2.xpose.msra.mxu0 0.0
  %987 = vmatprep.subr.mxu0 0.0
  %988 = vmatpush2.xpose.msra.mxu0 0.0
  %989 = vmatprep.subr.mxu0 0.0
  %990 = vmatpush2.xpose.msra.mxu0 0.0
  %991 = vmatprep.subr.mxu0 0.0
  %992 = vmatpush2.xpose.msra.mxu0 0.0
  %993 = vmatprep.subr.mxu0 0.0
  %994 = vmatpush2.xpose.msra.mxu0 0.0
  %995 = vmatprep.subr.mxu0 0.0
  %996 = vmatpush2.xpose.msra.mxu0 0.0
  %997 = vmatprep.subr.mxu0 0.0
  %998 = vmatpush2.xpose.msra.mxu0 0.0
  %999 = vmatprep.subr.mxu0 0.0
  %1000 = vmatpush2.xpose.msra.mxu0 0.0
  %1001 = vmatprep.subr.mxu0 0.0
  %1002 = vmatpush2.xpose.msra.mxu0 0.0
  %1003 = vmatprep.subr.mxu0 0.0
  %1004 = vmatpush2.xpose.msra.mxu0 0.0
  %1005 = vmatprep.subr.mxu0 0.0
  %1006 = vmatpush2.xpose.msra.mxu0 0.0
  %1007 = vmatprep.subr.mxu0 0.0
  %1008 = vmatpush2.xpose.msra.mxu0 0.0
  %1009 = vmatprep.subr.mxu0 0.0
  %1010 = vmatpush2.xpose.msra.mxu0 0.0
  %1011 = vmatprep.subr.mxu0 0.0
  %1012 = vmatpush2.xpose.msra.mxu0 0.0
  %1013 = vmatprep.mubr.f32.mxu0 0.0
  %1014 = vmatmul.mubr.f32.gmra.mxu0 %v944
  %v1015 = vpop.f32.mrf.mxu0
  %v1016 = vadd.f32 0.0, %v1015
  %v1017 = vpop.f32.mrf.mxu0
  %1018 = vdwg.mxu0
  %v1020 = vsel %vm866, %v343, 0
  %v1023 = vsel %vm866, %v599, 0
  %1025 = vmatprep.subr.mxu0 0.0
  %1026 = vmatpush1.xpose.msra.mxu0 0.0
  %1027 = vmatprep.subr.mxu0 0.0
  %1028 = vmatpush1.xpose.msra.mxu0 0.0
  %1029 = vmatprep.subr.mxu0 0.0
  %1030 = vmatpush1.xpose.msra.mxu0 0.0
  %1031 = vmatprep.subr.mxu0 0.0
  %1032 = vmatpush1.xpose.msra.mxu0 0.0
  %1033 = vmatprep.subr.mxu0 0.0
  %1034 = vmatpush1.xpose.msra.mxu0 0.0
  %1035 = vmatprep.subr.mxu0 0.0
  %1036 = vmatpush1.xpose.msra.mxu0 0.0
  %1037 = vmatprep.subr.mxu0 0.0
  %1038 = vmatpush1.xpose.msra.mxu0 0.0
  %1039 = vmatprep.subr.mxu0 0.0
  %1040 = vmatpush1.xpose.msra.mxu0 0.0
  %1041 = vmatprep.subr.mxu0 0.0
  %1042 = vmatpush1.xpose.msra.mxu0 0.0
  %1043 = vmatprep.subr.mxu0 0.0
  %1044 = vmatpush1.xpose.msra.mxu0 0.0
  %1045 = vmatprep.subr.mxu0 0.0
  %1046 = vmatpush1.xpose.msra.mxu0 0.0
  %1047 = vmatprep.subr.mxu0 0.0
  %1048 = vmatpush1.xpose.msra.mxu0 0.0
  %1049 = vmatprep.subr.mxu0 0.0
  %1050 = vmatpush1.xpose.msra.mxu0 0.0
  %1051 = vmatprep.subr.mxu0 0.0
  %1052 = vmatpush1.xpose.msra.mxu0 0.0
  %1053 = vmatprep.subr.mxu0 0.0
  %1054 = vmatpush1.xpose.msra.mxu0 0.0
  %1055 = vmatprep.subr.mxu0 0.0
  %1056 = vmatpush1.xpose.msra.mxu0 %v1023
  %1057 = vmatprep.subr.mxu0 0.0
  %1058 = vmatpush2.xpose.msra.mxu0 0.0
  %1059 = vmatprep.subr.mxu0 0.0
  %1060 = vmatpush2.xpose.msra.mxu0 0.0
  %1061 = vmatprep.subr.mxu0 0.0
  %1062 = vmatpush2.xpose.msra.mxu0 0.0
  %1063 = vmatprep.subr.mxu0 0.0
  %1064 = vmatpush2.xpose.msra.mxu0 0.0
  %1065 = vmatprep.subr.mxu0 0.0
  %1066 = vmatpush2.xpose.msra.mxu0 0.0
  %1067 = vmatprep.subr.mxu0 0.0
  %1068 = vmatpush2.xpose.msra.mxu0 0.0
  %1069 = vmatprep.subr.mxu0 0.0
  %1070 = vmatpush2.xpose.msra.mxu0 0.0
  %1071 = vmatprep.subr.mxu0 0.0
  %1072 = vmatpush2.xpose.msra.mxu0 0.0
  %1073 = vmatprep.subr.mxu0 0.0
  %1074 = vmatpush2.xpose.msra.mxu0 0.0
  %1075 = vmatprep.subr.mxu0 0.0
  %1076 = vmatpush2.xpose.msra.mxu0 0.0
  %1077 = vmatprep.subr.mxu0 0.0
  %1078 = vmatpush2.xpose.msra.mxu0 0.0
  %1079 = vmatprep.subr.mxu0 0.0
  %1080 = vmatpush2.xpose.msra.mxu0 0.0
  %1081 = vmatprep.subr.mxu0 0.0
  %1082 = vmatpush2.xpose.msra.mxu0 0.0
  %1083 = vmatprep.subr.mxu0 0.0
  %1084 = vmatpush2.xpose.msra.mxu0 0.0
  %1085 = vmatprep.subr.mxu0 0.0
  %1086 = vmatpush2.xpose.msra.mxu0 0.0
  %1087 = vmatprep.subr.mxu0 0.0
  %1088 = vmatpush2.xpose.msra.mxu0 0.0
  %1089 = vmatprep.mubr.f32.mxu0 0.0
  %1090 = vmatmul.mubr.f32.gmra.mxu0 %v1020
  %v1091 = vpop.f32.mrf.mxu0
  %v1092 = vadd.f32 0.0, %v1091
  %v1093 = vpop.f32.mrf.mxu0
  %1094 = vdwg.mxu0
  %v1096 = vsel %vm866, %v344, 0
  %v1099 = vsel %vm866, %v600, 0
  %1101 = vmatprep.subr.mxu0 0.0
  %1102 = vmatpush1.xpose.msra.mxu0 0.0
  %1103 = vmatprep.subr.mxu0 0.0
  %1104 = vmatpush1.xpose.msra.mxu0 0.0
  %1105 = vmatprep.subr.mxu0 0.0
  %1106 = vmatpush1.xpose.msra.mxu0 0.0
  %1107 = vmatprep.subr.mxu0 0.0
  %1108 = vmatpush1.xpose.msra.mxu0 0.0
  %1109 = vmatprep.subr.mxu0 0.0
  %1110 = vmatpush1.xpose.msra.mxu0 0.0
  %1111 = vmatprep.subr.mxu0 0.0
  %1112 = vmatpush1.xpose.msra.mxu0 0.0
  %1113 = vmatprep.subr.mxu0 0.0
  %1114 = vmatpush1.xpose.msra.mxu0 0.0
  %1115 = vmatprep.subr.mxu0 0.0
  %1116 = vmatpush1.xpose.msra.mxu0 0.0
  %1117 = vmatprep.subr.mxu0 0.0
  %1118 = vmatpush1.xpose.msra.mxu0 0.0
  %1119 = vmatprep.subr.mxu0 0.0
  %1120 = vmatpush1.xpose.msra.mxu0 0.0
  %1121 = vmatprep.subr.mxu0 0.0
  %1122 = vmatpush1.xpose.msra.mxu0 0.0
  %1123 = vmatprep.subr.mxu0 0.0
  %1124 = vmatpush1.xpose.msra.mxu0 0.0
  %1125 = vmatprep.subr.mxu0 0.0
  %1126 = vmatpush1.xpose.msra.mxu0 0.0
  %1127 = vmatprep.subr.mxu0 0.0
  %1128 = vmatpush1.xpose.msra.mxu0 0.0
  %1129 = vmatprep.subr.mxu0 0.0
  %1130 = vmatpush1.xpose.msra.mxu0 0.0
  %1131 = vmatprep.subr.mxu0 0.0
  %1132 = vmatpush1.xpose.msra.mxu0 %v1099
  %1133 = vmatprep.subr.mxu0 0.0
  %1134 = vmatpush2.xpose.msra.mxu0 0.0
  %1135 = vmatprep.subr.mxu0 0.0
  %1136 = vmatpush2.xpose.msra.mxu0 0.0
  %1137 = vmatprep.subr.mxu0 0.0
  %1138 = vmatpush2.xpose.msra.mxu0 0.0
  %1139 = vmatprep.subr.mxu0 0.0
  %1140 = vmatpush2.xpose.msra.mxu0 0.0
  %1141 = vmatprep.subr.mxu0 0.0
  %1142 = vmatpush2.xpose.msra.mxu0 0.0
  %1143 = vmatprep.subr.mxu0 0.0
  %1144 = vmatpush2.xpose.msra.mxu0 0.0
  %1145 = vmatprep.subr.mxu0 0.0
  %1146 = vmatpush2.xpose.msra.mxu0 0.0
  %1147 = vmatprep.subr.mxu0 0.0
  %1148 = vmatpush2.xpose.msra.mxu0 0.0
  %1149 = vmatprep.subr.mxu0 0.0
  %1150 = vmatpush2.xpose.msra.mxu0 0.0
  %1151 = vmatprep.subr.mxu0 0.0
  %1152 = vmatpush2.xpose.msra.mxu0 0.0
  %1153 = vmatprep.subr.mxu0 0.0
  %1154 = vmatpush2.xpose.msra.mxu0 0.0
  %1155 = vmatprep.subr.mxu0 0.0
  %1156 = vmatpush2.xpose.msra.mxu0 0.0
  %1157 = vmatprep.subr.mxu0 0.0
  %1158 = vmatpush2.xpose.msra.mxu0 0.0
  %1159 = vmatprep.subr.mxu0 0.0
  %1160 = vmatpush2.xpose.msra.mxu0 0.0
  %1161 = vmatprep.subr.mxu0 0.0
  %1162 = vmatpush2.xpose.msra.mxu0 0.0
  %1163 = vmatprep.subr.mxu0 0.0
  %1164 = vmatpush2.xpose.msra.mxu0 0.0
  %1165 = vmatprep.mubr.f32.mxu0 0.0
  %1166 = vmatmul.mubr.f32.gmra.mxu0 %v1096
  %v1167 = vpop.f32.mrf.mxu0
  %v1168 = vadd.f32 0.0, %v1167
  %v1169 = vpop.f32.mrf.mxu0
  %1170 = vdwg.mxu0
  %v1172 = vsel %vm866, %v345, 0
  %v1175 = vsel %vm866, %v601, 0
  %1177 = vmatprep.subr.mxu0 0.0
  %1178 = vmatpush1.xpose.msra.mxu0 0.0
  %1179 = vmatprep.subr.mxu0 0.0
  %1180 = vmatpush1.xpose.msra.mxu0 0.0
  %1181 = vmatprep.subr.mxu0 0.0
  %1182 = vmatpush1.xpose.msra.mxu0 0.0
  %1183 = vmatprep.subr.mxu0 0.0
  %1184 = vmatpush1.xpose.msra.mxu0 0.0
  %1185 = vmatprep.subr.mxu0 0.0
  %1186 = vmatpush1.xpose.msra.mxu0 0.0
  %1187 = vmatprep.subr.mxu0 0.0
  %1188 = vmatpush1.xpose.msra.mxu0 0.0
  %1189 = vmatprep.subr.mxu0 0.0
  %1190 = vmatpush1.xpose.msra.mxu0 0.0
  %1191 = vmatprep.subr.mxu0 0.0
  %1192 = vmatpush1.xpose.msra.mxu0 0.0
  %1193 = vmatprep.subr.mxu0 0.0
  %1194 = vmatpush1.xpose.msra.mxu0 0.0
  %1195 = vmatprep.subr.mxu0 0.0
  %1196 = vmatpush1.xpose.msra.mxu0 0.0
  %1197 = vmatprep.subr.mxu0 0.0
  %1198 = vmatpush1.xpose.msra.mxu0 0.0
  %1199 = vmatprep.subr.mxu0 0.0
  %1200 = vmatpush1.xpose.msra.mxu0 0.0
  %1201 = vmatprep.subr.mxu0 0.0
  %1202 = vmatpush1.xpose.msra.mxu0 0.0
  %1203 = vmatprep.subr.mxu0 0.0
  %1204 = vmatpush1.xpose.msra.mxu0 0.0
  %1205 = vmatprep.subr.mxu0 0.0
  %1206 = vmatpush1.xpose.msra.mxu0 0.0
  %1207 = vmatprep.subr.mxu0 0.0
  %1208 = vmatpush1.xpose.msra.mxu0 %v1175
  %1209 = vmatprep.subr.mxu0 0.0
  %1210 = vmatpush2.xpose.msra.mxu0 0.0
  %1211 = vmatprep.subr.mxu0 0.0
  %1212 = vmatpush2.xpose.msra.mxu0 0.0
  %1213 = vmatprep.subr.mxu0 0.0
  %1214 = vmatpush2.xpose.msra.mxu0 0.0
  %1215 = vmatprep.subr.mxu0 0.0
  %1216 = vmatpush2.xpose.msra.mxu0 0.0
  %1217 = vmatprep.subr.mxu0 0.0
  %1218 = vmatpush2.xpose.msra.mxu0 0.0
  %1219 = vmatprep.subr.mxu0 0.0
  %1220 = vmatpush2.xpose.msra.mxu0 0.0
  %1221 = vmatprep.subr.mxu0 0.0
  %1222 = vmatpush2.xpose.msra.mxu0 0.0
  %1223 = vmatprep.subr.mxu0 0.0
  %1224 = vmatpush2.xpose.msra.mxu0 0.0
  %1225 = vmatprep.subr.mxu0 0.0
  %1226 = vmatpush2.xpose.msra.mxu0 0.0
  %1227 = vmatprep.subr.mxu0 0.0
  %1228 = vmatpush2.xpose.msra.mxu0 0.0
  %1229 = vmatprep.subr.mxu0 0.0
  %1230 = vmatpush2.xpose.msra.mxu0 0.0
  %1231 = vmatprep.subr.mxu0 0.0
  %1232 = vmatpush2.xpose.msra.mxu0 0.0
  %1233 = vmatprep.subr.mxu0 0.0
  %1234 = vmatpush2.xpose.msra.mxu0 0.0
  %1235 = vmatprep.subr.mxu0 0.0
  %1236 = vmatpush2.xpose.msra.mxu0 0.0
  %1237 = vmatprep.subr.mxu0 0.0
  %1238 = vmatpush2.xpose.msra.mxu0 0.0
  %1239 = vmatprep.subr.mxu0 0.0
  %1240 = vmatpush2.xpose.msra.mxu0 0.0
  %1241 = vmatprep.mubr.f32.mxu0 0.0
  %1242 = vmatmul.mubr.f32.gmra.mxu0 %v1172
  %v1243 = vpop.f32.mrf.mxu0
  %v1244 = vadd.f32 0.0, %v1243
  %v1245 = vpop.f32.mrf.mxu0
  %1246 = vdwg.mxu0
  %v1248 = vsel %vm866, %v346, 0
  %v1251 = vsel %vm866, %v602, 0
  %1253 = vmatprep.subr.mxu0 0.0
  %1254 = vmatpush1.xpose.msra.mxu0 0.0
  %1255 = vmatprep.subr.mxu0 0.0
  %1256 = vmatpush1.xpose.msra.mxu0 0.0
  %1257 = vmatprep.subr.mxu0 0.0
  %1258 = vmatpush1.xpose.msra.mxu0 0.0
  %1259 = vmatprep.subr.mxu0 0.0
  %1260 = vmatpush1.xpose.msra.mxu0 0.0
  %1261 = vmatprep.subr.mxu0 0.0
  %1262 = vmatpush1.xpose.msra.mxu0 0.0
  %1263 = vmatprep.subr.mxu0 0.0
  %1264 = vmatpush1.xpose.msra.mxu0 0.0
  %1265 = vmatprep.subr.mxu0 0.0
  %1266 = vmatpush1.xpose.msra.mxu0 0.0
  %1267 = vmatprep.subr.mxu0 0.0
  %1268 = vmatpush1.xpose.msra.mxu0 0.0
  %1269 = vmatprep.subr.mxu0 0.0
  %1270 = vmatpush1.xpose.msra.mxu0 0.0
  %1271 = vmatprep.subr.mxu0 0.0
  %1272 = vmatpush1.xpose.msra.mxu0 0.0
  %1273 = vmatprep.subr.mxu0 0.0
  %1274 = vmatpush1.xpose.msra.mxu0 0.0
  %1275 = vmatprep.subr.mxu0 0.0
  %1276 = vmatpush1.xpose.msra.mxu0 0.0
  %1277 = vmatprep.subr.mxu0 0.0
  %1278 = vmatpush1.xpose.msra.mxu0 0.0
  %1279 = vmatprep.subr.mxu0 0.0
  %1280 = vmatpush1.xpose.msra.mxu0 0.0
  %1281 = vmatprep.subr.mxu0 0.0
  %1282 = vmatpush1.xpose.msra.mxu0 0.0
  %1283 = vmatprep.subr.mxu0 0.0
  %1284 = vmatpush1.xpose.msra.mxu0 %v1251
  %1285 = vmatprep.subr.mxu0 0.0
  %1286 = vmatpush2.xpose.msra.mxu0 0.0
  %1287 = vmatprep.subr.mxu0 0.0
  %1288 = vmatpush2.xpose.msra.mxu0 0.0
  %1289 = vmatprep.subr.mxu0 0.0
  %1290 = vmatpush2.xpose.msra.mxu0 0.0
  %1291 = vmatprep.subr.mxu0 0.0
  %1292 = vmatpush2.xpose.msra.mxu0 0.0
  %1293 = vmatprep.subr.mxu0 0.0
  %1294 = vmatpush2.xpose.msra.mxu0 0.0
  %1295 = vmatprep.subr.mxu0 0.0
  %1296 = vmatpush2.xpose.msra.mxu0 0.0
  %1297 = vmatprep.subr.mxu0 0.0
  %1298 = vmatpush2.xpose.msra.mxu0 0.0
  %1299 = vmatprep.subr.mxu0 0.0
  %1300 = vmatpush2.xpose.msra.mxu0 0.0
  %1301 = vmatprep.subr.mxu0 0.0
  %1302 = vmatpush2.xpose.msra.mxu0 0.0
  %1303 = vmatprep.subr.mxu0 0.0
  %1304 = vmatpush2.xpose.msra.mxu0 0.0
  %1305 = vmatprep.subr.mxu0 0.0
  %1306 = vmatpush2.xpose.msra.mxu0 0.0
  %1307 = vmatprep.subr.mxu0 0.0
  %1308 = vmatpush2.xpose.msra.mxu0 0.0
  %1309 = vmatprep.subr.mxu0 0.0
  %1310 = vmatpush2.xpose.msra.mxu0 0.0
  %1311 = vmatprep.subr.mxu0 0.0
  %1312 = vmatpush2.xpose.msra.mxu0 0.0
  %1313 = vmatprep.subr.mxu0 0.0
  %1314 = vmatpush2.xpose.msra.mxu0 0.0
  %1315 = vmatprep.subr.mxu0 0.0
  %1316 = vmatpush2.xpose.msra.mxu0 0.0
  %1317 = vmatprep.mubr.f32.mxu0 0.0
  %1318 = vmatmul.mubr.f32.gmra.mxu0 %v1248
  %v1319 = vpop.f32.mrf.mxu0
  %v1320 = vadd.f32 0.0, %v1319
  %v1321 = vpop.f32.mrf.mxu0
  %1322 = vdwg.mxu0
  %v1324 = vsel %vm866, %v347, 0
  %v1327 = vsel %vm866, %v603, 0
  %1329 = vmatprep.subr.mxu0 0.0
  %1330 = vmatpush1.xpose.msra.mxu0 0.0
  %1331 = vmatprep.subr.mxu0 0.0
  %1332 = vmatpush1.xpose.msra.mxu0 0.0
  %1333 = vmatprep.subr.mxu0 0.0
  %1334 = vmatpush1.xpose.msra.mxu0 0.0
  %1335 = vmatprep.subr.mxu0 0.0
  %1336 = vmatpush1.xpose.msra.mxu0 0.0
  %1337 = vmatprep.subr.mxu0 0.0
  %1338 = vmatpush1.xpose.msra.mxu0 0.0
  %1339 = vmatprep.subr.mxu0 0.0
  %1340 = vmatpush1.xpose.msra.mxu0 0.0
  %1341 = vmatprep.subr.mxu0 0.0
  %1342 = vmatpush1.xpose.msra.mxu0 0.0
  %1343 = vmatprep.subr.mxu0 0.0
  %1344 = vmatpush1.xpose.msra.mxu0 0.0
  %1345 = vmatprep.subr.mxu0 0.0
  %1346 = vmatpush1.xpose.msra.mxu0 0.0
  %1347 = vmatprep.subr.mxu0 0.0
  %1348 = vmatpush1.xpose.msra.mxu0 0.0
  %1349 = vmatprep.subr.mxu0 0.0
  %1350 = vmatpush1.xpose.msra.mxu0 0.0
  %1351 = vmatprep.subr.mxu0 0.0
  %1352 = vmatpush1.xpose.msra.mxu0 0.0
  %1353 = vmatprep.subr.mxu0 0.0
  %1354 = vmatpush1.xpose.msra.mxu0 0.0
  %1355 = vmatprep.subr.mxu0 0.0
  %1356 = vmatpush1.xpose.msra.mxu0 0.0
  %1357 = vmatprep.subr.mxu0 0.0
  %1358 = vmatpush1.xpose.msra.mxu0 0.0
  %1359 = vmatprep.subr.mxu0 0.0
  %1360 = vmatpush1.xpose.msra.mxu0 %v1327
  %1361 = vmatprep.subr.mxu0 0.0
  %1362 = vmatpush2.xpose.msra.mxu0 0.0
  %1363 = vmatprep.subr.mxu0 0.0
  %1364 = vmatpush2.xpose.msra.mxu0 0.0
  %1365 = vmatprep.subr.mxu0 0.0
  %1366 = vmatpush2.xpose.msra.mxu0 0.0
  %1367 = vmatprep.subr.mxu0 0.0
  %1368 = vmatpush2.xpose.msra.mxu0 0.0
  %1369 = vmatprep.subr.mxu0 0.0
  %1370 = vmatpush2.xpose.msra.mxu0 0.0
  %1371 = vmatprep.subr.mxu0 0.0
  %1372 = vmatpush2.xpose.msra.mxu0 0.0
  %1373 = vmatprep.subr.mxu0 0.0
  %1374 = vmatpush2.xpose.msra.mxu0 0.0
  %1375 = vmatprep.subr.mxu0 0.0
  %1376 = vmatpush2.xpose.msra.mxu0 0.0
  %1377 = vmatprep.subr.mxu0 0.0
  %1378 = vmatpush2.xpose.msra.mxu0 0.0
  %1379 = vmatprep.subr.mxu0 0.0
  %1380 = vmatpush2.xpose.msra.mxu0 0.0
  %1381 = vmatprep.subr.mxu0 0.0
  %1382 = vmatpush2.xpose.msra.mxu0 0.0
  %1383 = vmatprep.subr.mxu0 0.0
  %1384 = vmatpush2.xpose.msra.mxu0 0.0
  %1385 = vmatprep.subr.mxu0 0.0
  %1386 = vmatpush2.xpose.msra.mxu0 0.0
  %1387 = vmatprep.subr.mxu0 0.0
  %1388 = vmatpush2.xpose.msra.mxu0 0.0
  %1389 = vmatprep.subr.mxu0 0.0
  %1390 = vmatpush2.xpose.msra.mxu0 0.0
  %1391 = vmatprep.subr.mxu0 0.0
  %1392 = vmatpush2.xpose.msra.mxu0 0.0
  %1393 = vmatprep.mubr.f32.mxu0 0.0
  %1394 = vmatmul.mubr.f32.gmra.mxu0 %v1324
  %v1395 = vpop.f32.mrf.mxu0
  %v1396 = vadd.f32 0.0, %v1395
  %v1397 = vpop.f32.mrf.mxu0
  %1398 = vdwg.mxu0
  %v1400 = vsel %vm866, %v348, 0
  %v1403 = vsel %vm866, %v604, 0
  %1405 = vmatprep.subr.mxu0 0.0
  %1406 = vmatpush1.xpose.msra.mxu0 0.0
  %1407 = vmatprep.subr.mxu0 0.0
  %1408 = vmatpush1.xpose.msra.mxu0 0.0
  %1409 = vmatprep.subr.mxu0 0.0
  %1410 = vmatpush1.xpose.msra.mxu0 0.0
  %1411 = vmatprep.subr.mxu0 0.0
  %1412 = vmatpush1.xpose.msra.mxu0 0.0
  %1413 = vmatprep.subr.mxu0 0.0
  %1414 = vmatpush1.xpose.msra.mxu0 0.0
  %1415 = vmatprep.subr.mxu0 0.0
  %1416 = vmatpush1.xpose.msra.mxu0 0.0
  %1417 = vmatprep.subr.mxu0 0.0
  %1418 = vmatpush1.xpose.msra.mxu0 0.0
  %1419 = vmatprep.subr.mxu0 0.0
  %1420 = vmatpush1.xpose.msra.mxu0 0.0
  %1421 = vmatprep.subr.mxu0 0.0
  %1422 = vmatpush1.xpose.msra.mxu0 0.0
  %1423 = vmatprep.subr.mxu0 0.0
  %1424 = vmatpush1.xpose.msra.mxu0 0.0
  %1425 = vmatprep.subr.mxu0 0.0
  %1426 = vmatpush1.xpose.msra.mxu0 0.0
  %1427 = vmatprep.subr.mxu0 0.0
  %1428 = vmatpush1.xpose.msra.mxu0 0.0
  %1429 = vmatprep.subr.mxu0 0.0
  %1430 = vmatpush1.xpose.msra.mxu0 0.0
  %1431 = vmatprep.subr.mxu0 0.0
  %1432 = vmatpush1.xpose.msra.mxu0 0.0
  %1433 = vmatprep.subr.mxu0 0.0
  %1434 = vmatpush1.xpose.msra.mxu0 0.0
  %1435 = vmatprep.subr.mxu0 0.0
  %1436 = vmatpush1.xpose.msra.mxu0 %v1403
  %1437 = vmatprep.subr.mxu0 0.0
  %1438 = vmatpush2.xpose.msra.mxu0 0.0
  %1439 = vmatprep.subr.mxu0 0.0
  %1440 = vmatpush2.xpose.msra.mxu0 0.0
  %1441 = vmatprep.subr.mxu0 0.0
  %1442 = vmatpush2.xpose.msra.mxu0 0.0
  %1443 = vmatprep.subr.mxu0 0.0
  %1444 = vmatpush2.xpose.msra.mxu0 0.0
  %1445 = vmatprep.subr.mxu0 0.0
  %1446 = vmatpush2.xpose.msra.mxu0 0.0
  %1447 = vmatprep.subr.mxu0 0.0
  %1448 = vmatpush2.xpose.msra.mxu0 0.0
  %1449 = vmatprep.subr.mxu0 0.0
  %1450 = vmatpush2.xpose.msra.mxu0 0.0
  %1451 = vmatprep.subr.mxu0 0.0
  %1452 = vmatpush2.xpose.msra.mxu0 0.0
  %1453 = vmatprep.subr.mxu0 0.0
  %1454 = vmatpush2.xpose.msra.mxu0 0.0
  %1455 = vmatprep.subr.mxu0 0.0
  %1456 = vmatpush2.xpose.msra.mxu0 0.0
  %1457 = vmatprep.subr.mxu0 0.0
  %1458 = vmatpush2.xpose.msra.mxu0 0.0
  %1459 = vmatprep.subr.mxu0 0.0
  %1460 = vmatpush2.xpose.msra.mxu0 0.0
  %1461 = vmatprep.subr.mxu0 0.0
  %1462 = vmatpush2.xpose.msra.mxu0 0.0
  %1463 = vmatprep.subr.mxu0 0.0
  %1464 = vmatpush2.xpose.msra.mxu0 0.0
  %1465 = vmatprep.subr.mxu0 0.0
  %1466 = vmatpush2.xpose.msra.mxu0 0.0
  %1467 = vmatprep.subr.mxu0 0.0
  %1468 = vmatpush2.xpose.msra.mxu0 0.0
  %1469 = vmatprep.mubr.f32.mxu0 0.0
  %1470 = vmatmul.mubr.f32.gmra.mxu0 %v1400
  %v1471 = vpop.f32.mrf.mxu0
  %v1472 = vadd.f32 0.0, %v1471
  %v1473 = vpop.f32.mrf.mxu0
  %1474 = vdwg.mxu0
  %v1475 = vsel %vm865, 1, 0
  %vm1476 = vcmp.eq.s32.totalorder %v1475, 1
  %v1477 = vsel %vm1476, %v940, -32767.0
  %v1478 = vsel %vm1476, %v1016, -32767.0
  %v1479 = vsel %vm1476, %v1092, -32767.0
  %v1480 = vsel %vm1476, %v1168, -32767.0
  %v1481 = vsel %vm1476, %v1244, -32767.0
  %v1482 = vsel %vm1476, %v1320, -32767.0
  %v1483 = vsel %vm1476, %v1396, -32767.0
  %v1484 = vsel %vm1476, %v1472, -32767.0
  %vm1485 = vcmask 64512
  %v1486 = vsel %vm1485, %v1477, -inf
  %1487 = vmax.xlane.f32.xlu0 %v1486
  %v1488 = vpop.xlane.xlu0 %1487
  %v1489 = vsel %vm1485, %v1478, -inf
  %1490 = vmax.xlane.f32.xlu0 %v1489
  %v1491 = vpop.xlane.xlu0 %1490
  %v1492 = vsel %vm1485, %v1479, -inf
  %1493 = vmax.xlane.f32.xlu0 %v1492
  %v1494 = vpop.xlane.xlu0 %1493
  %v1495 = vsel %vm1485, %v1480, -inf
  %1496 = vmax.xlane.f32.xlu0 %v1495
  %v1497 = vpop.xlane.xlu0 %1496
  %v1498 = vsel %vm1485, %v1481, -inf
  %1499 = vmax.xlane.f32.xlu0 %v1498
  %v1500 = vpop.xlane.xlu0 %1499
  %v1501 = vsel %vm1485, %v1482, -inf
  %1502 = vmax.xlane.f32.xlu0 %v1501
  %v1503 = vpop.xlane.xlu0 %1502
  %v1504 = vsel %vm1485, %v1483, -inf
  %1505 = vmax.xlane.f32.xlu0 %v1504
  %v1506 = vpop.xlane.xlu0 %1505
  %v1507 = vsel %vm1485, %v1484, -inf
  %1508 = vmax.xlane.f32.xlu0 %v1507
  %v1509 = vpop.xlane.xlu0 %1508
  %v1510 = vsub.f32 %v1477, %v1488
  %v1511 = vsub.f32 %v1478, %v1491
  %v1512 = vsub.f32 %v1479, %v1494
  %v1513 = vsub.f32 %v1480, %v1497
  %v1514 = vsub.f32 %v1481, %v1500
  %v1515 = vsub.f32 %v1482, %v1503
  %v1516 = vsub.f32 %v1483, %v1506
  %v1517 = vsub.f32 %v1484, %v1509
  %v1518 = vmul.f32 %v1510, 1.442695
  %v1519 = vpow.pop %v1518
  %v1520 = vmul.f32 %v1511, 1.442695
  %v1521 = vpow.pop %v1520
  %v1522 = vmul.f32 %v1512, 1.442695
  %v1523 = vpow.pop %v1522
  %v1524 = vmul.f32 %v1513, 1.442695
  %v1525 = vpow.pop %v1524
  %v1526 = vmul.f32 %v1514, 1.442695
  %v1527 = vpow.pop %v1526
  %v1528 = vmul.f32 %v1515, 1.442695
  %v1529 = vpow.pop %v1528
  %v1530 = vmul.f32 %v1516, 1.442695
  %v1531 = vpow.pop %v1530
  %v1532 = vmul.f32 %v1517, 1.442695
  %v1533 = vpow.pop %v1532
  %v1534 = vsel %vm1485, %v1519, 0.0
  %1535 = vadd.xlane.f32.xlu0 %v1534
  %v1536 = vpop.xlane.xlu0 %1535
  %v1537 = vsel %vm1485, %v1521, 0.0
  %1538 = vadd.xlane.f32.xlu0 %v1537
  %v1539 = vpop.xlane.xlu0 %1538
  %v1540 = vsel %vm1485, %v1523, 0.0
  %1541 = vadd.xlane.f32.xlu0 %v1540
  %v1542 = vpop.xlane.xlu0 %1541
  %v1543 = vsel %vm1485, %v1525, 0.0
  %1544 = vadd.xlane.f32.xlu0 %v1543
  %v1545 = vpop.xlane.xlu0 %1544
  %v1546 = vsel %vm1485, %v1527, 0.0
  %1547 = vadd.xlane.f32.xlu0 %v1546
  %v1548 = vpop.xlane.xlu0 %1547
  %v1549 = vsel %vm1485, %v1529, 0.0
  %1550 = vadd.xlane.f32.xlu0 %v1549
  %v1551 = vpop.xlane.xlu0 %1550
  %v1552 = vsel %vm1485, %v1531, 0.0
  %1553 = vadd.xlane.f32.xlu0 %v1552
  %v1554 = vpop.xlane.xlu0 %1553
  %v1555 = vsel %vm1485, %v1533, 0.0
  %1556 = vadd.xlane.f32.xlu0 %v1555
  %v1557 = vpop.xlane.xlu0 %1556
  %v1558 = vrcp.pop %v1536
  %v1559 = vmul.f32 %v1519, %v1558
  %v1560 = vrcp.pop %v1539
  %v1561 = vmul.f32 %v1521, %v1560
  %v1562 = vrcp.pop %v1542
  %v1563 = vmul.f32 %v1523, %v1562
  %v1564 = vrcp.pop %v1545
  %v1565 = vmul.f32 %v1525, %v1564
  %v1566 = vrcp.pop %v1548
  %v1567 = vmul.f32 %v1527, %v1566
  %v1568 = vrcp.pop %v1551
  %v1569 = vmul.f32 %v1529, %v1568
  %v1570 = vrcp.pop %v1554
  %v1571 = vmul.f32 %v1531, %v1570
  %v1572 = vrcp.pop %v1557
  %v1573 = vmul.f32 %v1533, %v1572
  %v1575 = vsel %vm1485, %v1559, 0
  %1577 = vmatprep.subr.mxu0 0.0
  %1578 = vmatpush1.msra.mxu0 0.0
  %1579 = vmatprep.subr.mxu0 0.0
  %1580 = vmatpush1.msra.mxu0 0.0
  %1581 = vmatprep.subr.mxu0 0.0
  %1582 = vmatpush1.msra.mxu0 0.0
  %1583 = vmatprep.subr.mxu0 0.0
  %1584 = vmatpush1.msra.mxu0 0.0
  %1585 = vmatprep.subr.mxu0 0.0
  %1586 = vmatpush1.msra.mxu0 0.0
  %1587 = vmatprep.subr.mxu0 0.0
  %1588 = vmatpush1.msra.mxu0 0.0
  %1589 = vmatprep.subr.mxu0 0.0
  %1590 = vmatpush1.msra.mxu0 0.0
  %1591 = vmatprep.subr.mxu0 0.0
  %1592 = vmatpush1.msra.mxu0 0.0
  %1593 = vmatprep.subr.mxu0 0.0
  %1594 = vmatpush1.msra.mxu0 0.0
  %1595 = vmatprep.subr.mxu0 0.0
  %1596 = vmatpush1.msra.mxu0 0.0
  %1597 = vmatprep.subr.mxu0 0.0
  %1598 = vmatpush1.msra.mxu0 0.0
  %1599 = vmatprep.subr.mxu0 0.0
  %1600 = vmatpush1.msra.mxu0 0.0
  %1601 = vmatprep.subr.mxu0 0.0
  %1602 = vmatpush1.msra.mxu0 0.0
  %1603 = vmatprep.subr.mxu0 0.0
  %1604 = vmatpush1.msra.mxu0 0.0
  %1605 = vmatprep.subr.mxu0 0.0
  %1606 = vmatpush1.msra.mxu0 0.0
  %1607 = vmatprep.subr.mxu0 0.0
  %1608 = vmatpush1.msra.mxu0 %v853
  %1609 = vmatprep.subr.mxu0 0.0
  %1610 = vmatpush2.msra.mxu0 0.0
  %1611 = vmatprep.subr.mxu0 0.0
  %1612 = vmatpush2.msra.mxu0 0.0
  %1613 = vmatprep.subr.mxu0 0.0
  %1614 = vmatpush2.msra.mxu0 0.0
  %1615 = vmatprep.subr.mxu0 0.0
  %1616 = vmatpush2.msra.mxu0 0.0
  %1617 = vmatprep.subr.mxu0 0.0
  %1618 = vmatpush2.msra.mxu0 0.0
  %1619 = vmatprep.subr.mxu0 0.0
  %1620 = vmatpush2.msra.mxu0 0.0
  %1621 = vmatprep.subr.mxu0 0.0
  %1622 = vmatpush2.msra.mxu0 0.0
  %1623 = vmatprep.subr.mxu0 0.0
  %1624 = vmatpush2.msra.mxu0 0.0
  %1625 = vmatprep.subr.mxu0 0.0
  %1626 = vmatpush2.msra.mxu0 0.0
  %1627 = vmatprep.subr.mxu0 0.0
  %1628 = vmatpush2.msra.mxu0 0.0
  %1629 = vmatprep.subr.mxu0 0.0
  %1630 = vmatpush2.msra.mxu0 0.0
  %1631 = vmatprep.subr.mxu0 0.0
  %1632 = vmatpush2.msra.mxu0 0.0
  %1633 = vmatprep.subr.mxu0 0.0
  %1634 = vmatpush2.msra.mxu0 0.0
  %1635 = vmatprep.subr.mxu0 0.0
  %1636 = vmatpush2.msra.mxu0 0.0
  %1637 = vmatprep.subr.mxu0 0.0
  %1638 = vmatpush2.msra.mxu0 0.0
  %1639 = vmatprep.subr.mxu0 0.0
  %1640 = vmatpush2.msra.mxu0 0.0
  %1641 = vmatprep.mubr.f32.mxu0 0.0
  %1642 = vmatmul.mubr.f32.gmra.mxu0 %v1575
  %v1643 = vpop.f32.mrf.mxu0
  %v1644 = vadd.f32 0.0, %v1643
  %v1645 = vpop.f32.mrf.mxu0
  %1646 = vdwg.mxu0
  %v1648 = vsel %vm1485, %v1561, 0
  %1650 = vmatprep.subr.mxu0 0.0
  %1651 = vmatpush1.msra.mxu0 0.0
  %1652 = vmatprep.subr.mxu0 0.0
  %1653 = vmatpush1.msra.mxu0 0.0
  %1654 = vmatprep.subr.mxu0 0.0
  %1655 = vmatpush1.msra.mxu0 0.0
  %1656 = vmatprep.subr.mxu0 0.0
  %1657 = vmatpush1.msra.mxu0 0.0
  %1658 = vmatprep.subr.mxu0 0.0
  %1659 = vmatpush1.msra.mxu0 0.0
  %1660 = vmatprep.subr.mxu0 0.0
  %1661 = vmatpush1.msra.mxu0 0.0
  %1662 = vmatprep.subr.mxu0 0.0
  %1663 = vmatpush1.msra.mxu0 0.0
  %1664 = vmatprep.subr.mxu0 0.0
  %1665 = vmatpush1.msra.mxu0 0.0
  %1666 = vmatprep.subr.mxu0 0.0
  %1667 = vmatpush1.msra.mxu0 0.0
  %1668 = vmatprep.subr.mxu0 0.0
  %1669 = vmatpush1.msra.mxu0 0.0
  %1670 = vmatprep.subr.mxu0 0.0
  %1671 = vmatpush1.msra.mxu0 0.0
  %1672 = vmatprep.subr.mxu0 0.0
  %1673 = vmatpush1.msra.mxu0 0.0
  %1674 = vmatprep.subr.mxu0 0.0
  %1675 = vmatpush1.msra.mxu0 0.0
  %1676 = vmatprep.subr.mxu0 0.0
  %1677 = vmatpush1.msra.mxu0 0.0
  %1678 = vmatprep.subr.mxu0 0.0
  %1679 = vmatpush1.msra.mxu0 0.0
  %1680 = vmatprep.subr.mxu0 0.0
  %1681 = vmatpush1.msra.mxu0 %v854
  %1682 = vmatprep.subr.mxu0 0.0
  %1683 = vmatpush2.msra.mxu0 0.0
  %1684 = vmatprep.subr.mxu0 0.0
  %1685 = vmatpush2.msra.mxu0 0.0
  %1686 = vmatprep.subr.mxu0 0.0
  %1687 = vmatpush2.msra.mxu0 0.0
  %1688 = vmatprep.subr.mxu0 0.0
  %1689 = vmatpush2.msra.mxu0 0.0
  %1690 = vmatprep.subr.mxu0 0.0
  %1691 = vmatpush2.msra.mxu0 0.0
  %1692 = vmatprep.subr.mxu0 0.0
  %1693 = vmatpush2.msra.mxu0 0.0
  %1694 = vmatprep.subr.mxu0 0.0
  %1695 = vmatpush2.msra.mxu0 0.0
  %1696 = vmatprep.subr.mxu0 0.0
  %1697 = vmatpush2.msra.mxu0 0.0
  %1698 = vmatprep.subr.mxu0 0.0
  %1699 = vmatpush2.msra.mxu0 0.0
  %1700 = vmatprep.subr.mxu0 0.0
  %1701 = vmatpush2.msra.mxu0 0.0
  %1702 = vmatprep.subr.mxu0 0.0
  %1703 = vmatpush2.msra.mxu0 0.0
  %1704 = vmatprep.subr.mxu0 0.0
  %1705 = vmatpush2.msra.mxu0 0.0
  %1706 = vmatprep.subr.mxu0 0.0
  %1707 = vmatpush2.msra.mxu0 0.0
  %1708 = vmatprep.subr.mxu0 0.0
  %1709 = vmatpush2.msra.mxu0 0.0
  %1710 = vmatprep.subr.mxu0 0.0
  %1711 = vmatpush2.msra.mxu0 0.0
  %1712 = vmatprep.subr.mxu0 0.0
  %1713 = vmatpush2.msra.mxu0 0.0
  %1714 = vmatprep.mubr.f32.mxu0 0.0
  %1715 = vmatmul.mubr.f32.gmra.mxu0 %v1648
  %v1716 = vpop.f32.mrf.mxu0
  %v1717 = vadd.f32 0.0, %v1716
  %v1718 = vpop.f32.mrf.mxu0
  %1719 = vdwg.mxu0
  %v1721 = vsel %vm1485, %v1563, 0
  %1723 = vmatprep.subr.mxu0 0.0
  %1724 = vmatpush1.msra.mxu0 0.0
  %1725 = vmatprep.subr.mxu0 0.0
  %1726 = vmatpush1.msra.mxu0 0.0
  %1727 = vmatprep.subr.mxu0 0.0
  %1728 = vmatpush1.msra.mxu0 0.0
  %1729 = vmatprep.subr.mxu0 0.0
  %1730 = vmatpush1.msra.mxu0 0.0
  %1731 = vmatprep.subr.mxu0 0.0
  %1732 = vmatpush1.msra.mxu0 0.0
  %1733 = vmatprep.subr.mxu0 0.0
  %1734 = vmatpush1.msra.mxu0 0.0
  %1735 = vmatprep.subr.mxu0 0.0
  %1736 = vmatpush1.msra.mxu0 0.0
  %1737 = vmatprep.subr.mxu0 0.0
  %1738 = vmatpush1.msra.mxu0 0.0
  %1739 = vmatprep.subr.mxu0 0.0
  %1740 = vmatpush1.msra.mxu0 0.0
  %1741 = vmatprep.subr.mxu0 0.0
  %1742 = vmatpush1.msra.mxu0 0.0
  %1743 = vmatprep.subr.mxu0 0.0
  %1744 = vmatpush1.msra.mxu0 0.0
  %1745 = vmatprep.subr.mxu0 0.0
  %1746 = vmatpush1.msra.mxu0 0.0
  %1747 = vmatprep.subr.mxu0 0.0
  %1748 = vmatpush1.msra.mxu0 0.0
  %1749 = vmatprep.subr.mxu0 0.0
  %1750 = vmatpush1.msra.mxu0 0.0
  %1751 = vmatprep.subr.mxu0 0.0
  %1752 = vmatpush1.msra.mxu0 0.0
  %1753 = vmatprep.subr.mxu0 0.0
  %1754 = vmatpush1.msra.mxu0 %v855
  %1755 = vmatprep.subr.mxu0 0.0
  %1756 = vmatpush2.msra.mxu0 0.0
  %1757 = vmatprep.subr.mxu0 0.0
  %1758 = vmatpush2.msra.mxu0 0.0
  %1759 = vmatprep.subr.mxu0 0.0
  %1760 = vmatpush2.msra.mxu0 0.0
  %1761 = vmatprep.subr.mxu0 0.0
  %1762 = vmatpush2.msra.mxu0 0.0
  %1763 = vmatprep.subr.mxu0 0.0
  %1764 = vmatpush2.msra.mxu0 0.0
  %1765 = vmatprep.subr.mxu0 0.0
  %1766 = vmatpush2.msra.mxu0 0.0
  %1767 = vmatprep.subr.mxu0 0.0
  %1768 = vmatpush2.msra.mxu0 0.0
  %1769 = vmatprep.subr.mxu0 0.0
  %1770 = vmatpush2.msra.mxu0 0.0
  %1771 = vmatprep.subr.mxu0 0.0
  %1772 = vmatpush2.msra.mxu0 0.0
  %1773 = vmatprep.subr.mxu0 0.0
  %1774 = vmatpush2.msra.mxu0 0.0
  %1775 = vmatprep.subr.mxu0 0.0
  %1776 = vmatpush2.msra.mxu0 0.0
  %1777 = vmatprep.subr.mxu0 0.0
  %1778 = vmatpush2.msra.mxu0 0.0
  %1779 = vmatprep.subr.mxu0 0.0
  %1780 = vmatpush2.msra.mxu0 0.0
  %1781 = vmatprep.subr.mxu0 0.0
  %1782 = vmatpush2.msra.mxu0 0.0
  %1783 = vmatprep.subr.mxu0 0.0
  %1784 = vmatpush2.msra.mxu0 0.0
  %1785 = vmatprep.subr.mxu0 0.0
  %1786 = vmatpush2.msra.mxu0 0.0
  %1787 = vmatprep.mubr.f32.mxu0 0.0
  %1788 = vmatmul.mubr.f32.gmra.mxu0 %v1721
  %v1789 = vpop.f32.mrf.mxu0
  %v1790 = vadd.f32 0.0, %v1789
  %v1791 = vpop.f32.mrf.mxu0
  %1792 = vdwg.mxu0
  %v1794 = vsel %vm1485, %v1565, 0
  %1796 = vmatprep.subr.mxu0 0.0
  %1797 = vmatpush1.msra.mxu0 0.0
  %1798 = vmatprep.subr.mxu0 0.0
  %1799 = vmatpush1.msra.mxu0 0.0
  %1800 = vmatprep.subr.mxu0 0.0
  %1801 = vmatpush1.msra.mxu0 0.0
  %1802 = vmatprep.subr.mxu0 0.0
  %1803 = vmatpush1.msra.mxu0 0.0
  %1804 = vmatprep.subr.mxu0 0.0
  %1805 = vmatpush1.msra.mxu0 0.0
  %1806 = vmatprep.subr.mxu0 0.0
  %1807 = vmatpush1.msra.mxu0 0.0
  %1808 = vmatprep.subr.mxu0 0.0
  %1809 = vmatpush1.msra.mxu0 0.0
  %1810 = vmatprep.subr.mxu0 0.0
  %1811 = vmatpush1.msra.mxu0 0.0
  %1812 = vmatprep.subr.mxu0 0.0
  %1813 = vmatpush1.msra.mxu0 0.0
  %1814 = vmatprep.subr.mxu0 0.0
  %1815 = vmatpush1.msra.mxu0 0.0
  %1816 = vmatprep.subr.mxu0 0.0
  %1817 = vmatpush1.msra.mxu0 0.0
  %1818 = vmatprep.subr.mxu0 0.0
  %1819 = vmatpush1.msra.mxu0 0.0
  %1820 = vmatprep.subr.mxu0 0.0
  %1821 = vmatpush1.msra.mxu0 0.0
  %1822 = vmatprep.subr.mxu0 0.0
  %1823 = vmatpush1.msra.mxu0 0.0
  %1824 = vmatprep.subr.mxu0 0.0
  %1825 = vmatpush1.msra.mxu0 0.0
  %1826 = vmatprep.subr.mxu0 0.0
  %1827 = vmatpush1.msra.mxu0 %v856
  %1828 = vmatprep.subr.mxu0 0.0
  %1829 = vmatpush2.msra.mxu0 0.0
  %1830 = vmatprep.subr.mxu0 0.0
  %1831 = vmatpush2.msra.mxu0 0.0
  %1832 = vmatprep.subr.mxu0 0.0
  %1833 = vmatpush2.msra.mxu0 0.0
  %1834 = vmatprep.subr.mxu0 0.0
  %1835 = vmatpush2.msra.mxu0 0.0
  %1836 = vmatprep.subr.mxu0 0.0
  %1837 = vmatpush2.msra.mxu0 0.0
  %1838 = vmatprep.subr.mxu0 0.0
  %1839 = vmatpush2.msra.mxu0 0.0
  %1840 = vmatprep.subr.mxu0 0.0
  %1841 = vmatpush2.msra.mxu0 0.0
  %1842 = vmatprep.subr.mxu0 0.0
  %1843 = vmatpush2.msra.mxu0 0.0
  %1844 = vmatprep.subr.mxu0 0.0
  %1845 = vmatpush2.msra.mxu0 0.0
  %1846 = vmatprep.subr.mxu0 0.0
  %1847 = vmatpush2.msra.mxu0 0.0
  %1848 = vmatprep.subr.mxu0 0.0
  %1849 = vmatpush2.msra.mxu0 0.0
  %1850 = vmatprep.subr.mxu0 0.0
  %1851 = vmatpush2.msra.mxu0 0.0
  %1852 = vmatprep.subr.mxu0 0.0
  %1853 = vmatpush2.msra.mxu0 0.0
  %1854 = vmatprep.subr.mxu0 0.0
  %1855 = vmatpush2.msra.mxu0 0.0
  %1856 = vmatprep.subr.mxu0 0.0
  %1857 = vmatpush2.msra.mxu0 0.0
  %1858 = vmatprep.subr.mxu0 0.0
  %1859 = vmatpush2.msra.mxu0 0.0
  %1860 = vmatprep.mubr.f32.mxu0 0.0
  %1861 = vmatmul.mubr.f32.gmra.mxu0 %v1794
  %v1862 = vpop.f32.mrf.mxu0
  %v1863 = vadd.f32 0.0, %v1862
  %v1864 = vpop.f32.mrf.mxu0
  %1865 = vdwg.mxu0
  %v1867 = vsel %vm1485, %v1567, 0
  %1869 = vmatprep.subr.mxu0 0.0
  %1870 = vmatpush1.msra.mxu0 0.0
  %1871 = vmatprep.subr.mxu0 0.0
  %1872 = vmatpush1.msra.mxu0 0.0
  %1873 = vmatprep.subr.mxu0 0.0
  %1874 = vmatpush1.msra.mxu0 0.0
  %1875 = vmatprep.subr.mxu0 0.0
  %1876 = vmatpush1.msra.mxu0 0.0
  %1877 = vmatprep.subr.mxu0 0.0
  %1878 = vmatpush1.msra.mxu0 0.0
  %1879 = vmatprep.subr.mxu0 0.0
  %1880 = vmatpush1.msra.mxu0 0.0
  %1881 = vmatprep.subr.mxu0 0.0
  %1882 = vmatpush1.msra.mxu0 0.0
  %1883 = vmatprep.subr.mxu0 0.0
  %1884 = vmatpush1.msra.mxu0 0.0
  %1885 = vmatprep.subr.mxu0 0.0
  %1886 = vmatpush1.msra.mxu0 0.0
  %1887 = vmatprep.subr.mxu0 0.0
  %1888 = vmatpush1.msra.mxu0 0.0
  %1889 = vmatprep.subr.mxu0 0.0
  %1890 = vmatpush1.msra.mxu0 0.0
  %1891 = vmatprep.subr.mxu0 0.0
  %1892 = vmatpush1.msra.mxu0 0.0
  %1893 = vmatprep.subr.mxu0 0.0
  %1894 = vmatpush1.msra.mxu0 0.0
  %1895 = vmatprep.subr.mxu0 0.0
  %1896 = vmatpush1.msra.mxu0 0.0
  %1897 = vmatprep.subr.mxu0 0.0
  %1898 = vmatpush1.msra.mxu0 0.0
  %1899 = vmatprep.subr.mxu0 0.0
  %1900 = vmatpush1.msra.mxu0 %v857
  %1901 = vmatprep.subr.mxu0 0.0
  %1902 = vmatpush2.msra.mxu0 0.0
  %1903 = vmatprep.subr.mxu0 0.0
  %1904 = vmatpush2.msra.mxu0 0.0
  %1905 = vmatprep.subr.mxu0 0.0
  %1906 = vmatpush2.msra.mxu0 0.0
  %1907 = vmatprep.subr.mxu0 0.0
  %1908 = vmatpush2.msra.mxu0 0.0
  %1909 = vmatprep.subr.mxu0 0.0
  %1910 = vmatpush2.msra.mxu0 0.0
  %1911 = vmatprep.subr.mxu0 0.0
  %1912 = vmatpush2.msra.mxu0 0.0
  %1913 = vmatprep.subr.mxu0 0.0
  %1914 = vmatpush2.msra.mxu0 0.0
  %1915 = vmatprep.subr.mxu0 0.0
  %1916 = vmatpush2.msra.mxu0 0.0
  %1917 = vmatprep.subr.mxu0 0.0
  %1918 = vmatpush2.msra.mxu0 0.0
  %1919 = vmatprep.subr.mxu0 0.0
  %1920 = vmatpush2.msra.mxu0 0.0
  %1921 = vmatprep.subr.mxu0 0.0
  %1922 = vmatpush2.msra.mxu0 0.0
  %1923 = vmatprep.subr.mxu0 0.0
  %1924 = vmatpush2.msra.mxu0 0.0
  %1925 = vmatprep.subr.mxu0 0.0
  %1926 = vmatpush2.msra.mxu0 0.0
  %1927 = vmatprep.subr.mxu0 0.0
  %1928 = vmatpush2.msra.mxu0 0.0
  %1929 = vmatprep.subr.mxu0 0.0
  %1930 = vmatpush2.msra.mxu0 0.0
  %1931 = vmatprep.subr.mxu0 0.0
  %1932 = vmatpush2.msra.mxu0 0.0
  %1933 = vmatprep.mubr.f32.mxu0 0.0
  %1934 = vmatmul.mubr.f32.gmra.mxu0 %v1867
  %v1935 = vpop.f32.mrf.mxu0
  %v1936 = vadd.f32 0.0, %v1935
  %v1937 = vpop.f32.mrf.mxu0
  %1938 = vdwg.mxu0
  %v1940 = vsel %vm1485, %v1569, 0
  %1942 = vmatprep.subr.mxu0 0.0
  %1943 = vmatpush1.msra.mxu0 0.0
  %1944 = vmatprep.subr.mxu0 0.0
  %1945 = vmatpush1.msra.mxu0 0.0
  %1946 = vmatprep.subr.mxu0 0.0
  %1947 = vmatpush1.msra.mxu0 0.0
  %1948 = vmatprep.subr.mxu0 0.0
  %1949 = vmatpush1.msra.mxu0 0.0
  %1950 = vmatprep.subr.mxu0 0.0
  %1951 = vmatpush1.msra.mxu0 0.0
  %1952 = vmatprep.subr.mxu0 0.0
  %1953 = vmatpush1.msra.mxu0 0.0
  %1954 = vmatprep.subr.mxu0 0.0
  %1955 = vmatpush1.msra.mxu0 0.0
  %1956 = vmatprep.subr.mxu0 0.0
  %1957 = vmatpush1.msra.mxu0 0.0
  %1958 = vmatprep.subr.mxu0 0.0
  %1959 = vmatpush1.msra.mxu0 0.0
  %1960 = vmatprep.subr.mxu0 0.0
  %1961 = vmatpush1.msra.mxu0 0.0
  %1962 = vmatprep.subr.mxu0 0.0
  %1963 = vmatpush1.msra.mxu0 0.0
  %1964 = vmatprep.subr.mxu0 0.0
  %1965 = vmatpush1.msra.mxu0 0.0
  %1966 = vmatprep.subr.mxu0 0.0
  %1967 = vmatpush1.msra.mxu0 0.0
  %1968 = vmatprep.subr.mxu0 0.0
  %1969 = vmatpush1.msra.mxu0 0.0
  %1970 = vmatprep.subr.mxu0 0.0
  %1971 = vmatpush1.msra.mxu0 0.0
  %1972 = vmatprep.subr.mxu0 0.0
  %1973 = vmatpush1.msra.mxu0 %v858
  %1974 = vmatprep.subr.mxu0 0.0
  %1975 = vmatpush2.msra.mxu0 0.0
  %1976 = vmatprep.subr.mxu0 0.0
  %1977 = vmatpush2.msra.mxu0 0.0
  %1978 = vmatprep.subr.mxu0 0.0
  %1979 = vmatpush2.msra.mxu0 0.0
  %1980 = vmatprep.subr.mxu0 0.0
  %1981 = vmatpush2.msra.mxu0 0.0
  %1982 = vmatprep.subr.mxu0 0.0
  %1983 = vmatpush2.msra.mxu0 0.0
  %1984 = vmatprep.subr.mxu0 0.0
  %1985 = vmatpush2.msra.mxu0 0.0
  %1986 = vmatprep.subr.mxu0 0.0
  %1987 = vmatpush2.msra.mxu0 0.0
  %1988 = vmatprep.subr.mxu0 0.0
  %1989 = vmatpush2.msra.mxu0 0.0
  %1990 = vmatprep.subr.mxu0 0.0
  %1991 = vmatpush2.msra.mxu0 0.0
  %1992 = vmatprep.subr.mxu0 0.0
  %1993 = vmatpush2.msra.mxu0 0.0
  %1994 = vmatprep.subr.mxu0 0.0
  %1995 = vmatpush2.msra.mxu0 0.0
  %1996 = vmatprep.subr.mxu0 0.0
  %1997 = vmatpush2.msra.mxu0 0.0
  %1998 = vmatprep.subr.mxu0 0.0
  %1999 = vmatpush2.msra.mxu0 0.0
  %2000 = vmatprep.subr.mxu0 0.0
  %2001 = vmatpush2.msra.mxu0 0.0
  %2002 = vmatprep.subr.mxu0 0.0
  %2003 = vmatpush2.msra.mxu0 0.0
  %2004 = vmatprep.subr.mxu0 0.0
  %2005 = vmatpush2.msra.mxu0 0.0
  %2006 = vmatprep.mubr.f32.mxu0 0.0
  %2007 = vmatmul.mubr.f32.gmra.mxu0 %v1940
  %v2008 = vpop.f32.mrf.mxu0
  %v2009 = vadd.f32 0.0, %v2008
  %v2010 = vpop.f32.mrf.mxu0
  %2011 = vdwg.mxu0
  %v2013 = vsel %vm1485, %v1571, 0
  %2015 = vmatprep.subr.mxu0 0.0
  %2016 = vmatpush1.msra.mxu0 0.0
  %2017 = vmatprep.subr.mxu0 0.0
  %2018 = vmatpush1.msra.mxu0 0.0
  %2019 = vmatprep.subr.mxu0 0.0
  %2020 = vmatpush1.msra.mxu0 0.0
  %2021 = vmatprep.subr.mxu0 0.0
  %2022 = vmatpush1.msra.mxu0 0.0
  %2023 = vmatprep.subr.mxu0 0.0
  %2024 = vmatpush1.msra.mxu0 0.0
  %2025 = vmatprep.subr.mxu0 0.0
  %2026 = vmatpush1.msra.mxu0 0.0
  %2027 = vmatprep.subr.mxu0 0.0
  %2028 = vmatpush1.msra.mxu0 0.0
  %2029 = vmatprep.subr.mxu0 0.0
  %2030 = vmatpush1.msra.mxu0 0.0
  %2031 = vmatprep.subr.mxu0 0.0
  %2032 = vmatpush1.msra.mxu0 0.0
  %2033 = vmatprep.subr.mxu0 0.0
  %2034 = vmatpush1.msra.mxu0 0.0
  %2035 = vmatprep.subr.mxu0 0.0
  %2036 = vmatpush1.msra.mxu0 0.0
  %2037 = vmatprep.subr.mxu0 0.0
  %2038 = vmatpush1.msra.mxu0 0.0
  %2039 = vmatprep.subr.mxu0 0.0
  %2040 = vmatpush1.msra.mxu0 0.0
  %2041 = vmatprep.subr.mxu0 0.0
  %2042 = vmatpush1.msra.mxu0 0.0
  %2043 = vmatprep.subr.mxu0 0.0
  %2044 = vmatpush1.msra.mxu0 0.0
  %2045 = vmatprep.subr.mxu0 0.0
  %2046 = vmatpush1.msra.mxu0 %v859
  %2047 = vmatprep.subr.mxu0 0.0
  %2048 = vmatpush2.msra.mxu0 0.0
  %2049 = vmatprep.subr.mxu0 0.0
  %2050 = vmatpush2.msra.mxu0 0.0
  %2051 = vmatprep.subr.mxu0 0.0
  %2052 = vmatpush2.msra.mxu0 0.0
  %2053 = vmatprep.subr.mxu0 0.0
  %2054 = vmatpush2.msra.mxu0 0.0
  %2055 = vmatprep.subr.mxu0 0.0
  %2056 = vmatpush2.msra.mxu0 0.0
  %2057 = vmatprep.subr.mxu0 0.0
  %2058 = vmatpush2.msra.mxu0 0.0
  %2059 = vmatprep.subr.mxu0 0.0
  %2060 = vmatpush2.msra.mxu0 0.0
  %2061 = vmatprep.subr.mxu0 0.0
  %2062 = vmatpush2.msra.mxu0 0.0
  %2063 = vmatprep.subr.mxu0 0.0
  %2064 = vmatpush2.msra.mxu0 0.0
  %2065 = vmatprep.subr.mxu0 0.0
  %2066 = vmatpush2.msra.mxu0 0.0
  %2067 = vmatprep.subr.mxu0 0.0
  %2068 = vmatpush2.msra.mxu0 0.0
  %2069 = vmatprep.subr.mxu0 0.0
  %2070 = vmatpush2.msra.mxu0 0.0
  %2071 = vmatprep.subr.mxu0 0.0
  %2072 = vmatpush2.msra.mxu0 0.0
  %2073 = vmatprep.subr.mxu0 0.0
  %2074 = vmatpush2.msra.mxu0 0.0
  %2075 = vmatprep.subr.mxu0 0.0
  %2076 = vmatpush2.msra.mxu0 0.0
  %2077 = vmatprep.subr.mxu0 0.0
  %2078 = vmatpush2.msra.mxu0 0.0
  %2079 = vmatprep.mubr.f32.mxu0 0.0
  %2080 = vmatmul.mubr.f32.gmra.mxu0 %v2013
  %v2081 = vpop.f32.mrf.mxu0
  %v2082 = vadd.f32 0.0, %v2081
  %v2083 = vpop.f32.mrf.mxu0
  %2084 = vdwg.mxu0
  %v2086 = vsel %vm1485, %v1573, 0
  %2088 = vmatprep.subr.mxu0 0.0
  %2089 = vmatpush1.msra.mxu0 0.0
  %2090 = vmatprep.subr.mxu0 0.0
  %2091 = vmatpush1.msra.mxu0 0.0
  %2092 = vmatprep.subr.mxu0 0.0
  %2093 = vmatpush1.msra.mxu0 0.0
  %2094 = vmatprep.subr.mxu0 0.0
  %2095 = vmatpush1.msra.mxu0 0.0
  %2096 = vmatprep.subr.mxu0 0.0
  %2097 = vmatpush1.msra.mxu0 0.0
  %2098 = vmatprep.subr.mxu0 0.0
  %2099 = vmatpush1.msra.mxu0 0.0
  %2100 = vmatprep.subr.mxu0 0.0
  %2101 = vmatpush1.msra.mxu0 0.0
  %2102 = vmatprep.subr.mxu0 0.0
  %2103 = vmatpush1.msra.mxu0 0.0
  %2104 = vmatprep.subr.mxu0 0.0
  %2105 = vmatpush1.msra.mxu0 0.0
  %2106 = vmatprep.subr.mxu0 0.0
  %2107 = vmatpush1.msra.mxu0 0.0
  %2108 = vmatprep.subr.mxu0 0.0
  %2109 = vmatpush1.msra.mxu0 0.0
  %2110 = vmatprep.subr.mxu0 0.0
  %2111 = vmatpush1.msra.mxu0 0.0
  %2112 = vmatprep.subr.mxu0 0.0
  %2113 = vmatpush1.msra.mxu0 0.0
  %2114 = vmatprep.subr.mxu0 0.0
  %2115 = vmatpush1.msra.mxu0 0.0
  %2116 = vmatprep.subr.mxu0 0.0
  %2117 = vmatpush1.msra.mxu0 0.0
  %2118 = vmatprep.subr.mxu0 0.0
  %2119 = vmatpush1.msra.mxu0 %v860
  %2120 = vmatprep.subr.mxu0 0.0
  %2121 = vmatpush2.msra.mxu0 0.0
  %2122 = vmatprep.subr.mxu0 0.0
  %2123 = vmatpush2.msra.mxu0 0.0
  %2124 = vmatprep.subr.mxu0 0.0
  %2125 = vmatpush2.msra.mxu0 0.0
  %2126 = vmatprep.subr.mxu0 0.0
  %2127 = vmatpush2.msra.mxu0 0.0
  %2128 = vmatprep.subr.mxu0 0.0
  %2129 = vmatpush2.msra.mxu0 0.0
  %2130 = vmatprep.subr.mxu0 0.0
  %2131 = vmatpush2.msra.mxu0 0.0
  %2132 = vmatprep.subr.mxu0 0.0
  %2133 = vmatpush2.msra.mxu0 0.0
  %2134 = vmatprep.subr.mxu0 0.0
  %2135 = vmatpush2.msra.mxu0 0.0
  %2136 = vmatprep.subr.mxu0 0.0
  %2137 = vmatpush2.msra.mxu0 0.0
  %2138 = vmatprep.subr.mxu0 0.0
  %2139 = vmatpush2.msra.mxu0 0.0
  %2140 = vmatprep.subr.mxu0 0.0
  %2141 = vmatpush2.msra.mxu0 0.0
  %2142 = vmatprep.subr.mxu0 0.0
  %2143 = vmatpush2.msra.mxu0 0.0
  %2144 = vmatprep.subr.mxu0 0.0
  %2145 = vmatpush2.msra.mxu0 0.0
  %2146 = vmatprep.subr.mxu0 0.0
  %2147 = vmatpush2.msra.mxu0 0.0
  %2148 = vmatprep.subr.mxu0 0.0
  %2149 = vmatpush2.msra.mxu0 0.0
  %2150 = vmatprep.subr.mxu0 0.0
  %2151 = vmatpush2.msra.mxu0 0.0
  %2152 = vmatprep.mubr.f32.mxu0 0.0
  %2153 = vmatmul.mubr.f32.gmra.mxu0 %v2086
  %v2154 = vpop.f32.mrf.mxu0
  %v2155 = vadd.f32 0.0, %v2154
  %v2156 = vpop.f32.mrf.mxu0
  %2157 = vdwg.mxu0
  %2158 = vrot.lane.b32.xlu0 %v341, 124
  %v2159 = vpop.permute.xlu0 %2158
  %2160 = vrot.lane.b32.xlu0 %v597, 124
  %v2161 = vpop.permute.xlu0 %2160
  %v2162 = vsel %vm866, %v2159, 0
  %v2164 = vsel %vm866, %v2161, 0
  %2166 = vmatprep.subr.mxu0 0.0
  %2167 = vmatpush1.xpose.msra.mxu0 0.0
  %2168 = vmatprep.subr.mxu0 0.0
  %2169 = vmatpush1.xpose.msra.mxu0 0.0
  %2170 = vmatprep.subr.mxu0 0.0
  %2171 = vmatpush1.xpose.msra.mxu0 0.0
  %2172 = vmatprep.subr.mxu0 0.0
  %2173 = vmatpush1.xpose.msra.mxu0 0.0
  %2174 = vmatprep.subr.mxu0 0.0
  %2175 = vmatpush1.xpose.msra.mxu0 0.0
  %2176 = vmatprep.subr.mxu0 0.0
  %2177 = vmatpush1.xpose.msra.mxu0 0.0
  %2178 = vmatprep.subr.mxu0 0.0
  %2179 = vmatpush1.xpose.msra.mxu0 0.0
  %2180 = vmatprep.subr.mxu0 0.0
  %2181 = vmatpush1.xpose.msra.mxu0 0.0
  %2182 = vmatprep.subr.mxu0 0.0
  %2183 = vmatpush1.xpose.msra.mxu0 0.0
  %2184 = vmatprep.subr.mxu0 0.0
  %2185 = vmatpush1.xpose.msra.mxu0 0.0
  %2186 = vmatprep.subr.mxu0 0.0
  %2187 = vmatpush1.xpose.msra.mxu0 0.0
  %2188 = vmatprep.subr.mxu0 0.0
  %2189 = vmatpush1.xpose.msra.mxu0 0.0
  %2190 = vmatprep.subr.mxu0 0.0
  %2191 = vmatpush1.xpose.msra.mxu0 0.0
  %2192 = vmatprep.subr.mxu0 0.0
  %2193 = vmatpush1.xpose.msra.mxu0 0.0
  %2194 = vmatprep.subr.mxu0 0.0
  %2195 = vmatpush1.xpose.msra.mxu0 0.0
  %2196 = vmatprep.subr.mxu0 0.0
  %2197 = vmatpush1.xpose.msra.mxu0 %v2164
  %2198 = vmatprep.subr.mxu0 0.0
  %2199 = vmatpush2.xpose.msra.mxu0 0.0
  %2200 = vmatprep.subr.mxu0 0.0
  %2201 = vmatpush2.xpose.msra.mxu0 0.0
  %2202 = vmatprep.subr.mxu0 0.0
  %2203 = vmatpush2.xpose.msra.mxu0 0.0
  %2204 = vmatprep.subr.mxu0 0.0
  %2205 = vmatpush2.xpose.msra.mxu0 0.0
  %2206 = vmatprep.subr.mxu0 0.0
  %2207 = vmatpush2.xpose.msra.mxu0 0.0
  %2208 = vmatprep.subr.mxu0 0.0
  %2209 = vmatpush2.xpose.msra.mxu0 0.0
  %2210 = vmatprep.subr.mxu0 0.0
  %2211 = vmatpush2.xpose.msra.mxu0 0.0
  %2212 = vmatprep.subr.mxu0 0.0
  %2213 = vmatpush2.xpose.msra.mxu0 0.0
  %2214 = vmatprep.subr.mxu0 0.0
  %2215 = vmatpush2.xpose.msra.mxu0 0.0
  %2216 = vmatprep.subr.mxu0 0.0
  %2217 = vmatpush2.xpose.msra.mxu0 0.0
  %2218 = vmatprep.subr.mxu0 0.0
  %2219 = vmatpush2.xpose.msra.mxu0 0.0
  %2220 = vmatprep.subr.mxu0 0.0
  %2221 = vmatpush2.xpose.msra.mxu0 0.0
  %2222 = vmatprep.subr.mxu0 0.0
  %2223 = vmatpush2.xpose.msra.mxu0 0.0
  %2224 = vmatprep.subr.mxu0 0.0
  %2225 = vmatpush2.xpose.msra.mxu0 0.0
  %2226 = vmatprep.subr.mxu0 0.0
  %2227 = vmatpush2.xpose.msra.mxu0 0.0
  %2228 = vmatprep.subr.mxu0 0.0
  %2229 = vmatpush2.xpose.msra.mxu0 0.0
  %2230 = vmatprep.mubr.f32.mxu0 0.0
  %2231 = vmatmul.mubr.f32.gmra.mxu0 %v2162
  %v2232 = vpop.f32.mrf.mxu0
  %v2233 = vadd.f32 0.0, %v2232
  %v2234 = vpop.f32.mrf.mxu0
  %2235 = vdwg.mxu0
  %2236 = vrot.lane.b32.xlu0 %v342, 124
  %v2237 = vpop.permute.xlu0 %2236
  %2238 = vrot.lane.b32.xlu0 %v598, 124
  %v2239 = vpop.permute.xlu0 %2238
  %v2240 = vsel %vm866, %v2237, 0
  %v2242 = vsel %vm866, %v2239, 0
  %2244 = vmatprep.subr.mxu0 0.0
  %2245 = vmatpush1.xpose.msra.mxu0 0.0
  %2246 = vmatprep.subr.mxu0 0.0
  %2247 = vmatpush1.xpose.msra.mxu0 0.0
  %2248 = vmatprep.subr.mxu0 0.0
  %2249 = vmatpush1.xpose.msra.mxu0 0.0
  %2250 = vmatprep.subr.mxu0 0.0
  %2251 = vmatpush1.xpose.msra.mxu0 0.0
  %2252 = vmatprep.subr.mxu0 0.0
  %2253 = vmatpush1.xpose.msra.mxu0 0.0
  %2254 = vmatprep.subr.mxu0 0.0
  %2255 = vmatpush1.xpose.msra.mxu0 0.0
  %2256 = vmatprep.subr.mxu0 0.0
  %2257 = vmatpush1.xpose.msra.mxu0 0.0
  %2258 = vmatprep.subr.mxu0 0.0
  %2259 = vmatpush1.xpose.msra.mxu0 0.0
  %2260 = vmatprep.subr.mxu0 0.0
  %2261 = vmatpush1.xpose.msra.mxu0 0.0
  %2262 = vmatprep.subr.mxu0 0.0
  %2263 = vmatpush1.xpose.msra.mxu0 0.0
  %2264 = vmatprep.subr.mxu0 0.0
  %2265 = vmatpush1.xpose.msra.mxu0 0.0
  %2266 = vmatprep.subr.mxu0 0.0
  %2267 = vmatpush1.xpose.msra.mxu0 0.0
  %2268 = vmatprep.subr.mxu0 0.0
  %2269 = vmatpush1.xpose.msra.mxu0 0.0
  %2270 = vmatprep.subr.mxu0 0.0
  %2271 = vmatpush1.xpose.msra.mxu0 0.0
  %2272 = vmatprep.subr.mxu0 0.0
  %2273 = vmatpush1.xpose.msra.mxu0 0.0
  %2274 = vmatprep.subr.mxu0 0.0
  %2275 = vmatpush1.xpose.msra.mxu0 %v2242
  %2276 = vmatprep.subr.mxu0 0.0
  %2277 = vmatpush2.xpose.msra.mxu0 0.0
  %2278 = vmatprep.subr.mxu0 0.0
  %2279 = vmatpush2.xpose.msra.mxu0 0.0
  %2280 = vmatprep.subr.mxu0 0.0
  %2281 = vmatpush2.xpose.msra.mxu0 0.0
  %2282 = vmatprep.subr.mxu0 0.0
  %2283 = vmatpush2.xpose.msra.mxu0 0.0
  %2284 = vmatprep.subr.mxu0 0.0
  %2285 = vmatpush2.xpose.msra.mxu0 0.0
  %2286 = vmatprep.subr.mxu0 0.0
  %2287 = vmatpush2.xpose.msra.mxu0 0.0
  %2288 = vmatprep.subr.mxu0 0.0
  %2289 = vmatpush2.xpose.msra.mxu0 0.0
  %2290 = vmatprep.subr.mxu0 0.0
  %2291 = vmatpush2.xpose.msra.mxu0 0.0
  %2292 = vmatprep.subr.mxu0 0.0
  %2293 = vmatpush2.xpose.msra.mxu0 0.0
  %2294 = vmatprep.subr.mxu0 0.0
  %2295 = vmatpush2.xpose.msra.mxu0 0.0
  %2296 = vmatprep.subr.mxu0 0.0
  %2297 = vmatpush2.xpose.msra.mxu0 0.0
  %2298 = vmatprep.subr.mxu0 0.0
  %2299 = vmatpush2.xpose.msra.mxu0 0.0
  %2300 = vmatprep.subr.mxu0 0.0
  %2301 = vmatpush2.xpose.msra.mxu0 0.0
  %2302 = vmatprep.subr.mxu0 0.0
  %2303 = vmatpush2.xpose.msra.mxu0 0.0
  %2304 = vmatprep.subr.mxu0 0.0
  %2305 = vmatpush2.xpose.msra.mxu0 0.0
  %2306 = vmatprep.subr.mxu0 0.0
  %2307 = vmatpush2.xpose.msra.mxu0 0.0
  %2308 = vmatprep.mubr.f32.mxu0 0.0
  %2309 = vmatmul.mubr.f32.gmra.mxu0 %v2240
  %v2310 = vpop.f32.mrf.mxu0
  %v2311 = vadd.f32 0.0, %v2310
  %v2312 = vpop.f32.mrf.mxu0
  %2313 = vdwg.mxu0
  %2314 = vrot.lane.b32.xlu0 %v343, 124
  %v2315 = vpop.permute.xlu0 %2314
  %2316 = vrot.lane.b32.xlu0 %v599, 124
  %v2317 = vpop.permute.xlu0 %2316
  %v2318 = vsel %vm866, %v2315, 0
  %v2320 = vsel %vm866, %v2317, 0
  %2322 = vmatprep.subr.mxu0 0.0
  %2323 = vmatpush1.xpose.msra.mxu0 0.0
  %2324 = vmatprep.subr.mxu0 0.0
  %2325 = vmatpush1.xpose.msra.mxu0 0.0
  %2326 = vmatprep.subr.mxu0 0.0
  %2327 = vmatpush1.xpose.msra.mxu0 0.0
  %2328 = vmatprep.subr.mxu0 0.0
  %2329 = vmatpush1.xpose.msra.mxu0 0.0
  %2330 = vmatprep.subr.mxu0 0.0
  %2331 = vmatpush1.xpose.msra.mxu0 0.0
  %2332 = vmatprep.subr.mxu0 0.0
  %2333 = vmatpush1.xpose.msra.mxu0 0.0
  %2334 = vmatprep.subr.mxu0 0.0
  %2335 = vmatpush1.xpose.msra.mxu0 0.0
  %2336 = vmatprep.subr.mxu0 0.0
  %2337 = vmatpush1.xpose.msra.mxu0 0.0
  %2338 = vmatprep.subr.mxu0 0.0
  %2339 = vmatpush1.xpose.msra.mxu0 0.0
  %2340 = vmatprep.subr.mxu0 0.0
  %2341 = vmatpush1.xpose.msra.mxu0 0.0
  %2342 = vmatprep.subr.mxu0 0.0
  %2343 = vmatpush1.xpose.msra.mxu0 0.0
  %2344 = vmatprep.subr.mxu0 0.0
  %2345 = vmatpush1.xpose.msra.mxu0 0.0
  %2346 = vmatprep.subr.mxu0 0.0
  %2347 = vmatpush1.xpose.msra.mxu0 0.0
  %2348 = vmatprep.subr.mxu0 0.0
  %2349 = vmatpush1.xpose.msra.mxu0 0.0
  %2350 = vmatprep.subr.mxu0 0.0
  %2351 = vmatpush1.xpose.msra.mxu0 0.0
  %2352 = vmatprep.subr.mxu0 0.0
  %2353 = vmatpush1.xpose.msra.mxu0 %v2320
  %2354 = vmatprep.subr.mxu0 0.0
  %2355 = vmatpush2.xpose.msra.mxu0 0.0
  %2356 = vmatprep.subr.mxu0 0.0
  %2357 = vmatpush2.xpose.msra.mxu0 0.0
  %2358 = vmatprep.subr.mxu0 0.0
  %2359 = vmatpush2.xpose.msra.mxu0 0.0
  %2360 = vmatprep.subr.mxu0 0.0
  %2361 = vmatpush2.xpose.msra.mxu0 0.0
  %2362 = vmatprep.subr.mxu0 0.0
  %2363 = vmatpush2.xpose.msra.mxu0 0.0
  %2364 = vmatprep.subr.mxu0 0.0
  %2365 = vmatpush2.xpose.msra.mxu0 0.0
  %2366 = vmatprep.subr.mxu0 0.0
  %2367 = vmatpush2.xpose.msra.mxu0 0.0
  %2368 = vmatprep.subr.mxu0 0.0
  %2369 = vmatpush2.xpose.msra.mxu0 0.0
  %2370 = vmatprep.subr.mxu0 0.0
  %2371 = vmatpush2.xpose.msra.mxu0 0.0
  %2372 = vmatprep.subr.mxu0 0.0
  %2373 = vmatpush2.xpose.msra.mxu0 0.0
  %2374 = vmatprep.subr.mxu0 0.0
  %2375 = vmatpush2.xpose.msra.mxu0 0.0
  %2376 = vmatprep.subr.mxu0 0.0
  %2377 = vmatpush2.xpose.msra.mxu0 0.0
  %2378 = vmatprep.subr.mxu0 0.0
  %2379 = vmatpush2.xpose.msra.mxu0 0.0
  %2380 = vmatprep.subr.mxu0 0.0
  %2381 = vmatpush2.xpose.msra.mxu0 0.0
  %2382 = vmatprep.subr.mxu0 0.0
  %2383 = vmatpush2.xpose.msra.mxu0 0.0
  %2384 = vmatprep.subr.mxu0 0.0
  %2385 = vmatpush2.xpose.msra.mxu0 0.0
  %2386 = vmatprep.mubr.f32.mxu0 0.0
  %2387 = vmatmul.mubr.f32.gmra.mxu0 %v2318
  %v2388 = vpop.f32.mrf.mxu0
  %v2389 = vadd.f32 0.0, %v2388
  %v2390 = vpop.f32.mrf.mxu0
  %2391 = vdwg.mxu0
  %2392 = vrot.lane.b32.xlu0 %v344, 124
  %v2393 = vpop.permute.xlu0 %2392
  %2394 = vrot.lane.b32.xlu0 %v600, 124
  %v2395 = vpop.permute.xlu0 %2394
  %v2396 = vsel %vm866, %v2393, 0
  %v2398 = vsel %vm866, %v2395, 0
  %2400 = vmatprep.subr.mxu0 0.0
  %2401 = vmatpush1.xpose.msra.mxu0 0.0
  %2402 = vmatprep.subr.mxu0 0.0
  %2403 = vmatpush1.xpose.msra.mxu0 0.0
  %2404 = vmatprep.subr.mxu0 0.0
  %2405 = vmatpush1.xpose.msra.mxu0 0.0
  %2406 = vmatprep.subr.mxu0 0.0
  %2407 = vmatpush1.xpose.msra.mxu0 0.0
  %2408 = vmatprep.subr.mxu0 0.0
  %2409 = vmatpush1.xpose.msra.mxu0 0.0
  %2410 = vmatprep.subr.mxu0 0.0
  %2411 = vmatpush1.xpose.msra.mxu0 0.0
  %2412 = vmatprep.subr.mxu0 0.0
  %2413 = vmatpush1.xpose.msra.mxu0 0.0
  %2414 = vmatprep.subr.mxu0 0.0
  %2415 = vmatpush1.xpose.msra.mxu0 0.0
  %2416 = vmatprep.subr.mxu0 0.0
  %2417 = vmatpush1.xpose.msra.mxu0 0.0
  %2418 = vmatprep.subr.mxu0 0.0
  %2419 = vmatpush1.xpose.msra.mxu0 0.0
  %2420 = vmatprep.subr.mxu0 0.0
  %2421 = vmatpush1.xpose.msra.mxu0 0.0
  %2422 = vmatprep.subr.mxu0 0.0
  %2423 = vmatpush1.xpose.msra.mxu0 0.0
  %2424 = vmatprep.subr.mxu0 0.0
  %2425 = vmatpush1.xpose.msra.mxu0 0.0
  %2426 = vmatprep.subr.mxu0 0.0
  %2427 = vmatpush1.xpose.msra.mxu0 0.0
  %2428 = vmatprep.subr.mxu0 0.0
  %2429 = vmatpush1.xpose.msra.mxu0 0.0
  %2430 = vmatprep.subr.mxu0 0.0
  %2431 = vmatpush1.xpose.msra.mxu0 %v2398
  %2432 = vmatprep.subr.mxu0 0.0
  %2433 = vmatpush2.xpose.msra.mxu0 0.0
  %2434 = vmatprep.subr.mxu0 0.0
  %2435 = vmatpush2.xpose.msra.mxu0 0.0
  %2436 = vmatprep.subr.mxu0 0.0
  %2437 = vmatpush2.xpose.msra.mxu0 0.0
  %2438 = vmatprep.subr.mxu0 0.0
  %2439 = vmatpush2.xpose.msra.mxu0 0.0
  %2440 = vmatprep.subr.mxu0 0.0
  %2441 = vmatpush2.xpose.msra.mxu0 0.0
  %2442 = vmatprep.subr.mxu0 0.0
  %2443 = vmatpush2.xpose.msra.mxu0 0.0
  %2444 = vmatprep.subr.mxu0 0.0
  %2445 = vmatpush2.xpose.msra.mxu0 0.0
  %2446 = vmatprep.subr.mxu0 0.0
  %2447 = vmatpush2.xpose.msra.mxu0 0.0
  %2448 = vmatprep.subr.mxu0 0.0
  %2449 = vmatpush2.xpose.msra.mxu0 0.0
  %2450 = vmatprep.subr.mxu0 0.0
  %2451 = vmatpush2.xpose.msra.mxu0 0.0
  %2452 = vmatprep.subr.mxu0 0.0
  %2453 = vmatpush2.xpose.msra.mxu0 0.0
  %2454 = vmatprep.subr.mxu0 0.0
  %2455 = vmatpush2.xpose.msra.mxu0 0.0
  %2456 = vmatprep.subr.mxu0 0.0
  %2457 = vmatpush2.xpose.msra.mxu0 0.0
  %2458 = vmatprep.subr.mxu0 0.0
  %2459 = vmatpush2.xpose.msra.mxu0 0.0
  %2460 = vmatprep.subr.mxu0 0.0
  %2461 = vmatpush2.xpose.msra.mxu0 0.0
  %2462 = vmatprep.subr.mxu0 0.0
  %2463 = vmatpush2.xpose.msra.mxu0 0.0
  %2464 = vmatprep.mubr.f32.mxu0 0.0
  %2465 = vmatmul.mubr.f32.gmra.mxu0 %v2396
  %v2466 = vpop.f32.mrf.mxu0
  %v2467 = vadd.f32 0.0, %v2466
  %v2468 = vpop.f32.mrf.mxu0
  %2469 = vdwg.mxu0
  %2470 = vrot.lane.b32.xlu0 %v345, 124
  %v2471 = vpop.permute.xlu0 %2470
  %2472 = vrot.lane.b32.xlu0 %v601, 124
  %v2473 = vpop.permute.xlu0 %2472
  %v2474 = vsel %vm866, %v2471, 0
  %v2476 = vsel %vm866, %v2473, 0
  %2478 = vmatprep.subr.mxu0 0.0
  %2479 = vmatpush1.xpose.msra.mxu0 0.0
  %2480 = vmatprep.subr.mxu0 0.0
  %2481 = vmatpush1.xpose.msra.mxu0 0.0
  %2482 = vmatprep.subr.mxu0 0.0
  %2483 = vmatpush1.xpose.msra.mxu0 0.0
  %2484 = vmatprep.subr.mxu0 0.0
  %2485 = vmatpush1.xpose.msra.mxu0 0.0
  %2486 = vmatprep.subr.mxu0 0.0
  %2487 = vmatpush1.xpose.msra.mxu0 0.0
  %2488 = vmatprep.subr.mxu0 0.0
  %2489 = vmatpush1.xpose.msra.mxu0 0.0
  %2490 = vmatprep.subr.mxu0 0.0
  %2491 = vmatpush1.xpose.msra.mxu0 0.0
  %2492 = vmatprep.subr.mxu0 0.0
  %2493 = vmatpush1.xpose.msra.mxu0 0.0
  %2494 = vmatprep.subr.mxu0 0.0
  %2495 = vmatpush1.xpose.msra.mxu0 0.0
  %2496 = vmatprep.subr.mxu0 0.0
  %2497 = vmatpush1.xpose.msra.mxu0 0.0
  %2498 = vmatprep.subr.mxu0 0.0
  %2499 = vmatpush1.xpose.msra.mxu0 0.0
  %2500 = vmatprep.subr.mxu0 0.0
  %2501 = vmatpush1.xpose.msra.mxu0 0.0
  %2502 = vmatprep.subr.mxu0 0.0
  %2503 = vmatpush1.xpose.msra.mxu0 0.0
  %2504 = vmatprep.subr.mxu0 0.0
  %2505 = vmatpush1.xpose.msra.mxu0 0.0
  %2506 = vmatprep.subr.mxu0 0.0
  %2507 = vmatpush1.xpose.msra.mxu0 0.0
  %2508 = vmatprep.subr.mxu0 0.0
  %2509 = vmatpush1.xpose.msra.mxu0 %v2476
  %2510 = vmatprep.subr.mxu0 0.0
  %2511 = vmatpush2.xpose.msra.mxu0 0.0
  %2512 = vmatprep.subr.mxu0 0.0
  %2513 = vmatpush2.xpose.msra.mxu0 0.0
  %2514 = vmatprep.subr.mxu0 0.0
  %2515 = vmatpush2.xpose.msra.mxu0 0.0
  %2516 = vmatprep.subr.mxu0 0.0
  %2517 = vmatpush2.xpose.msra.mxu0 0.0
  %2518 = vmatprep.subr.mxu0 0.0
  %2519 = vmatpush2.xpose.msra.mxu0 0.0
  %2520 = vmatprep.subr.mxu0 0.0
  %2521 = vmatpush2.xpose.msra.mxu0 0.0
  %2522 = vmatprep.subr.mxu0 0.0
  %2523 = vmatpush2.xpose.msra.mxu0 0.0
  %2524 = vmatprep.subr.mxu0 0.0
  %2525 = vmatpush2.xpose.msra.mxu0 0.0
  %2526 = vmatprep.subr.mxu0 0.0
  %2527 = vmatpush2.xpose.msra.mxu0 0.0
  %2528 = vmatprep.subr.mxu0 0.0
  %2529 = vmatpush2.xpose.msra.mxu0 0.0
  %2530 = vmatprep.subr.mxu0 0.0
  %2531 = vmatpush2.xpose.msra.mxu0 0.0
  %2532 = vmatprep.subr.mxu0 0.0
  %2533 = vmatpush2.xpose.msra.mxu0 0.0
  %2534 = vmatprep.subr.mxu0 0.0
  %2535 = vmatpush2.xpose.msra.mxu0 0.0
  %2536 = vmatprep.subr.mxu0 0.0
  %2537 = vmatpush2.xpose.msra.mxu0 0.0
  %2538 = vmatprep.subr.mxu0 0.0
  %2539 = vmatpush2.xpose.msra.mxu0 0.0
  %2540 = vmatprep.subr.mxu0 0.0
  %2541 = vmatpush2.xpose.msra.mxu0 0.0
  %2542 = vmatprep.mubr.f32.mxu0 0.0
  %2543 = vmatmul.mubr.f32.gmra.mxu0 %v2474
  %v2544 = vpop.f32.mrf.mxu0
  %v2545 = vadd.f32 0.0, %v2544
  %v2546 = vpop.f32.mrf.mxu0
  %2547 = vdwg.mxu0
  %2548 = vrot.lane.b32.xlu0 %v346, 124
  %v2549 = vpop.permute.xlu0 %2548
  %2550 = vrot.lane.b32.xlu0 %v602, 124
  %v2551 = vpop.permute.xlu0 %2550
  %v2552 = vsel %vm866, %v2549, 0
  %v2554 = vsel %vm866, %v2551, 0
  %2556 = vmatprep.subr.mxu0 0.0
  %2557 = vmatpush1.xpose.msra.mxu0 0.0
  %2558 = vmatprep.subr.mxu0 0.0
  %2559 = vmatpush1.xpose.msra.mxu0 0.0
  %2560 = vmatprep.subr.mxu0 0.0
  %2561 = vmatpush1.xpose.msra.mxu0 0.0
  %2562 = vmatprep.subr.mxu0 0.0
  %2563 = vmatpush1.xpose.msra.mxu0 0.0
  %2564 = vmatprep.subr.mxu0 0.0
  %2565 = vmatpush1.xpose.msra.mxu0 0.0
  %2566 = vmatprep.subr.mxu0 0.0
  %2567 = vmatpush1.xpose.msra.mxu0 0.0
  %2568 = vmatprep.subr.mxu0 0.0
  %2569 = vmatpush1.xpose.msra.mxu0 0.0
  %2570 = vmatprep.subr.mxu0 0.0
  %2571 = vmatpush1.xpose.msra.mxu0 0.0
  %2572 = vmatprep.subr.mxu0 0.0
  %2573 = vmatpush1.xpose.msra.mxu0 0.0
  %2574 = vmatprep.subr.mxu0 0.0
  %2575 = vmatpush1.xpose.msra.mxu0 0.0
  %2576 = vmatprep.subr.mxu0 0.0
  %2577 = vmatpush1.xpose.msra.mxu0 0.0
  %2578 = vmatprep.subr.mxu0 0.0
  %2579 = vmatpush1.xpose.msra.mxu0 0.0
  %2580 = vmatprep.subr.mxu0 0.0
  %2581 = vmatpush1.xpose.msra.mxu0 0.0
  %2582 = vmatprep.subr.mxu0 0.0
  %2583 = vmatpush1.xpose.msra.mxu0 0.0
  %2584 = vmatprep.subr.mxu0 0.0
  %2585 = vmatpush1.xpose.msra.mxu0 0.0
  %2586 = vmatprep.subr.mxu0 0.0
  %2587 = vmatpush1.xpose.msra.mxu0 %v2554
  %2588 = vmatprep.subr.mxu0 0.0
  %2589 = vmatpush2.xpose.msra.mxu0 0.0
  %2590 = vmatprep.subr.mxu0 0.0
  %2591 = vmatpush2.xpose.msra.mxu0 0.0
  %2592 = vmatprep.subr.mxu0 0.0
  %2593 = vmatpush2.xpose.msra.mxu0 0.0
  %2594 = vmatprep.subr.mxu0 0.0
  %2595 = vmatpush2.xpose.msra.mxu0 0.0
  %2596 = vmatprep.subr.mxu0 0.0
  %2597 = vmatpush2.xpose.msra.mxu0 0.0
  %2598 = vmatprep.subr.mxu0 0.0
  %2599 = vmatpush2.xpose.msra.mxu0 0.0
  %2600 = vmatprep.subr.mxu0 0.0
  %2601 = vmatpush2.xpose.msra.mxu0 0.0
  %2602 = vmatprep.subr.mxu0 0.0
  %2603 = vmatpush2.xpose.msra.mxu0 0.0
  %2604 = vmatprep.subr.mxu0 0.0
  %2605 = vmatpush2.xpose.msra.mxu0 0.0
  %2606 = vmatprep.subr.mxu0 0.0
  %2607 = vmatpush2.xpose.msra.mxu0 0.0
  %2608 = vmatprep.subr.mxu0 0.0
  %2609 = vmatpush2.xpose.msra.mxu0 0.0
  %2610 = vmatprep.subr.mxu0 0.0
  %2611 = vmatpush2.xpose.msra.mxu0 0.0
  %2612 = vmatprep.subr.mxu0 0.0
  %2613 = vmatpush2.xpose.msra.mxu0 0.0
  %2614 = vmatprep.subr.mxu0 0.0
  %2615 = vmatpush2.xpose.msra.mxu0 0.0
  %2616 = vmatprep.subr.mxu0 0.0
  %2617 = vmatpush2.xpose.msra.mxu0 0.0
  %2618 = vmatprep.subr.mxu0 0.0
  %2619 = vmatpush2.xpose.msra.mxu0 0.0
  %2620 = vmatprep.mubr.f32.mxu0 0.0
  %2621 = vmatmul.mubr.f32.gmra.mxu0 %v2552
  %v2622 = vpop.f32.mrf.mxu0
  %v2623 = vadd.f32 0.0, %v2622
  %v2624 = vpop.f32.mrf.mxu0
  %2625 = vdwg.mxu0
  %2626 = vrot.lane.b32.xlu0 %v347, 124
  %v2627 = vpop.permute.xlu0 %2626
  %2628 = vrot.lane.b32.xlu0 %v603, 124
  %v2629 = vpop.permute.xlu0 %2628
  %v2630 = vsel %vm866, %v2627, 0
  %v2632 = vsel %vm866, %v2629, 0
  %2634 = vmatprep.subr.mxu0 0.0
  %2635 = vmatpush1.xpose.msra.mxu0 0.0
  %2636 = vmatprep.subr.mxu0 0.0
  %2637 = vmatpush1.xpose.msra.mxu0 0.0
  %2638 = vmatprep.subr.mxu0 0.0
  %2639 = vmatpush1.xpose.msra.mxu0 0.0
  %2640 = vmatprep.subr.mxu0 0.0
  %2641 = vmatpush1.xpose.msra.mxu0 0.0
  %2642 = vmatprep.subr.mxu0 0.0
  %2643 = vmatpush1.xpose.msra.mxu0 0.0
  %2644 = vmatprep.subr.mxu0 0.0
  %2645 = vmatpush1.xpose.msra.mxu0 0.0
  %2646 = vmatprep.subr.mxu0 0.0
  %2647 = vmatpush1.xpose.msra.mxu0 0.0
  %2648 = vmatprep.subr.mxu0 0.0
  %2649 = vmatpush1.xpose.msra.mxu0 0.0
  %2650 = vmatprep.subr.mxu0 0.0
  %2651 = vmatpush1.xpose.msra.mxu0 0.0
  %2652 = vmatprep.subr.mxu0 0.0
  %2653 = vmatpush1.xpose.msra.mxu0 0.0
  %2654 = vmatprep.subr.mxu0 0.0
  %2655 = vmatpush1.xpose.msra.mxu0 0.0
  %2656 = vmatprep.subr.mxu0 0.0
  %2657 = vmatpush1.xpose.msra.mxu0 0.0
  %2658 = vmatprep.subr.mxu0 0.0
  %2659 = vmatpush1.xpose.msra.mxu0 0.0
  %2660 = vmatprep.subr.mxu0 0.0
  %2661 = vmatpush1.xpose.msra.mxu0 0.0
  %2662 = vmatprep.subr.mxu0 0.0
  %2663 = vmatpush1.xpose.msra.mxu0 0.0
  %2664 = vmatprep.subr.mxu0 0.0
  %2665 = vmatpush1.xpose.msra.mxu0 %v2632
  %2666 = vmatprep.subr.mxu0 0.0
  %2667 = vmatpush2.xpose.msra.mxu0 0.0
  %2668 = vmatprep.subr.mxu0 0.0
  %2669 = vmatpush2.xpose.msra.mxu0 0.0
  %2670 = vmatprep.subr.mxu0 0.0
  %2671 = vmatpush2.xpose.msra.mxu0 0.0
  %2672 = vmatprep.subr.mxu0 0.0
  %2673 = vmatpush2.xpose.msra.mxu0 0.0
  %2674 = vmatprep.subr.mxu0 0.0
  %2675 = vmatpush2.xpose.msra.mxu0 0.0
  %2676 = vmatprep.subr.mxu0 0.0
  %2677 = vmatpush2.xpose.msra.mxu0 0.0
  %2678 = vmatprep.subr.mxu0 0.0
  %2679 = vmatpush2.xpose.msra.mxu0 0.0
  %2680 = vmatprep.subr.mxu0 0.0
  %2681 = vmatpush2.xpose.msra.mxu0 0.0
  %2682 = vmatprep.subr.mxu0 0.0
  %2683 = vmatpush2.xpose.msra.mxu0 0.0
  %2684 = vmatprep.subr.mxu0 0.0
  %2685 = vmatpush2.xpose.msra.mxu0 0.0
  %2686 = vmatprep.subr.mxu0 0.0
  %2687 = vmatpush2.xpose.msra.mxu0 0.0
  %2688 = vmatprep.subr.mxu0 0.0
  %2689 = vmatpush2.xpose.msra.mxu0 0.0
  %2690 = vmatprep.subr.mxu0 0.0
  %2691 = vmatpush2.xpose.msra.mxu0 0.0
  %2692 = vmatprep.subr.mxu0 0.0
  %2693 = vmatpush2.xpose.msra.mxu0 0.0
  %2694 = vmatprep.subr.mxu0 0.0
  %2695 = vmatpush2.xpose.msra.mxu0 0.0
  %2696 = vmatprep.subr.mxu0 0.0
  %2697 = vmatpush2.xpose.msra.mxu0 0.0
  %2698 = vmatprep.mubr.f32.mxu0 0.0
  %2699 = vmatmul.mubr.f32.gmra.mxu0 %v2630
  %v2700 = vpop.f32.mrf.mxu0
  %v2701 = vadd.f32 0.0, %v2700
  %v2702 = vpop.f32.mrf.mxu0
  %2703 = vdwg.mxu0
  %2704 = vrot.lane.b32.xlu0 %v348, 124
  %v2705 = vpop.permute.xlu0 %2704
  %2706 = vrot.lane.b32.xlu0 %v604, 124
  %v2707 = vpop.permute.xlu0 %2706
  %v2708 = vsel %vm866, %v2705, 0
  %v2710 = vsel %vm866, %v2707, 0
  %2712 = vmatprep.subr.mxu0 0.0
  %2713 = vmatpush1.xpose.msra.mxu0 0.0
  %2714 = vmatprep.subr.mxu0 0.0
  %2715 = vmatpush1.xpose.msra.mxu0 0.0
  %2716 = vmatprep.subr.mxu0 0.0
  %2717 = vmatpush1.xpose.msra.mxu0 0.0
  %2718 = vmatprep.subr.mxu0 0.0
  %2719 = vmatpush1.xpose.msra.mxu0 0.0
  %2720 = vmatprep.subr.mxu0 0.0
  %2721 = vmatpush1.xpose.msra.mxu0 0.0
  %2722 = vmatprep.subr.mxu0 0.0
  %2723 = vmatpush1.xpose.msra.mxu0 0.0
  %2724 = vmatprep.subr.mxu0 0.0
  %2725 = vmatpush1.xpose.msra.mxu0 0.0
  %2726 = vmatprep.subr.mxu0 0.0
  %2727 = vmatpush1.xpose.msra.mxu0 0.0
  %2728 = vmatprep.subr.mxu0 0.0
  %2729 = vmatpush1.xpose.msra.mxu0 0.0
  %2730 = vmatprep.subr.mxu0 0.0
  %2731 = vmatpush1.xpose.msra.mxu0 0.0
  %2732 = vmatprep.subr.mxu0 0.0
  %2733 = vmatpush1.xpose.msra.mxu0 0.0
  %2734 = vmatprep.subr.mxu0 0.0
  %2735 = vmatpush1.xpose.msra.mxu0 0.0
  %2736 = vmatprep.subr.mxu0 0.0
  %2737 = vmatpush1.xpose.msra.mxu0 0.0
  %2738 = vmatprep.subr.mxu0 0.0
  %2739 = vmatpush1.xpose.msra.mxu0 0.0
  %2740 = vmatprep.subr.mxu0 0.0
  %2741 = vmatpush1.xpose.msra.mxu0 0.0
  %2742 = vmatprep.subr.mxu0 0.0
  %2743 = vmatpush1.xpose.msra.mxu0 %v2710
  %2744 = vmatprep.subr.mxu0 0.0
  %2745 = vmatpush2.xpose.msra.mxu0 0.0
  %2746 = vmatprep.subr.mxu0 0.0
  %2747 = vmatpush2.xpose.msra.mxu0 0.0
  %2748 = vmatprep.subr.mxu0 0.0
  %2749 = vmatpush2.xpose.msra.mxu0 0.0
  %2750 = vmatprep.subr.mxu0 0.0
  %2751 = vmatpush2.xpose.msra.mxu0 0.0
  %2752 = vmatprep.subr.mxu0 0.0
  %2753 = vmatpush2.xpose.msra.mxu0 0.0
  %2754 = vmatprep.subr.mxu0 0.0
  %2755 = vmatpush2.xpose.msra.mxu0 0.0
  %2756 = vmatprep.subr.mxu0 0.0
  %2757 = vmatpush2.xpose.msra.mxu0 0.0
  %2758 = vmatprep.subr.mxu0 0.0
  %2759 = vmatpush2.xpose.msra.mxu0 0.0
  %2760 = vmatprep.subr.mxu0 0.0
  %2761 = vmatpush2.xpose.msra.mxu0 0.0
  %2762 = vmatprep.subr.mxu0 0.0
  %2763 = vmatpush2.xpose.msra.mxu0 0.0
  %2764 = vmatprep.subr.mxu0 0.0
  %2765 = vmatpush2.xpose.msra.mxu0 0.0
  %2766 = vmatprep.subr.mxu0 0.0
  %2767 = vmatpush2.xpose.msra.mxu0 0.0
  %2768 = vmatprep.subr.mxu0 0.0
  %2769 = vmatpush2.xpose.msra.mxu0 0.0
  %2770 = vmatprep.subr.mxu0 0.0
  %2771 = vmatpush2.xpose.msra.mxu0 0.0
  %2772 = vmatprep.subr.mxu0 0.0
  %2773 = vmatpush2.xpose.msra.mxu0 0.0
  %2774 = vmatprep.subr.mxu0 0.0
  %2775 = vmatpush2.xpose.msra.mxu0 0.0
  %2776 = vmatprep.mubr.f32.mxu0 0.0
  %2777 = vmatmul.mubr.f32.gmra.mxu0 %v2708
  %v2778 = vpop.f32.mrf.mxu0
  %v2779 = vadd.f32 0.0, %v2778
  %v2780 = vpop.f32.mrf.mxu0
  %2781 = vdwg.mxu0
  %v2782 = vsel %vm1476, %v2233, -32767.0
  %v2783 = vsel %vm1476, %v2311, -32767.0
  %v2784 = vsel %vm1476, %v2389, -32767.0
  %v2785 = vsel %vm1476, %v2467, -32767.0
  %v2786 = vsel %vm1476, %v2545, -32767.0
  %v2787 = vsel %vm1476, %v2623, -32767.0
  %v2788 = vsel %vm1476, %v2701, -32767.0
  %v2789 = vsel %vm1476, %v2779, -32767.0
  %v2790 = vsel %vm1485, %v2782, -inf
  %2791 = vmax.xlane.f32.xlu0 %v2790
  %v2792 = vpop.xlane.xlu0 %2791
  %v2793 = vsel %vm1485, %v2783, -inf
  %2794 = vmax.xlane.f32.xlu0 %v2793
  %v2795 = vpop.xlane.xlu0 %2794
  %v2796 = vsel %vm1485, %v2784, -inf
  %2797 = vmax.xlane.f32.xlu0 %v2796
  %v2798 = vpop.xlane.xlu0 %2797
  %v2799 = vsel %vm1485, %v2785, -inf
  %2800 = vmax.xlane.f32.xlu0 %v2799
  %v2801 = vpop.xlane.xlu0 %2800
  %v2802 = vsel %vm1485, %v2786, -inf
  %2803 = vmax.xlane.f32.xlu0 %v2802
  %v2804 = vpop.xlane.xlu0 %2803
  %v2805 = vsel %vm1485, %v2787, -inf
  %2806 = vmax.xlane.f32.xlu0 %v2805
  %v2807 = vpop.xlane.xlu0 %2806
  %v2808 = vsel %vm1485, %v2788, -inf
  %2809 = vmax.xlane.f32.xlu0 %v2808
  %v2810 = vpop.xlane.xlu0 %2809
  %v2811 = vsel %vm1485, %v2789, -inf
  %2812 = vmax.xlane.f32.xlu0 %v2811
  %v2813 = vpop.xlane.xlu0 %2812
  %v2814 = vsub.f32 %v2782, %v2792
  %v2815 = vsub.f32 %v2783, %v2795
  %v2816 = vsub.f32 %v2784, %v2798
  %v2817 = vsub.f32 %v2785, %v2801
  %v2818 = vsub.f32 %v2786, %v2804
  %v2819 = vsub.f32 %v2787, %v2807
  %v2820 = vsub.f32 %v2788, %v2810
  %v2821 = vsub.f32 %v2789, %v2813
  %v2822 = vmul.f32 %v2814, 1.442695
  %v2823 = vpow.pop %v2822
  %v2824 = vmul.f32 %v2815, 1.442695
  %v2825 = vpow.pop %v2824
  %v2826 = vmul.f32 %v2816, 1.442695
  %v2827 = vpow.pop %v2826
  %v2828 = vmul.f32 %v2817, 1.442695
  %v2829 = vpow.pop %v2828
  %v2830 = vmul.f32 %v2818, 1.442695
  %v2831 = vpow.pop %v2830
  %v2832 = vmul.f32 %v2819, 1.442695
  %v2833 = vpow.pop %v2832
  %v2834 = vmul.f32 %v2820, 1.442695
  %v2835 = vpow.pop %v2834
  %v2836 = vmul.f32 %v2821, 1.442695
  %v2837 = vpow.pop %v2836
  %v2838 = vsel %vm1485, %v2823, 0.0
  %2839 = vadd.xlane.f32.xlu0 %v2838
  %v2840 = vpop.xlane.xlu0 %2839
  %v2841 = vsel %vm1485, %v2825, 0.0
  %2842 = vadd.xlane.f32.xlu0 %v2841
  %v2843 = vpop.xlane.xlu0 %2842
  %v2844 = vsel %vm1485, %v2827, 0.0
  %2845 = vadd.xlane.f32.xlu0 %v2844
  %v2846 = vpop.xlane.xlu0 %2845
  %v2847 = vsel %vm1485, %v2829, 0.0
  %2848 = vadd.xlane.f32.xlu0 %v2847
  %v2849 = vpop.xlane.xlu0 %2848
  %v2850 = vsel %vm1485, %v2831, 0.0
  %2851 = vadd.xlane.f32.xlu0 %v2850
  %v2852 = vpop.xlane.xlu0 %2851
  %v2853 = vsel %vm1485, %v2833, 0.0
  %2854 = vadd.xlane.f32.xlu0 %v2853
  %v2855 = vpop.xlane.xlu0 %2854
  %v2856 = vsel %vm1485, %v2835, 0.0
  %2857 = vadd.xlane.f32.xlu0 %v2856
  %v2858 = vpop.xlane.xlu0 %2857
  %v2859 = vsel %vm1485, %v2837, 0.0
  %2860 = vadd.xlane.f32.xlu0 %v2859
  %v2861 = vpop.xlane.xlu0 %2860
  %v2862 = vrcp.pop %v2840
  %v2863 = vmul.f32 %v2823, %v2862
  %v2864 = vrcp.pop %v2843
  %v2865 = vmul.f32 %v2825, %v2864
  %v2866 = vrcp.pop %v2846
  %v2867 = vmul.f32 %v2827, %v2866
  %v2868 = vrcp.pop %v2849
  %v2869 = vmul.f32 %v2829, %v2868
  %v2870 = vrcp.pop %v2852
  %v2871 = vmul.f32 %v2831, %v2870
  %v2872 = vrcp.pop %v2855
  %v2873 = vmul.f32 %v2833, %v2872
  %v2874 = vrcp.pop %v2858
  %v2875 = vmul.f32 %v2835, %v2874
  %v2876 = vrcp.pop %v2861
  %v2877 = vmul.f32 %v2837, %v2876
  %2879 = vrot.lane.b32.xlu0 %v853, 124
  %v2880 = vpop.permute.xlu0 %2879
  %v2883 = vsel %vm1485, %v2863, 0
  %2885 = vmatprep.subr.mxu0 0.0
  %2886 = vmatpush1.msra.mxu0 0.0
  %2887 = vmatprep.subr.mxu0 0.0
  %2888 = vmatpush1.msra.mxu0 0.0
  %2889 = vmatprep.subr.mxu0 0.0
  %2890 = vmatpush1.msra.mxu0 0.0
  %2891 = vmatprep.subr.mxu0 0.0
  %2892 = vmatpush1.msra.mxu0 0.0
  %2893 = vmatprep.subr.mxu0 0.0
  %2894 = vmatpush1.msra.mxu0 0.0
  %2895 = vmatprep.subr.mxu0 0.0
  %2896 = vmatpush1.msra.mxu0 0.0
  %2897 = vmatprep.subr.mxu0 0.0
  %2898 = vmatpush1.msra.mxu0 0.0
  %2899 = vmatprep.subr.mxu0 0.0
  %2900 = vmatpush1.msra.mxu0 0.0
  %2901 = vmatprep.subr.mxu0 0.0
  %2902 = vmatpush1.msra.mxu0 0.0
  %2903 = vmatprep.subr.mxu0 0.0
  %2904 = vmatpush1.msra.mxu0 0.0
  %2905 = vmatprep.subr.mxu0 0.0
  %2906 = vmatpush1.msra.mxu0 0.0
  %2907 = vmatprep.subr.mxu0 0.0
  %2908 = vmatpush1.msra.mxu0 0.0
  %2909 = vmatprep.subr.mxu0 0.0
  %2910 = vmatpush1.msra.mxu0 0.0
  %2911 = vmatprep.subr.mxu0 0.0
  %2912 = vmatpush1.msra.mxu0 0.0
  %2913 = vmatprep.subr.mxu0 0.0
  %2914 = vmatpush1.msra.mxu0 0.0
  %2915 = vmatprep.subr.mxu0 0.0
  %2916 = vmatpush1.msra.mxu0 %v2880
  %2917 = vmatprep.subr.mxu0 0.0
  %2918 = vmatpush2.msra.mxu0 0.0
  %2919 = vmatprep.subr.mxu0 0.0
  %2920 = vmatpush2.msra.mxu0 0.0
  %2921 = vmatprep.subr.mxu0 0.0
  %2922 = vmatpush2.msra.mxu0 0.0
  %2923 = vmatprep.subr.mxu0 0.0
  %2924 = vmatpush2.msra.mxu0 0.0
  %2925 = vmatprep.subr.mxu0 0.0
  %2926 = vmatpush2.msra.mxu0 0.0
  %2927 = vmatprep.subr.mxu0 0.0
  %2928 = vmatpush2.msra.mxu0 0.0
  %2929 = vmatprep.subr.mxu0 0.0
  %2930 = vmatpush2.msra.mxu0 0.0
  %2931 = vmatprep.subr.mxu0 0.0
  %2932 = vmatpush2.msra.mxu0 0.0
  %2933 = vmatprep.subr.mxu0 0.0
  %2934 = vmatpush2.msra.mxu0 0.0
  %2935 = vmatprep.subr.mxu0 0.0
  %2936 = vmatpush2.msra.mxu0 0.0
  %2937 = vmatprep.subr.mxu0 0.0
  %2938 = vmatpush2.msra.mxu0 0.0
  %2939 = vmatprep.subr.mxu0 0.0
  %2940 = vmatpush2.msra.mxu0 0.0
  %2941 = vmatprep.subr.mxu0 0.0
  %2942 = vmatpush2.msra.mxu0 0.0
  %2943 = vmatprep.subr.mxu0 0.0
  %2944 = vmatpush2.msra.mxu0 0.0
  %2945 = vmatprep.subr.mxu0 0.0
  %2946 = vmatpush2.msra.mxu0 0.0
  %2947 = vmatprep.subr.mxu0 0.0
  %2948 = vmatpush2.msra.mxu0 0.0
  %2949 = vmatprep.mubr.f32.mxu0 0.0
  %2950 = vmatmul.mubr.f32.gmra.mxu0 %v2883
  %v2951 = vpop.f32.mrf.mxu0
  %v2952 = vadd.f32 0.0, %v2951
  %v2953 = vpop.f32.mrf.mxu0
  %2954 = vdwg.mxu0
  %2956 = vrot.lane.b32.xlu0 %v854, 124
  %v2957 = vpop.permute.xlu0 %2956
  %v2960 = vsel %vm1485, %v2865, 0
  %2962 = vmatprep.subr.mxu0 0.0
  %2963 = vmatpush1.msra.mxu0 0.0
  %2964 = vmatprep.subr.mxu0 0.0
  %2965 = vmatpush1.msra.mxu0 0.0
  %2966 = vmatprep.subr.mxu0 0.0
  %2967 = vmatpush1.msra.mxu0 0.0
  %2968 = vmatprep.subr.mxu0 0.0
  %2969 = vmatpush1.msra.mxu0 0.0
  %2970 = vmatprep.subr.mxu0 0.0
  %2971 = vmatpush1.msra.mxu0 0.0
  %2972 = vmatprep.subr.mxu0 0.0
  %2973 = vmatpush1.msra.mxu0 0.0
  %2974 = vmatprep.subr.mxu0 0.0
  %2975 = vmatpush1.msra.mxu0 0.0
  %2976 = vmatprep.subr.mxu0 0.0
  %2977 = vmatpush1.msra.mxu0 0.0
  %2978 = vmatprep.subr.mxu0 0.0
  %2979 = vmatpush1.msra.mxu0 0.0
  %2980 = vmatprep.subr.mxu0 0.0
  %2981 = vmatpush1.msra.mxu0 0.0
  %2982 = vmatprep.subr.mxu0 0.0
  %2983 = vmatpush1.msra.mxu0 0.0
  %2984 = vmatprep.subr.mxu0 0.0
  %2985 = vmatpush1.msra.mxu0 0.0
  %2986 = vmatprep.subr.mxu0 0.0
  %2987 = vmatpush1.msra.mxu0 0.0
  %2988 = vmatprep.subr.mxu0 0.0
  %2989 = vmatpush1.msra.mxu0 0.0
  %2990 = vmatprep.subr.mxu0 0.0
  %2991 = vmatpush1.msra.mxu0 0.0
  %2992 = vmatprep.subr.mxu0 0.0
  %2993 = vmatpush1.msra.mxu0 %v2957
  %2994 = vmatprep.subr.mxu0 0.0
  %2995 = vmatpush2.msra.mxu0 0.0
  %2996 = vmatprep.subr.mxu0 0.0
  %2997 = vmatpush2.msra.mxu0 0.0
  %2998 = vmatprep.subr.mxu0 0.0
  %2999 = vmatpush2.msra.mxu0 0.0
  %3000 = vmatprep.subr.mxu0 0.0
  %3001 = vmatpush2.msra.mxu0 0.0
  %3002 = vmatprep.subr.mxu0 0.0
  %3003 = vmatpush2.msra.mxu0 0.0
  %3004 = vmatprep.subr.mxu0 0.0
  %3005 = vmatpush2.msra.mxu0 0.0
  %3006 = vmatprep.subr.mxu0 0.0
  %3007 = vmatpush2.msra.mxu0 0.0
  %3008 = vmatprep.subr.mxu0 0.0
  %3009 = vmatpush2.msra.mxu0 0.0
  %3010 = vmatprep.subr.mxu0 0.0
  %3011 = vmatpush2.msra.mxu0 0.0
  %3012 = vmatprep.subr.mxu0 0.0
  %3013 = vmatpush2.msra.mxu0 0.0
  %3014 = vmatprep.subr.mxu0 0.0
  %3015 = vmatpush2.msra.mxu0 0.0
  %3016 = vmatprep.subr.mxu0 0.0
  %3017 = vmatpush2.msra.mxu0 0.0
  %3018 = vmatprep.subr.mxu0 0.0
  %3019 = vmatpush2.msra.mxu0 0.0
  %3020 = vmatprep.subr.mxu0 0.0
  %3021 = vmatpush2.msra.mxu0 0.0
  %3022 = vmatprep.subr.mxu0 0.0
  %3023 = vmatpush2.msra.mxu0 0.0
  %3024 = vmatprep.subr.mxu0 0.0
  %3025 = vmatpush2.msra.mxu0 0.0
  %3026 = vmatprep.mubr.f32.mxu0 0.0
  %3027 = vmatmul.mubr.f32.gmra.mxu0 %v2960
  %v3028 = vpop.f32.mrf.mxu0
  %v3029 = vadd.f32 0.0, %v3028
  %v3030 = vpop.f32.mrf.mxu0
  %3031 = vdwg.mxu0
  %3033 = vrot.lane.b32.xlu0 %v855, 124
  %v3034 = vpop.permute.xlu0 %3033
  %v3037 = vsel %vm1485, %v2867, 0
  %3039 = vmatprep.subr.mxu0 0.0
  %3040 = vmatpush1.msra.mxu0 0.0
  %3041 = vmatprep.subr.mxu0 0.0
  %3042 = vmatpush1.msra.mxu0 0.0
  %3043 = vmatprep.subr.mxu0 0.0
  %3044 = vmatpush1.msra.mxu0 0.0
  %3045 = vmatprep.subr.mxu0 0.0
  %3046 = vmatpush1.msra.mxu0 0.0
  %3047 = vmatprep.subr.mxu0 0.0
  %3048 = vmatpush1.msra.mxu0 0.0
  %3049 = vmatprep.subr.mxu0 0.0
  %3050 = vmatpush1.msra.mxu0 0.0
  %3051 = vmatprep.subr.mxu0 0.0
  %3052 = vmatpush1.msra.mxu0 0.0
  %3053 = vmatprep.subr.mxu0 0.0
  %3054 = vmatpush1.msra.mxu0 0.0
  %3055 = vmatprep.subr.mxu0 0.0
  %3056 = vmatpush1.msra.mxu0 0.0
  %3057 = vmatprep.subr.mxu0 0.0
  %3058 = vmatpush1.msra.mxu0 0.0
  %3059 = vmatprep.subr.mxu0 0.0
  %3060 = vmatpush1.msra.mxu0 0.0
  %3061 = vmatprep.subr.mxu0 0.0
  %3062 = vmatpush1.msra.mxu0 0.0
  %3063 = vmatprep.subr.mxu0 0.0
  %3064 = vmatpush1.msra.mxu0 0.0
  %3065 = vmatprep.subr.mxu0 0.0
  %3066 = vmatpush1.msra.mxu0 0.0
  %3067 = vmatprep.subr.mxu0 0.0
  %3068 = vmatpush1.msra.mxu0 0.0
  %3069 = vmatprep.subr.mxu0 0.0
  %3070 = vmatpush1.msra.mxu0 %v3034
  %3071 = vmatprep.subr.mxu0 0.0
  %3072 = vmatpush2.msra.mxu0 0.0
  %3073 = vmatprep.subr.mxu0 0.0
  %3074 = vmatpush2.msra.mxu0 0.0
  %3075 = vmatprep.subr.mxu0 0.0
  %3076 = vmatpush2.msra.mxu0 0.0
  %3077 = vmatprep.subr.mxu0 0.0
  %3078 = vmatpush2.msra.mxu0 0.0
  %3079 = vmatprep.subr.mxu0 0.0
  %3080 = vmatpush2.msra.mxu0 0.0
  %3081 = vmatprep.subr.mxu0 0.0
  %3082 = vmatpush2.msra.mxu0 0.0
  %3083 = vmatprep.subr.mxu0 0.0
  %3084 = vmatpush2.msra.mxu0 0.0
  %3085 = vmatprep.subr.mxu0 0.0
  %3086 = vmatpush2.msra.mxu0 0.0
  %3087 = vmatprep.subr.mxu0 0.0
  %3088 = vmatpush2.msra.mxu0 0.0
  %3089 = vmatprep.subr.mxu0 0.0
  %3090 = vmatpush2.msra.mxu0 0.0
  %3091 = vmatprep.subr.mxu0 0.0
  %3092 = vmatpush2.msra.mxu0 0.0
  %3093 = vmatprep.subr.mxu0 0.0
  %3094 = vmatpush2.msra.mxu0 0.0
  %3095 = vmatprep.subr.mxu0 0.0
  %3096 = vmatpush2.msra.mxu0 0.0
  %3097 = vmatprep.subr.mxu0 0.0
  %3098 = vmatpush2.msra.mxu0 0.0
  %3099 = vmatprep.subr.mxu0 0.0
  %3100 = vmatpush2.msra.mxu0 0.0
  %3101 = vmatprep.subr.mxu0 0.0
  %3102 = vmatpush2.msra.mxu0 0.0
  %3103 = vmatprep.mubr.f32.mxu0 0.0
  %3104 = vmatmul.mubr.f32.gmra.mxu0 %v3037
  %v3105 = vpop.f32.mrf.mxu0
  %v3106 = vadd.f32 0.0, %v3105
  %v3107 = vpop.f32.mrf.mxu0
  %3108 = vdwg.mxu0
  %3110 = vrot.lane.b32.xlu0 %v856, 124
  %v3111 = vpop.permute.xlu0 %3110
  %v3114 = vsel %vm1485, %v2869, 0
  %3116 = vmatprep.subr.mxu0 0.0
  %3117 = vmatpush1.msra.mxu0 0.0
  %3118 = vmatprep.subr.mxu0 0.0
  %3119 = vmatpush1.msra.mxu0 0.0
  %3120 = vmatprep.subr.mxu0 0.0
  %3121 = vmatpush1.msra.mxu0 0.0
  %3122 = vmatprep.subr.mxu0 0.0
  %3123 = vmatpush1.msra.mxu0 0.0
  %3124 = vmatprep.subr.mxu0 0.0
  %3125 = vmatpush1.msra.mxu0 0.0
  %3126 = vmatprep.subr.mxu0 0.0
  %3127 = vmatpush1.msra.mxu0 0.0
  %3128 = vmatprep.subr.mxu0 0.0
  %3129 = vmatpush1.msra.mxu0 0.0
  %3130 = vmatprep.subr.mxu0 0.0
  %3131 = vmatpush1.msra.mxu0 0.0
  %3132 = vmatprep.subr.mxu0 0.0
  %3133 = vmatpush1.msra.mxu0 0.0
  %3134 = vmatprep.subr.mxu0 0.0
  %3135 = vmatpush1.msra.mxu0 0.0
  %3136 = vmatprep.subr.mxu0 0.0
  %3137 = vmatpush1.msra.mxu0 0.0
  %3138 = vmatprep.subr.mxu0 0.0
  %3139 = vmatpush1.msra.mxu0 0.0
  %3140 = vmatprep.subr.mxu0 0.0
  %3141 = vmatpush1.msra.mxu0 0.0
  %3142 = vmatprep.subr.mxu0 0.0
  %3143 = vmatpush1.msra.mxu0 0.0
  %3144 = vmatprep.subr.mxu0 0.0
  %3145 = vmatpush1.msra.mxu0 0.0
  %3146 = vmatprep.subr.mxu0 0.0
  %3147 = vmatpush1.msra.mxu0 %v3111
  %3148 = vmatprep.subr.mxu0 0.0
  %3149 = vmatpush2.msra.mxu0 0.0
  %3150 = vmatprep.subr.mxu0 0.0
  %3151 = vmatpush2.msra.mxu0 0.0
  %3152 = vmatprep.subr.mxu0 0.0
  %3153 = vmatpush2.msra.mxu0 0.0
  %3154 = vmatprep.subr.mxu0 0.0
  %3155 = vmatpush2.msra.mxu0 0.0
  %3156 = vmatprep.subr.mxu0 0.0
  %3157 = vmatpush2.msra.mxu0 0.0
  %3158 = vmatprep.subr.mxu0 0.0
  %3159 = vmatpush2.msra.mxu0 0.0
  %3160 = vmatprep.subr.mxu0 0.0
  %3161 = vmatpush2.msra.mxu0 0.0
  %3162 = vmatprep.subr.mxu0 0.0
  %3163 = vmatpush2.msra.mxu0 0.0
  %3164 = vmatprep.subr.mxu0 0.0
  %3165 = vmatpush2.msra.mxu0 0.0
  %3166 = vmatprep.subr.mxu0 0.0
  %3167 = vmatpush2.msra.mxu0 0.0
  %3168 = vmatprep.subr.mxu0 0.0
  %3169 = vmatpush2.msra.mxu0 0.0
  %3170 = vmatprep.subr.mxu0 0.0
  %3171 = vmatpush2.msra.mxu0 0.0
  %3172 = vmatprep.subr.mxu0 0.0
  %3173 = vmatpush2.msra.mxu0 0.0
  %3174 = vmatprep.subr.mxu0 0.0
  %3175 = vmatpush2.msra.mxu0 0.0
  %3176 = vmatprep.subr.mxu0 0.0
  %3177 = vmatpush2.msra.mxu0 0.0
  %3178 = vmatprep.subr.mxu0 0.0
  %3179 = vmatpush2.msra.mxu0 0.0
  %3180 = vmatprep.mubr.f32.mxu0 0.0
  %3181 = vmatmul.mubr.f32.gmra.mxu0 %v3114
  %v3182 = vpop.f32.mrf.mxu0
  %v3183 = vadd.f32 0.0, %v3182
  %v3184 = vpop.f32.mrf.mxu0
  %3185 = vdwg.mxu0
  %3187 = vrot.lane.b32.xlu0 %v857, 124
  %v3188 = vpop.permute.xlu0 %3187
  %v3191 = vsel %vm1485, %v2871, 0
  %3193 = vmatprep.subr.mxu0 0.0
  %3194 = vmatpush1.msra.mxu0 0.0
  %3195 = vmatprep.subr.mxu0 0.0
  %3196 = vmatpush1.msra.mxu0 0.0
  %3197 = vmatprep.subr.mxu0 0.0
  %3198 = vmatpush1.msra.mxu0 0.0
  %3199 = vmatprep.subr.mxu0 0.0
  %3200 = vmatpush1.msra.mxu0 0.0
  %3201 = vmatprep.subr.mxu0 0.0
  %3202 = vmatpush1.msra.mxu0 0.0
  %3203 = vmatprep.subr.mxu0 0.0
  %3204 = vmatpush1.msra.mxu0 0.0
  %3205 = vmatprep.subr.mxu0 0.0
  %3206 = vmatpush1.msra.mxu0 0.0
  %3207 = vmatprep.subr.mxu0 0.0
  %3208 = vmatpush1.msra.mxu0 0.0
  %3209 = vmatprep.subr.mxu0 0.0
  %3210 = vmatpush1.msra.mxu0 0.0
  %3211 = vmatprep.subr.mxu0 0.0
  %3212 = vmatpush1.msra.mxu0 0.0
  %3213 = vmatprep.subr.mxu0 0.0
  %3214 = vmatpush1.msra.mxu0 0.0
  %3215 = vmatprep.subr.mxu0 0.0
  %3216 = vmatpush1.msra.mxu0 0.0
  %3217 = vmatprep.subr.mxu0 0.0
  %3218 = vmatpush1.msra.mxu0 0.0
  %3219 = vmatprep.subr.mxu0 0.0
  %3220 = vmatpush1.msra.mxu0 0.0
  %3221 = vmatprep.subr.mxu0 0.0
  %3222 = vmatpush1.msra.mxu0 0.0
  %3223 = vmatprep.subr.mxu0 0.0
  %3224 = vmatpush1.msra.mxu0 %v3188
  %3225 = vmatprep.subr.mxu0 0.0
  %3226 = vmatpush2.msra.mxu0 0.0
  %3227 = vmatprep.subr.mxu0 0.0
  %3228 = vmatpush2.msra.mxu0 0.0
  %3229 = vmatprep.subr.mxu0 0.0
  %3230 = vmatpush2.msra.mxu0 0.0
  %3231 = vmatprep.subr.mxu0 0.0
  %3232 = vmatpush2.msra.mxu0 0.0
  %3233 = vmatprep.subr.mxu0 0.0
  %3234 = vmatpush2.msra.mxu0 0.0
  %3235 = vmatprep.subr.mxu0 0.0
  %3236 = vmatpush2.msra.mxu0 0.0
  %3237 = vmatprep.subr.mxu0 0.0
  %3238 = vmatpush2.msra.mxu0 0.0
  %3239 = vmatprep.subr.mxu0 0.0
  %3240 = vmatpush2.msra.mxu0 0.0
  %3241 = vmatprep.subr.mxu0 0.0
  %3242 = vmatpush2.msra.mxu0 0.0
  %3243 = vmatprep.subr.mxu0 0.0
  %3244 = vmatpush2.msra.mxu0 0.0
  %3245 = vmatprep.subr.mxu0 0.0
  %3246 = vmatpush2.msra.mxu0 0.0
  %3247 = vmatprep.subr.mxu0 0.0
  %3248 = vmatpush2.msra.mxu0 0.0
  %3249 = vmatprep.subr.mxu0 0.0
  %3250 = vmatpush2.msra.mxu0 0.0
  %3251 = vmatprep.subr.mxu0 0.0
  %3252 = vmatpush2.msra.mxu0 0.0
  %3253 = vmatprep.subr.mxu0 0.0
  %3254 = vmatpush2.msra.mxu0 0.0
  %3255 = vmatprep.subr.mxu0 0.0
  %3256 = vmatpush2.msra.mxu0 0.0
  %3257 = vmatprep.mubr.f32.mxu0 0.0
  %3258 = vmatmul.mubr.f32.gmra.mxu0 %v3191
  %v3259 = vpop.f32.mrf.mxu0
  %v3260 = vadd.f32 0.0, %v3259
  %v3261 = vpop.f32.mrf.mxu0
  %3262 = vdwg.mxu0
  %3264 = vrot.lane.b32.xlu0 %v858, 124
  %v3265 = vpop.permute.xlu0 %3264
  %v3268 = vsel %vm1485, %v2873, 0
  %3270 = vmatprep.subr.mxu0 0.0
  %3271 = vmatpush1.msra.mxu0 0.0
  %3272 = vmatprep.subr.mxu0 0.0
  %3273 = vmatpush1.msra.mxu0 0.0
  %3274 = vmatprep.subr.mxu0 0.0
  %3275 = vmatpush1.msra.mxu0 0.0
  %3276 = vmatprep.subr.mxu0 0.0
  %3277 = vmatpush1.msra.mxu0 0.0
  %3278 = vmatprep.subr.mxu0 0.0
  %3279 = vmatpush1.msra.mxu0 0.0
  %3280 = vmatprep.subr.mxu0 0.0
  %3281 = vmatpush1.msra.mxu0 0.0
  %3282 = vmatprep.subr.mxu0 0.0
  %3283 = vmatpush1.msra.mxu0 0.0
  %3284 = vmatprep.subr.mxu0 0.0
  %3285 = vmatpush1.msra.mxu0 0.0
  %3286 = vmatprep.subr.mxu0 0.0
  %3287 = vmatpush1.msra.mxu0 0.0
  %3288 = vmatprep.subr.mxu0 0.0
  %3289 = vmatpush1.msra.mxu0 0.0
  %3290 = vmatprep.subr.mxu0 0.0
  %3291 = vmatpush1.msra.mxu0 0.0
  %3292 = vmatprep.subr.mxu0 0.0
  %3293 = vmatpush1.msra.mxu0 0.0
  %3294 = vmatprep.subr.mxu0 0.0
  %3295 = vmatpush1.msra.mxu0 0.0
  %3296 = vmatprep.subr.mxu0 0.0
  %3297 = vmatpush1.msra.mxu0 0.0
  %3298 = vmatprep.subr.mxu0 0.0
  %3299 = vmatpush1.msra.mxu0 0.0
  %3300 = vmatprep.subr.mxu0 0.0
  %3301 = vmatpush1.msra.mxu0 %v3265
  %3302 = vmatprep.subr.mxu0 0.0
  %3303 = vmatpush2.msra.mxu0 0.0
  %3304 = vmatprep.subr.mxu0 0.0
  %3305 = vmatpush2.msra.mxu0 0.0
  %3306 = vmatprep.subr.mxu0 0.0
  %3307 = vmatpush2.msra.mxu0 0.0
  %3308 = vmatprep.subr.mxu0 0.0
  %3309 = vmatpush2.msra.mxu0 0.0
  %3310 = vmatprep.subr.mxu0 0.0
  %3311 = vmatpush2.msra.mxu0 0.0
  %3312 = vmatprep.subr.mxu0 0.0
  %3313 = vmatpush2.msra.mxu0 0.0
  %3314 = vmatprep.subr.mxu0 0.0
  %3315 = vmatpush2.msra.mxu0 0.0
  %3316 = vmatprep.subr.mxu0 0.0
  %3317 = vmatpush2.msra.mxu0 0.0
  %3318 = vmatprep.subr.mxu0 0.0
  %3319 = vmatpush2.msra.mxu0 0.0
  %3320 = vmatprep.subr.mxu0 0.0
  %3321 = vmatpush2.msra.mxu0 0.0
  %3322 = vmatprep.subr.mxu0 0.0
  %3323 = vmatpush2.msra.mxu0 0.0
  %3324 = vmatprep.subr.mxu0 0.0
  %3325 = vmatpush2.msra.mxu0 0.0
  %3326 = vmatprep.subr.mxu0 0.0
  %3327 = vmatpush2.msra.mxu0 0.0
  %3328 = vmatprep.subr.mxu0 0.0
  %3329 = vmatpush2.msra.mxu0 0.0
  %3330 = vmatprep.subr.mxu0 0.0
  %3331 = vmatpush2.msra.mxu0 0.0
  %3332 = vmatprep.subr.mxu0 0.0
  %3333 = vmatpush2.msra.mxu0 0.0
  %3334 = vmatprep.mubr.f32.mxu0 0.0
  %3335 = vmatmul.mubr.f32.gmra.mxu0 %v3268
  %v3336 = vpop.f32.mrf.mxu0
  %v3337 = vadd.f32 0.0, %v3336
  %v3338 = vpop.f32.mrf.mxu0
  %3339 = vdwg.mxu0
  %3341 = vrot.lane.b32.xlu0 %v859, 124
  %v3342 = vpop.permute.xlu0 %3341
  %v3345 = vsel %vm1485, %v2875, 0
  %3347 = vmatprep.subr.mxu0 0.0
  %3348 = vmatpush1.msra.mxu0 0.0
  %3349 = vmatprep.subr.mxu0 0.0
  %3350 = vmatpush1.msra.mxu0 0.0
  %3351 = vmatprep.subr.mxu0 0.0
  %3352 = vmatpush1.msra.mxu0 0.0
  %3353 = vmatprep.subr.mxu0 0.0
  %3354 = vmatpush1.msra.mxu0 0.0
  %3355 = vmatprep.subr.mxu0 0.0
  %3356 = vmatpush1.msra.mxu0 0.0
  %3357 = vmatprep.subr.mxu0 0.0
  %3358 = vmatpush1.msra.mxu0 0.0
  %3359 = vmatprep.subr.mxu0 0.0
  %3360 = vmatpush1.msra.mxu0 0.0
  %3361 = vmatprep.subr.mxu0 0.0
  %3362 = vmatpush1.msra.mxu0 0.0
  %3363 = vmatprep.subr.mxu0 0.0
  %3364 = vmatpush1.msra.mxu0 0.0
  %3365 = vmatprep.subr.mxu0 0.0
  %3366 = vmatpush1.msra.mxu0 0.0
  %3367 = vmatprep.subr.mxu0 0.0
  %3368 = vmatpush1.msra.mxu0 0.0
  %3369 = vmatprep.subr.mxu0 0.0
  %3370 = vmatpush1.msra.mxu0 0.0
  %3371 = vmatprep.subr.mxu0 0.0
  %3372 = vmatpush1.msra.mxu0 0.0
  %3373 = vmatprep.subr.mxu0 0.0
  %3374 = vmatpush1.msra.mxu0 0.0
  %3375 = vmatprep.subr.mxu0 0.0
  %3376 = vmatpush1.msra.mxu0 0.0
  %3377 = vmatprep.subr.mxu0 0.0
  %3378 = vmatpush1.msra.mxu0 %v3342
  %3379 = vmatprep.subr.mxu0 0.0
  %3380 = vmatpush2.msra.mxu0 0.0
  %3381 = vmatprep.subr.mxu0 0.0
  %3382 = vmatpush2.msra.mxu0 0.0
  %3383 = vmatprep.subr.mxu0 0.0
  %3384 = vmatpush2.msra.mxu0 0.0
  %3385 = vmatprep.subr.mxu0 0.0
  %3386 = vmatpush2.msra.mxu0 0.0
  %3387 = vmatprep.subr.mxu0 0.0
  %3388 = vmatpush2.msra.mxu0 0.0
  %3389 = vmatprep.subr.mxu0 0.0
  %3390 = vmatpush2.msra.mxu0 0.0
  %3391 = vmatprep.subr.mxu0 0.0
  %3392 = vmatpush2.msra.mxu0 0.0
  %3393 = vmatprep.subr.mxu0 0.0
  %3394 = vmatpush2.msra.mxu0 0.0
  %3395 = vmatprep.subr.mxu0 0.0
  %3396 = vmatpush2.msra.mxu0 0.0
  %3397 = vmatprep.subr.mxu0 0.0
  %3398 = vmatpush2.msra.mxu0 0.0
  %3399 = vmatprep.subr.mxu0 0.0
  %3400 = vmatpush2.msra.mxu0 0.0
  %3401 = vmatprep.subr.mxu0 0.0
  %3402 = vmatpush2.msra.mxu0 0.0
  %3403 = vmatprep.subr.mxu0 0.0
  %3404 = vmatpush2.msra.mxu0 0.0
  %3405 = vmatprep.subr.mxu0 0.0
  %3406 = vmatpush2.msra.mxu0 0.0
  %3407 = vmatprep.subr.mxu0 0.0
  %3408 = vmatpush2.msra.mxu0 0.0
  %3409 = vmatprep.subr.mxu0 0.0
  %3410 = vmatpush2.msra.mxu0 0.0
  %3411 = vmatprep.mubr.f32.mxu0 0.0
  %3412 = vmatmul.mubr.f32.gmra.mxu0 %v3345
  %v3413 = vpop.f32.mrf.mxu0
  %v3414 = vadd.f32 0.0, %v3413
  %v3415 = vpop.f32.mrf.mxu0
  %3416 = vdwg.mxu0
  %3418 = vrot.lane.b32.xlu0 %v860, 124
  %v3419 = vpop.permute.xlu0 %3418
  %v3422 = vsel %vm1485, %v2877, 0
  %3424 = vmatprep.subr.mxu0 0.0
  %3425 = vmatpush1.msra.mxu0 0.0
  %3426 = vmatprep.subr.mxu0 0.0
  %3427 = vmatpush1.msra.mxu0 0.0
  %3428 = vmatprep.subr.mxu0 0.0
  %3429 = vmatpush1.msra.mxu0 0.0
  %3430 = vmatprep.subr.mxu0 0.0
  %3431 = vmatpush1.msra.mxu0 0.0
  %3432 = vmatprep.subr.mxu0 0.0
  %3433 = vmatpush1.msra.mxu0 0.0
  %3434 = vmatprep.subr.mxu0 0.0
  %3435 = vmatpush1.msra.mxu0 0.0
  %3436 = vmatprep.subr.mxu0 0.0
  %3437 = vmatpush1.msra.mxu0 0.0
  %3438 = vmatprep.subr.mxu0 0.0
  %3439 = vmatpush1.msra.mxu0 0.0
  %3440 = vmatprep.subr.mxu0 0.0
  %3441 = vmatpush1.msra.mxu0 0.0
  %3442 = vmatprep.subr.mxu0 0.0
  %3443 = vmatpush1.msra.mxu0 0.0
  %3444 = vmatprep.subr.mxu0 0.0
  %3445 = vmatpush1.msra.mxu0 0.0
  %3446 = vmatprep.subr.mxu0 0.0
  %3447 = vmatpush1.msra.mxu0 0.0
  %3448 = vmatprep.subr.mxu0 0.0
  %3449 = vmatpush1.msra.mxu0 0.0
  %3450 = vmatprep.subr.mxu0 0.0
  %3451 = vmatpush1.msra.mxu0 0.0
  %3452 = vmatprep.subr.mxu0 0.0
  %3453 = vmatpush1.msra.mxu0 0.0
  %3454 = vmatprep.subr.mxu0 0.0
  %3455 = vmatpush1.msra.mxu0 %v3419
  %3456 = vmatprep.subr.mxu0 0.0
  %3457 = vmatpush2.msra.mxu0 0.0
  %3458 = vmatprep.subr.mxu0 0.0
  %3459 = vmatpush2.msra.mxu0 0.0
  %3460 = vmatprep.subr.mxu0 0.0
  %3461 = vmatpush2.msra.mxu0 0.0
  %3462 = vmatprep.subr.mxu0 0.0
  %3463 = vmatpush2.msra.mxu0 0.0
  %3464 = vmatprep.subr.mxu0 0.0
  %3465 = vmatpush2.msra.mxu0 0.0
  %3466 = vmatprep.subr.mxu0 0.0
  %3467 = vmatpush2.msra.mxu0 0.0
  %3468 = vmatprep.subr.mxu0 0.0
  %3469 = vmatpush2.msra.mxu0 0.0
  %3470 = vmatprep.subr.mxu0 0.0
  %3471 = vmatpush2.msra.mxu0 0.0
  %3472 = vmatprep.subr.mxu0 0.0
  %3473 = vmatpush2.msra.mxu0 0.0
  %3474 = vmatprep.subr.mxu0 0.0
  %3475 = vmatpush2.msra.mxu0 0.0
  %3476 = vmatprep.subr.mxu0 0.0
  %3477 = vmatpush2.msra.mxu0 0.0
  %3478 = vmatprep.subr.mxu0 0.0
  %3479 = vmatpush2.msra.mxu0 0.0
  %3480 = vmatprep.subr.mxu0 0.0
  %3481 = vmatpush2.msra.mxu0 0.0
  %3482 = vmatprep.subr.mxu0 0.0
  %3483 = vmatpush2.msra.mxu0 0.0
  %3484 = vmatprep.subr.mxu0 0.0
  %3485 = vmatpush2.msra.mxu0 0.0
  %3486 = vmatprep.subr.mxu0 0.0
  %3487 = vmatpush2.msra.mxu0 0.0
  %3488 = vmatprep.mubr.f32.mxu0 0.0
  %3489 = vmatmul.mubr.f32.gmra.mxu0 %v3422
  %v3490 = vpop.f32.mrf.mxu0
  %v3491 = vadd.f32 0.0, %v3490
  %v3492 = vpop.f32.mrf.mxu0
  %3493 = vdwg.mxu0
  %3494 = vrot.lane.b32.xlu0 %v341, 120
  %v3495 = vpop.permute.xlu0 %3494
  %3496 = vrot.lane.b32.xlu0 %v597, 120
  %v3497 = vpop.permute.xlu0 %3496
  %v3498 = vsel %vm866, %v3495, 0
  %v3500 = vsel %vm866, %v3497, 0
  %3502 = vmatprep.subr.mxu0 0.0
  %3503 = vmatpush1.xpose.msra.mxu0 0.0
  %3504 = vmatprep.subr.mxu0 0.0
  %3505 = vmatpush1.xpose.msra.mxu0 0.0
  %3506 = vmatprep.subr.mxu0 0.0
  %3507 = vmatpush1.xpose.msra.mxu0 0.0
  %3508 = vmatprep.subr.mxu0 0.0
  %3509 = vmatpush1.xpose.msra.mxu0 0.0
  %3510 = vmatprep.subr.mxu0 0.0
  %3511 = vmatpush1.xpose.msra.mxu0 0.0
  %3512 = vmatprep.subr.mxu0 0.0
  %3513 = vmatpush1.xpose.msra.mxu0 0.0
  %3514 = vmatprep.subr.mxu0 0.0
  %3515 = vmatpush1.xpose.msra.mxu0 0.0
  %3516 = vmatprep.subr.mxu0 0.0
  %3517 = vmatpush1.xpose.msra.mxu0 0.0
  %3518 = vmatprep.subr.mxu0 0.0
  %3519 = vmatpush1.xpose.msra.mxu0 0.0
  %3520 = vmatprep.subr.mxu0 0.0
  %3521 = vmatpush1.xpose.msra.mxu0 0.0
  %3522 = vmatprep.subr.mxu0 0.0
  %3523 = vmatpush1.xpose.msra.mxu0 0.0
  %3524 = vmatprep.subr.mxu0 0.0
  %3525 = vmatpush1.xpose.msra.mxu0 0.0
  %3526 = vmatprep.subr.mxu0 0.0
  %3527 = vmatpush1.xpose.msra.mxu0 0.0
  %3528 = vmatprep.subr.mxu0 0.0
  %3529 = vmatpush1.xpose.msra.mxu0 0.0
  %3530 = vmatprep.subr.mxu0 0.0
  %3531 = vmatpush1.xpose.msra.mxu0 0.0
  %3532 = vmatprep.subr.mxu0 0.0
  %3533 = vmatpush1.xpose.msra.mxu0 %v3500
  %3534 = vmatprep.subr.mxu0 0.0
  %3535 = vmatpush2.xpose.msra.mxu0 0.0
  %3536 = vmatprep.subr.mxu0 0.0
  %3537 = vmatpush2.xpose.msra.mxu0 0.0
  %3538 = vmatprep.subr.mxu0 0.0
  %3539 = vmatpush2.xpose.msra.mxu0 0.0
  %3540 = vmatprep.subr.mxu0 0.0
  %3541 = vmatpush2.xpose.msra.mxu0 0.0
  %3542 = vmatprep.subr.mxu0 0.0
  %3543 = vmatpush2.xpose.msra.mxu0 0.0
  %3544 = vmatprep.subr.mxu0 0.0
  %3545 = vmatpush2.xpose.msra.mxu0 0.0
  %3546 = vmatprep.subr.mxu0 0.0
  %3547 = vmatpush2.xpose.msra.mxu0 0.0
  %3548 = vmatprep.subr.mxu0 0.0
  %3549 = vmatpush2.xpose.msra.mxu0 0.0
  %3550 = vmatprep.subr.mxu0 0.0
  %3551 = vmatpush2.xpose.msra.mxu0 0.0
  %3552 = vmatprep.subr.mxu0 0.0
  %3553 = vmatpush2.xpose.msra.mxu0 0.0
  %3554 = vmatprep.subr.mxu0 0.0
  %3555 = vmatpush2.xpose.msra.mxu0 0.0
  %3556 = vmatprep.subr.mxu0 0.0
  %3557 = vmatpush2.xpose.msra.mxu0 0.0
  %3558 = vmatprep.subr.mxu0 0.0
  %3559 = vmatpush2.xpose.msra.mxu0 0.0
  %3560 = vmatprep.subr.mxu0 0.0
  %3561 = vmatpush2.xpose.msra.mxu0 0.0
  %3562 = vmatprep.subr.mxu0 0.0
  %3563 = vmatpush2.xpose.msra.mxu0 0.0
  %3564 = vmatprep.subr.mxu0 0.0
  %3565 = vmatpush2.xpose.msra.mxu0 0.0
  %3566 = vmatprep.mubr.f32.mxu0 0.0
  %3567 = vmatmul.mubr.f32.gmra.mxu0 %v3498
  %v3568 = vpop.f32.mrf.mxu0
  %v3569 = vadd.f32 0.0, %v3568
  %v3570 = vpop.f32.mrf.mxu0
  %3571 = vdwg.mxu0
  %3572 = vrot.lane.b32.xlu0 %v342, 120
  %v3573 = vpop.permute.xlu0 %3572
  %3574 = vrot.lane.b32.xlu0 %v598, 120
  %v3575 = vpop.permute.xlu0 %3574
  %v3576 = vsel %vm866, %v3573, 0
  %v3578 = vsel %vm866, %v3575, 0
  %3580 = vmatprep.subr.mxu0 0.0
  %3581 = vmatpush1.xpose.msra.mxu0 0.0
  %3582 = vmatprep.subr.mxu0 0.0
  %3583 = vmatpush1.xpose.msra.mxu0 0.0
  %3584 = vmatprep.subr.mxu0 0.0
  %3585 = vmatpush1.xpose.msra.mxu0 0.0
  %3586 = vmatprep.subr.mxu0 0.0
  %3587 = vmatpush1.xpose.msra.mxu0 0.0
  %3588 = vmatprep.subr.mxu0 0.0
  %3589 = vmatpush1.xpose.msra.mxu0 0.0
  %3590 = vmatprep.subr.mxu0 0.0
  %3591 = vmatpush1.xpose.msra.mxu0 0.0
  %3592 = vmatprep.subr.mxu0 0.0
  %3593 = vmatpush1.xpose.msra.mxu0 0.0
  %3594 = vmatprep.subr.mxu0 0.0
  %3595 = vmatpush1.xpose.msra.mxu0 0.0
  %3596 = vmatprep.subr.mxu0 0.0
  %3597 = vmatpush1.xpose.msra.mxu0 0.0
  %3598 = vmatprep.subr.mxu0 0.0
  %3599 = vmatpush1.xpose.msra.mxu0 0.0
  %3600 = vmatprep.subr.mxu0 0.0
  %3601 = vmatpush1.xpose.msra.mxu0 0.0
  %3602 = vmatprep.subr.mxu0 0.0
  %3603 = vmatpush1.xpose.msra.mxu0 0.0
  %3604 = vmatprep.subr.mxu0 0.0
  %3605 = vmatpush1.xpose.msra.mxu0 0.0
  %3606 = vmatprep.subr.mxu0 0.0
  %3607 = vmatpush1.xpose.msra.mxu0 0.0
  %3608 = vmatprep.subr.mxu0 0.0
  %3609 = vmatpush1.xpose.msra.mxu0 0.0
  %3610 = vmatprep.subr.mxu0 0.0
  %3611 = vmatpush1.xpose.msra.mxu0 %v3578
  %3612 = vmatprep.subr.mxu0 0.0
  %3613 = vmatpush2.xpose.msra.mxu0 0.0
  %3614 = vmatprep.subr.mxu0 0.0
  %3615 = vmatpush2.xpose.msra.mxu0 0.0
  %3616 = vmatprep.subr.mxu0 0.0
  %3617 = vmatpush2.xpose.msra.mxu0 0.0
  %3618 = vmatprep.subr.mxu0 0.0
  %3619 = vmatpush2.xpose.msra.mxu0 0.0
  %3620 = vmatprep.subr.mxu0 0.0
  %3621 = vmatpush2.xpose.msra.mxu0 0.0
  %3622 = vmatprep.subr.mxu0 0.0
  %3623 = vmatpush2.xpose.msra.mxu0 0.0
  %3624 = vmatprep.subr.mxu0 0.0
  %3625 = vmatpush2.xpose.msra.mxu0 0.0
  %3626 = vmatprep.subr.mxu0 0.0
  %3627 = vmatpush2.xpose.msra.mxu0 0.0
  %3628 = vmatprep.subr.mxu0 0.0
  %3629 = vmatpush2.xpose.msra.mxu0 0.0
  %3630 = vmatprep.subr.mxu0 0.0
  %3631 = vmatpush2.xpose.msra.mxu0 0.0
  %3632 = vmatprep.subr.mxu0 0.0
  %3633 = vmatpush2.xpose.msra.mxu0 0.0
  %3634 = vmatprep.subr.mxu0 0.0
  %3635 = vmatpush2.xpose.msra.mxu0 0.0
  %3636 = vmatprep.subr.mxu0 0.0
  %3637 = vmatpush2.xpose.msra.mxu0 0.0
  %3638 = vmatprep.subr.mxu0 0.0
  %3639 = vmatpush2.xpose.msra.mxu0 0.0
  %3640 = vmatprep.subr.mxu0 0.0
  %3641 = vmatpush2.xpose.msra.mxu0 0.0
  %3642 = vmatprep.subr.mxu0 0.0
  %3643 = vmatpush2.xpose.msra.mxu0 0.0
  %3644 = vmatprep.mubr.f32.mxu0 0.0
  %3645 = vmatmul.mubr.f32.gmra.mxu0 %v3576
  %v3646 = vpop.f32.mrf.mxu0
  %v3647 = vadd.f32 0.0, %v3646
  %v3648 = vpop.f32.mrf.mxu0
  %3649 = vdwg.mxu0
  %3650 = vrot.lane.b32.xlu0 %v343, 120
  %v3651 = vpop.permute.xlu0 %3650
  %3652 = vrot.lane.b32.xlu0 %v599, 120
  %v3653 = vpop.permute.xlu0 %3652
  %v3654 = vsel %vm866, %v3651, 0
  %v3656 = vsel %vm866, %v3653, 0
  %3658 = vmatprep.subr.mxu0 0.0
  %3659 = vmatpush1.xpose.msra.mxu0 0.0
  %3660 = vmatprep.subr.mxu0 0.0
  %3661 = vmatpush1.xpose.msra.mxu0 0.0
  %3662 = vmatprep.subr.mxu0 0.0
  %3663 = vmatpush1.xpose.msra.mxu0 0.0
  %3664 = vmatprep.subr.mxu0 0.0
  %3665 = vmatpush1.xpose.msra.mxu0 0.0
  %3666 = vmatprep.subr.mxu0 0.0
  %3667 = vmatpush1.xpose.msra.mxu0 0.0
  %3668 = vmatprep.subr.mxu0 0.0
  %3669 = vmatpush1.xpose.msra.mxu0 0.0
  %3670 = vmatprep.subr.mxu0 0.0
  %3671 = vmatpush1.xpose.msra.mxu0 0.0
  %3672 = vmatprep.subr.mxu0 0.0
  %3673 = vmatpush1.xpose.msra.mxu0 0.0
  %3674 = vmatprep.subr.mxu0 0.0
  %3675 = vmatpush1.xpose.msra.mxu0 0.0
  %3676 = vmatprep.subr.mxu0 0.0
  %3677 = vmatpush1.xpose.msra.mxu0 0.0
  %3678 = vmatprep.subr.mxu0 0.0
  %3679 = vmatpush1.xpose.msra.mxu0 0.0
  %3680 = vmatprep.subr.mxu0 0.0
  %3681 = vmatpush1.xpose.msra.mxu0 0.0
  %3682 = vmatprep.subr.mxu0 0.0
  %3683 = vmatpush1.xpose.msra.mxu0 0.0
  %3684 = vmatprep.subr.mxu0 0.0
  %3685 = vmatpush1.xpose.msra.mxu0 0.0
  %3686 = vmatprep.subr.mxu0 0.0
  %3687 = vmatpush1.xpose.msra.mxu0 0.0
  %3688 = vmatprep.subr.mxu0 0.0
  %3689 = vmatpush1.xpose.msra.mxu0 %v3656
  %3690 = vmatprep.subr.mxu0 0.0
  %3691 = vmatpush2.xpose.msra.mxu0 0.0
  %3692 = vmatprep.subr.mxu0 0.0
  %3693 = vmatpush2.xpose.msra.mxu0 0.0
  %3694 = vmatprep.subr.mxu0 0.0
  %3695 = vmatpush2.xpose.msra.mxu0 0.0
  %3696 = vmatprep.subr.mxu0 0.0
  %3697 = vmatpush2.xpose.msra.mxu0 0.0
  %3698 = vmatprep.subr.mxu0 0.0
  %3699 = vmatpush2.xpose.msra.mxu0 0.0
  %3700 = vmatprep.subr.mxu0 0.0
  %3701 = vmatpush2.xpose.msra.mxu0 0.0
  %3702 = vmatprep.subr.mxu0 0.0
  %3703 = vmatpush2.xpose.msra.mxu0 0.0
  %3704 = vmatprep.subr.mxu0 0.0
  %3705 = vmatpush2.xpose.msra.mxu0 0.0
  %3706 = vmatprep.subr.mxu0 0.0
  %3707 = vmatpush2.xpose.msra.mxu0 0.0
  %3708 = vmatprep.subr.mxu0 0.0
  %3709 = vmatpush2.xpose.msra.mxu0 0.0
  %3710 = vmatprep.subr.mxu0 0.0
  %3711 = vmatpush2.xpose.msra.mxu0 0.0
  %3712 = vmatprep.subr.mxu0 0.0
  %3713 = vmatpush2.xpose.msra.mxu0 0.0
  %3714 = vmatprep.subr.mxu0 0.0
  %3715 = vmatpush2.xpose.msra.mxu0 0.0
  %3716 = vmatprep.subr.mxu0 0.0
  %3717 = vmatpush2.xpose.msra.mxu0 0.0
  %3718 = vmatprep.subr.mxu0 0.0
  %3719 = vmatpush2.xpose.msra.mxu0 0.0
  %3720 = vmatprep.subr.mxu0 0.0
  %3721 = vmatpush2.xpose.msra.mxu0 0.0
  %3722 = vmatprep.mubr.f32.mxu0 0.0
  %3723 = vmatmul.mubr.f32.gmra.mxu0 %v3654
  %v3724 = vpop.f32.mrf.mxu0
  %v3725 = vadd.f32 0.0, %v3724
  %v3726 = vpop.f32.mrf.mxu0
  %3727 = vdwg.mxu0
  %3728 = vrot.lane.b32.xlu0 %v344, 120
  %v3729 = vpop.permute.xlu0 %3728
  %3730 = vrot.lane.b32.xlu0 %v600, 120
  %v3731 = vpop.permute.xlu0 %3730
  %v3732 = vsel %vm866, %v3729, 0
  %v3734 = vsel %vm866, %v3731, 0
  %3736 = vmatprep.subr.mxu0 0.0
  %3737 = vmatpush1.xpose.msra.mxu0 0.0
  %3738 = vmatprep.subr.mxu0 0.0
  %3739 = vmatpush1.xpose.msra.mxu0 0.0
  %3740 = vmatprep.subr.mxu0 0.0
  %3741 = vmatpush1.xpose.msra.mxu0 0.0
  %3742 = vmatprep.subr.mxu0 0.0
  %3743 = vmatpush1.xpose.msra.mxu0 0.0
  %3744 = vmatprep.subr.mxu0 0.0
  %3745 = vmatpush1.xpose.msra.mxu0 0.0
  %3746 = vmatprep.subr.mxu0 0.0
  %3747 = vmatpush1.xpose.msra.mxu0 0.0
  %3748 = vmatprep.subr.mxu0 0.0
  %3749 = vmatpush1.xpose.msra.mxu0 0.0
  %3750 = vmatprep.subr.mxu0 0.0
  %3751 = vmatpush1.xpose.msra.mxu0 0.0
  %3752 = vmatprep.subr.mxu0 0.0
  %3753 = vmatpush1.xpose.msra.mxu0 0.0
  %3754 = vmatprep.subr.mxu0 0.0
  %3755 = vmatpush1.xpose.msra.mxu0 0.0
  %3756 = vmatprep.subr.mxu0 0.0
  %3757 = vmatpush1.xpose.msra.mxu0 0.0
  %3758 = vmatprep.subr.mxu0 0.0
  %3759 = vmatpush1.xpose.msra.mxu0 0.0
  %3760 = vmatprep.subr.mxu0 0.0
  %3761 = vmatpush1.xpose.msra.mxu0 0.0
  %3762 = vmatprep.subr.mxu0 0.0
  %3763 = vmatpush1.xpose.msra.mxu0 0.0
  %3764 = vmatprep.subr.mxu0 0.0
  %3765 = vmatpush1.xpose.msra.mxu0 0.0
  %3766 = vmatprep.subr.mxu0 0.0
  %3767 = vmatpush1.xpose.msra.mxu0 %v3734
  %3768 = vmatprep.subr.mxu0 0.0
  %3769 = vmatpush2.xpose.msra.mxu0 0.0
  %3770 = vmatprep.subr.mxu0 0.0
  %3771 = vmatpush2.xpose.msra.mxu0 0.0
  %3772 = vmatprep.subr.mxu0 0.0
  %3773 = vmatpush2.xpose.msra.mxu0 0.0
  %3774 = vmatprep.subr.mxu0 0.0
  %3775 = vmatpush2.xpose.msra.mxu0 0.0
  %3776 = vmatprep.subr.mxu0 0.0
  %3777 = vmatpush2.xpose.msra.mxu0 0.0
  %3778 = vmatprep.subr.mxu0 0.0
  %3779 = vmatpush2.xpose.msra.mxu0 0.0
  %3780 = vmatprep.subr.mxu0 0.0
  %3781 = vmatpush2.xpose.msra.mxu0 0.0
  %3782 = vmatprep.subr.mxu0 0.0
  %3783 = vmatpush2.xpose.msra.mxu0 0.0
  %3784 = vmatprep.subr.mxu0 0.0
  %3785 = vmatpush2.xpose.msra.mxu0 0.0
  %3786 = vmatprep.subr.mxu0 0.0
  %3787 = vmatpush2.xpose.msra.mxu0 0.0
  %3788 = vmatprep.subr.mxu0 0.0
  %3789 = vmatpush2.xpose.msra.mxu0 0.0
  %3790 = vmatprep.subr.mxu0 0.0
  %3791 = vmatpush2.xpose.msra.mxu0 0.0
  %3792 = vmatprep.subr.mxu0 0.0
  %3793 = vmatpush2.xpose.msra.mxu0 0.0
  %3794 = vmatprep.subr.mxu0 0.0
  %3795 = vmatpush2.xpose.msra.mxu0 0.0
  %3796 = vmatprep.subr.mxu0 0.0
  %3797 = vmatpush2.xpose.msra.mxu0 0.0
  %3798 = vmatprep.subr.mxu0 0.0
  %3799 = vmatpush2.xpose.msra.mxu0 0.0
  %3800 = vmatprep.mubr.f32.mxu0 0.0
  %3801 = vmatmul.mubr.f32.gmra.mxu0 %v3732
  %v3802 = vpop.f32.mrf.mxu0
  %v3803 = vadd.f32 0.0, %v3802
  %v3804 = vpop.f32.mrf.mxu0
  %3805 = vdwg.mxu0
  %3806 = vrot.lane.b32.xlu0 %v345, 120
  %v3807 = vpop.permute.xlu0 %3806
  %3808 = vrot.lane.b32.xlu0 %v601, 120
  %v3809 = vpop.permute.xlu0 %3808
  %v3810 = vsel %vm866, %v3807, 0
  %v3812 = vsel %vm866, %v3809, 0
  %3814 = vmatprep.subr.mxu0 0.0
  %3815 = vmatpush1.xpose.msra.mxu0 0.0
  %3816 = vmatprep.subr.mxu0 0.0
  %3817 = vmatpush1.xpose.msra.mxu0 0.0
  %3818 = vmatprep.subr.mxu0 0.0
  %3819 = vmatpush1.xpose.msra.mxu0 0.0
  %3820 = vmatprep.subr.mxu0 0.0
  %3821 = vmatpush1.xpose.msra.mxu0 0.0
  %3822 = vmatprep.subr.mxu0 0.0
  %3823 = vmatpush1.xpose.msra.mxu0 0.0
  %3824 = vmatprep.subr.mxu0 0.0
  %3825 = vmatpush1.xpose.msra.mxu0 0.0
  %3826 = vmatprep.subr.mxu0 0.0
  %3827 = vmatpush1.xpose.msra.mxu0 0.0
  %3828 = vmatprep.subr.mxu0 0.0
  %3829 = vmatpush1.xpose.msra.mxu0 0.0
  %3830 = vmatprep.subr.mxu0 0.0
  %3831 = vmatpush1.xpose.msra.mxu0 0.0
  %3832 = vmatprep.subr.mxu0 0.0
  %3833 = vmatpush1.xpose.msra.mxu0 0.0
  %3834 = vmatprep.subr.mxu0 0.0
  %3835 = vmatpush1.xpose.msra.mxu0 0.0
  %3836 = vmatprep.subr.mxu0 0.0
  %3837 = vmatpush1.xpose.msra.mxu0 0.0
  %3838 = vmatprep.subr.mxu0 0.0
  %3839 = vmatpush1.xpose.msra.mxu0 0.0
  %3840 = vmatprep.subr.mxu0 0.0
  %3841 = vmatpush1.xpose.msra.mxu0 0.0
  %3842 = vmatprep.subr.mxu0 0.0
  %3843 = vmatpush1.xpose.msra.mxu0 0.0
  %3844 = vmatprep.subr.mxu0 0.0
  %3845 = vmatpush1.xpose.msra.mxu0 %v3812
  %3846 = vmatprep.subr.mxu0 0.0
  %3847 = vmatpush2.xpose.msra.mxu0 0.0
  %3848 = vmatprep.subr.mxu0 0.0
  %3849 = vmatpush2.xpose.msra.mxu0 0.0
  %3850 = vmatprep.subr.mxu0 0.0
  %3851 = vmatpush2.xpose.msra.mxu0 0.0
  %3852 = vmatprep.subr.mxu0 0.0
  %3853 = vmatpush2.xpose.msra.mxu0 0.0
  %3854 = vmatprep.subr.mxu0 0.0
  %3855 = vmatpush2.xpose.msra.mxu0 0.0
  %3856 = vmatprep.subr.mxu0 0.0
  %3857 = vmatpush2.xpose.msra.mxu0 0.0
  %3858 = vmatprep.subr.mxu0 0.0
  %3859 = vmatpush2.xpose.msra.mxu0 0.0
  %3860 = vmatprep.subr.mxu0 0.0
  %3861 = vmatpush2.xpose.msra.mxu0 0.0
  %3862 = vmatprep.subr.mxu0 0.0
  %3863 = vmatpush2.xpose.msra.mxu0 0.0
  %3864 = vmatprep.subr.mxu0 0.0
  %3865 = vmatpush2.xpose.msra.mxu0 0.0
  %3866 = vmatprep.subr.mxu0 0.0
  %3867 = vmatpush2.xpose.msra.mxu0 0.0
  %3868 = vmatprep.subr.mxu0 0.0
  %3869 = vmatpush2.xpose.msra.mxu0 0.0
  %3870 = vmatprep.subr.mxu0 0.0
  %3871 = vmatpush2.xpose.msra.mxu0 0.0
  %3872 = vmatprep.subr.mxu0 0.0
  %3873 = vmatpush2.xpose.msra.mxu0 0.0
  %3874 = vmatprep.subr.mxu0 0.0
  %3875 = vmatpush2.xpose.msra.mxu0 0.0
  %3876 = vmatprep.subr.mxu0 0.0
  %3877 = vmatpush2.xpose.msra.mxu0 0.0
  %3878 = vmatprep.mubr.f32.mxu0 0.0
  %3879 = vmatmul.mubr.f32.gmra.mxu0 %v3810
  %v3880 = vpop.f32.mrf.mxu0
  %v3881 = vadd.f32 0.0, %v3880
  %v3882 = vpop.f32.mrf.mxu0
  %3883 = vdwg.mxu0
  %3884 = vrot.lane.b32.xlu0 %v346, 120
  %v3885 = vpop.permute.xlu0 %3884
  %3886 = vrot.lane.b32.xlu0 %v602, 120
  %v3887 = vpop.permute.xlu0 %3886
  %v3888 = vsel %vm866, %v3885, 0
  %v3890 = vsel %vm866, %v3887, 0
  %3892 = vmatprep.subr.mxu0 0.0
  %3893 = vmatpush1.xpose.msra.mxu0 0.0
  %3894 = vmatprep.subr.mxu0 0.0
  %3895 = vmatpush1.xpose.msra.mxu0 0.0
  %3896 = vmatprep.subr.mxu0 0.0
  %3897 = vmatpush1.xpose.msra.mxu0 0.0
  %3898 = vmatprep.subr.mxu0 0.0
  %3899 = vmatpush1.xpose.msra.mxu0 0.0
  %3900 = vmatprep.subr.mxu0 0.0
  %3901 = vmatpush1.xpose.msra.mxu0 0.0
  %3902 = vmatprep.subr.mxu0 0.0
  %3903 = vmatpush1.xpose.msra.mxu0 0.0
  %3904 = vmatprep.subr.mxu0 0.0
  %3905 = vmatpush1.xpose.msra.mxu0 0.0
  %3906 = vmatprep.subr.mxu0 0.0
  %3907 = vmatpush1.xpose.msra.mxu0 0.0
  %3908 = vmatprep.subr.mxu0 0.0
  %3909 = vmatpush1.xpose.msra.mxu0 0.0
  %3910 = vmatprep.subr.mxu0 0.0
  %3911 = vmatpush1.xpose.msra.mxu0 0.0
  %3912 = vmatprep.subr.mxu0 0.0
  %3913 = vmatpush1.xpose.msra.mxu0 0.0
  %3914 = vmatprep.subr.mxu0 0.0
  %3915 = vmatpush1.xpose.msra.mxu0 0.0
  %3916 = vmatprep.subr.mxu0 0.0
  %3917 = vmatpush1.xpose.msra.mxu0 0.0
  %3918 = vmatprep.subr.mxu0 0.0
  %3919 = vmatpush1.xpose.msra.mxu0 0.0
  %3920 = vmatprep.subr.mxu0 0.0
  %3921 = vmatpush1.xpose.msra.mxu0 0.0
  %3922 = vmatprep.subr.mxu0 0.0
  %3923 = vmatpush1.xpose.msra.mxu0 %v3890
  %3924 = vmatprep.subr.mxu0 0.0
  %3925 = vmatpush2.xpose.msra.mxu0 0.0
  %3926 = vmatprep.subr.mxu0 0.0
  %3927 = vmatpush2.xpose.msra.mxu0 0.0
  %3928 = vmatprep.subr.mxu0 0.0
  %3929 = vmatpush2.xpose.msra.mxu0 0.0
  %3930 = vmatprep.subr.mxu0 0.0
  %3931 = vmatpush2.xpose.msra.mxu0 0.0
  %3932 = vmatprep.subr.mxu0 0.0
  %3933 = vmatpush2.xpose.msra.mxu0 0.0
  %3934 = vmatprep.subr.mxu0 0.0
  %3935 = vmatpush2.xpose.msra.mxu0 0.0
  %3936 = vmatprep.subr.mxu0 0.0
  %3937 = vmatpush2.xpose.msra.mxu0 0.0
  %3938 = vmatprep.subr.mxu0 0.0
  %3939 = vmatpush2.xpose.msra.mxu0 0.0
  %3940 = vmatprep.subr.mxu0 0.0
  %3941 = vmatpush2.xpose.msra.mxu0 0.0
  %3942 = vmatprep.subr.mxu0 0.0
  %3943 = vmatpush2.xpose.msra.mxu0 0.0
  %3944 = vmatprep.subr.mxu0 0.0
  %3945 = vmatpush2.xpose.msra.mxu0 0.0
  %3946 = vmatprep.subr.mxu0 0.0
  %3947 = vmatpush2.xpose.msra.mxu0 0.0
  %3948 = vmatprep.subr.mxu0 0.0
  %3949 = vmatpush2.xpose.msra.mxu0 0.0
  %3950 = vmatprep.subr.mxu0 0.0
  %3951 = vmatpush2.xpose.msra.mxu0 0.0
  %3952 = vmatprep.subr.mxu0 0.0
  %3953 = vmatpush2.xpose.msra.mxu0 0.0
  %3954 = vmatprep.subr.mxu0 0.0
  %3955 = vmatpush2.xpose.msra.mxu0 0.0
  %3956 = vmatprep.mubr.f32.mxu0 0.0
  %3957 = vmatmul.mubr.f32.gmra.mxu0 %v3888
  %v3958 = vpop.f32.mrf.mxu0
  %v3959 = vadd.f32 0.0, %v3958
  %v3960 = vpop.f32.mrf.mxu0
  %3961 = vdwg.mxu0
  %3962 = vrot.lane.b32.xlu0 %v347, 120
  %v3963 = vpop.permute.xlu0 %3962
  %3964 = vrot.lane.b32.xlu0 %v603, 120
  %v3965 = vpop.permute.xlu0 %3964
  %v3966 = vsel %vm866, %v3963, 0
  %v3968 = vsel %vm866, %v3965, 0
  %3970 = vmatprep.subr.mxu0 0.0
  %3971 = vmatpush1.xpose.msra.mxu0 0.0
  %3972 = vmatprep.subr.mxu0 0.0
  %3973 = vmatpush1.xpose.msra.mxu0 0.0
  %3974 = vmatprep.subr.mxu0 0.0
  %3975 = vmatpush1.xpose.msra.mxu0 0.0
  %3976 = vmatprep.subr.mxu0 0.0
  %3977 = vmatpush1.xpose.msra.mxu0 0.0
  %3978 = vmatprep.subr.mxu0 0.0
  %3979 = vmatpush1.xpose.msra.mxu0 0.0
  %3980 = vmatprep.subr.mxu0 0.0
  %3981 = vmatpush1.xpose.msra.mxu0 0.0
  %3982 = vmatprep.subr.mxu0 0.0
  %3983 = vmatpush1.xpose.msra.mxu0 0.0
  %3984 = vmatprep.subr.mxu0 0.0
  %3985 = vmatpush1.xpose.msra.mxu0 0.0
  %3986 = vmatprep.subr.mxu0 0.0
  %3987 = vmatpush1.xpose.msra.mxu0 0.0
  %3988 = vmatprep.subr.mxu0 0.0
  %3989 = vmatpush1.xpose.msra.mxu0 0.0
  %3990 = vmatprep.subr.mxu0 0.0
  %3991 = vmatpush1.xpose.msra.mxu0 0.0
  %3992 = vmatprep.subr.mxu0 0.0
  %3993 = vmatpush1.xpose.msra.mxu0 0.0
  %3994 = vmatprep.subr.mxu0 0.0
  %3995 = vmatpush1.xpose.msra.mxu0 0.0
  %3996 = vmatprep.subr.mxu0 0.0
  %3997 = vmatpush1.xpose.msra.mxu0 0.0
  %3998 = vmatprep.subr.mxu0 0.0
  %3999 = vmatpush1.xpose.msra.mxu0 0.0
  %4000 = vmatprep.subr.mxu0 0.0
  %4001 = vmatpush1.xpose.msra.mxu0 %v3968
  %4002 = vmatprep.subr.mxu0 0.0
  %4003 = vmatpush2.xpose.msra.mxu0 0.0
  %4004 = vmatprep.subr.mxu0 0.0
  %4005 = vmatpush2.xpose.msra.mxu0 0.0
  %4006 = vmatprep.subr.mxu0 0.0
  %4007 = vmatpush2.xpose.msra.mxu0 0.0
  %4008 = vmatprep.subr.mxu0 0.0
  %4009 = vmatpush2.xpose.msra.mxu0 0.0
  %4010 = vmatprep.subr.mxu0 0.0
  %4011 = vmatpush2.xpose.msra.mxu0 0.0
  %4012 = vmatprep.subr.mxu0 0.0
  %4013 = vmatpush2.xpose.msra.mxu0 0.0
  %4014 = vmatprep.subr.mxu0 0.0
  %4015 = vmatpush2.xpose.msra.mxu0 0.0
  %4016 = vmatprep.subr.mxu0 0.0
  %4017 = vmatpush2.xpose.msra.mxu0 0.0
  %4018 = vmatprep.subr.mxu0 0.0
  %4019 = vmatpush2.xpose.msra.mxu0 0.0
  %4020 = vmatprep.subr.mxu0 0.0
  %4021 = vmatpush2.xpose.msra.mxu0 0.0
  %4022 = vmatprep.subr.mxu0 0.0
  %4023 = vmatpush2.xpose.msra.mxu0 0.0
  %4024 = vmatprep.subr.mxu0 0.0
  %4025 = vmatpush2.xpose.msra.mxu0 0.0
  %4026 = vmatprep.subr.mxu0 0.0
  %4027 = vmatpush2.xpose.msra.mxu0 0.0
  %4028 = vmatprep.subr.mxu0 0.0
  %4029 = vmatpush2.xpose.msra.mxu0 0.0
  %4030 = vmatprep.subr.mxu0 0.0
  %4031 = vmatpush2.xpose.msra.mxu0 0.0
  %4032 = vmatprep.subr.mxu0 0.0
  %4033 = vmatpush2.xpose.msra.mxu0 0.0
  %4034 = vmatprep.mubr.f32.mxu0 0.0
  %4035 = vmatmul.mubr.f32.gmra.mxu0 %v3966
  %v4036 = vpop.f32.mrf.mxu0
  %v4037 = vadd.f32 0.0, %v4036
  %v4038 = vpop.f32.mrf.mxu0
  %4039 = vdwg.mxu0
  %4040 = vrot.lane.b32.xlu0 %v348, 120
  %v4041 = vpop.permute.xlu0 %4040
  %4042 = vrot.lane.b32.xlu0 %v604, 120
  %v4043 = vpop.permute.xlu0 %4042
  %v4044 = vsel %vm866, %v4041, 0
  %v4046 = vsel %vm866, %v4043, 0
  %4048 = vmatprep.subr.mxu0 0.0
  %4049 = vmatpush1.xpose.msra.mxu0 0.0
  %4050 = vmatprep.subr.mxu0 0.0
  %4051 = vmatpush1.xpose.msra.mxu0 0.0
  %4052 = vmatprep.subr.mxu0 0.0
  %4053 = vmatpush1.xpose.msra.mxu0 0.0
  %4054 = vmatprep.subr.mxu0 0.0
  %4055 = vmatpush1.xpose.msra.mxu0 0.0
  %4056 = vmatprep.subr.mxu0 0.0
  %4057 = vmatpush1.xpose.msra.mxu0 0.0
  %4058 = vmatprep.subr.mxu0 0.0
  %4059 = vmatpush1.xpose.msra.mxu0 0.0
  %4060 = vmatprep.subr.mxu0 0.0
  %4061 = vmatpush1.xpose.msra.mxu0 0.0
  %4062 = vmatprep.subr.mxu0 0.0
  %4063 = vmatpush1.xpose.msra.mxu0 0.0
  %4064 = vmatprep.subr.mxu0 0.0
  %4065 = vmatpush1.xpose.msra.mxu0 0.0
  %4066 = vmatprep.subr.mxu0 0.0
  %4067 = vmatpush1.xpose.msra.mxu0 0.0
  %4068 = vmatprep.subr.mxu0 0.0
  %4069 = vmatpush1.xpose.msra.mxu0 0.0
  %4070 = vmatprep.subr.mxu0 0.0
  %4071 = vmatpush1.xpose.msra.mxu0 0.0
  %4072 = vmatprep.subr.mxu0 0.0
  %4073 = vmatpush1.xpose.msra.mxu0 0.0
  %4074 = vmatprep.subr.mxu0 0.0
  %4075 = vmatpush1.xpose.msra.mxu0 0.0
  %4076 = vmatprep.subr.mxu0 0.0
  %4077 = vmatpush1.xpose.msra.mxu0 0.0
  %4078 = vmatprep.subr.mxu0 0.0
  %4079 = vmatpush1.xpose.msra.mxu0 %v4046
  %4080 = vmatprep.subr.mxu0 0.0
  %4081 = vmatpush2.xpose.msra.mxu0 0.0
  %4082 = vmatprep.subr.mxu0 0.0
  %4083 = vmatpush2.xpose.msra.mxu0 0.0
  %4084 = vmatprep.subr.mxu0 0.0
  %4085 = vmatpush2.xpose.msra.mxu0 0.0
  %4086 = vmatprep.subr.mxu0 0.0
  %4087 = vmatpush2.xpose.msra.mxu0 0.0
  %4088 = vmatprep.subr.mxu0 0.0
  %4089 = vmatpush2.xpose.msra.mxu0 0.0
  %4090 = vmatprep.subr.mxu0 0.0
  %4091 = vmatpush2.xpose.msra.mxu0 0.0
  %4092 = vmatprep.subr.mxu0 0.0
  %4093 = vmatpush2.xpose.msra.mxu0 0.0
  %4094 = vmatprep.subr.mxu0 0.0
  %4095 = vmatpush2.xpose.msra.mxu0 0.0
  %4096 = vmatprep.subr.mxu0 0.0
  %4097 = vmatpush2.xpose.msra.mxu0 0.0
  %4098 = vmatprep.subr.mxu0 0.0
  %4099 = vmatpush2.xpose.msra.mxu0 0.0
  %4100 = vmatprep.subr.mxu0 0.0
  %4101 = vmatpush2.xpose.msra.mxu0 0.0
  %4102 = vmatprep.subr.mxu0 0.0
  %4103 = vmatpush2.xpose.msra.mxu0 0.0
  %4104 = vmatprep.subr.mxu0 0.0
  %4105 = vmatpush2.xpose.msra.mxu0 0.0
  %4106 = vmatprep.subr.mxu0 0.0
  %4107 = vmatpush2.xpose.msra.mxu0 0.0
  %4108 = vmatprep.subr.mxu0 0.0
  %4109 = vmatpush2.xpose.msra.mxu0 0.0
  %4110 = vmatprep.subr.mxu0 0.0
  %4111 = vmatpush2.xpose.msra.mxu0 0.0
  %4112 = vmatprep.mubr.f32.mxu0 0.0
  %4113 = vmatmul.mubr.f32.gmra.mxu0 %v4044
  %v4114 = vpop.f32.mrf.mxu0
  %v4115 = vadd.f32 0.0, %v4114
  %v4116 = vpop.f32.mrf.mxu0
  %4117 = vdwg.mxu0
  %v4118 = vsel %vm1476, %v3569, -32767.0
  %v4119 = vsel %vm1476, %v3647, -32767.0
  %v4120 = vsel %vm1476, %v3725, -32767.0
  %v4121 = vsel %vm1476, %v3803, -32767.0
  %v4122 = vsel %vm1476, %v3881, -32767.0
  %v4123 = vsel %vm1476, %v3959, -32767.0
  %v4124 = vsel %vm1476, %v4037, -32767.0
  %v4125 = vsel %vm1476, %v4115, -32767.0
  %v4126 = vsel %vm1485, %v4118, -inf
  %4127 = vmax.xlane.f32.xlu0 %v4126
  %v4128 = vpop.xlane.xlu0 %4127
  %v4129 = vsel %vm1485, %v4119, -inf
  %4130 = vmax.xlane.f32.xlu0 %v4129
  %v4131 = vpop.xlane.xlu0 %4130
  %v4132 = vsel %vm1485, %v4120, -inf
  %4133 = vmax.xlane.f32.xlu0 %v4132
  %v4134 = vpop.xlane.xlu0 %4133
  %v4135 = vsel %vm1485, %v4121, -inf
  %4136 = vmax.xlane.f32.xlu0 %v4135
  %v4137 = vpop.xlane.xlu0 %4136
  %v4138 = vsel %vm1485, %v4122, -inf
  %4139 = vmax.xlane.f32.xlu0 %v4138
  %v4140 = vpop.xlane.xlu0 %4139
  %v4141 = vsel %vm1485, %v4123, -inf
  %4142 = vmax.xlane.f32.xlu0 %v4141
  %v4143 = vpop.xlane.xlu0 %4142
  %v4144 = vsel %vm1485, %v4124, -inf
  %4145 = vmax.xlane.f32.xlu0 %v4144
  %v4146 = vpop.xlane.xlu0 %4145
  %v4147 = vsel %vm1485, %v4125, -inf
  %4148 = vmax.xlane.f32.xlu0 %v4147
  %v4149 = vpop.xlane.xlu0 %4148
  %v4150 = vsub.f32 %v4118, %v4128
  %v4151 = vsub.f32 %v4119, %v4131
  %v4152 = vsub.f32 %v4120, %v4134
  %v4153 = vsub.f32 %v4121, %v4137
  %v4154 = vsub.f32 %v4122, %v4140
  %v4155 = vsub.f32 %v4123, %v4143
  %v4156 = vsub.f32 %v4124, %v4146
  %v4157 = vsub.f32 %v4125, %v4149
  %v4158 = vmul.f32 %v4150, 1.442695
  %v4159 = vpow.pop %v4158
  %v4160 = vmul.f32 %v4151, 1.442695
  %v4161 = vpow.pop %v4160
  %v4162 = vmul.f32 %v4152, 1.442695
  %v4163 = vpow.pop %v4162
  %v4164 = vmul.f32 %v4153, 1.442695
  %v4165 = vpow.pop %v4164
  %v4166 = vmul.f32 %v4154, 1.442695
  %v4167 = vpow.pop %v4166
  %v4168 = vmul.f32 %v4155, 1.442695
  %v4169 = vpow.pop %v4168
  %v4170 = vmul.f32 %v4156, 1.442695
  %v4171 = vpow.pop %v4170
  %v4172 = vmul.f32 %v4157, 1.442695
  %v4173 = vpow.pop %v4172
  %v4174 = vsel %vm1485, %v4159, 0.0
  %4175 = vadd.xlane.f32.xlu0 %v4174
  %v4176 = vpop.xlane.xlu0 %4175
  %v4177 = vsel %vm1485, %v4161, 0.0
  %4178 = vadd.xlane.f32.xlu0 %v4177
  %v4179 = vpop.xlane.xlu0 %4178
  %v4180 = vsel %vm1485, %v4163, 0.0
  %4181 = vadd.xlane.f32.xlu0 %v4180
  %v4182 = vpop.xlane.xlu0 %4181
  %v4183 = vsel %vm1485, %v4165, 0.0
  %4184 = vadd.xlane.f32.xlu0 %v4183
  %v4185 = vpop.xlane.xlu0 %4184
  %v4186 = vsel %vm1485, %v4167, 0.0
  %4187 = vadd.xlane.f32.xlu0 %v4186
  %v4188 = vpop.xlane.xlu0 %4187
  %v4189 = vsel %vm1485, %v4169, 0.0
  %4190 = vadd.xlane.f32.xlu0 %v4189
  %v4191 = vpop.xlane.xlu0 %4190
  %v4192 = vsel %vm1485, %v4171, 0.0
  %4193 = vadd.xlane.f32.xlu0 %v4192
  %v4194 = vpop.xlane.xlu0 %4193
  %v4195 = vsel %vm1485, %v4173, 0.0
  %4196 = vadd.xlane.f32.xlu0 %v4195
  %v4197 = vpop.xlane.xlu0 %4196
  %v4198 = vrcp.pop %v4176
  %v4199 = vmul.f32 %v4159, %v4198
  %v4200 = vrcp.pop %v4179
  %v4201 = vmul.f32 %v4161, %v4200
  %v4202 = vrcp.pop %v4182
  %v4203 = vmul.f32 %v4163, %v4202
  %v4204 = vrcp.pop %v4185
  %v4205 = vmul.f32 %v4165, %v4204
  %v4206 = vrcp.pop %v4188
  %v4207 = vmul.f32 %v4167, %v4206
  %v4208 = vrcp.pop %v4191
  %v4209 = vmul.f32 %v4169, %v4208
  %v4210 = vrcp.pop %v4194
  %v4211 = vmul.f32 %v4171, %v4210
  %v4212 = vrcp.pop %v4197
  %v4213 = vmul.f32 %v4173, %v4212
  %4214 = vrot.lane.b32.xlu0 %v853, 120
  %v4215 = vpop.permute.xlu0 %4214
  %v4218 = vsel %vm1485, %v4199, 0
  %4220 = vmatprep.subr.mxu0 0.0
  %4221 = vmatpush1.msra.mxu0 0.0
  %4222 = vmatprep.subr.mxu0 0.0
  %4223 = vmatpush1.msra.mxu0 0.0
  %4224 = vmatprep.subr.mxu0 0.0
  %4225 = vmatpush1.msra.mxu0 0.0
  %4226 = vmatprep.subr.mxu0 0.0
  %4227 = vmatpush1.msra.mxu0 0.0
  %4228 = vmatprep.subr.mxu0 0.0
  %4229 = vmatpush1.msra.mxu0 0.0
  %4230 = vmatprep.subr.mxu0 0.0
  %4231 = vmatpush1.msra.mxu0 0.0
  %4232 = vmatprep.subr.mxu0 0.0
  %4233 = vmatpush1.msra.mxu0 0.0
  %4234 = vmatprep.subr.mxu0 0.0
  %4235 = vmatpush1.msra.mxu0 0.0
  %4236 = vmatprep.subr.mxu0 0.0
  %4237 = vmatpush1.msra.mxu0 0.0
  %4238 = vmatprep.subr.mxu0 0.0
  %4239 = vmatpush1.msra.mxu0 0.0
  %4240 = vmatprep.subr.mxu0 0.0
  %4241 = vmatpush1.msra.mxu0 0.0
  %4242 = vmatprep.subr.mxu0 0.0
  %4243 = vmatpush1.msra.mxu0 0.0
  %4244 = vmatprep.subr.mxu0 0.0
  %4245 = vmatpush1.msra.mxu0 0.0
  %4246 = vmatprep.subr.mxu0 0.0
  %4247 = vmatpush1.msra.mxu0 0.0
  %4248 = vmatprep.subr.mxu0 0.0
  %4249 = vmatpush1.msra.mxu0 0.0
  %4250 = vmatprep.subr.mxu0 0.0
  %4251 = vmatpush1.msra.mxu0 %v4215
  %4252 = vmatprep.subr.mxu0 0.0
  %4253 = vmatpush2.msra.mxu0 0.0
  %4254 = vmatprep.subr.mxu0 0.0
  %4255 = vmatpush2.msra.mxu0 0.0
  %4256 = vmatprep.subr.mxu0 0.0
  %4257 = vmatpush2.msra.mxu0 0.0
  %4258 = vmatprep.subr.mxu0 0.0
  %4259 = vmatpush2.msra.mxu0 0.0
  %4260 = vmatprep.subr.mxu0 0.0
  %4261 = vmatpush2.msra.mxu0 0.0
  %4262 = vmatprep.subr.mxu0 0.0
  %4263 = vmatpush2.msra.mxu0 0.0
  %4264 = vmatprep.subr.mxu0 0.0
  %4265 = vmatpush2.msra.mxu0 0.0
  %4266 = vmatprep.subr.mxu0 0.0
  %4267 = vmatpush2.msra.mxu0 0.0
  %4268 = vmatprep.subr.mxu0 0.0
  %4269 = vmatpush2.msra.mxu0 0.0
  %4270 = vmatprep.subr.mxu0 0.0
  %4271 = vmatpush2.msra.mxu0 0.0
  %4272 = vmatprep.subr.mxu0 0.0
  %4273 = vmatpush2.msra.mxu0 0.0
  %4274 = vmatprep.subr.mxu0 0.0
  %4275 = vmatpush2.msra.mxu0 0.0
  %4276 = vmatprep.subr.mxu0 0.0
  %4277 = vmatpush2.msra.mxu0 0.0
  %4278 = vmatprep.subr.mxu0 0.0
  %4279 = vmatpush2.msra.mxu0 0.0
  %4280 = vmatprep.subr.mxu0 0.0
  %4281 = vmatpush2.msra.mxu0 0.0
  %4282 = vmatprep.subr.mxu0 0.0
  %4283 = vmatpush2.msra.mxu0 0.0
  %4284 = vmatprep.mubr.f32.mxu0 0.0
  %4285 = vmatmul.mubr.f32.gmra.mxu0 %v4218
  %v4286 = vpop.f32.mrf.mxu0
  %v4287 = vadd.f32 0.0, %v4286
  %v4288 = vpop.f32.mrf.mxu0
  %4289 = vdwg.mxu0
  %4290 = vrot.lane.b32.xlu0 %v854, 120
  %v4291 = vpop.permute.xlu0 %4290
  %v4294 = vsel %vm1485, %v4201, 0
  %4296 = vmatprep.subr.mxu0 0.0
  %4297 = vmatpush1.msra.mxu0 0.0
  %4298 = vmatprep.subr.mxu0 0.0
  %4299 = vmatpush1.msra.mxu0 0.0
  %4300 = vmatprep.subr.mxu0 0.0
  %4301 = vmatpush1.msra.mxu0 0.0
  %4302 = vmatprep.subr.mxu0 0.0
  %4303 = vmatpush1.msra.mxu0 0.0
  %4304 = vmatprep.subr.mxu0 0.0
  %4305 = vmatpush1.msra.mxu0 0.0
  %4306 = vmatprep.subr.mxu0 0.0
  %4307 = vmatpush1.msra.mxu0 0.0
  %4308 = vmatprep.subr.mxu0 0.0
  %4309 = vmatpush1.msra.mxu0 0.0
  %4310 = vmatprep.subr.mxu0 0.0
  %4311 = vmatpush1.msra.mxu0 0.0
  %4312 = vmatprep.subr.mxu0 0.0
  %4313 = vmatpush1.msra.mxu0 0.0
  %4314 = vmatprep.subr.mxu0 0.0
  %4315 = vmatpush1.msra.mxu0 0.0
  %4316 = vmatprep.subr.mxu0 0.0
  %4317 = vmatpush1.msra.mxu0 0.0
  %4318 = vmatprep.subr.mxu0 0.0
  %4319 = vmatpush1.msra.mxu0 0.0
  %4320 = vmatprep.subr.mxu0 0.0
  %4321 = vmatpush1.msra.mxu0 0.0
  %4322 = vmatprep.subr.mxu0 0.0
  %4323 = vmatpush1.msra.mxu0 0.0
  %4324 = vmatprep.subr.mxu0 0.0
  %4325 = vmatpush1.msra.mxu0 0.0
  %4326 = vmatprep.subr.mxu0 0.0
  %4327 = vmatpush1.msra.mxu0 %v4291
  %4328 = vmatprep.subr.mxu0 0.0
  %4329 = vmatpush2.msra.mxu0 0.0
  %4330 = vmatprep.subr.mxu0 0.0
  %4331 = vmatpush2.msra.mxu0 0.0
  %4332 = vmatprep.subr.mxu0 0.0
  %4333 = vmatpush2.msra.mxu0 0.0
  %4334 = vmatprep.subr.mxu0 0.0
  %4335 = vmatpush2.msra.mxu0 0.0
  %4336 = vmatprep.subr.mxu0 0.0
  %4337 = vmatpush2.msra.mxu0 0.0
  %4338 = vmatprep.subr.mxu0 0.0
  %4339 = vmatpush2.msra.mxu0 0.0
  %4340 = vmatprep.subr.mxu0 0.0
  %4341 = vmatpush2.msra.mxu0 0.0
  %4342 = vmatprep.subr.mxu0 0.0
  %4343 = vmatpush2.msra.mxu0 0.0
  %4344 = vmatprep.subr.mxu0 0.0
  %4345 = vmatpush2.msra.mxu0 0.0
  %4346 = vmatprep.subr.mxu0 0.0
  %4347 = vmatpush2.msra.mxu0 0.0
  %4348 = vmatprep.subr.mxu0 0.0
  %4349 = vmatpush2.msra.mxu0 0.0
  %4350 = vmatprep.subr.mxu0 0.0
  %4351 = vmatpush2.msra.mxu0 0.0
  %4352 = vmatprep.subr.mxu0 0.0
  %4353 = vmatpush2.msra.mxu0 0.0
  %4354 = vmatprep.subr.mxu0 0.0
  %4355 = vmatpush2.msra.mxu0 0.0
  %4356 = vmatprep.subr.mxu0 0.0
  %4357 = vmatpush2.msra.mxu0 0.0
  %4358 = vmatprep.subr.mxu0 0.0
  %4359 = vmatpush2.msra.mxu0 0.0
  %4360 = vmatprep.mubr.f32.mxu0 0.0
  %4361 = vmatmul.mubr.f32.gmra.mxu0 %v4294
  %v4362 = vpop.f32.mrf.mxu0
  %v4363 = vadd.f32 0.0, %v4362
  %v4364 = vpop.f32.mrf.mxu0
  %4365 = vdwg.mxu0
  %4366 = vrot.lane.b32.xlu0 %v855, 120
  %v4367 = vpop.permute.xlu0 %4366
  %v4370 = vsel %vm1485, %v4203, 0
  %4372 = vmatprep.subr.mxu0 0.0
  %4373 = vmatpush1.msra.mxu0 0.0
  %4374 = vmatprep.subr.mxu0 0.0
  %4375 = vmatpush1.msra.mxu0 0.0
  %4376 = vmatprep.subr.mxu0 0.0
  %4377 = vmatpush1.msra.mxu0 0.0
  %4378 = vmatprep.subr.mxu0 0.0
  %4379 = vmatpush1.msra.mxu0 0.0
  %4380 = vmatprep.subr.mxu0 0.0
  %4381 = vmatpush1.msra.mxu0 0.0
  %4382 = vmatprep.subr.mxu0 0.0
  %4383 = vmatpush1.msra.mxu0 0.0
  %4384 = vmatprep.subr.mxu0 0.0
  %4385 = vmatpush1.msra.mxu0 0.0
  %4386 = vmatprep.subr.mxu0 0.0
  %4387 = vmatpush1.msra.mxu0 0.0
  %4388 = vmatprep.subr.mxu0 0.0
  %4389 = vmatpush1.msra.mxu0 0.0
  %4390 = vmatprep.subr.mxu0 0.0
  %4391 = vmatpush1.msra.mxu0 0.0
  %4392 = vmatprep.subr.mxu0 0.0
  %4393 = vmatpush1.msra.mxu0 0.0
  %4394 = vmatprep.subr.mxu0 0.0
  %4395 = vmatpush1.msra.mxu0 0.0
  %4396 = vmatprep.subr.mxu0 0.0
  %4397 = vmatpush1.msra.mxu0 0.0
  %4398 = vmatprep.subr.mxu0 0.0
  %4399 = vmatpush1.msra.mxu0 0.0
  %4400 = vmatprep.subr.mxu0 0.0
  %4401 = vmatpush1.msra.mxu0 0.0
  %4402 = vmatprep.subr.mxu0 0.0
  %4403 = vmatpush1.msra.mxu0 %v4367
  %4404 = vmatprep.subr.mxu0 0.0
  %4405 = vmatpush2.msra.mxu0 0.0
  %4406 = vmatprep.subr.mxu0 0.0
  %4407 = vmatpush2.msra.mxu0 0.0
  %4408 = vmatprep.subr.mxu0 0.0
  %4409 = vmatpush2.msra.mxu0 0.0
  %4410 = vmatprep.subr.mxu0 0.0
  %4411 = vmatpush2.msra.mxu0 0.0
  %4412 = vmatprep.subr.mxu0 0.0
  %4413 = vmatpush2.msra.mxu0 0.0
  %4414 = vmatprep.subr.mxu0 0.0
  %4415 = vmatpush2.msra.mxu0 0.0
  %4416 = vmatprep.subr.mxu0 0.0
  %4417 = vmatpush2.msra.mxu0 0.0
  %4418 = vmatprep.subr.mxu0 0.0
  %4419 = vmatpush2.msra.mxu0 0.0
  %4420 = vmatprep.subr.mxu0 0.0
  %4421 = vmatpush2.msra.mxu0 0.0
  %4422 = vmatprep.subr.mxu0 0.0
  %4423 = vmatpush2.msra.mxu0 0.0
  %4424 = vmatprep.subr.mxu0 0.0
  %4425 = vmatpush2.msra.mxu0 0.0
  %4426 = vmatprep.subr.mxu0 0.0
  %4427 = vmatpush2.msra.mxu0 0.0
  %4428 = vmatprep.subr.mxu0 0.0
  %4429 = vmatpush2.msra.mxu0 0.0
  %4430 = vmatprep.subr.mxu0 0.0
  %4431 = vmatpush2.msra.mxu0 0.0
  %4432 = vmatprep.subr.mxu0 0.0
  %4433 = vmatpush2.msra.mxu0 0.0
  %4434 = vmatprep.subr.mxu0 0.0
  %4435 = vmatpush2.msra.mxu0 0.0
  %4436 = vmatprep.mubr.f32.mxu0 0.0
  %4437 = vmatmul.mubr.f32.gmra.mxu0 %v4370
  %v4438 = vpop.f32.mrf.mxu0
  %v4439 = vadd.f32 0.0, %v4438
  %v4440 = vpop.f32.mrf.mxu0
  %4441 = vdwg.mxu0
  %4442 = vrot.lane.b32.xlu0 %v856, 120
  %v4443 = vpop.permute.xlu0 %4442
  %v4446 = vsel %vm1485, %v4205, 0
  %4448 = vmatprep.subr.mxu0 0.0
  %4449 = vmatpush1.msra.mxu0 0.0
  %4450 = vmatprep.subr.mxu0 0.0
  %4451 = vmatpush1.msra.mxu0 0.0
  %4452 = vmatprep.subr.mxu0 0.0
  %4453 = vmatpush1.msra.mxu0 0.0
  %4454 = vmatprep.subr.mxu0 0.0
  %4455 = vmatpush1.msra.mxu0 0.0
  %4456 = vmatprep.subr.mxu0 0.0
  %4457 = vmatpush1.msra.mxu0 0.0
  %4458 = vmatprep.subr.mxu0 0.0
  %4459 = vmatpush1.msra.mxu0 0.0
  %4460 = vmatprep.subr.mxu0 0.0
  %4461 = vmatpush1.msra.mxu0 0.0
  %4462 = vmatprep.subr.mxu0 0.0
  %4463 = vmatpush1.msra.mxu0 0.0
  %4464 = vmatprep.subr.mxu0 0.0
  %4465 = vmatpush1.msra.mxu0 0.0
  %4466 = vmatprep.subr.mxu0 0.0
  %4467 = vmatpush1.msra.mxu0 0.0
  %4468 = vmatprep.subr.mxu0 0.0
  %4469 = vmatpush1.msra.mxu0 0.0
  %4470 = vmatprep.subr.mxu0 0.0
  %4471 = vmatpush1.msra.mxu0 0.0
  %4472 = vmatprep.subr.mxu0 0.0
  %4473 = vmatpush1.msra.mxu0 0.0
  %4474 = vmatprep.subr.mxu0 0.0
  %4475 = vmatpush1.msra.mxu0 0.0
  %4476 = vmatprep.subr.mxu0 0.0
  %4477 = vmatpush1.msra.mxu0 0.0
  %4478 = vmatprep.subr.mxu0 0.0
  %4479 = vmatpush1.msra.mxu0 %v4443
  %4480 = vmatprep.subr.mxu0 0.0
  %4481 = vmatpush2.msra.mxu0 0.0
  %4482 = vmatprep.subr.mxu0 0.0
  %4483 = vmatpush2.msra.mxu0 0.0
  %4484 = vmatprep.subr.mxu0 0.0
  %4485 = vmatpush2.msra.mxu0 0.0
  %4486 = vmatprep.subr.mxu0 0.0
  %4487 = vmatpush2.msra.mxu0 0.0
  %4488 = vmatprep.subr.mxu0 0.0
  %4489 = vmatpush2.msra.mxu0 0.0
  %4490 = vmatprep.subr.mxu0 0.0
  %4491 = vmatpush2.msra.mxu0 0.0
  %4492 = vmatprep.subr.mxu0 0.0
  %4493 = vmatpush2.msra.mxu0 0.0
  %4494 = vmatprep.subr.mxu0 0.0
  %4495 = vmatpush2.msra.mxu0 0.0
  %4496 = vmatprep.subr.mxu0 0.0
  %4497 = vmatpush2.msra.mxu0 0.0
  %4498 = vmatprep.subr.mxu0 0.0
  %4499 = vmatpush2.msra.mxu0 0.0
  %4500 = vmatprep.subr.mxu0 0.0
  %4501 = vmatpush2.msra.mxu0 0.0
  %4502 = vmatprep.subr.mxu0 0.0
  %4503 = vmatpush2.msra.mxu0 0.0
  %4504 = vmatprep.subr.mxu0 0.0
  %4505 = vmatpush2.msra.mxu0 0.0
  %4506 = vmatprep.subr.mxu0 0.0
  %4507 = vmatpush2.msra.mxu0 0.0
  %4508 = vmatprep.subr.mxu0 0.0
  %4509 = vmatpush2.msra.mxu0 0.0
  %4510 = vmatprep.subr.mxu0 0.0
  %4511 = vmatpush2.msra.mxu0 0.0
  %4512 = vmatprep.mubr.f32.mxu0 0.0
  %4513 = vmatmul.mubr.f32.gmra.mxu0 %v4446
  %v4514 = vpop.f32.mrf.mxu0
  %v4515 = vadd.f32 0.0, %v4514
  %v4516 = vpop.f32.mrf.mxu0
  %4517 = vdwg.mxu0
  %4518 = vrot.lane.b32.xlu0 %v857, 120
  %v4519 = vpop.permute.xlu0 %4518
  %v4522 = vsel %vm1485, %v4207, 0
  %4524 = vmatprep.subr.mxu0 0.0
  %4525 = vmatpush1.msra.mxu0 0.0
  %4526 = vmatprep.subr.mxu0 0.0
  %4527 = vmatpush1.msra.mxu0 0.0
  %4528 = vmatprep.subr.mxu0 0.0
  %4529 = vmatpush1.msra.mxu0 0.0
  %4530 = vmatprep.subr.mxu0 0.0
  %4531 = vmatpush1.msra.mxu0 0.0
  %4532 = vmatprep.subr.mxu0 0.0
  %4533 = vmatpush1.msra.mxu0 0.0
  %4534 = vmatprep.subr.mxu0 0.0
  %4535 = vmatpush1.msra.mxu0 0.0
  %4536 = vmatprep.subr.mxu0 0.0
  %4537 = vmatpush1.msra.mxu0 0.0
  %4538 = vmatprep.subr.mxu0 0.0
  %4539 = vmatpush1.msra.mxu0 0.0
  %4540 = vmatprep.subr.mxu0 0.0
  %4541 = vmatpush1.msra.mxu0 0.0
  %4542 = vmatprep.subr.mxu0 0.0
  %4543 = vmatpush1.msra.mxu0 0.0
  %4544 = vmatprep.subr.mxu0 0.0
  %4545 = vmatpush1.msra.mxu0 0.0
  %4546 = vmatprep.subr.mxu0 0.0
  %4547 = vmatpush1.msra.mxu0 0.0
  %4548 = vmatprep.subr.mxu0 0.0
  %4549 = vmatpush1.msra.mxu0 0.0
  %4550 = vmatprep.subr.mxu0 0.0
  %4551 = vmatpush1.msra.mxu0 0.0
  %4552 = vmatprep.subr.mxu0 0.0
  %4553 = vmatpush1.msra.mxu0 0.0
  %4554 = vmatprep.subr.mxu0 0.0
  %4555 = vmatpush1.msra.mxu0 %v4519
  %4556 = vmatprep.subr.mxu0 0.0
  %4557 = vmatpush2.msra.mxu0 0.0
  %4558 = vmatprep.subr.mxu0 0.0
  %4559 = vmatpush2.msra.mxu0 0.0
  %4560 = vmatprep.subr.mxu0 0.0
  %4561 = vmatpush2.msra.mxu0 0.0
  %4562 = vmatprep.subr.mxu0 0.0
  %4563 = vmatpush2.msra.mxu0 0.0
  %4564 = vmatprep.subr.mxu0 0.0
  %4565 = vmatpush2.msra.mxu0 0.0
  %4566 = vmatprep.subr.mxu0 0.0
  %4567 = vmatpush2.msra.mxu0 0.0
  %4568 = vmatprep.subr.mxu0 0.0
  %4569 = vmatpush2.msra.mxu0 0.0
  %4570 = vmatprep.subr.mxu0 0.0
  %4571 = vmatpush2.msra.mxu0 0.0
  %4572 = vmatprep.subr.mxu0 0.0
  %4573 = vmatpush2.msra.mxu0 0.0
  %4574 = vmatprep.subr.mxu0 0.0
  %4575 = vmatpush2.msra.mxu0 0.0
  %4576 = vmatprep.subr.mxu0 0.0
  %4577 = vmatpush2.msra.mxu0 0.0
  %4578 = vmatprep.subr.mxu0 0.0
  %4579 = vmatpush2.msra.mxu0 0.0
  %4580 = vmatprep.subr.mxu0 0.0
  %4581 = vmatpush2.msra.mxu0 0.0
  %4582 = vmatprep.subr.mxu0 0.0
  %4583 = vmatpush2.msra.mxu0 0.0
  %4584 = vmatprep.subr.mxu0 0.0
  %4585 = vmatpush2.msra.mxu0 0.0
  %4586 = vmatprep.subr.mxu0 0.0
  %4587 = vmatpush2.msra.mxu0 0.0
  %4588 = vmatprep.mubr.f32.mxu0 0.0
  %4589 = vmatmul.mubr.f32.gmra.mxu0 %v4522
  %v4590 = vpop.f32.mrf.mxu0
  %v4591 = vadd.f32 0.0, %v4590
  %v4592 = vpop.f32.mrf.mxu0
  %4593 = vdwg.mxu0
  %4594 = vrot.lane.b32.xlu0 %v858, 120
  %v4595 = vpop.permute.xlu0 %4594
  %v4598 = vsel %vm1485, %v4209, 0
  %4600 = vmatprep.subr.mxu0 0.0
  %4601 = vmatpush1.msra.mxu0 0.0
  %4602 = vmatprep.subr.mxu0 0.0
  %4603 = vmatpush1.msra.mxu0 0.0
  %4604 = vmatprep.subr.mxu0 0.0
  %4605 = vmatpush1.msra.mxu0 0.0
  %4606 = vmatprep.subr.mxu0 0.0
  %4607 = vmatpush1.msra.mxu0 0.0
  %4608 = vmatprep.subr.mxu0 0.0
  %4609 = vmatpush1.msra.mxu0 0.0
  %4610 = vmatprep.subr.mxu0 0.0
  %4611 = vmatpush1.msra.mxu0 0.0
  %4612 = vmatprep.subr.mxu0 0.0
  %4613 = vmatpush1.msra.mxu0 0.0
  %4614 = vmatprep.subr.mxu0 0.0
  %4615 = vmatpush1.msra.mxu0 0.0
  %4616 = vmatprep.subr.mxu0 0.0
  %4617 = vmatpush1.msra.mxu0 0.0
  %4618 = vmatprep.subr.mxu0 0.0
  %4619 = vmatpush1.msra.mxu0 0.0
  %4620 = vmatprep.subr.mxu0 0.0
  %4621 = vmatpush1.msra.mxu0 0.0
  %4622 = vmatprep.subr.mxu0 0.0
  %4623 = vmatpush1.msra.mxu0 0.0
  %4624 = vmatprep.subr.mxu0 0.0
  %4625 = vmatpush1.msra.mxu0 0.0
  %4626 = vmatprep.subr.mxu0 0.0
  %4627 = vmatpush1.msra.mxu0 0.0
  %4628 = vmatprep.subr.mxu0 0.0
  %4629 = vmatpush1.msra.mxu0 0.0
  %4630 = vmatprep.subr.mxu0 0.0
  %4631 = vmatpush1.msra.mxu0 %v4595
  %4632 = vmatprep.subr.mxu0 0.0
  %4633 = vmatpush2.msra.mxu0 0.0
  %4634 = vmatprep.subr.mxu0 0.0
  %4635 = vmatpush2.msra.mxu0 0.0
  %4636 = vmatprep.subr.mxu0 0.0
  %4637 = vmatpush2.msra.mxu0 0.0
  %4638 = vmatprep.subr.mxu0 0.0
  %4639 = vmatpush2.msra.mxu0 0.0
  %4640 = vmatprep.subr.mxu0 0.0
  %4641 = vmatpush2.msra.mxu0 0.0
  %4642 = vmatprep.subr.mxu0 0.0
  %4643 = vmatpush2.msra.mxu0 0.0
  %4644 = vmatprep.subr.mxu0 0.0
  %4645 = vmatpush2.msra.mxu0 0.0
  %4646 = vmatprep.subr.mxu0 0.0
  %4647 = vmatpush2.msra.mxu0 0.0
  %4648 = vmatprep.subr.mxu0 0.0
  %4649 = vmatpush2.msra.mxu0 0.0
  %4650 = vmatprep.subr.mxu0 0.0
  %4651 = vmatpush2.msra.mxu0 0.0
  %4652 = vmatprep.subr.mxu0 0.0
  %4653 = vmatpush2.msra.mxu0 0.0
  %4654 = vmatprep.subr.mxu0 0.0
  %4655 = vmatpush2.msra.mxu0 0.0
  %4656 = vmatprep.subr.mxu0 0.0
  %4657 = vmatpush2.msra.mxu0 0.0
  %4658 = vmatprep.subr.mxu0 0.0
  %4659 = vmatpush2.msra.mxu0 0.0
  %4660 = vmatprep.subr.mxu0 0.0
  %4661 = vmatpush2.msra.mxu0 0.0
  %4662 = vmatprep.subr.mxu0 0.0
  %4663 = vmatpush2.msra.mxu0 0.0
  %4664 = vmatprep.mubr.f32.mxu0 0.0
  %4665 = vmatmul.mubr.f32.gmra.mxu0 %v4598
  %v4666 = vpop.f32.mrf.mxu0
  %v4667 = vadd.f32 0.0, %v4666
  %v4668 = vpop.f32.mrf.mxu0
  %4669 = vdwg.mxu0
  %4670 = vrot.lane.b32.xlu0 %v859, 120
  %v4671 = vpop.permute.xlu0 %4670
  %v4674 = vsel %vm1485, %v4211, 0
  %4676 = vmatprep.subr.mxu0 0.0
  %4677 = vmatpush1.msra.mxu0 0.0
  %4678 = vmatprep.subr.mxu0 0.0
  %4679 = vmatpush1.msra.mxu0 0.0
  %4680 = vmatprep.subr.mxu0 0.0
  %4681 = vmatpush1.msra.mxu0 0.0
  %4682 = vmatprep.subr.mxu0 0.0
  %4683 = vmatpush1.msra.mxu0 0.0
  %4684 = vmatprep.subr.mxu0 0.0
  %4685 = vmatpush1.msra.mxu0 0.0
  %4686 = vmatprep.subr.mxu0 0.0
  %4687 = vmatpush1.msra.mxu0 0.0
  %4688 = vmatprep.subr.mxu0 0.0
  %4689 = vmatpush1.msra.mxu0 0.0
  %4690 = vmatprep.subr.mxu0 0.0
  %4691 = vmatpush1.msra.mxu0 0.0
  %4692 = vmatprep.subr.mxu0 0.0
  %4693 = vmatpush1.msra.mxu0 0.0
  %4694 = vmatprep.subr.mxu0 0.0
  %4695 = vmatpush1.msra.mxu0 0.0
  %4696 = vmatprep.subr.mxu0 0.0
  %4697 = vmatpush1.msra.mxu0 0.0
  %4698 = vmatprep.subr.mxu0 0.0
  %4699 = vmatpush1.msra.mxu0 0.0
  %4700 = vmatprep.subr.mxu0 0.0
  %4701 = vmatpush1.msra.mxu0 0.0
  %4702 = vmatprep.subr.mxu0 0.0
  %4703 = vmatpush1.msra.mxu0 0.0
  %4704 = vmatprep.subr.mxu0 0.0
  %4705 = vmatpush1.msra.mxu0 0.0
  %4706 = vmatprep.subr.mxu0 0.0
  %4707 = vmatpush1.msra.mxu0 %v4671
  %4708 = vmatprep.subr.mxu0 0.0
  %4709 = vmatpush2.msra.mxu0 0.0
  %4710 = vmatprep.subr.mxu0 0.0
  %4711 = vmatpush2.msra.mxu0 0.0
  %4712 = vmatprep.subr.mxu0 0.0
  %4713 = vmatpush2.msra.mxu0 0.0
  %4714 = vmatprep.subr.mxu0 0.0
  %4715 = vmatpush2.msra.mxu0 0.0
  %4716 = vmatprep.subr.mxu0 0.0
  %4717 = vmatpush2.msra.mxu0 0.0
  %4718 = vmatprep.subr.mxu0 0.0
  %4719 = vmatpush2.msra.mxu0 0.0
  %4720 = vmatprep.subr.mxu0 0.0
  %4721 = vmatpush2.msra.mxu0 0.0
  %4722 = vmatprep.subr.mxu0 0.0
  %4723 = vmatpush2.msra.mxu0 0.0
  %4724 = vmatprep.subr.mxu0 0.0
  %4725 = vmatpush2.msra.mxu0 0.0
  %4726 = vmatprep.subr.mxu0 0.0
  %4727 = vmatpush2.msra.mxu0 0.0
  %4728 = vmatprep.subr.mxu0 0.0
  %4729 = vmatpush2.msra.mxu0 0.0
  %4730 = vmatprep.subr.mxu0 0.0
  %4731 = vmatpush2.msra.mxu0 0.0
  %4732 = vmatprep.subr.mxu0 0.0
  %4733 = vmatpush2.msra.mxu0 0.0
  %4734 = vmatprep.subr.mxu0 0.0
  %4735 = vmatpush2.msra.mxu0 0.0
  %4736 = vmatprep.subr.mxu0 0.0
  %4737 = vmatpush2.msra.mxu0 0.0
  %4738 = vmatprep.subr.mxu0 0.0
  %4739 = vmatpush2.msra.mxu0 0.0
  %4740 = vmatprep.mubr.f32.mxu0 0.0
  %4741 = vmatmul.mubr.f32.gmra.mxu0 %v4674
  %v4742 = vpop.f32.mrf.mxu0
  %v4743 = vadd.f32 0.0, %v4742
  %v4744 = vpop.f32.mrf.mxu0
  %4745 = vdwg.mxu0
  %4746 = vrot.lane.b32.xlu0 %v860, 120
  %v4747 = vpop.permute.xlu0 %4746
  %v4750 = vsel %vm1485, %v4213, 0
  %4752 = vmatprep.subr.mxu0 0.0
  %4753 = vmatpush1.msra.mxu0 0.0
  %4754 = vmatprep.subr.mxu0 0.0
  %4755 = vmatpush1.msra.mxu0 0.0
  %4756 = vmatprep.subr.mxu0 0.0
  %4757 = vmatpush1.msra.mxu0 0.0
  %4758 = vmatprep.subr.mxu0 0.0
  %4759 = vmatpush1.msra.mxu0 0.0
  %4760 = vmatprep.subr.mxu0 0.0
  %4761 = vmatpush1.msra.mxu0 0.0
  %4762 = vmatprep.subr.mxu0 0.0
  %4763 = vmatpush1.msra.mxu0 0.0
  %4764 = vmatprep.subr.mxu0 0.0
  %4765 = vmatpush1.msra.mxu0 0.0
  %4766 = vmatprep.subr.mxu0 0.0
  %4767 = vmatpush1.msra.mxu0 0.0
  %4768 = vmatprep.subr.mxu0 0.0
  %4769 = vmatpush1.msra.mxu0 0.0
  %4770 = vmatprep.subr.mxu0 0.0
  %4771 = vmatpush1.msra.mxu0 0.0
  %4772 = vmatprep.subr.mxu0 0.0
  %4773 = vmatpush1.msra.mxu0 0.0
  %4774 = vmatprep.subr.mxu0 0.0
  %4775 = vmatpush1.msra.mxu0 0.0
  %4776 = vmatprep.subr.mxu0 0.0
  %4777 = vmatpush1.msra.mxu0 0.0
  %4778 = vmatprep.subr.mxu0 0.0
  %4779 = vmatpush1.msra.mxu0 0.0
  %4780 = vmatprep.subr.mxu0 0.0
  %4781 = vmatpush1.msra.mxu0 0.0
  %4782 = vmatprep.subr.mxu0 0.0
  %4783 = vmatpush1.msra.mxu0 %v4747
  %4784 = vmatprep.subr.mxu0 0.0
  %4785 = vmatpush2.msra.mxu0 0.0
  %4786 = vmatprep.subr.mxu0 0.0
  %4787 = vmatpush2.msra.mxu0 0.0
  %4788 = vmatprep.subr.mxu0 0.0
  %4789 = vmatpush2.msra.mxu0 0.0
  %4790 = vmatprep.subr.mxu0 0.0
  %4791 = vmatpush2.msra.mxu0 0.0
  %4792 = vmatprep.subr.mxu0 0.0
  %4793 = vmatpush2.msra.mxu0 0.0
  %4794 = vmatprep.subr.mxu0 0.0
  %4795 = vmatpush2.msra.mxu0 0.0
  %4796 = vmatprep.subr.mxu0 0.0
  %4797 = vmatpush2.msra.mxu0 0.0
  %4798 = vmatprep.subr.mxu0 0.0
  %4799 = vmatpush2.msra.mxu0 0.0
  %4800 = vmatprep.subr.mxu0 0.0
  %4801 = vmatpush2.msra.mxu0 0.0
  %4802 = vmatprep.subr.mxu0 0.0
  %4803 = vmatpush2.msra.mxu0 0.0
  %4804 = vmatprep.subr.mxu0 0.0
  %4805 = vmatpush2.msra.mxu0 0.0
  %4806 = vmatprep.subr.mxu0 0.0
  %4807 = vmatpush2.msra.mxu0 0.0
  %4808 = vmatprep.subr.mxu0 0.0
  %4809 = vmatpush2.msra.mxu0 0.0
  %4810 = vmatprep.subr.mxu0 0.0
  %4811 = vmatpush2.msra.mxu0 0.0
  %4812 = vmatprep.subr.mxu0 0.0
  %4813 = vmatpush2.msra.mxu0 0.0
  %4814 = vmatprep.subr.mxu0 0.0
  %4815 = vmatpush2.msra.mxu0 0.0
  %4816 = vmatprep.mubr.f32.mxu0 0.0
  %4817 = vmatmul.mubr.f32.gmra.mxu0 %v4750
  %v4818 = vpop.f32.mrf.mxu0
  %v4819 = vadd.f32 0.0, %v4818
  %v4820 = vpop.f32.mrf.mxu0
  %4821 = vdwg.mxu0
  %4822 = vrot.lane.b32.xlu0 %v341, 116
  %v4823 = vpop.permute.xlu0 %4822
  %4824 = vrot.lane.b32.xlu0 %v597, 116
  %v4825 = vpop.permute.xlu0 %4824
  %v4826 = vsel %vm866, %v4823, 0
  %v4828 = vsel %vm866, %v4825, 0
  %4830 = vmatprep.subr.mxu0 0.0
  %4831 = vmatpush1.xpose.msra.mxu0 0.0
  %4832 = vmatprep.subr.mxu0 0.0
  %4833 = vmatpush1.xpose.msra.mxu0 0.0
  %4834 = vmatprep.subr.mxu0 0.0
  %4835 = vmatpush1.xpose.msra.mxu0 0.0
  %4836 = vmatprep.subr.mxu0 0.0
  %4837 = vmatpush1.xpose.msra.mxu0 0.0
  %4838 = vmatprep.subr.mxu0 0.0
  %4839 = vmatpush1.xpose.msra.mxu0 0.0
  %4840 = vmatprep.subr.mxu0 0.0
  %4841 = vmatpush1.xpose.msra.mxu0 0.0
  %4842 = vmatprep.subr.mxu0 0.0
  %4843 = vmatpush1.xpose.msra.mxu0 0.0
  %4844 = vmatprep.subr.mxu0 0.0
  %4845 = vmatpush1.xpose.msra.mxu0 0.0
  %4846 = vmatprep.subr.mxu0 0.0
  %4847 = vmatpush1.xpose.msra.mxu0 0.0
  %4848 = vmatprep.subr.mxu0 0.0
  %4849 = vmatpush1.xpose.msra.mxu0 0.0
  %4850 = vmatprep.subr.mxu0 0.0
  %4851 = vmatpush1.xpose.msra.mxu0 0.0
  %4852 = vmatprep.subr.mxu0 0.0
  %4853 = vmatpush1.xpose.msra.mxu0 0.0
  %4854 = vmatprep.subr.mxu0 0.0
  %4855 = vmatpush1.xpose.msra.mxu0 0.0
  %4856 = vmatprep.subr.mxu0 0.0
  %4857 = vmatpush1.xpose.msra.mxu0 0.0
  %4858 = vmatprep.subr.mxu0 0.0
  %4859 = vmatpush1.xpose.msra.mxu0 0.0
  %4860 = vmatprep.subr.mxu0 0.0
  %4861 = vmatpush1.xpose.msra.mxu0 %v4828
  %4862 = vmatprep.subr.mxu0 0.0
  %4863 = vmatpush2.xpose.msra.mxu0 0.0
  %4864 = vmatprep.subr.mxu0 0.0
  %4865 = vmatpush2.xpose.msra.mxu0 0.0
  %4866 = vmatprep.subr.mxu0 0.0
  %4867 = vmatpush2.xpose.msra.mxu0 0.0
  %4868 = vmatprep.subr.mxu0 0.0
  %4869 = vmatpush2.xpose.msra.mxu0 0.0
  %4870 = vmatprep.subr.mxu0 0.0
  %4871 = vmatpush2.xpose.msra.mxu0 0.0
  %4872 = vmatprep.subr.mxu0 0.0
  %4873 = vmatpush2.xpose.msra.mxu0 0.0
  %4874 = vmatprep.subr.mxu0 0.0
  %4875 = vmatpush2.xpose.msra.mxu0 0.0
  %4876 = vmatprep.subr.mxu0 0.0
  %4877 = vmatpush2.xpose.msra.mxu0 0.0
  %4878 = vmatprep.subr.mxu0 0.0
  %4879 = vmatpush2.xpose.msra.mxu0 0.0
  %4880 = vmatprep.subr.mxu0 0.0
  %4881 = vmatpush2.xpose.msra.mxu0 0.0
  %4882 = vmatprep.subr.mxu0 0.0
  %4883 = vmatpush2.xpose.msra.mxu0 0.0
  %4884 = vmatprep.subr.mxu0 0.0
  %4885 = vmatpush2.xpose.msra.mxu0 0.0
  %4886 = vmatprep.subr.mxu0 0.0
  %4887 = vmatpush2.xpose.msra.mxu0 0.0
  %4888 = vmatprep.subr.mxu0 0.0
  %4889 = vmatpush2.xpose.msra.mxu0 0.0
  %4890 = vmatprep.subr.mxu0 0.0
  %4891 = vmatpush2.xpose.msra.mxu0 0.0
  %4892 = vmatprep.subr.mxu0 0.0
  %4893 = vmatpush2.xpose.msra.mxu0 0.0
  %4894 = vmatprep.mubr.f32.mxu0 0.0
  %4895 = vmatmul.mubr.f32.gmra.mxu0 %v4826
  %v4896 = vpop.f32.mrf.mxu0
  %v4897 = vadd.f32 0.0, %v4896
  %v4898 = vpop.f32.mrf.mxu0
  %4899 = vdwg.mxu0
  %4900 = vrot.lane.b32.xlu0 %v342, 116
  %v4901 = vpop.permute.xlu0 %4900
  %4902 = vrot.lane.b32.xlu0 %v598, 116
  %v4903 = vpop.permute.xlu0 %4902
  %v4904 = vsel %vm866, %v4901, 0
  %v4906 = vsel %vm866, %v4903, 0
  %4908 = vmatprep.subr.mxu0 0.0
  %4909 = vmatpush1.xpose.msra.mxu0 0.0
  %4910 = vmatprep.subr.mxu0 0.0
  %4911 = vmatpush1.xpose.msra.mxu0 0.0
  %4912 = vmatprep.subr.mxu0 0.0
  %4913 = vmatpush1.xpose.msra.mxu0 0.0
  %4914 = vmatprep.subr.mxu0 0.0
  %4915 = vmatpush1.xpose.msra.mxu0 0.0
  %4916 = vmatprep.subr.mxu0 0.0
  %4917 = vmatpush1.xpose.msra.mxu0 0.0
  %4918 = vmatprep.subr.mxu0 0.0
  %4919 = vmatpush1.xpose.msra.mxu0 0.0
  %4920 = vmatprep.subr.mxu0 0.0
  %4921 = vmatpush1.xpose.msra.mxu0 0.0
  %4922 = vmatprep.subr.mxu0 0.0
  %4923 = vmatpush1.xpose.msra.mxu0 0.0
  %4924 = vmatprep.subr.mxu0 0.0
  %4925 = vmatpush1.xpose.msra.mxu0 0.0
  %4926 = vmatprep.subr.mxu0 0.0
  %4927 = vmatpush1.xpose.msra.mxu0 0.0
  %4928 = vmatprep.subr.mxu0 0.0
  %4929 = vmatpush1.xpose.msra.mxu0 0.0
  %4930 = vmatprep.subr.mxu0 0.0
  %4931 = vmatpush1.xpose.msra.mxu0 0.0
  %4932 = vmatprep.subr.mxu0 0.0
  %4933 = vmatpush1.xpose.msra.mxu0 0.0
  %4934 = vmatprep.subr.mxu0 0.0
  %4935 = vmatpush1.xpose.msra.mxu0 0.0
  %4936 = vmatprep.subr.mxu0 0.0
  %4937 = vmatpush1.xpose.msra.mxu0 0.0
  %4938 = vmatprep.subr.mxu0 0.0
  %4939 = vmatpush1.xpose.msra.mxu0 %v4906
  %4940 = vmatprep.subr.mxu0 0.0
  %4941 = vmatpush2.xpose.msra.mxu0 0.0
  %4942 = vmatprep.subr.mxu0 0.0
  %4943 = vmatpush2.xpose.msra.mxu0 0.0
  %4944 = vmatprep.subr.mxu0 0.0
  %4945 = vmatpush2.xpose.msra.mxu0 0.0
  %4946 = vmatprep.subr.mxu0 0.0
  %4947 = vmatpush2.xpose.msra.mxu0 0.0
  %4948 = vmatprep.subr.mxu0 0.0
  %4949 = vmatpush2.xpose.msra.mxu0 0.0
  %4950 = vmatprep.subr.mxu0 0.0
  %4951 = vmatpush2.xpose.msra.mxu0 0.0
  %4952 = vmatprep.subr.mxu0 0.0
  %4953 = vmatpush2.xpose.msra.mxu0 0.0
  %4954 = vmatprep.subr.mxu0 0.0
  %4955 = vmatpush2.xpose.msra.mxu0 0.0
  %4956 = vmatprep.subr.mxu0 0.0
  %4957 = vmatpush2.xpose.msra.mxu0 0.0
  %4958 = vmatprep.subr.mxu0 0.0
  %4959 = vmatpush2.xpose.msra.mxu0 0.0
  %4960 = vmatprep.subr.mxu0 0.0
  %4961 = vmatpush2.xpose.msra.mxu0 0.0
  %4962 = vmatprep.subr.mxu0 0.0
  %4963 = vmatpush2.xpose.msra.mxu0 0.0
  %4964 = vmatprep.subr.mxu0 0.0
  %4965 = vmatpush2.xpose.msra.mxu0 0.0
  %4966 = vmatprep.subr.mxu0 0.0
  %4967 = vmatpush2.xpose.msra.mxu0 0.0
  %4968 = vmatprep.subr.mxu0 0.0
  %4969 = vmatpush2.xpose.msra.mxu0 0.0
  %4970 = vmatprep.subr.mxu0 0.0
  %4971 = vmatpush2.xpose.msra.mxu0 0.0
  %4972 = vmatprep.mubr.f32.mxu0 0.0
  %4973 = vmatmul.mubr.f32.gmra.mxu0 %v4904
  %v4974 = vpop.f32.mrf.mxu0
  %v4975 = vadd.f32 0.0, %v4974
  %v4976 = vpop.f32.mrf.mxu0
  %4977 = vdwg.mxu0
  %4978 = vrot.lane.b32.xlu0 %v343, 116
  %v4979 = vpop.permute.xlu0 %4978
  %4980 = vrot.lane.b32.xlu0 %v599, 116
  %v4981 = vpop.permute.xlu0 %4980
  %v4982 = vsel %vm866, %v4979, 0
  %v4984 = vsel %vm866, %v4981, 0
  %4986 = vmatprep.subr.mxu0 0.0
  %4987 = vmatpush1.xpose.msra.mxu0 0.0
  %4988 = vmatprep.subr.mxu0 0.0
  %4989 = vmatpush1.xpose.msra.mxu0 0.0
  %4990 = vmatprep.subr.mxu0 0.0
  %4991 = vmatpush1.xpose.msra.mxu0 0.0
  %4992 = vmatprep.subr.mxu0 0.0
  %4993 = vmatpush1.xpose.msra.mxu0 0.0
  %4994 = vmatprep.subr.mxu0 0.0
  %4995 = vmatpush1.xpose.msra.mxu0 0.0
  %4996 = vmatprep.subr.mxu0 0.0
  %4997 = vmatpush1.xpose.msra.mxu0 0.0
  %4998 = vmatprep.subr.mxu0 0.0
  %4999 = vmatpush1.xpose.msra.mxu0 0.0
  %5000 = vmatprep.subr.mxu0 0.0
  %5001 = vmatpush1.xpose.msra.mxu0 0.0
  %5002 = vmatprep.subr.mxu0 0.0
  %5003 = vmatpush1.xpose.msra.mxu0 0.0
  %5004 = vmatprep.subr.mxu0 0.0
  %5005 = vmatpush1.xpose.msra.mxu0 0.0
  %5006 = vmatprep.subr.mxu0 0.0
  %5007 = vmatpush1.xpose.msra.mxu0 0.0
  %5008 = vmatprep.subr.mxu0 0.0
  %5009 = vmatpush1.xpose.msra.mxu0 0.0
  %5010 = vmatprep.subr.mxu0 0.0
  %5011 = vmatpush1.xpose.msra.mxu0 0.0
  %5012 = vmatprep.subr.mxu0 0.0
  %5013 = vmatpush1.xpose.msra.mxu0 0.0
  %5014 = vmatprep.subr.mxu0 0.0
  %5015 = vmatpush1.xpose.msra.mxu0 0.0
  %5016 = vmatprep.subr.mxu0 0.0
  %5017 = vmatpush1.xpose.msra.mxu0 %v4984
  %5018 = vmatprep.subr.mxu0 0.0
  %5019 = vmatpush2.xpose.msra.mxu0 0.0
  %5020 = vmatprep.subr.mxu0 0.0
  %5021 = vmatpush2.xpose.msra.mxu0 0.0
  %5022 = vmatprep.subr.mxu0 0.0
  %5023 = vmatpush2.xpose.msra.mxu0 0.0
  %5024 = vmatprep.subr.mxu0 0.0
  %5025 = vmatpush2.xpose.msra.mxu0 0.0
  %5026 = vmatprep.subr.mxu0 0.0
  %5027 = vmatpush2.xpose.msra.mxu0 0.0
  %5028 = vmatprep.subr.mxu0 0.0
  %5029 = vmatpush2.xpose.msra.mxu0 0.0
  %5030 = vmatprep.subr.mxu0 0.0
  %5031 = vmatpush2.xpose.msra.mxu0 0.0
  %5032 = vmatprep.subr.mxu0 0.0
  %5033 = vmatpush2.xpose.msra.mxu0 0.0
  %5034 = vmatprep.subr.mxu0 0.0
  %5035 = vmatpush2.xpose.msra.mxu0 0.0
  %5036 = vmatprep.subr.mxu0 0.0
  %5037 = vmatpush2.xpose.msra.mxu0 0.0
  %5038 = vmatprep.subr.mxu0 0.0
  %5039 = vmatpush2.xpose.msra.mxu0 0.0
  %5040 = vmatprep.subr.mxu0 0.0
  %5041 = vmatpush2.xpose.msra.mxu0 0.0
  %5042 = vmatprep.subr.mxu0 0.0
  %5043 = vmatpush2.xpose.msra.mxu0 0.0
  %5044 = vmatprep.subr.mxu0 0.0
  %5045 = vmatpush2.xpose.msra.mxu0 0.0
  %5046 = vmatprep.subr.mxu0 0.0
  %5047 = vmatpush2.xpose.msra.mxu0 0.0
  %5048 = vmatprep.subr.mxu0 0.0
  %5049 = vmatpush2.xpose.msra.mxu0 0.0
  %5050 = vmatprep.mubr.f32.mxu0 0.0
  %5051 = vmatmul.mubr.f32.gmra.mxu0 %v4982
  %v5052 = vpop.f32.mrf.mxu0
  %v5053 = vadd.f32 0.0, %v5052
  %v5054 = vpop.f32.mrf.mxu0
  %5055 = vdwg.mxu0
  %5056 = vrot.lane.b32.xlu0 %v344, 116
  %v5057 = vpop.permute.xlu0 %5056
  %5058 = vrot.lane.b32.xlu0 %v600, 116
  %v5059 = vpop.permute.xlu0 %5058
  %v5060 = vsel %vm866, %v5057, 0
  %v5062 = vsel %vm866, %v5059, 0
  %5064 = vmatprep.subr.mxu0 0.0
  %5065 = vmatpush1.xpose.msra.mxu0 0.0
  %5066 = vmatprep.subr.mxu0 0.0
  %5067 = vmatpush1.xpose.msra.mxu0 0.0
  %5068 = vmatprep.subr.mxu0 0.0
  %5069 = vmatpush1.xpose.msra.mxu0 0.0
  %5070 = vmatprep.subr.mxu0 0.0
  %5071 = vmatpush1.xpose.msra.mxu0 0.0
  %5072 = vmatprep.subr.mxu0 0.0
  %5073 = vmatpush1.xpose.msra.mxu0 0.0
  %5074 = vmatprep.subr.mxu0 0.0
  %5075 = vmatpush1.xpose.msra.mxu0 0.0
  %5076 = vmatprep.subr.mxu0 0.0
  %5077 = vmatpush1.xpose.msra.mxu0 0.0
  %5078 = vmatprep.subr.mxu0 0.0
  %5079 = vmatpush1.xpose.msra.mxu0 0.0
  %5080 = vmatprep.subr.mxu0 0.0
  %5081 = vmatpush1.xpose.msra.mxu0 0.0
  %5082 = vmatprep.subr.mxu0 0.0
  %5083 = vmatpush1.xpose.msra.mxu0 0.0
  %5084 = vmatprep.subr.mxu0 0.0
  %5085 = vmatpush1.xpose.msra.mxu0 0.0
  %5086 = vmatprep.subr.mxu0 0.0
  %5087 = vmatpush1.xpose.msra.mxu0 0.0
  %5088 = vmatprep.subr.mxu0 0.0
  %5089 = vmatpush1.xpose.msra.mxu0 0.0
  %5090 = vmatprep.subr.mxu0 0.0
  %5091 = vmatpush1.xpose.msra.mxu0 0.0
  %5092 = vmatprep.subr.mxu0 0.0
  %5093 = vmatpush1.xpose.msra.mxu0 0.0
  %5094 = vmatprep.subr.mxu0 0.0
  %5095 = vmatpush1.xpose.msra.mxu0 %v5062
  %5096 = vmatprep.subr.mxu0 0.0
  %5097 = vmatpush2.xpose.msra.mxu0 0.0
  %5098 = vmatprep.subr.mxu0 0.0
  %5099 = vmatpush2.xpose.msra.mxu0 0.0
  %5100 = vmatprep.subr.mxu0 0.0
  %5101 = vmatpush2.xpose.msra.mxu0 0.0
  %5102 = vmatprep.subr.mxu0 0.0
  %5103 = vmatpush2.xpose.msra.mxu0 0.0
  %5104 = vmatprep.subr.mxu0 0.0
  %5105 = vmatpush2.xpose.msra.mxu0 0.0
  %5106 = vmatprep.subr.mxu0 0.0
  %5107 = vmatpush2.xpose.msra.mxu0 0.0
  %5108 = vmatprep.subr.mxu0 0.0
  %5109 = vmatpush2.xpose.msra.mxu0 0.0
  %5110 = vmatprep.subr.mxu0 0.0
  %5111 = vmatpush2.xpose.msra.mxu0 0.0
  %5112 = vmatprep.subr.mxu0 0.0
  %5113 = vmatpush2.xpose.msra.mxu0 0.0
  %5114 = vmatprep.subr.mxu0 0.0
  %5115 = vmatpush2.xpose.msra.mxu0 0.0
  %5116 = vmatprep.subr.mxu0 0.0
  %5117 = vmatpush2.xpose.msra.mxu0 0.0
  %5118 = vmatprep.subr.mxu0 0.0
  %5119 = vmatpush2.xpose.msra.mxu0 0.0
  %5120 = vmatprep.subr.mxu0 0.0
  %5121 = vmatpush2.xpose.msra.mxu0 0.0
  %5122 = vmatprep.subr.mxu0 0.0
  %5123 = vmatpush2.xpose.msra.mxu0 0.0
  %5124 = vmatprep.subr.mxu0 0.0
  %5125 = vmatpush2.xpose.msra.mxu0 0.0
  %5126 = vmatprep.subr.mxu0 0.0
  %5127 = vmatpush2.xpose.msra.mxu0 0.0
  %5128 = vmatprep.mubr.f32.mxu0 0.0
  %5129 = vmatmul.mubr.f32.gmra.mxu0 %v5060
  %v5130 = vpop.f32.mrf.mxu0
  %v5131 = vadd.f32 0.0, %v5130
  %v5132 = vpop.f32.mrf.mxu0
  %5133 = vdwg.mxu0
  %5134 = vrot.lane.b32.xlu0 %v345, 116
  %v5135 = vpop.permute.xlu0 %5134
  %5136 = vrot.lane.b32.xlu0 %v601, 116
  %v5137 = vpop.permute.xlu0 %5136
  %v5138 = vsel %vm866, %v5135, 0
  %v5140 = vsel %vm866, %v5137, 0
  %5142 = vmatprep.subr.mxu0 0.0
  %5143 = vmatpush1.xpose.msra.mxu0 0.0
  %5144 = vmatprep.subr.mxu0 0.0
  %5145 = vmatpush1.xpose.msra.mxu0 0.0
  %5146 = vmatprep.subr.mxu0 0.0
  %5147 = vmatpush1.xpose.msra.mxu0 0.0
  %5148 = vmatprep.subr.mxu0 0.0
  %5149 = vmatpush1.xpose.msra.mxu0 0.0
  %5150 = vmatprep.subr.mxu0 0.0
  %5151 = vmatpush1.xpose.msra.mxu0 0.0
  %5152 = vmatprep.subr.mxu0 0.0
  %5153 = vmatpush1.xpose.msra.mxu0 0.0
  %5154 = vmatprep.subr.mxu0 0.0
  %5155 = vmatpush1.xpose.msra.mxu0 0.0
  %5156 = vmatprep.subr.mxu0 0.0
  %5157 = vmatpush1.xpose.msra.mxu0 0.0
  %5158 = vmatprep.subr.mxu0 0.0
  %5159 = vmatpush1.xpose.msra.mxu0 0.0
  %5160 = vmatprep.subr.mxu0 0.0
  %5161 = vmatpush1.xpose.msra.mxu0 0.0
  %5162 = vmatprep.subr.mxu0 0.0
  %5163 = vmatpush1.xpose.msra.mxu0 0.0
  %5164 = vmatprep.subr.mxu0 0.0
  %5165 = vmatpush1.xpose.msra.mxu0 0.0
  %5166 = vmatprep.subr.mxu0 0.0
  %5167 = vmatpush1.xpose.msra.mxu0 0.0
  %5168 = vmatprep.subr.mxu0 0.0
  %5169 = vmatpush1.xpose.msra.mxu0 0.0
  %5170 = vmatprep.subr.mxu0 0.0
  %5171 = vmatpush1.xpose.msra.mxu0 0.0
  %5172 = vmatprep.subr.mxu0 0.0
  %5173 = vmatpush1.xpose.msra.mxu0 %v5140
  %5174 = vmatprep.subr.mxu0 0.0
  %5175 = vmatpush2.xpose.msra.mxu0 0.0
  %5176 = vmatprep.subr.mxu0 0.0
  %5177 = vmatpush2.xpose.msra.mxu0 0.0
  %5178 = vmatprep.subr.mxu0 0.0
  %5179 = vmatpush2.xpose.msra.mxu0 0.0
  %5180 = vmatprep.subr.mxu0 0.0
  %5181 = vmatpush2.xpose.msra.mxu0 0.0
  %5182 = vmatprep.subr.mxu0 0.0
  %5183 = vmatpush2.xpose.msra.mxu0 0.0
  %5184 = vmatprep.subr.mxu0 0.0
  %5185 = vmatpush2.xpose.msra.mxu0 0.0
  %5186 = vmatprep.subr.mxu0 0.0
  %5187 = vmatpush2.xpose.msra.mxu0 0.0
  %5188 = vmatprep.subr.mxu0 0.0
  %5189 = vmatpush2.xpose.msra.mxu0 0.0
  %5190 = vmatprep.subr.mxu0 0.0
  %5191 = vmatpush2.xpose.msra.mxu0 0.0
  %5192 = vmatprep.subr.mxu0 0.0
  %5193 = vmatpush2.xpose.msra.mxu0 0.0
  %5194 = vmatprep.subr.mxu0 0.0
  %5195 = vmatpush2.xpose.msra.mxu0 0.0
  %5196 = vmatprep.subr.mxu0 0.0
  %5197 = vmatpush2.xpose.msra.mxu0 0.0
  %5198 = vmatprep.subr.mxu0 0.0
  %5199 = vmatpush2.xpose.msra.mxu0 0.0
  %5200 = vmatprep.subr.mxu0 0.0
  %5201 = vmatpush2.xpose.msra.mxu0 0.0
  %5202 = vmatprep.subr.mxu0 0.0
  %5203 = vmatpush2.xpose.msra.mxu0 0.0
  %5204 = vmatprep.subr.mxu0 0.0
  %5205 = vmatpush2.xpose.msra.mxu0 0.0
  %5206 = vmatprep.mubr.f32.mxu0 0.0
  %5207 = vmatmul.mubr.f32.gmra.mxu0 %v5138
  %v5208 = vpop.f32.mrf.mxu0
  %v5209 = vadd.f32 0.0, %v5208
  %v5210 = vpop.f32.mrf.mxu0
  %5211 = vdwg.mxu0
  %5212 = vrot.lane.b32.xlu0 %v346, 116
  %v5213 = vpop.permute.xlu0 %5212
  %5214 = vrot.lane.b32.xlu0 %v602, 116
  %v5215 = vpop.permute.xlu0 %5214
  %v5216 = vsel %vm866, %v5213, 0
  %v5218 = vsel %vm866, %v5215, 0
  %5220 = vmatprep.subr.mxu0 0.0
  %5221 = vmatpush1.xpose.msra.mxu0 0.0
  %5222 = vmatprep.subr.mxu0 0.0
  %5223 = vmatpush1.xpose.msra.mxu0 0.0
  %5224 = vmatprep.subr.mxu0 0.0
  %5225 = vmatpush1.xpose.msra.mxu0 0.0
  %5226 = vmatprep.subr.mxu0 0.0
  %5227 = vmatpush1.xpose.msra.mxu0 0.0
  %5228 = vmatprep.subr.mxu0 0.0
  %5229 = vmatpush1.xpose.msra.mxu0 0.0
  %5230 = vmatprep.subr.mxu0 0.0
  %5231 = vmatpush1.xpose.msra.mxu0 0.0
  %5232 = vmatprep.subr.mxu0 0.0
  %5233 = vmatpush1.xpose.msra.mxu0 0.0
  %5234 = vmatprep.subr.mxu0 0.0
  %5235 = vmatpush1.xpose.msra.mxu0 0.0
  %5236 = vmatprep.subr.mxu0 0.0
  %5237 = vmatpush1.xpose.msra.mxu0 0.0
  %5238 = vmatprep.subr.mxu0 0.0
  %5239 = vmatpush1.xpose.msra.mxu0 0.0
  %5240 = vmatprep.subr.mxu0 0.0
  %5241 = vmatpush1.xpose.msra.mxu0 0.0
  %5242 = vmatprep.subr.mxu0 0.0
  %5243 = vmatpush1.xpose.msra.mxu0 0.0
  %5244 = vmatprep.subr.mxu0 0.0
  %5245 = vmatpush1.xpose.msra.mxu0 0.0
  %5246 = vmatprep.subr.mxu0 0.0
  %5247 = vmatpush1.xpose.msra.mxu0 0.0
  %5248 = vmatprep.subr.mxu0 0.0
  %5249 = vmatpush1.xpose.msra.mxu0 0.0
  %5250 = vmatprep.subr.mxu0 0.0
  %5251 = vmatpush1.xpose.msra.mxu0 %v5218
  %5252 = vmatprep.subr.mxu0 0.0
  %5253 = vmatpush2.xpose.msra.mxu0 0.0
  %5254 = vmatprep.subr.mxu0 0.0
  %5255 = vmatpush2.xpose.msra.mxu0 0.0
  %5256 = vmatprep.subr.mxu0 0.0
  %5257 = vmatpush2.xpose.msra.mxu0 0.0
  %5258 = vmatprep.subr.mxu0 0.0
  %5259 = vmatpush2.xpose.msra.mxu0 0.0
  %5260 = vmatprep.subr.mxu0 0.0
  %5261 = vmatpush2.xpose.msra.mxu0 0.0
  %5262 = vmatprep.subr.mxu0 0.0
  %5263 = vmatpush2.xpose.msra.mxu0 0.0
  %5264 = vmatprep.subr.mxu0 0.0
  %5265 = vmatpush2.xpose.msra.mxu0 0.0
  %5266 = vmatprep.subr.mxu0 0.0
  %5267 = vmatpush2.xpose.msra.mxu0 0.0
  %5268 = vmatprep.subr.mxu0 0.0
  %5269 = vmatpush2.xpose.msra.mxu0 0.0
  %5270 = vmatprep.subr.mxu0 0.0
  %5271 = vmatpush2.xpose.msra.mxu0 0.0
  %5272 = vmatprep.subr.mxu0 0.0
  %5273 = vmatpush2.xpose.msra.mxu0 0.0
  %5274 = vmatprep.subr.mxu0 0.0
  %5275 = vmatpush2.xpose.msra.mxu0 0.0
  %5276 = vmatprep.subr.mxu0 0.0
  %5277 = vmatpush2.xpose.msra.mxu0 0.0
  %5278 = vmatprep.subr.mxu0 0.0
  %5279 = vmatpush2.xpose.msra.mxu0 0.0
  %5280 = vmatprep.subr.mxu0 0.0
  %5281 = vmatpush2.xpose.msra.mxu0 0.0
  %5282 = vmatprep.subr.mxu0 0.0
  %5283 = vmatpush2.xpose.msra.mxu0 0.0
  %5284 = vmatprep.mubr.f32.mxu0 0.0
  %5285 = vmatmul.mubr.f32.gmra.mxu0 %v5216
  %v5286 = vpop.f32.mrf.mxu0
  %v5287 = vadd.f32 0.0, %v5286
  %v5288 = vpop.f32.mrf.mxu0
  %5289 = vdwg.mxu0
  %5290 = vrot.lane.b32.xlu0 %v347, 116
  %v5291 = vpop.permute.xlu0 %5290
  %5292 = vrot.lane.b32.xlu0 %v603, 116
  %v5293 = vpop.permute.xlu0 %5292
  %v5294 = vsel %vm866, %v5291, 0
  %v5296 = vsel %vm866, %v5293, 0
  %5298 = vmatprep.subr.mxu0 0.0
  %5299 = vmatpush1.xpose.msra.mxu0 0.0
  %5300 = vmatprep.subr.mxu0 0.0
  %5301 = vmatpush1.xpose.msra.mxu0 0.0
  %5302 = vmatprep.subr.mxu0 0.0
  %5303 = vmatpush1.xpose.msra.mxu0 0.0
  %5304 = vmatprep.subr.mxu0 0.0
  %5305 = vmatpush1.xpose.msra.mxu0 0.0
  %5306 = vmatprep.subr.mxu0 0.0
  %5307 = vmatpush1.xpose.msra.mxu0 0.0
  %5308 = vmatprep.subr.mxu0 0.0
  %5309 = vmatpush1.xpose.msra.mxu0 0.0
  %5310 = vmatprep.subr.mxu0 0.0
  %5311 = vmatpush1.xpose.msra.mxu0 0.0
  %5312 = vmatprep.subr.mxu0 0.0
  %5313 = vmatpush1.xpose.msra.mxu0 0.0
  %5314 = vmatprep.subr.mxu0 0.0
  %5315 = vmatpush1.xpose.msra.mxu0 0.0
  %5316 = vmatprep.subr.mxu0 0.0
  %5317 = vmatpush1.xpose.msra.mxu0 0.0
  %5318 = vmatprep.subr.mxu0 0.0
  %5319 = vmatpush1.xpose.msra.mxu0 0.0
  %5320 = vmatprep.subr.mxu0 0.0
  %5321 = vmatpush1.xpose.msra.mxu0 0.0
  %5322 = vmatprep.subr.mxu0 0.0
  %5323 = vmatpush1.xpose.msra.mxu0 0.0
  %5324 = vmatprep.subr.mxu0 0.0
  %5325 = vmatpush1.xpose.msra.mxu0 0.0
  %5326 = vmatprep.subr.mxu0 0.0
  %5327 = vmatpush1.xpose.msra.mxu0 0.0
  %5328 = vmatprep.subr.mxu0 0.0
  %5329 = vmatpush1.xpose.msra.mxu0 %v5296
  %5330 = vmatprep.subr.mxu0 0.0
  %5331 = vmatpush2.xpose.msra.mxu0 0.0
  %5332 = vmatprep.subr.mxu0 0.0
  %5333 = vmatpush2.xpose.msra.mxu0 0.0
  %5334 = vmatprep.subr.mxu0 0.0
  %5335 = vmatpush2.xpose.msra.mxu0 0.0
  %5336 = vmatprep.subr.mxu0 0.0
  %5337 = vmatpush2.xpose.msra.mxu0 0.0
  %5338 = vmatprep.subr.mxu0 0.0
  %5339 = vmatpush2.xpose.msra.mxu0 0.0
  %5340 = vmatprep.subr.mxu0 0.0
  %5341 = vmatpush2.xpose.msra.mxu0 0.0
  %5342 = vmatprep.subr.mxu0 0.0
  %5343 = vmatpush2.xpose.msra.mxu0 0.0
  %5344 = vmatprep.subr.mxu0 0.0
  %5345 = vmatpush2.xpose.msra.mxu0 0.0
  %5346 = vmatprep.subr.mxu0 0.0
  %5347 = vmatpush2.xpose.msra.mxu0 0.0
  %5348 = vmatprep.subr.mxu0 0.0
  %5349 = vmatpush2.xpose.msra.mxu0 0.0
  %5350 = vmatprep.subr.mxu0 0.0
  %5351 = vmatpush2.xpose.msra.mxu0 0.0
  %5352 = vmatprep.subr.mxu0 0.0
  %5353 = vmatpush2.xpose.msra.mxu0 0.0
  %5354 = vmatprep.subr.mxu0 0.0
  %5355 = vmatpush2.xpose.msra.mxu0 0.0
  %5356 = vmatprep.subr.mxu0 0.0
  %5357 = vmatpush2.xpose.msra.mxu0 0.0
  %5358 = vmatprep.subr.mxu0 0.0
  %5359 = vmatpush2.xpose.msra.mxu0 0.0
  %5360 = vmatprep.subr.mxu0 0.0
  %5361 = vmatpush2.xpose.msra.mxu0 0.0
  %5362 = vmatprep.mubr.f32.mxu0 0.0
  %5363 = vmatmul.mubr.f32.gmra.mxu0 %v5294
  %v5364 = vpop.f32.mrf.mxu0
  %v5365 = vadd.f32 0.0, %v5364
  %v5366 = vpop.f32.mrf.mxu0
  %5367 = vdwg.mxu0
  %5368 = vrot.lane.b32.xlu0 %v348, 116
  %v5369 = vpop.permute.xlu0 %5368
  %5370 = vrot.lane.b32.xlu0 %v604, 116
  %v5371 = vpop.permute.xlu0 %5370
  %v5372 = vsel %vm866, %v5369, 0
  %v5374 = vsel %vm866, %v5371, 0
  %5376 = vmatprep.subr.mxu0 0.0
  %5377 = vmatpush1.xpose.msra.mxu0 0.0
  %5378 = vmatprep.subr.mxu0 0.0
  %5379 = vmatpush1.xpose.msra.mxu0 0.0
  %5380 = vmatprep.subr.mxu0 0.0
  %5381 = vmatpush1.xpose.msra.mxu0 0.0
  %5382 = vmatprep.subr.mxu0 0.0
  %5383 = vmatpush1.xpose.msra.mxu0 0.0
  %5384 = vmatprep.subr.mxu0 0.0
  %5385 = vmatpush1.xpose.msra.mxu0 0.0
  %5386 = vmatprep.subr.mxu0 0.0
  %5387 = vmatpush1.xpose.msra.mxu0 0.0
  %5388 = vmatprep.subr.mxu0 0.0
  %5389 = vmatpush1.xpose.msra.mxu0 0.0
  %5390 = vmatprep.subr.mxu0 0.0
  %5391 = vmatpush1.xpose.msra.mxu0 0.0
  %5392 = vmatprep.subr.mxu0 0.0
  %5393 = vmatpush1.xpose.msra.mxu0 0.0
  %5394 = vmatprep.subr.mxu0 0.0
  %5395 = vmatpush1.xpose.msra.mxu0 0.0
  %5396 = vmatprep.subr.mxu0 0.0
  %5397 = vmatpush1.xpose.msra.mxu0 0.0
  %5398 = vmatprep.subr.mxu0 0.0
  %5399 = vmatpush1.xpose.msra.mxu0 0.0
  %5400 = vmatprep.subr.mxu0 0.0
  %5401 = vmatpush1.xpose.msra.mxu0 0.0
  %5402 = vmatprep.subr.mxu0 0.0
  %5403 = vmatpush1.xpose.msra.mxu0 0.0
  %5404 = vmatprep.subr.mxu0 0.0
  %5405 = vmatpush1.xpose.msra.mxu0 0.0
  %5406 = vmatprep.subr.mxu0 0.0
  %5407 = vmatpush1.xpose.msra.mxu0 %v5374
  %5408 = vmatprep.subr.mxu0 0.0
  %5409 = vmatpush2.xpose.msra.mxu0 0.0
  %5410 = vmatprep.subr.mxu0 0.0
  %5411 = vmatpush2.xpose.msra.mxu0 0.0
  %5412 = vmatprep.subr.mxu0 0.0
  %5413 = vmatpush2.xpose.msra.mxu0 0.0
  %5414 = vmatprep.subr.mxu0 0.0
  %5415 = vmatpush2.xpose.msra.mxu0 0.0
  %5416 = vmatprep.subr.mxu0 0.0
  %5417 = vmatpush2.xpose.msra.mxu0 0.0
  %5418 = vmatprep.subr.mxu0 0.0
  %5419 = vmatpush2.xpose.msra.mxu0 0.0
  %5420 = vmatprep.subr.mxu0 0.0
  %5421 = vmatpush2.xpose.msra.mxu0 0.0
  %5422 = vmatprep.subr.mxu0 0.0
  %5423 = vmatpush2.xpose.msra.mxu0 0.0
  %5424 = vmatprep.subr.mxu0 0.0
  %5425 = vmatpush2.xpose.msra.mxu0 0.0
  %5426 = vmatprep.subr.mxu0 0.0
  %5427 = vmatpush2.xpose.msra.mxu0 0.0
  %5428 = vmatprep.subr.mxu0 0.0
  %5429 = vmatpush2.xpose.msra.mxu0 0.0
  %5430 = vmatprep.subr.mxu0 0.0
  %5431 = vmatpush2.xpose.msra.mxu0 0.0
  %5432 = vmatprep.subr.mxu0 0.0
  %5433 = vmatpush2.xpose.msra.mxu0 0.0
  %5434 = vmatprep.subr.mxu0 0.0
  %5435 = vmatpush2.xpose.msra.mxu0 0.0
  %5436 = vmatprep.subr.mxu0 0.0
  %5437 = vmatpush2.xpose.msra.mxu0 0.0
  %5438 = vmatprep.subr.mxu0 0.0
  %5439 = vmatpush2.xpose.msra.mxu0 0.0
  %5440 = vmatprep.mubr.f32.mxu0 0.0
  %5441 = vmatmul.mubr.f32.gmra.mxu0 %v5372
  %v5442 = vpop.f32.mrf.mxu0
  %v5443 = vadd.f32 0.0, %v5442
  %v5444 = vpop.f32.mrf.mxu0
  %5445 = vdwg.mxu0
  %v5446 = vsel %vm1476, %v4897, -32767.0
  %v5447 = vsel %vm1476, %v4975, -32767.0
  %v5448 = vsel %vm1476, %v5053, -32767.0
  %v5449 = vsel %vm1476, %v5131, -32767.0
  %v5450 = vsel %vm1476, %v5209, -32767.0
  %v5451 = vsel %vm1476, %v5287, -32767.0
  %v5452 = vsel %vm1476, %v5365, -32767.0
  %v5453 = vsel %vm1476, %v5443, -32767.0
  %v5454 = vsel %vm1485, %v5446, -inf
  %5455 = vmax.xlane.f32.xlu0 %v5454
  %v5456 = vpop.xlane.xlu0 %5455
  %v5457 = vsel %vm1485, %v5447, -inf
  %5458 = vmax.xlane.f32.xlu0 %v5457
  %v5459 = vpop.xlane.xlu0 %5458
  %v5460 = vsel %vm1485, %v5448, -inf
  %5461 = vmax.xlane.f32.xlu0 %v5460
  %v5462 = vpop.xlane.xlu0 %5461
  %v5463 = vsel %vm1485, %v5449, -inf
  %5464 = vmax.xlane.f32.xlu0 %v5463
  %v5465 = vpop.xlane.xlu0 %5464
  %v5466 = vsel %vm1485, %v5450, -inf
  %5467 = vmax.xlane.f32.xlu0 %v5466
  %v5468 = vpop.xlane.xlu0 %5467
  %v5469 = vsel %vm1485, %v5451, -inf
  %5470 = vmax.xlane.f32.xlu0 %v5469
  %v5471 = vpop.xlane.xlu0 %5470
  %v5472 = vsel %vm1485, %v5452, -inf
  %5473 = vmax.xlane.f32.xlu0 %v5472
  %v5474 = vpop.xlane.xlu0 %5473
  %v5475 = vsel %vm1485, %v5453, -inf
  %5476 = vmax.xlane.f32.xlu0 %v5475
  %v5477 = vpop.xlane.xlu0 %5476
  %v5478 = vsub.f32 %v5446, %v5456
  %v5479 = vsub.f32 %v5447, %v5459
  %v5480 = vsub.f32 %v5448, %v5462
  %v5481 = vsub.f32 %v5449, %v5465
  %v5482 = vsub.f32 %v5450, %v5468
  %v5483 = vsub.f32 %v5451, %v5471
  %v5484 = vsub.f32 %v5452, %v5474
  %v5485 = vsub.f32 %v5453, %v5477
  %v5486 = vmul.f32 %v5478, 1.442695
  %v5487 = vpow.pop %v5486
  %v5488 = vmul.f32 %v5479, 1.442695
  %v5489 = vpow.pop %v5488
  %v5490 = vmul.f32 %v5480, 1.442695
  %v5491 = vpow.pop %v5490
  %v5492 = vmul.f32 %v5481, 1.442695
  %v5493 = vpow.pop %v5492
  %v5494 = vmul.f32 %v5482, 1.442695
  %v5495 = vpow.pop %v5494
  %v5496 = vmul.f32 %v5483, 1.442695
  %v5497 = vpow.pop %v5496
  %v5498 = vmul.f32 %v5484, 1.442695
  %v5499 = vpow.pop %v5498
  %v5500 = vmul.f32 %v5485, 1.442695
  %v5501 = vpow.pop %v5500
  %v5502 = vsel %vm1485, %v5487, 0.0
  %5503 = vadd.xlane.f32.xlu0 %v5502
  %v5504 = vpop.xlane.xlu0 %5503
  %v5505 = vsel %vm1485, %v5489, 0.0
  %5506 = vadd.xlane.f32.xlu0 %v5505
  %v5507 = vpop.xlane.xlu0 %5506
  %v5508 = vsel %vm1485, %v5491, 0.0
  %5509 = vadd.xlane.f32.xlu0 %v5508
  %v5510 = vpop.xlane.xlu0 %5509
  %v5511 = vsel %vm1485, %v5493, 0.0
  %5512 = vadd.xlane.f32.xlu0 %v5511
  %v5513 = vpop.xlane.xlu0 %5512
  %v5514 = vsel %vm1485, %v5495, 0.0
  %5515 = vadd.xlane.f32.xlu0 %v5514
  %v5516 = vpop.xlane.xlu0 %5515
  %v5517 = vsel %vm1485, %v5497, 0.0
  %5518 = vadd.xlane.f32.xlu0 %v5517
  %v5519 = vpop.xlane.xlu0 %5518
  %v5520 = vsel %vm1485, %v5499, 0.0
  %5521 = vadd.xlane.f32.xlu0 %v5520
  %v5522 = vpop.xlane.xlu0 %5521
  %v5523 = vsel %vm1485, %v5501, 0.0
  %5524 = vadd.xlane.f32.xlu0 %v5523
  %v5525 = vpop.xlane.xlu0 %5524
  %v5526 = vrcp.pop %v5504
  %v5527 = vmul.f32 %v5487, %v5526
  %v5528 = vrcp.pop %v5507
  %v5529 = vmul.f32 %v5489, %v5528
  %v5530 = vrcp.pop %v5510
  %v5531 = vmul.f32 %v5491, %v5530
  %v5532 = vrcp.pop %v5513
  %v5533 = vmul.f32 %v5493, %v5532
  %v5534 = vrcp.pop %v5516
  %v5535 = vmul.f32 %v5495, %v5534
  %v5536 = vrcp.pop %v5519
  %v5537 = vmul.f32 %v5497, %v5536
  %v5538 = vrcp.pop %v5522
  %v5539 = vmul.f32 %v5499, %v5538
  %v5540 = vrcp.pop %v5525
  %v5541 = vmul.f32 %v5501, %v5540
  %5542 = vrot.lane.b32.xlu0 %v853, 116
  %v5543 = vpop.permute.xlu0 %5542
  %v5546 = vsel %vm1485, %v5527, 0
  %5548 = vmatprep.subr.mxu0 0.0
  %5549 = vmatpush1.msra.mxu0 0.0
  %5550 = vmatprep.subr.mxu0 0.0
  %5551 = vmatpush1.msra.mxu0 0.0
  %5552 = vmatprep.subr.mxu0 0.0
  %5553 = vmatpush1.msra.mxu0 0.0
  %5554 = vmatprep.subr.mxu0 0.0
  %5555 = vmatpush1.msra.mxu0 0.0
  %5556 = vmatprep.subr.mxu0 0.0
  %5557 = vmatpush1.msra.mxu0 0.0
  %5558 = vmatprep.subr.mxu0 0.0
  %5559 = vmatpush1.msra.mxu0 0.0
  %5560 = vmatprep.subr.mxu0 0.0
  %5561 = vmatpush1.msra.mxu0 0.0
  %5562 = vmatprep.subr.mxu0 0.0
  %5563 = vmatpush1.msra.mxu0 0.0
  %5564 = vmatprep.subr.mxu0 0.0
  %5565 = vmatpush1.msra.mxu0 0.0
  %5566 = vmatprep.subr.mxu0 0.0
  %5567 = vmatpush1.msra.mxu0 0.0
  %5568 = vmatprep.subr.mxu0 0.0
  %5569 = vmatpush1.msra.mxu0 0.0
  %5570 = vmatprep.subr.mxu0 0.0
  %5571 = vmatpush1.msra.mxu0 0.0
  %5572 = vmatprep.subr.mxu0 0.0
  %5573 = vmatpush1.msra.mxu0 0.0
  %5574 = vmatprep.subr.mxu0 0.0
  %5575 = vmatpush1.msra.mxu0 0.0
  %5576 = vmatprep.subr.mxu0 0.0
  %5577 = vmatpush1.msra.mxu0 0.0
  %5578 = vmatprep.subr.mxu0 0.0
  %5579 = vmatpush1.msra.mxu0 %v5543
  %5580 = vmatprep.subr.mxu0 0.0
  %5581 = vmatpush2.msra.mxu0 0.0
  %5582 = vmatprep.subr.mxu0 0.0
  %5583 = vmatpush2.msra.mxu0 0.0
  %5584 = vmatprep.subr.mxu0 0.0
  %5585 = vmatpush2.msra.mxu0 0.0
  %5586 = vmatprep.subr.mxu0 0.0
  %5587 = vmatpush2.msra.mxu0 0.0
  %5588 = vmatprep.subr.mxu0 0.0
  %5589 = vmatpush2.msra.mxu0 0.0
  %5590 = vmatprep.subr.mxu0 0.0
  %5591 = vmatpush2.msra.mxu0 0.0
  %5592 = vmatprep.subr.mxu0 0.0
  %5593 = vmatpush2.msra.mxu0 0.0
  %5594 = vmatprep.subr.mxu0 0.0
  %5595 = vmatpush2.msra.mxu0 0.0
  %5596 = vmatprep.subr.mxu0 0.0
  %5597 = vmatpush2.msra.mxu0 0.0
  %5598 = vmatprep.subr.mxu0 0.0
  %5599 = vmatpush2.msra.mxu0 0.0
  %5600 = vmatprep.subr.mxu0 0.0
  %5601 = vmatpush2.msra.mxu0 0.0
  %5602 = vmatprep.subr.mxu0 0.0
  %5603 = vmatpush2.msra.mxu0 0.0
  %5604 = vmatprep.subr.mxu0 0.0
  %5605 = vmatpush2.msra.mxu0 0.0
  %5606 = vmatprep.subr.mxu0 0.0
  %5607 = vmatpush2.msra.mxu0 0.0
  %5608 = vmatprep.subr.mxu0 0.0
  %5609 = vmatpush2.msra.mxu0 0.0
  %5610 = vmatprep.subr.mxu0 0.0
  %5611 = vmatpush2.msra.mxu0 0.0
  %5612 = vmatprep.mubr.f32.mxu0 0.0
  %5613 = vmatmul.mubr.f32.gmra.mxu0 %v5546
  %v5614 = vpop.f32.mrf.mxu0
  %v5615 = vadd.f32 0.0, %v5614
  %v5616 = vpop.f32.mrf.mxu0
  %5617 = vdwg.mxu0
  %5618 = vrot.lane.b32.xlu0 %v854, 116
  %v5619 = vpop.permute.xlu0 %5618
  %v5622 = vsel %vm1485, %v5529, 0
  %5624 = vmatprep.subr.mxu0 0.0
  %5625 = vmatpush1.msra.mxu0 0.0
  %5626 = vmatprep.subr.mxu0 0.0
  %5627 = vmatpush1.msra.mxu0 0.0
  %5628 = vmatprep.subr.mxu0 0.0
  %5629 = vmatpush1.msra.mxu0 0.0
  %5630 = vmatprep.subr.mxu0 0.0
  %5631 = vmatpush1.msra.mxu0 0.0
  %5632 = vmatprep.subr.mxu0 0.0
  %5633 = vmatpush1.msra.mxu0 0.0
  %5634 = vmatprep.subr.mxu0 0.0
  %5635 = vmatpush1.msra.mxu0 0.0
  %5636 = vmatprep.subr.mxu0 0.0
  %5637 = vmatpush1.msra.mxu0 0.0
  %5638 = vmatprep.subr.mxu0 0.0
  %5639 = vmatpush1.msra.mxu0 0.0
  %5640 = vmatprep.subr.mxu0 0.0
  %5641 = vmatpush1.msra.mxu0 0.0
  %5642 = vmatprep.subr.mxu0 0.0
  %5643 = vmatpush1.msra.mxu0 0.0
  %5644 = vmatprep.subr.mxu0 0.0
  %5645 = vmatpush1.msra.mxu0 0.0
  %5646 = vmatprep.subr.mxu0 0.0
  %5647 = vmatpush1.msra.mxu0 0.0
  %5648 = vmatprep.subr.mxu0 0.0
  %5649 = vmatpush1.msra.mxu0 0.0
  %5650 = vmatprep.subr.mxu0 0.0
  %5651 = vmatpush1.msra.mxu0 0.0
  %5652 = vmatprep.subr.mxu0 0.0
  %5653 = vmatpush1.msra.mxu0 0.0
  %5654 = vmatprep.subr.mxu0 0.0
  %5655 = vmatpush1.msra.mxu0 %v5619
  %5656 = vmatprep.subr.mxu0 0.0
  %5657 = vmatpush2.msra.mxu0 0.0
  %5658 = vmatprep.subr.mxu0 0.0
  %5659 = vmatpush2.msra.mxu0 0.0
  %5660 = vmatprep.subr.mxu0 0.0
  %5661 = vmatpush2.msra.mxu0 0.0
  %5662 = vmatprep.subr.mxu0 0.0
  %5663 = vmatpush2.msra.mxu0 0.0
  %5664 = vmatprep.subr.mxu0 0.0
  %5665 = vmatpush2.msra.mxu0 0.0
  %5666 = vmatprep.subr.mxu0 0.0
  %5667 = vmatpush2.msra.mxu0 0.0
  %5668 = vmatprep.subr.mxu0 0.0
  %5669 = vmatpush2.msra.mxu0 0.0
  %5670 = vmatprep.subr.mxu0 0.0
  %5671 = vmatpush2.msra.mxu0 0.0
  %5672 = vmatprep.subr.mxu0 0.0
  %5673 = vmatpush2.msra.mxu0 0.0
  %5674 = vmatprep.subr.mxu0 0.0
  %5675 = vmatpush2.msra.mxu0 0.0
  %5676 = vmatprep.subr.mxu0 0.0
  %5677 = vmatpush2.msra.mxu0 0.0
  %5678 = vmatprep.subr.mxu0 0.0
  %5679 = vmatpush2.msra.mxu0 0.0
  %5680 = vmatprep.subr.mxu0 0.0
  %5681 = vmatpush2.msra.mxu0 0.0
  %5682 = vmatprep.subr.mxu0 0.0
  %5683 = vmatpush2.msra.mxu0 0.0
  %5684 = vmatprep.subr.mxu0 0.0
  %5685 = vmatpush2.msra.mxu0 0.0
  %5686 = vmatprep.subr.mxu0 0.0
  %5687 = vmatpush2.msra.mxu0 0.0
  %5688 = vmatprep.mubr.f32.mxu0 0.0
  %5689 = vmatmul.mubr.f32.gmra.mxu0 %v5622
  %v5690 = vpop.f32.mrf.mxu0
  %v5691 = vadd.f32 0.0, %v5690
  %v5692 = vpop.f32.mrf.mxu0
  %5693 = vdwg.mxu0
  %5694 = vrot.lane.b32.xlu0 %v855, 116
  %v5695 = vpop.permute.xlu0 %5694
  %v5698 = vsel %vm1485, %v5531, 0
  %5700 = vmatprep.subr.mxu0 0.0
  %5701 = vmatpush1.msra.mxu0 0.0
  %5702 = vmatprep.subr.mxu0 0.0
  %5703 = vmatpush1.msra.mxu0 0.0
  %5704 = vmatprep.subr.mxu0 0.0
  %5705 = vmatpush1.msra.mxu0 0.0
  %5706 = vmatprep.subr.mxu0 0.0
  %5707 = vmatpush1.msra.mxu0 0.0
  %5708 = vmatprep.subr.mxu0 0.0
  %5709 = vmatpush1.msra.mxu0 0.0
  %5710 = vmatprep.subr.mxu0 0.0
  %5711 = vmatpush1.msra.mxu0 0.0
  %5712 = vmatprep.subr.mxu0 0.0
  %5713 = vmatpush1.msra.mxu0 0.0
  %5714 = vmatprep.subr.mxu0 0.0
  %5715 = vmatpush1.msra.mxu0 0.0
  %5716 = vmatprep.subr.mxu0 0.0
  %5717 = vmatpush1.msra.mxu0 0.0
  %5718 = vmatprep.subr.mxu0 0.0
  %5719 = vmatpush1.msra.mxu0 0.0
  %5720 = vmatprep.subr.mxu0 0.0
  %5721 = vmatpush1.msra.mxu0 0.0
  %5722 = vmatprep.subr.mxu0 0.0
  %5723 = vmatpush1.msra.mxu0 0.0
  %5724 = vmatprep.subr.mxu0 0.0
  %5725 = vmatpush1.msra.mxu0 0.0
  %5726 = vmatprep.subr.mxu0 0.0
  %5727 = vmatpush1.msra.mxu0 0.0
  %5728 = vmatprep.subr.mxu0 0.0
  %5729 = vmatpush1.msra.mxu0 0.0
  %5730 = vmatprep.subr.mxu0 0.0
  %5731 = vmatpush1.msra.mxu0 %v5695
  %5732 = vmatprep.subr.mxu0 0.0
  %5733 = vmatpush2.msra.mxu0 0.0
  %5734 = vmatprep.subr.mxu0 0.0
  %5735 = vmatpush2.msra.mxu0 0.0
  %5736 = vmatprep.subr.mxu0 0.0
  %5737 = vmatpush2.msra.mxu0 0.0
  %5738 = vmatprep.subr.mxu0 0.0
  %5739 = vmatpush2.msra.mxu0 0.0
  %5740 = vmatprep.subr.mxu0 0.0
  %5741 = vmatpush2.msra.mxu0 0.0
  %5742 = vmatprep.subr.mxu0 0.0
  %5743 = vmatpush2.msra.mxu0 0.0
  %5744 = vmatprep.subr.mxu0 0.0
  %5745 = vmatpush2.msra.mxu0 0.0
  %5746 = vmatprep.subr.mxu0 0.0
  %5747 = vmatpush2.msra.mxu0 0.0
  %5748 = vmatprep.subr.mxu0 0.0
  %5749 = vmatpush2.msra.mxu0 0.0
  %5750 = vmatprep.subr.mxu0 0.0
  %5751 = vmatpush2.msra.mxu0 0.0
  %5752 = vmatprep.subr.mxu0 0.0
  %5753 = vmatpush2.msra.mxu0 0.0
  %5754 = vmatprep.subr.mxu0 0.0
  %5755 = vmatpush2.msra.mxu0 0.0
  %5756 = vmatprep.subr.mxu0 0.0
  %5757 = vmatpush2.msra.mxu0 0.0
  %5758 = vmatprep.subr.mxu0 0.0
  %5759 = vmatpush2.msra.mxu0 0.0
  %5760 = vmatprep.subr.mxu0 0.0
  %5761 = vmatpush2.msra.mxu0 0.0
  %5762 = vmatprep.subr.mxu0 0.0
  %5763 = vmatpush2.msra.mxu0 0.0
  %5764 = vmatprep.mubr.f32.mxu0 0.0
  %5765 = vmatmul.mubr.f32.gmra.mxu0 %v5698
  %v5766 = vpop.f32.mrf.mxu0
  %v5767 = vadd.f32 0.0, %v5766
  %v5768 = vpop.f32.mrf.mxu0
  %5769 = vdwg.mxu0
  %5770 = vrot.lane.b32.xlu0 %v856, 116
  %v5771 = vpop.permute.xlu0 %5770
  %v5774 = vsel %vm1485, %v5533, 0
  %5776 = vmatprep.subr.mxu0 0.0
  %5777 = vmatpush1.msra.mxu0 0.0
  %5778 = vmatprep.subr.mxu0 0.0
  %5779 = vmatpush1.msra.mxu0 0.0
  %5780 = vmatprep.subr.mxu0 0.0
  %5781 = vmatpush1.msra.mxu0 0.0
  %5782 = vmatprep.subr.mxu0 0.0
  %5783 = vmatpush1.msra.mxu0 0.0
  %5784 = vmatprep.subr.mxu0 0.0
  %5785 = vmatpush1.msra.mxu0 0.0
  %5786 = vmatprep.subr.mxu0 0.0
  %5787 = vmatpush1.msra.mxu0 0.0
  %5788 = vmatprep.subr.mxu0 0.0
  %5789 = vmatpush1.msra.mxu0 0.0
  %5790 = vmatprep.subr.mxu0 0.0
  %5791 = vmatpush1.msra.mxu0 0.0
  %5792 = vmatprep.subr.mxu0 0.0
  %5793 = vmatpush1.msra.mxu0 0.0
  %5794 = vmatprep.subr.mxu0 0.0
  %5795 = vmatpush1.msra.mxu0 0.0
  %5796 = vmatprep.subr.mxu0 0.0
  %5797 = vmatpush1.msra.mxu0 0.0
  %5798 = vmatprep.subr.mxu0 0.0
  %5799 = vmatpush1.msra.mxu0 0.0
  %5800 = vmatprep.subr.mxu0 0.0
  %5801 = vmatpush1.msra.mxu0 0.0
  %5802 = vmatprep.subr.mxu0 0.0
  %5803 = vmatpush1.msra.mxu0 0.0
  %5804 = vmatprep.subr.mxu0 0.0
  %5805 = vmatpush1.msra.mxu0 0.0
  %5806 = vmatprep.subr.mxu0 0.0
  %5807 = vmatpush1.msra.mxu0 %v5771
  %5808 = vmatprep.subr.mxu0 0.0
  %5809 = vmatpush2.msra.mxu0 0.0
  %5810 = vmatprep.subr.mxu0 0.0
  %5811 = vmatpush2.msra.mxu0 0.0
  %5812 = vmatprep.subr.mxu0 0.0
  %5813 = vmatpush2.msra.mxu0 0.0
  %5814 = vmatprep.subr.mxu0 0.0
  %5815 = vmatpush2.msra.mxu0 0.0
  %5816 = vmatprep.subr.mxu0 0.0
  %5817 = vmatpush2.msra.mxu0 0.0
  %5818 = vmatprep.subr.mxu0 0.0
  %5819 = vmatpush2.msra.mxu0 0.0
  %5820 = vmatprep.subr.mxu0 0.0
  %5821 = vmatpush2.msra.mxu0 0.0
  %5822 = vmatprep.subr.mxu0 0.0
  %5823 = vmatpush2.msra.mxu0 0.0
  %5824 = vmatprep.subr.mxu0 0.0
  %5825 = vmatpush2.msra.mxu0 0.0
  %5826 = vmatprep.subr.mxu0 0.0
  %5827 = vmatpush2.msra.mxu0 0.0
  %5828 = vmatprep.subr.mxu0 0.0
  %5829 = vmatpush2.msra.mxu0 0.0
  %5830 = vmatprep.subr.mxu0 0.0
  %5831 = vmatpush2.msra.mxu0 0.0
  %5832 = vmatprep.subr.mxu0 0.0
  %5833 = vmatpush2.msra.mxu0 0.0
  %5834 = vmatprep.subr.mxu0 0.0
  %5835 = vmatpush2.msra.mxu0 0.0
  %5836 = vmatprep.subr.mxu0 0.0
  %5837 = vmatpush2.msra.mxu0 0.0
  %5838 = vmatprep.subr.mxu0 0.0
  %5839 = vmatpush2.msra.mxu0 0.0
  %5840 = vmatprep.mubr.f32.mxu0 0.0
  %5841 = vmatmul.mubr.f32.gmra.mxu0 %v5774
  %v5842 = vpop.f32.mrf.mxu0
  %v5843 = vadd.f32 0.0, %v5842
  %v5844 = vpop.f32.mrf.mxu0
  %5845 = vdwg.mxu0
  %5846 = vrot.lane.b32.xlu0 %v857, 116
  %v5847 = vpop.permute.xlu0 %5846
  %v5850 = vsel %vm1485, %v5535, 0
  %5852 = vmatprep.subr.mxu0 0.0
  %5853 = vmatpush1.msra.mxu0 0.0
  %5854 = vmatprep.subr.mxu0 0.0
  %5855 = vmatpush1.msra.mxu0 0.0
  %5856 = vmatprep.subr.mxu0 0.0
  %5857 = vmatpush1.msra.mxu0 0.0
  %5858 = vmatprep.subr.mxu0 0.0
  %5859 = vmatpush1.msra.mxu0 0.0
  %5860 = vmatprep.subr.mxu0 0.0
  %5861 = vmatpush1.msra.mxu0 0.0
  %5862 = vmatprep.subr.mxu0 0.0
  %5863 = vmatpush1.msra.mxu0 0.0
  %5864 = vmatprep.subr.mxu0 0.0
  %5865 = vmatpush1.msra.mxu0 0.0
  %5866 = vmatprep.subr.mxu0 0.0
  %5867 = vmatpush1.msra.mxu0 0.0
  %5868 = vmatprep.subr.mxu0 0.0
  %5869 = vmatpush1.msra.mxu0 0.0
  %5870 = vmatprep.subr.mxu0 0.0
  %5871 = vmatpush1.msra.mxu0 0.0
  %5872 = vmatprep.subr.mxu0 0.0
  %5873 = vmatpush1.msra.mxu0 0.0
  %5874 = vmatprep.subr.mxu0 0.0
  %5875 = vmatpush1.msra.mxu0 0.0
  %5876 = vmatprep.subr.mxu0 0.0
  %5877 = vmatpush1.msra.mxu0 0.0
  %5878 = vmatprep.subr.mxu0 0.0
  %5879 = vmatpush1.msra.mxu0 0.0
  %5880 = vmatprep.subr.mxu0 0.0
  %5881 = vmatpush1.msra.mxu0 0.0
  %5882 = vmatprep.subr.mxu0 0.0
  %5883 = vmatpush1.msra.mxu0 %v5847
  %5884 = vmatprep.subr.mxu0 0.0
  %5885 = vmatpush2.msra.mxu0 0.0
  %5886 = vmatprep.subr.mxu0 0.0
  %5887 = vmatpush2.msra.mxu0 0.0
  %5888 = vmatprep.subr.mxu0 0.0
  %5889 = vmatpush2.msra.mxu0 0.0
  %5890 = vmatprep.subr.mxu0 0.0
  %5891 = vmatpush2.msra.mxu0 0.0
  %5892 = vmatprep.subr.mxu0 0.0
  %5893 = vmatpush2.msra.mxu0 0.0
  %5894 = vmatprep.subr.mxu0 0.0
  %5895 = vmatpush2.msra.mxu0 0.0
  %5896 = vmatprep.subr.mxu0 0.0
  %5897 = vmatpush2.msra.mxu0 0.0
  %5898 = vmatprep.subr.mxu0 0.0
  %5899 = vmatpush2.msra.mxu0 0.0
  %5900 = vmatprep.subr.mxu0 0.0
  %5901 = vmatpush2.msra.mxu0 0.0
  %5902 = vmatprep.subr.mxu0 0.0
  %5903 = vmatpush2.msra.mxu0 0.0
  %5904 = vmatprep.subr.mxu0 0.0
  %5905 = vmatpush2.msra.mxu0 0.0
  %5906 = vmatprep.subr.mxu0 0.0
  %5907 = vmatpush2.msra.mxu0 0.0
  %5908 = vmatprep.subr.mxu0 0.0
  %5909 = vmatpush2.msra.mxu0 0.0
  %5910 = vmatprep.subr.mxu0 0.0
  %5911 = vmatpush2.msra.mxu0 0.0
  %5912 = vmatprep.subr.mxu0 0.0
  %5913 = vmatpush2.msra.mxu0 0.0
  %5914 = vmatprep.subr.mxu0 0.0
  %5915 = vmatpush2.msra.mxu0 0.0
  %5916 = vmatprep.mubr.f32.mxu0 0.0
  %5917 = vmatmul.mubr.f32.gmra.mxu0 %v5850
  %v5918 = vpop.f32.mrf.mxu0
  %v5919 = vadd.f32 0.0, %v5918
  %v5920 = vpop.f32.mrf.mxu0
  %5921 = vdwg.mxu0
  %5922 = vrot.lane.b32.xlu0 %v858, 116
  %v5923 = vpop.permute.xlu0 %5922
  %v5926 = vsel %vm1485, %v5537, 0
  %5928 = vmatprep.subr.mxu0 0.0
  %5929 = vmatpush1.msra.mxu0 0.0
  %5930 = vmatprep.subr.mxu0 0.0
  %5931 = vmatpush1.msra.mxu0 0.0
  %5932 = vmatprep.subr.mxu0 0.0
  %5933 = vmatpush1.msra.mxu0 0.0
  %5934 = vmatprep.subr.mxu0 0.0
  %5935 = vmatpush1.msra.mxu0 0.0
  %5936 = vmatprep.subr.mxu0 0.0
  %5937 = vmatpush1.msra.mxu0 0.0
  %5938 = vmatprep.subr.mxu0 0.0
  %5939 = vmatpush1.msra.mxu0 0.0
  %5940 = vmatprep.subr.mxu0 0.0
  %5941 = vmatpush1.msra.mxu0 0.0
  %5942 = vmatprep.subr.mxu0 0.0
  %5943 = vmatpush1.msra.mxu0 0.0
  %5944 = vmatprep.subr.mxu0 0.0
  %5945 = vmatpush1.msra.mxu0 0.0
  %5946 = vmatprep.subr.mxu0 0.0
  %5947 = vmatpush1.msra.mxu0 0.0
  %5948 = vmatprep.subr.mxu0 0.0
  %5949 = vmatpush1.msra.mxu0 0.0
  %5950 = vmatprep.subr.mxu0 0.0
  %5951 = vmatpush1.msra.mxu0 0.0
  %5952 = vmatprep.subr.mxu0 0.0
  %5953 = vmatpush1.msra.mxu0 0.0
  %5954 = vmatprep.subr.mxu0 0.0
  %5955 = vmatpush1.msra.mxu0 0.0
  %5956 = vmatprep.subr.mxu0 0.0
  %5957 = vmatpush1.msra.mxu0 0.0
  %5958 = vmatprep.subr.mxu0 0.0
  %5959 = vmatpush1.msra.mxu0 %v5923
  %5960 = vmatprep.subr.mxu0 0.0
  %5961 = vmatpush2.msra.mxu0 0.0
  %5962 = vmatprep.subr.mxu0 0.0
  %5963 = vmatpush2.msra.mxu0 0.0
  %5964 = vmatprep.subr.mxu0 0.0
  %5965 = vmatpush2.msra.mxu0 0.0
  %5966 = vmatprep.subr.mxu0 0.0
  %5967 = vmatpush2.msra.mxu0 0.0
  %5968 = vmatprep.subr.mxu0 0.0
  %5969 = vmatpush2.msra.mxu0 0.0
  %5970 = vmatprep.subr.mxu0 0.0
  %5971 = vmatpush2.msra.mxu0 0.0
  %5972 = vmatprep.subr.mxu0 0.0
  %5973 = vmatpush2.msra.mxu0 0.0
  %5974 = vmatprep.subr.mxu0 0.0
  %5975 = vmatpush2.msra.mxu0 0.0
  %5976 = vmatprep.subr.mxu0 0.0
  %5977 = vmatpush2.msra.mxu0 0.0
  %5978 = vmatprep.subr.mxu0 0.0
  %5979 = vmatpush2.msra.mxu0 0.0
  %5980 = vmatprep.subr.mxu0 0.0
  %5981 = vmatpush2.msra.mxu0 0.0
  %5982 = vmatprep.subr.mxu0 0.0
  %5983 = vmatpush2.msra.mxu0 0.0
  %5984 = vmatprep.subr.mxu0 0.0
  %5985 = vmatpush2.msra.mxu0 0.0
  %5986 = vmatprep.subr.mxu0 0.0
  %5987 = vmatpush2.msra.mxu0 0.0
  %5988 = vmatprep.subr.mxu0 0.0
  %5989 = vmatpush2.msra.mxu0 0.0
  %5990 = vmatprep.subr.mxu0 0.0
  %5991 = vmatpush2.msra.mxu0 0.0
  %5992 = vmatprep.mubr.f32.mxu0 0.0
  %5993 = vmatmul.mubr.f32.gmra.mxu0 %v5926
  %v5994 = vpop.f32.mrf.mxu0
  %v5995 = vadd.f32 0.0, %v5994
  %v5996 = vpop.f32.mrf.mxu0
  %5997 = vdwg.mxu0
  %5998 = vrot.lane.b32.xlu0 %v859, 116
  %v5999 = vpop.permute.xlu0 %5998
  %v6002 = vsel %vm1485, %v5539, 0
  %6004 = vmatprep.subr.mxu0 0.0
  %6005 = vmatpush1.msra.mxu0 0.0
  %6006 = vmatprep.subr.mxu0 0.0
  %6007 = vmatpush1.msra.mxu0 0.0
  %6008 = vmatprep.subr.mxu0 0.0
  %6009 = vmatpush1.msra.mxu0 0.0
  %6010 = vmatprep.subr.mxu0 0.0
  %6011 = vmatpush1.msra.mxu0 0.0
  %6012 = vmatprep.subr.mxu0 0.0
  %6013 = vmatpush1.msra.mxu0 0.0
  %6014 = vmatprep.subr.mxu0 0.0
  %6015 = vmatpush1.msra.mxu0 0.0
  %6016 = vmatprep.subr.mxu0 0.0
  %6017 = vmatpush1.msra.mxu0 0.0
  %6018 = vmatprep.subr.mxu0 0.0
  %6019 = vmatpush1.msra.mxu0 0.0
  %6020 = vmatprep.subr.mxu0 0.0
  %6021 = vmatpush1.msra.mxu0 0.0
  %6022 = vmatprep.subr.mxu0 0.0
  %6023 = vmatpush1.msra.mxu0 0.0
  %6024 = vmatprep.subr.mxu0 0.0
  %6025 = vmatpush1.msra.mxu0 0.0
  %6026 = vmatprep.subr.mxu0 0.0
  %6027 = vmatpush1.msra.mxu0 0.0
  %6028 = vmatprep.subr.mxu0 0.0
  %6029 = vmatpush1.msra.mxu0 0.0
  %6030 = vmatprep.subr.mxu0 0.0
  %6031 = vmatpush1.msra.mxu0 0.0
  %6032 = vmatprep.subr.mxu0 0.0
  %6033 = vmatpush1.msra.mxu0 0.0
  %6034 = vmatprep.subr.mxu0 0.0
  %6035 = vmatpush1.msra.mxu0 %v5999
  %6036 = vmatprep.subr.mxu0 0.0
  %6037 = vmatpush2.msra.mxu0 0.0
  %6038 = vmatprep.subr.mxu0 0.0
  %6039 = vmatpush2.msra.mxu0 0.0
  %6040 = vmatprep.subr.mxu0 0.0
  %6041 = vmatpush2.msra.mxu0 0.0
  %6042 = vmatprep.subr.mxu0 0.0
  %6043 = vmatpush2.msra.mxu0 0.0
  %6044 = vmatprep.subr.mxu0 0.0
  %6045 = vmatpush2.msra.mxu0 0.0
  %6046 = vmatprep.subr.mxu0 0.0
  %6047 = vmatpush2.msra.mxu0 0.0
  %6048 = vmatprep.subr.mxu0 0.0
  %6049 = vmatpush2.msra.mxu0 0.0
  %6050 = vmatprep.subr.mxu0 0.0
  %6051 = vmatpush2.msra.mxu0 0.0
  %6052 = vmatprep.subr.mxu0 0.0
  %6053 = vmatpush2.msra.mxu0 0.0
  %6054 = vmatprep.subr.mxu0 0.0
  %6055 = vmatpush2.msra.mxu0 0.0
  %6056 = vmatprep.subr.mxu0 0.0
  %6057 = vmatpush2.msra.mxu0 0.0
  %6058 = vmatprep.subr.mxu0 0.0
  %6059 = vmatpush2.msra.mxu0 0.0
  %6060 = vmatprep.subr.mxu0 0.0
  %6061 = vmatpush2.msra.mxu0 0.0
  %6062 = vmatprep.subr.mxu0 0.0
  %6063 = vmatpush2.msra.mxu0 0.0
  %6064 = vmatprep.subr.mxu0 0.0
  %6065 = vmatpush2.msra.mxu0 0.0
  %6066 = vmatprep.subr.mxu0 0.0
  %6067 = vmatpush2.msra.mxu0 0.0
  %6068 = vmatprep.mubr.f32.mxu0 0.0
  %6069 = vmatmul.mubr.f32.gmra.mxu0 %v6002
  %v6070 = vpop.f32.mrf.mxu0
  %v6071 = vadd.f32 0.0, %v6070
  %v6072 = vpop.f32.mrf.mxu0
  %6073 = vdwg.mxu0
  %6074 = vrot.lane.b32.xlu0 %v860, 116
  %v6075 = vpop.permute.xlu0 %6074
  %v6078 = vsel %vm1485, %v5541, 0
  %6080 = vmatprep.subr.mxu0 0.0
  %6081 = vmatpush1.msra.mxu0 0.0
  %6082 = vmatprep.subr.mxu0 0.0
  %6083 = vmatpush1.msra.mxu0 0.0
  %6084 = vmatprep.subr.mxu0 0.0
  %6085 = vmatpush1.msra.mxu0 0.0
  %6086 = vmatprep.subr.mxu0 0.0
  %6087 = vmatpush1.msra.mxu0 0.0
  %6088 = vmatprep.subr.mxu0 0.0
  %6089 = vmatpush1.msra.mxu0 0.0
  %6090 = vmatprep.subr.mxu0 0.0
  %6091 = vmatpush1.msra.mxu0 0.0
  %6092 = vmatprep.subr.mxu0 0.0
  %6093 = vmatpush1.msra.mxu0 0.0
  %6094 = vmatprep.subr.mxu0 0.0
  %6095 = vmatpush1.msra.mxu0 0.0
  %6096 = vmatprep.subr.mxu0 0.0
  %6097 = vmatpush1.msra.mxu0 0.0
  %6098 = vmatprep.subr.mxu0 0.0
  %6099 = vmatpush1.msra.mxu0 0.0
  %6100 = vmatprep.subr.mxu0 0.0
  %6101 = vmatpush1.msra.mxu0 0.0
  %6102 = vmatprep.subr.mxu0 0.0
  %6103 = vmatpush1.msra.mxu0 0.0
  %6104 = vmatprep.subr.mxu0 0.0
  %6105 = vmatpush1.msra.mxu0 0.0
  %6106 = vmatprep.subr.mxu0 0.0
  %6107 = vmatpush1.msra.mxu0 0.0
  %6108 = vmatprep.subr.mxu0 0.0
  %6109 = vmatpush1.msra.mxu0 0.0
  %6110 = vmatprep.subr.mxu0 0.0
  %6111 = vmatpush1.msra.mxu0 %v6075
  %6112 = vmatprep.subr.mxu0 0.0
  %6113 = vmatpush2.msra.mxu0 0.0
  %6114 = vmatprep.subr.mxu0 0.0
  %6115 = vmatpush2.msra.mxu0 0.0
  %6116 = vmatprep.subr.mxu0 0.0
  %6117 = vmatpush2.msra.mxu0 0.0
  %6118 = vmatprep.subr.mxu0 0.0
  %6119 = vmatpush2.msra.mxu0 0.0
  %6120 = vmatprep.subr.mxu0 0.0
  %6121 = vmatpush2.msra.mxu0 0.0
  %6122 = vmatprep.subr.mxu0 0.0
  %6123 = vmatpush2.msra.mxu0 0.0
  %6124 = vmatprep.subr.mxu0 0.0
  %6125 = vmatpush2.msra.mxu0 0.0
  %6126 = vmatprep.subr.mxu0 0.0
  %6127 = vmatpush2.msra.mxu0 0.0
  %6128 = vmatprep.subr.mxu0 0.0
  %6129 = vmatpush2.msra.mxu0 0.0
  %6130 = vmatprep.subr.mxu0 0.0
  %6131 = vmatpush2.msra.mxu0 0.0
  %6132 = vmatprep.subr.mxu0 0.0
  %6133 = vmatpush2.msra.mxu0 0.0
  %6134 = vmatprep.subr.mxu0 0.0
  %6135 = vmatpush2.msra.mxu0 0.0
  %6136 = vmatprep.subr.mxu0 0.0
  %6137 = vmatpush2.msra.mxu0 0.0
  %6138 = vmatprep.subr.mxu0 0.0
  %6139 = vmatpush2.msra.mxu0 0.0
  %6140 = vmatprep.subr.mxu0 0.0
  %6141 = vmatpush2.msra.mxu0 0.0
  %6142 = vmatprep.subr.mxu0 0.0
  %6143 = vmatpush2.msra.mxu0 0.0
  %6144 = vmatprep.mubr.f32.mxu0 0.0
  %6145 = vmatmul.mubr.f32.gmra.mxu0 %v6078
  %v6146 = vpop.f32.mrf.mxu0
  %v6147 = vadd.f32 0.0, %v6146
  %v6148 = vpop.f32.mrf.mxu0
  %6149 = vdwg.mxu0
  %6158 = vrot.lane.b32.xlu0 %v2952, 4
  %v6159 = vpop.permute.xlu0 %6158
  %6160 = vrot.lane.b32.xlu0 %v3029, 4
  %v6161 = vpop.permute.xlu0 %6160
  %6162 = vrot.lane.b32.xlu0 %v3106, 4
  %v6163 = vpop.permute.xlu0 %6162
  %6164 = vrot.lane.b32.xlu0 %v3183, 4
  %v6165 = vpop.permute.xlu0 %6164
  %6166 = vrot.lane.b32.xlu0 %v3260, 4
  %v6167 = vpop.permute.xlu0 %6166
  %6168 = vrot.lane.b32.xlu0 %v3337, 4
  %v6169 = vpop.permute.xlu0 %6168
  %6170 = vrot.lane.b32.xlu0 %v3414, 4
  %v6171 = vpop.permute.xlu0 %6170
  %6172 = vrot.lane.b32.xlu0 %v3491, 4
  %v6173 = vpop.permute.xlu0 %6172
  %6190 = vrot.lane.b32.xlu0 %v4287, 8
  %v6191 = vpop.permute.xlu0 %6190
  %6192 = vrot.lane.b32.xlu0 %v4363, 8
  %v6193 = vpop.permute.xlu0 %6192
  %6194 = vrot.lane.b32.xlu0 %v4439, 8
  %v6195 = vpop.permute.xlu0 %6194
  %6196 = vrot.lane.b32.xlu0 %v4515, 8
  %v6197 = vpop.permute.xlu0 %6196
  %6198 = vrot.lane.b32.xlu0 %v4591, 8
  %v6199 = vpop.permute.xlu0 %6198
  %6200 = vrot.lane.b32.xlu0 %v4667, 8
  %v6201 = vpop.permute.xlu0 %6200
  %6202 = vrot.lane.b32.xlu0 %v4743, 8
  %v6203 = vpop.permute.xlu0 %6202
  %6204 = vrot.lane.b32.xlu0 %v4819, 8
  %v6205 = vpop.permute.xlu0 %6204
  %6222 = vrot.lane.b32.xlu0 %v5615, 12
  %v6223 = vpop.permute.xlu0 %6222
  %6224 = vrot.lane.b32.xlu0 %v5691, 12
  %v6225 = vpop.permute.xlu0 %6224
  %6226 = vrot.lane.b32.xlu0 %v5767, 12
  %v6227 = vpop.permute.xlu0 %6226
  %6228 = vrot.lane.b32.xlu0 %v5843, 12
  %v6229 = vpop.permute.xlu0 %6228
  %6230 = vrot.lane.b32.xlu0 %v5919, 12
  %v6231 = vpop.permute.xlu0 %6230
  %6232 = vrot.lane.b32.xlu0 %v5995, 12
  %v6233 = vpop.permute.xlu0 %6232
  %6234 = vrot.lane.b32.xlu0 %v6071, 12
  %v6235 = vpop.permute.xlu0 %6234
  %6236 = vrot.lane.b32.xlu0 %v6147, 12
  %v6237 = vpop.permute.xlu0 %6236
  %v6246 = vsel %vm866, %v1644, %v6159
  %v6247 = vsel %vm866, %v1717, %v6161
  %v6248 = vsel %vm866, %v1790, %v6163
  %v6249 = vsel %vm866, %v1863, %v6165
  %v6250 = vsel %vm866, %v1936, %v6167
  %v6251 = vsel %vm866, %v2009, %v6169
  %v6252 = vsel %vm866, %v2082, %v6171
  %v6253 = vsel %vm866, %v2155, %v6173
  %v6254 = vsel %vm1485, %v6246, %v6191
  %v6255 = vsel %vm1485, %v6247, %v6193
  %v6256 = vsel %vm1485, %v6248, %v6195
  %v6257 = vsel %vm1485, %v6249, %v6197
  %v6258 = vsel %vm1485, %v6250, %v6199
  %v6259 = vsel %vm1485, %v6251, %v6201
  %v6260 = vsel %vm1485, %v6252, %v6203
  %v6261 = vsel %vm1485, %v6253, %v6205
  %vm6262 = vcmask 97280
  %v6263 = vsel %vm6262, %v6254, %v6223
  %v6264 = vsel %vm6262, %v6255, %v6225
  %v6265 = vsel %vm6262, %v6256, %v6227
  %v6266 = vsel %vm6262, %v6257, %v6229
  %v6267 = vsel %vm6262, %v6258, %v6231
  %v6268 = vsel %vm6262, %v6259, %v6233
  %v6269 = vsel %vm6262, %v6260, %v6235
  %v6270 = vsel %vm6262, %v6261, %v6237
  %v6271 = vld [vmem:[%s6] sm:$0xff]
  %v6272 = vld [vmem:[%s6 + $0x8] sm:$0xff]
  %v6274 = vsel %vm52, %v6263, 0
  %v6277 = vsel %vm52, %v6264, 0
  %v6280 = vsel %vm52, %v6265, 0
  %v6283 = vsel %vm52, %v6266, 0
  %v6286 = vsel %vm52, %v6267, 0
  %v6289 = vsel %vm52, %v6268, 0
  %v6292 = vsel %vm52, %v6269, 0
  %v6295 = vsel %vm52, %v6270, 0
  %6297 = vmatprep.subr.mxu0 0.0
  %6298 = vmatpush1.msra.mxu0 0.0
  %6299 = vmatprep.subr.mxu0 0.0
  %6300 = vmatpush1.msra.mxu0 0.0
  %6301 = vmatprep.subr.mxu0 0.0
  %6302 = vmatpush1.msra.mxu0 0.0
  %6303 = vmatprep.subr.mxu0 0.0
  %6304 = vmatpush1.msra.mxu0 0.0
  %6305 = vmatprep.subr.mxu0 0.0
  %6306 = vmatpush1.msra.mxu0 0.0
  %6307 = vmatprep.subr.mxu0 0.0
  %6308 = vmatpush1.msra.mxu0 0.0
  %6309 = vmatprep.subr.mxu0 0.0
  %6310 = vmatpush1.msra.mxu0 0.0
  %6311 = vmatprep.subr.mxu0 0.0
  %6312 = vmatpush1.msra.mxu0 0.0
  %6313 = vmatprep.subr.mxu0 0.0
  %6314 = vmatpush1.msra.mxu0 0.0
  %6315 = vmatprep.subr.mxu0 0.0
  %6316 = vmatpush1.msra.mxu0 0.0
  %6317 = vmatprep.subr.mxu0 0.0
  %6318 = vmatpush1.msra.mxu0 0.0
  %6319 = vmatprep.subr.mxu0 0.0
  %6320 = vmatpush1.msra.mxu0 0.0
  %6321 = vmatprep.subr.mxu0 0.0
  %6322 = vmatpush1.msra.mxu0 0.0
  %6323 = vmatprep.subr.mxu0 0.0
  %6324 = vmatpush1.msra.mxu0 0.0
  %6325 = vmatprep.subr.mxu0 0.0
  %6326 = vmatpush1.msra.mxu0 %v6272
  %6327 = vmatprep.subr.mxu0 0.0
  %6328 = vmatpush1.msra.mxu0 %v6271
  %6329 = vmatprep.subr.mxu0 0.0
  %6330 = vmatpush2.msra.mxu0 0.0
  %6331 = vmatprep.subr.mxu0 0.0
  %6332 = vmatpush2.msra.mxu0 0.0
  %6333 = vmatprep.subr.mxu0 0.0
  %6334 = vmatpush2.msra.mxu0 0.0
  %6335 = vmatprep.subr.mxu0 0.0
  %6336 = vmatpush2.msra.mxu0 0.0
  %6337 = vmatprep.subr.mxu0 0.0
  %6338 = vmatpush2.msra.mxu0 0.0
  %6339 = vmatprep.subr.mxu0 0.0
  %6340 = vmatpush2.msra.mxu0 0.0
  %6341 = vmatprep.subr.mxu0 0.0
  %6342 = vmatpush2.msra.mxu0 0.0
  %6343 = vmatprep.subr.mxu0 0.0
  %6344 = vmatpush2.msra.mxu0 0.0
  %6345 = vmatprep.subr.mxu0 0.0
  %6346 = vmatpush2.msra.mxu0 0.0
  %6347 = vmatprep.subr.mxu0 0.0
  %6348 = vmatpush2.msra.mxu0 0.0
  %6349 = vmatprep.subr.mxu0 0.0
  %6350 = vmatpush2.msra.mxu0 0.0
  %6351 = vmatprep.subr.mxu0 0.0
  %6352 = vmatpush2.msra.mxu0 0.0
  %6353 = vmatprep.subr.mxu0 0.0
  %6354 = vmatpush2.msra.mxu0 0.0
  %6355 = vmatprep.subr.mxu0 0.0
  %6356 = vmatpush2.msra.mxu0 0.0
  %6357 = vmatprep.subr.mxu0 0.0
  %6358 = vmatpush2.msra.mxu0 0.0
  %6359 = vmatprep.subr.mxu0 0.0
  %6360 = vmatpush2.msra.mxu0 0.0
  %6361 = vmatprep.mubr.f32.mxu0 0.0
  %6362 = vmatmul.mubr.f32.gmra.mxu0 %v6274
  %v6363 = vpop.f32.mrf.mxu0
  %v6364 = vadd.f32 0.0, %v6363
  %v6365 = vpop.f32.mrf.mxu0
  %6366 = vmatprep.mubr.f32.mxu0 0.0
  %6367 = vmatmul.mubr.f32.gmra.mxu0 %v6277
  %v6368 = vpop.f32.mrf.mxu0
  %v6369 = vadd.f32 0.0, %v6368
  %v6370 = vpop.f32.mrf.mxu0
  %6371 = vmatprep.mubr.f32.mxu0 0.0
  %6372 = vmatmul.mubr.f32.gmra.mxu0 %v6280
  %v6373 = vpop.f32.mrf.mxu0
  %v6374 = vadd.f32 0.0, %v6373
  %v6375 = vpop.f32.mrf.mxu0
  %6376 = vmatprep.mubr.f32.mxu0 0.0
  %6377 = vmatmul.mubr.f32.gmra.mxu0 %v6283
  %v6378 = vpop.f32.mrf.mxu0
  %v6379 = vadd.f32 0.0, %v6378
  %v6380 = vpop.f32.mrf.mxu0
  %6381 = vmatprep.mubr.f32.mxu0 0.0
  %6382 = vmatmul.mubr.f32.gmra.mxu0 %v6286
  %v6383 = vpop.f32.mrf.mxu0
  %v6384 = vadd.f32 0.0, %v6383
  %v6385 = vpop.f32.mrf.mxu0
  %6386 = vmatprep.mubr.f32.mxu0 0.0
  %6387 = vmatmul.mubr.f32.gmra.mxu0 %v6289
  %v6388 = vpop.f32.mrf.mxu0
  %v6389 = vadd.f32 0.0, %v6388
  %v6390 = vpop.f32.mrf.mxu0
  %6391 = vmatprep.mubr.f32.mxu0 0.0
  %6392 = vmatmul.mubr.f32.gmra.mxu0 %v6292
  %v6393 = vpop.f32.mrf.mxu0
  %v6394 = vadd.f32 0.0, %v6393
  %v6395 = vpop.f32.mrf.mxu0
  %6396 = vmatprep.mubr.f32.mxu0 0.0
  %6397 = vmatmul.mubr.f32.gmra.mxu0 %v6295
  %v6398 = vpop.f32.mrf.mxu0
  %v6399 = vadd.f32 0.0, %v6398
  %v6400 = vpop.f32.mrf.mxu0
  %6401 = vdwg.mxu0
  %v6402 = vld [vmem:[%s7] sm:$0x1]
  %v6404 = vlaneseq
  %v6405 = vshrl.u32 %v6404, 7
  %v6406 = vsub.s32 0, %v6405
  %v6407 = vrot.slane %v6402, %v6406
  %v6409 = vmul.f32 %v6364, %v6407
  %v6410 = vmul.f32 %v6369, %v6407
  %v6411 = vmul.f32 %v6374, %v6407
  %v6412 = vmul.f32 %v6379, %v6407
  %v6413 = vmul.f32 %v6384, %v6407
  %v6414 = vmul.f32 %v6389, %v6407
  %v6415 = vmul.f32 %v6394, %v6407
  %v6416 = vmul.f32 %v6399, %v6407
  %v6417 = vld [vmem:[%s8] sm:$0x1]
  %v6419 = vlaneseq
  %v6420 = vshrl.u32 %v6419, 7
  %v6421 = vsub.s32 0, %v6420
  %v6422 = vrot.slane %v6417, %v6421
  %v6424 = vadd.f32 %v6409, %v6422
  %v6425 = vadd.f32 %v6410, %v6422
  %v6426 = vadd.f32 %v6411, %v6422
  %v6427 = vadd.f32 %v6412, %v6422
  %v6428 = vadd.f32 %v6413, %v6422
  %v6429 = vadd.f32 %v6414, %v6422
  %v6430 = vadd.f32 %v6415, %v6422
  %v6431 = vadd.f32 %v6416, %v6422
  %v6432 = vmax.f32 %v6424, 0.0
  %v6433 = vmax.f32 %v6425, 0.0
  %v6434 = vmax.f32 %v6426, 0.0
  %v6435 = vmax.f32 %v6427, 0.0
  %v6436 = vmax.f32 %v6428, 0.0
  %v6437 = vmax.f32 %v6429, 0.0
  %v6438 = vmax.f32 %v6430, 0.0
  %v6439 = vmax.f32 %v6431, 0.0
  %6440 = vst.msk [vmem:[%s9] sm:$0xff] %vm52, %v6432
  %6441 = vst.msk [vmem:[%s9 + $0x8] sm:$0xff] %vm52, %v6433
  %6442 = vst.msk [vmem:[%s9 + $0x10] sm:$0xff] %vm52, %v6434
  %6443 = vst.msk [vmem:[%s9 + $0x18] sm:$0xff] %vm52, %v6435
  %6444 = vst.msk [vmem:[%s9 + $0x20] sm:$0xff] %vm52, %v6436
  %6445 = vst.msk [vmem:[%s9 + $0x28] sm:$0xff] %vm52, %v6437
  %6446 = vst.msk [vmem:[%s9 + $0x30] sm:$0xff] %vm52, %v6438
  %6447 = vst.msk [vmem:[%s9 + $0x38] sm:$0xff] %vm52, %v6439
  // Predicated region
  $region38: #{temporal_attention.1} parent=0 // pred_check
    _
  $region39: #{temporal_attention.1} parent=0 // pred_check_branch
    %6449 = sbr.rel (0) target = $region41
  $region40: #{temporal_attention.1} parent=0 // pred_region
    _
  $region41: #{temporal_attention.1} parent=0 // pred_fallthru
    _
  // Predicated region
  $region42: #{temporal_attention.1} parent=0 // pred_check
    _
  $region43: #{temporal_attention.1} parent=0 // pred_check_branch
    %6451 = sbr.rel (0) target = $region45
  $region44: #{temporal_attention.1} parent=0 // pred_region
    _
  $region45: #{temporal_attention.1} parent=0 // pred_fallthru
    _

</llo_original>
